<compile_context>
chip_gen: v7x
topology: tpu7x:2x2x1
jax: 0.10.0
libtpu: 0.0.40
codegen_flags: <defaults>
</compile_context>

<pallas_src>
import jax
import jax.numpy as jnp
from jax import lax
from jax.experimental import pallas as pl
from jax.experimental.pallas import tpu as pltpu

_BN_EPS = 1e-5


def _round_up(n, m):
    return ((n + m - 1) // m) * m


def _pick_batch_block(b, target=8):
    for d in range(min(b, target), 0, -1):
        if b % d == 0:
            return d
    return 1


# ---------------------------------------------------------------------------
# Fused 3x3 same-conv + BatchNorm(eval) + ReLU + 2x2/2 maxpool.
# One bf16 matmul per image: acc[c, pix] = W[c, K] @ S[K, pix].
# Pixel (lane) axis is ordered [pw, ph, ho, wo] so the pool is a max over the
# four contiguous lane quarters.  Output is lane-dense (Cout, Ho*Wo) bf16.
# ---------------------------------------------------------------------------
def _conv_bn_relu_pool_kernel(s_ref, w_ref, scale_ref, bias_ref, o_ref):
    nb, _, npix4 = s_ref.shape
    howo = npix4 // 4
    w = w_ref[...]                          # (Cout, Kp)  bf16
    scale = scale_ref[...]                  # (Cout, 1)   f32
    bias = bias_ref[...]                    # (Cout, 1)   f32
    for i in range(nb):                     # small static batch block
        acc = jnp.dot(w, s_ref[i], preferred_element_type=jnp.float32)
        y = jnp.maximum(acc * scale + bias, 0.0)          # (Cout, 4*Ho*Wo) f32
        pooled = jnp.maximum(
            jnp.maximum(y[:, 0 * howo:1 * howo], y[:, 1 * howo:2 * howo]),
            jnp.maximum(y[:, 2 * howo:3 * howo], y[:, 3 * howo:4 * howo]))
        o_ref[i] = pooled.astype(o_ref.dtype)


def conv_bn_relu_pool(slab, w, scale, bias, *, out_dtype=jnp.bfloat16):
    B, Kp, npix4 = slab.shape
    Cout = w.shape[0]
    howo = npix4 // 4
    nb = _pick_batch_block(B)
    return pl.pallas_call(
        _conv_bn_relu_pool_kernel,
        out_shape=jax.ShapeDtypeStruct((B, Cout, howo), out_dtype),
        grid_spec=pltpu.PrefetchScalarGridSpec(
            num_scalar_prefetch=0,
            grid=(B // nb,),
            in_specs=[
                pl.BlockSpec((nb, Kp, npix4), lambda b: (b, 0, 0)),
                pl.BlockSpec((Cout, Kp), lambda b: (0, 0)),
                pl.BlockSpec((Cout, 1), lambda b: (0, 0)),
                pl.BlockSpec((Cout, 1), lambda b: (0, 0)),
            ],
            out_specs=pl.BlockSpec((nb, Cout, howo), lambda b: (b, 0, 0)),
        ),
        compiler_params=pltpu.CompilerParams(dimension_semantics=("parallel",)),
    )(slab, w, scale, bias)


# ---------------------------------------------------------------------------
# Fused fc1 + ReLU + fc2 head.  bf16 fc1 weights, f32 accumulation, tk=2048.
# Leading grid axis splits the 128 hidden units into two halves ("parallel"):
# on v7x each TensorCore streams half of fc1_w; the partial (B, 4) outputs
# are summed (and b2 added) in XLA.
# ---------------------------------------------------------------------------
def _mlp_kernel(x_ref, w1_ref, b1_ref, w2_ref, o_ref, acc_ref):
    k = pl.program_id(1)

    @pl.when(k == 0)
    def _():
        acc_ref[...] = jnp.zeros_like(acc_ref)

    # x and w1 are both already bf16 -> no cast inside the K loop.
    acc_ref[...] += jnp.dot(x_ref[...], w1_ref[0],
                            preferred_element_type=jnp.float32)

    @pl.when(k == pl.num_programs(1) - 1)
    def _():
        h = jnp.maximum(acc_ref[...] + b1_ref[0], 0.0)     # (B, 64) f32
        o_ref[0] = jnp.dot(h, w2_ref[0], preferred_element_type=jnp.float32)


def mlp_head(x, w1, b1, w2, b2, *, tk=2048):
    # TODO(synk): fc1_w could additionally be int8 (v5e/v6e) / fp8 (v7x)
    # quantized, or prefetched cross-call behind the conv stage; kept bf16.
    B, K = x.shape
    nh, _, hh = w1.shape            # (2, K, 64)
    N = w2.shape[-1]
    tk = min(tk, K)
    assert K % tk == 0, "head contraction dim must be divisible by tk"
    partial = pl.pallas_call(
        _mlp_kernel,
        out_shape=jax.ShapeDtypeStruct((nh, B, N), jnp.float32),
        grid_spec=pltpu.PrefetchScalarGridSpec(
            num_scalar_prefetch=0,
            grid=(nh, K // tk),
            in_specs=[
                pl.BlockSpec((B, tk), lambda j, k: (0, k)),
                pl.BlockSpec((1, tk, hh), lambda j, k: (j, k, 0)),
                pl.BlockSpec((1, 1, hh), lambda j, k: (j, 0, 0)),
                pl.BlockSpec((1, hh, N), lambda j, k: (j, 0, 0)),
            ],
            out_specs=pl.BlockSpec((1, B, N), lambda j, k: (j, 0, 0)),
            scratch_shapes=[pltpu.VMEM((B, hh), jnp.float32)],
        ),
        compiler_params=pltpu.CompilerParams(
            dimension_semantics=("parallel", "arbitrary")),
    )(x, w1, b1, w2)
    return partial.sum(axis=0) + b2[None, :]


# ---------------------------------------------------------------------------
# XLA-side data formatting (cheap, fuses into one pass over tiny activations).
# ---------------------------------------------------------------------------
def _im2col_pool_slab(x_chw, k_pad):
    """(B, C, H, W) -> (B, Kp, 4*Ho*Wo) bf16 im2col slab for 3x3 SAME conv +
    2x2/2 pool.  K index = (ky*3+kx)*C + c;  pixel (lane) index =
    ((pw*2+ph)*Ho + ho)*Wo + wo, so the kernel pools by maxing the four
    contiguous lane quarters."""
    B, C, H, W = x_chw.shape
    Ho, Wo = H // 2, W // 2
    xp = jnp.pad(x_chw, ((0, 0), (0, 0), (1, 1), (1, 1)))
    taps = [xp[:, :, ky:ky + H, kx:kx + W] for ky in range(3) for kx in range(3)]
    s = jnp.concatenate(taps, axis=1)                       # (B, 9C, H, W)
    s = s.reshape(B, 9 * C, Ho, 2, Wo, 2)                   # (.., ho, ph, wo, pw)
    s = s.transpose(0, 1, 5, 3, 2, 4).reshape(B, 9 * C, 4 * Ho * Wo)
    if k_pad > 9 * C:
        s = jnp.pad(s, ((0, 0), (0, k_pad - 9 * C), (0, 0)))
    return s.astype(jnp.bfloat16)


def _fold_conv_weight(w_hwio):
    """(3, 3, Cin, Cout) HWIO -> (Cout, Kp) bf16 with K = (ky*3+kx)*Cin + ci,
    K zero-padded to a multiple of 16 (bf16 sublane packing)."""
    kh, kw, cin, cout = w_hwio.shape
    k = kh * kw * cin
    kp = _round_up(k, 16)
    wt = w_hwio.reshape(k, cout).T
    if kp > k:
        wt = jnp.pad(wt, ((0, 0), (0, kp - k)))
    return wt.astype(jnp.bfloat16)


# ---------------------------------------------------------------------------
# Parameter preparation (done ONCE, outside the per-step jit).
# ---------------------------------------------------------------------------
def prepare_params(p):
    # TODO(synk): eval-mode BatchNorm only - the fold uses the running
    # statistics; train-mode batch statistics are not computed in-kernel.
    def bn_fold(g, b, mean, var, conv_b):
        scale = (g / jnp.sqrt(var + _BN_EPS)).astype(jnp.float32)
        bias = (b + scale * (conv_b - mean)).astype(jnp.float32)
        return scale.reshape(-1, 1), bias.reshape(-1, 1)

    s1, bb1 = bn_fold(p["bn1_g"], p["bn1_b"], p["bn1_mean"], p["bn1_var"], p["conv1_b"])
    s2, bb2 = bn_fold(p["bn2_g"], p["bn2_b"], p["bn2_mean"], p["bn2_var"], p["conv2_b"])

    K, H = p["fc1_w"].shape                      # (16384, 128)
    half = H // 2
    fc1_w = p["fc1_w"].reshape(K, 2, half).transpose(1, 0, 2).astype(jnp.bfloat16)
    fc1_b = p["fc1_b"].reshape(2, 1, half).astype(jnp.float32)
    fc2_w = p["fc2_w"].reshape(2, half, -1).astype(jnp.float32)

    return {
        "conv1_w": _fold_conv_weight(p["conv1_w"]), "conv1_s": s1, "conv1_b": bb1,
        "conv2_w": _fold_conv_weight(p["conv2_w"]), "conv2_s": s2, "conv2_b": bb2,
        "fc1_w": fc1_w, "fc1_b": fc1_b,
        "fc2_w": fc2_w, "fc2_b": p["fc2_b"].astype(jnp.float32),
    }


# ---------------------------------------------------------------------------
# Full forward.
# ---------------------------------------------------------------------------
def cnn_forward(x_nchw, kp):
    B, _, H, W = x_nchw.shape
    # conv1 + bn1 + relu + pool (input is already channel-major / NCHW).
    s1 = _im2col_pool_slab(x_nchw, kp["conv1_w"].shape[1])          # (B, 16, 4096)
    h1 = conv_bn_relu_pool(s1, kp["conv1_w"], kp["conv1_s"], kp["conv1_b"])
    h1 = h1.reshape(B, h1.shape[1], H // 2, W // 2)                 # (B, 32, 32, 32) CHW

    # conv2 + bn2 + relu + pool.
    # TODO(synk): conv1->pool->conv2->pool could be fused into one kernel to
    # drop this XLA-built slab's HBM round-trip (~0.6 MB/image bf16).
    s2 = _im2col_pool_slab(h1, kp["conv2_w"].shape[1])              # (B, 288, 1024)
    h2 = conv_bn_relu_pool(s2, kp["conv2_w"], kp["conv2_s"], kp["conv2_b"])

    # Channel-major (Cout, Ho*Wo) flattens in exactly PyTorch's NCHW .view order.
    flat = h2.reshape(B, -1)                                        # (B, 16384) bf16
    return mlp_head(flat, kp["fc1_w"], kp["fc1_b"], kp["fc2_w"], kp["fc2_b"])


# ---------------------------------------------------------------------------
# Pure-JAX reference (PyTorch forward semantics, eval-mode BN, f32).
# ---------------------------------------------------------------------------
def ref_forward(x, p):
    def conv(z, w, b):
        out = lax.conv_general_dilated(
            z, w, (1, 1), "SAME",
            dimension_numbers=("NCHW", "HWIO", "NCHW"),
            precision=lax.Precision.HIGHEST)
        return out + b[None, :, None, None]

    def bn(z, g, be, mean, var):
        return (z - mean[None, :, None, None]) \
            / jnp.sqrt(var[None, :, None, None] + _BN_EPS) \
            * g[None, :, None, None] + be[None, :, None, None]

    def pool(z):
        return lax.reduce_window(z, -jnp.inf, lax.max,
                                 (1, 1, 2, 2), (1, 1, 2, 2), "VALID")

    h = pool(jnp.maximum(bn(conv(x, p["conv1_w"], p["conv1_b"]),
                            p["bn1_g"], p["bn1_b"], p["bn1_mean"], p["bn1_var"]), 0.0))
    h = pool(jnp.maximum(bn(conv(h, p["conv2_w"], p["conv2_b"]),
                            p["bn2_g"], p["bn2_b"], p["bn2_mean"], p["bn2_var"]), 0.0))
    flat = h.reshape(h.shape[0], -1)
    h = jnp.maximum(flat @ p["fc1_w"] + p["fc1_b"], 0.0)
    return h @ p["fc2_w"] + p["fc2_b"]


if __name__ == "__main__":
    key = jax.random.PRNGKey(0)
    ks = jax.random.split(key, 13)
    B = 2
    # fc1 expects 64*16*16 features -> input spatial size is 64x64, 1 channel.
    x = jax.random.normal(ks[0], (B, 1, 64, 64), jnp.float32)

    params = {
        "conv1_w": 0.10 * jax.random.normal(ks[1], (3, 3, 1, 32), jnp.float32),
        "conv1_b": 0.10 * jax.random.normal(ks[2], (32,), jnp.float32),
        "bn1_g": 1.0 + 0.1 * jax.random.normal(ks[3], (32,), jnp.float32),
        "bn1_b": 0.10 * jax.random.normal(ks[4], (32,), jnp.float32),
        "bn1_mean": jnp.zeros((32,), jnp.float32),
        "bn1_var": jnp.ones((32,), jnp.float32),
        "conv2_w": 0.05 * jax.random.normal(ks[5], (3, 3, 32, 64), jnp.float32),
        "conv2_b": 0.10 * jax.random.normal(ks[6], (64,), jnp.float32),
        "bn2_g": 1.0 + 0.1 * jax.random.normal(ks[7], (64,), jnp.float32),
        "bn2_b": 0.10 * jax.random.normal(ks[8], (64,), jnp.float32),
        "bn2_mean": jnp.zeros((64,), jnp.float32),
        "bn2_var": jnp.ones((64,), jnp.float32),
        "fc1_w": 0.01 * jax.random.normal(ks[9], (64 * 16 * 16, 128), jnp.float32),
        "fc1_b": 0.10 * jax.random.normal(ks[10], (128,), jnp.float32),
        "fc2_w": 0.10 * jax.random.normal(ks[11], (128, 4), jnp.float32),
        "fc2_b": 0.10 * jax.random.normal(ks[12], (4,), jnp.float32),
    }

    kernel_params = prepare_params(params)       # one-time weight prep (outside jit)

    out = jax.jit(cnn_forward)(x, kernel_params)
    jax.block_until_ready(out)
    assert out.shape == (B, 4)

    ref = ref_forward(x, params)
    err = float(jnp.max(jnp.abs(out - ref)))
    assert err < 2e-2, f"mismatch vs reference: max abs err {err}"

    print("KERNEL_OK")
</pallas_src>

<mosaic_0001>
module attributes {stable_mosaic.version = 11 : i64} {
  func.func @_conv_bn_relu_pool_kernel(%arg0: i32, %arg1: memref<2x16x4096xbf16, #tpu.memory_space<vmem>>, %arg2: memref<32x16xbf16, #tpu.memory_space<vmem>>, %arg3: memref<32x1xf32, #tpu.memory_space<vmem>>, %arg4: memref<32x1xf32, #tpu.memory_space<vmem>>, %arg5: memref<2x32x1024xbf16, #tpu.memory_space<vmem>>) attributes {dimension_semantics = [#tpu.dimension_semantics<parallel>], iteration_bounds = array<i64: 1>, scalar_prefetch = 0 : i64, scratch_operands = 0 : i64, tpu.core_type = #tpu.core_type<tc>, window_params = [{transform_indices = @transform_0, window_bounds = array<i64: 2, 16, 4096>}, {pipeline_mode = #tpu.pipeline_mode<synchronous>, transform_indices = @transform_1, window_bounds = array<i64: 32, 16>}, {pipeline_mode = #tpu.pipeline_mode<synchronous>, transform_indices = @transform_2, window_bounds = array<i64: 32, 1>}, {pipeline_mode = #tpu.pipeline_mode<synchronous>, transform_indices = @transform_3, window_bounds = array<i64: 32, 1>}, {transform_indices = @transform_4, window_bounds = array<i64: 2, 32, 1024>}]} {
    %c0 = arith.constant 0 : index
    %c0_0 = arith.constant 0 : index
    %0 = vector.load %arg2[%c0, %c0_0] : memref<32x16xbf16, #tpu.memory_space<vmem>>, vector<32x16xbf16>
    %c0_1 = arith.constant 0 : index
    %c0_2 = arith.constant 0 : index
    %1 = vector.load %arg3[%c0_1, %c0_2] : memref<32x1xf32, #tpu.memory_space<vmem>>, vector<32x1xf32>
    %c0_3 = arith.constant 0 : index
    %c0_4 = arith.constant 0 : index
    %2 = vector.load %arg4[%c0_3, %c0_4] : memref<32x1xf32, #tpu.memory_space<vmem>>, vector<32x1xf32>
    %c0_5 = arith.constant 0 : index
    %c0_6 = arith.constant 0 : index
    %c0_7 = arith.constant 0 : index
    %3 = vector.load %arg1[%c0_5, %c0_6, %c0_7] : memref<2x16x4096xbf16, #tpu.memory_space<vmem>>, vector<1x16x4096xbf16>
    %4 = vector.shape_cast %3 : vector<1x16x4096xbf16> to vector<16x4096xbf16>
    %cst = arith.constant dense<0.000000e+00> : vector<32x4096xf32>
    %5 = tpu.matmul %0, %4, %cst {dimension_numbers = #tpu.dot_dimension_numbers<[1], [0], [0], [1], [0, 0, 1, 1], [], []>} : vector<32x16xbf16>, vector<16x4096xbf16>, vector<32x4096xf32> -> vector<32x4096xf32>
    %6 = vector.broadcast %1 : vector<32x1xf32> to vector<32x4096xf32>
    %7 = arith.mulf %5, %6 : vector<32x4096xf32>
    %8 = vector.broadcast %2 : vector<32x1xf32> to vector<32x4096xf32>
    %9 = arith.addf %7, %8 : vector<32x4096xf32>
    %cst_8 = arith.constant 0.000000e+00 : f32
    %10 = vector.broadcast %cst_8 : f32 to vector<32x4096xf32>
    %11 = arith.maximumf %9, %10 : vector<32x4096xf32>
    %12 = vector.extract_strided_slice %11 {offsets = [0, 0], sizes = [32, 1024], strides = [1, 1]} : vector<32x4096xf32> to vector<32x1024xf32>
    %13 = vector.extract_strided_slice %11 {offsets = [0, 1024], sizes = [32, 1024], strides = [1, 1]} : vector<32x4096xf32> to vector<32x1024xf32>
    %14 = arith.maximumf %12, %13 : vector<32x1024xf32>
    %15 = vector.extract_strided_slice %11 {offsets = [0, 2048], sizes = [32, 1024], strides = [1, 1]} : vector<32x4096xf32> to vector<32x1024xf32>
    %16 = vector.extract_strided_slice %11 {offsets = [0, 3072], sizes = [32, 1024], strides = [1, 1]} : vector<32x4096xf32> to vector<32x1024xf32>
    %17 = arith.maximumf %15, %16 : vector<32x1024xf32>
    %18 = arith.maximumf %14, %17 : vector<32x1024xf32>
    %19 = arith.truncf %18 : vector<32x1024xf32> to vector<32x1024xbf16>
    %c0_9 = arith.constant 0 : index
    %c0_10 = arith.constant 0 : index
    %c0_11 = arith.constant 0 : index
    %20 = vector.load %arg5[%c0_9, %c0_10, %c0_11] : memref<2x32x1024xbf16, #tpu.memory_space<vmem>>, vector<1x32x1024xbf16>
    %21 = vector.shape_cast %20 : vector<1x32x1024xbf16> to vector<32x1024xbf16>
    %22 = vector.shape_cast %19 : vector<32x1024xbf16> to vector<1x32x1024xbf16>
    tpu.vector_store %arg5[%c0_9, %c0_10, %c0_11], %22 {strides = array<i32>} : memref<2x32x1024xbf16, #tpu.memory_space<vmem>>, vector<1x32x1024xbf16>,
    %c1 = arith.constant 1 : index
    %c0_12 = arith.constant 0 : index
    %c0_13 = arith.constant 0 : index
    %23 = vector.load %arg1[%c1, %c0_12, %c0_13] : memref<2x16x4096xbf16, #tpu.memory_space<vmem>>, vector<1x16x4096xbf16>
    %24 = vector.shape_cast %23 : vector<1x16x4096xbf16> to vector<16x4096xbf16>
    %cst_14 = arith.constant dense<0.000000e+00> : vector<32x4096xf32>
    %25 = tpu.matmul %0, %24, %cst_14 {dimension_numbers = #tpu.dot_dimension_numbers<[1], [0], [0], [1], [0, 0, 1, 1], [], []>} : vector<32x16xbf16>, vector<16x4096xbf16>, vector<32x4096xf32> -> vector<32x4096xf32>
    %26 = vector.broadcast %1 : vector<32x1xf32> to vector<32x4096xf32>
    %27 = arith.mulf %25, %26 : vector<32x4096xf32>
    %28 = vector.broadcast %2 : vector<32x1xf32> to vector<32x4096xf32>
    %29 = arith.addf %27, %28 : vector<32x4096xf32>
    %cst_15 = arith.constant 0.000000e+00 : f32
    %30 = vector.broadcast %cst_15 : f32 to vector<32x4096xf32>
    %31 = arith.maximumf %29, %30 : vector<32x4096xf32>
    %32 = vector.extract_strided_slice %31 {offsets = [0, 0], sizes = [32, 1024], strides = [1, 1]} : vector<32x4096xf32> to vector<32x1024xf32>
    %33 = vector.extract_strided_slice %31 {offsets = [0, 1024], sizes = [32, 1024], strides = [1, 1]} : vector<32x4096xf32> to vector<32x1024xf32>
    %34 = arith.maximumf %32, %33 : vector<32x1024xf32>
    %35 = vector.extract_strided_slice %31 {offsets = [0, 2048], sizes = [32, 1024], strides = [1, 1]} : vector<32x4096xf32> to vector<32x1024xf32>
    %36 = vector.extract_strided_slice %31 {offsets = [0, 3072], sizes = [32, 1024], strides = [1, 1]} : vector<32x4096xf32> to vector<32x1024xf32>
    %37 = arith.maximumf %35, %36 : vector<32x1024xf32>
    %38 = arith.maximumf %34, %37 : vector<32x1024xf32>
    %39 = arith.truncf %38 : vector<32x1024xf32> to vector<32x1024xbf16>
    %c1_16 = arith.constant 1 : index
    %c0_17 = arith.constant 0 : index
    %c0_18 = arith.constant 0 : index
    %40 = vector.load %arg5[%c1_16, %c0_17, %c0_18] : memref<2x32x1024xbf16, #tpu.memory_space<vmem>>, vector<1x32x1024xbf16>
    %41 = vector.shape_cast %40 : vector<1x32x1024xbf16> to vector<32x1024xbf16>
    %42 = vector.shape_cast %39 : vector<32x1024xbf16> to vector<1x32x1024xbf16>
    tpu.vector_store %arg5[%c1_16, %c0_17, %c0_18], %42 {strides = array<i32>} : memref<2x32x1024xbf16, #tpu.memory_space<vmem>>, vector<1x32x1024xbf16>,
    return
  }
  func.func @transform_0(%arg0: i32) -> (i32, i32, i32) {
    %c0_i32 = arith.constant 0 : i32
    %c0_i32_0 = arith.constant 0 : i32
    %c0_i32_1 = arith.constant 0 : i32
    return %arg0, %c0_i32, %c0_i32_0 : i32, i32, i32
  }
  func.func @transform_1(%arg0: i32) -> (i32, i32) {
    %c0_i32 = arith.constant 0 : i32
    %c0_i32_0 = arith.constant 0 : i32
    %c0_i32_1 = arith.constant 0 : i32
    return %c0_i32, %c0_i32_0 : i32, i32
  }
  func.func @transform_2(%arg0: i32) -> (i32, i32) {
    %c0_i32 = arith.constant 0 : i32
    %c0_i32_0 = arith.constant 0 : i32
    %c0_i32_1 = arith.constant 0 : i32
    return %c0_i32, %c0_i32_0 : i32, i32
  }
  func.func @transform_3(%arg0: i32) -> (i32, i32) {
    %c0_i32 = arith.constant 0 : i32
    %c0_i32_0 = arith.constant 0 : i32
    %c0_i32_1 = arith.constant 0 : i32
    return %c0_i32, %c0_i32_0 : i32, i32
  }
  func.func @transform_4(%arg0: i32) -> (i32, i32, i32) {
    %c0_i32 = arith.constant 0 : i32
    %c0_i32_0 = arith.constant 0 : i32
    %c0_i32_1 = arith.constant 0 : i32
    return %arg0, %c0_i32, %c0_i32_0 : i32, i32, i32
  }
}

module attributes {stable_mosaic.version = 11 : i64} {
  func.func @_conv_bn_relu_pool_kernel(%arg0: i32, %arg1: memref<2x288x1024xbf16, #tpu.memory_space<vmem>>, %arg2: memref<64x288xbf16, #tpu.memory_space<vmem>>, %arg3: memref<64x1xf32, #tpu.memory_space<vmem>>, %arg4: memref<64x1xf32, #tpu.memory_space<vmem>>, %arg5: memref<2x64x256xbf16, #tpu.memory_space<vmem>>) attributes {dimension_semantics = [#tpu.dimension_semantics<parallel>], iteration_bounds = array<i64: 1>, scalar_prefetch = 0 : i64, scratch_operands = 0 : i64, tpu.core_type = #tpu.core_type<tc>, window_params = [{transform_indices = @transform_0, window_bounds = array<i64: 2, 288, 1024>}, {pipeline_mode = #tpu.pipeline_mode<synchronous>, transform_indices = @transform_1, window_bounds = array<i64: 64, 288>}, {pipeline_mode = #tpu.pipeline_mode<synchronous>, transform_indices = @transform_2, window_bounds = array<i64: 64, 1>}, {pipeline_mode = #tpu.pipeline_mode<synchronous>, transform_indices = @transform_3, window_bounds = array<i64: 64, 1>}, {transform_indices = @transform_4, window_bounds = array<i64: 2, 64, 256>}]} {
    %c0 = arith.constant 0 : index
    %c0_0 = arith.constant 0 : index
    %0 = vector.load %arg2[%c0, %c0_0] : memref<64x288xbf16, #tpu.memory_space<vmem>>, vector<64x288xbf16>
    %c0_1 = arith.constant 0 : index
    %c0_2 = arith.constant 0 : index
    %1 = vector.load %arg3[%c0_1, %c0_2] : memref<64x1xf32, #tpu.memory_space<vmem>>, vector<64x1xf32>
    %c0_3 = arith.constant 0 : index
    %c0_4 = arith.constant 0 : index
    %2 = vector.load %arg4[%c0_3, %c0_4] : memref<64x1xf32, #tpu.memory_space<vmem>>, vector<64x1xf32>
    %c0_5 = arith.constant 0 : index
    %c0_6 = arith.constant 0 : index
    %c0_7 = arith.constant 0 : index
    %3 = vector.load %arg1[%c0_5, %c0_6, %c0_7] : memref<2x288x1024xbf16, #tpu.memory_space<vmem>>, vector<1x288x1024xbf16>
    %4 = vector.shape_cast %3 : vector<1x288x1024xbf16> to vector<288x1024xbf16>
    %cst = arith.constant dense<0.000000e+00> : vector<64x1024xf32>
    %5 = tpu.matmul %0, %4, %cst {dimension_numbers = #tpu.dot_dimension_numbers<[1], [0], [0], [1], [0, 0, 1, 1], [], []>} : vector<64x288xbf16>, vector<288x1024xbf16>, vector<64x1024xf32> -> vector<64x1024xf32>
    %6 = vector.broadcast %1 : vector<64x1xf32> to vector<64x1024xf32>
    %7 = arith.mulf %5, %6 : vector<64x1024xf32>
    %8 = vector.broadcast %2 : vector<64x1xf32> to vector<64x1024xf32>
    %9 = arith.addf %7, %8 : vector<64x1024xf32>
    %cst_8 = arith.constant 0.000000e+00 : f32
    %10 = vector.broadcast %cst_8 : f32 to vector<64x1024xf32>
    %11 = arith.maximumf %9, %10 : vector<64x1024xf32>
    %12 = vector.extract_strided_slice %11 {offsets = [0, 0], sizes = [64, 256], strides = [1, 1]} : vector<64x1024xf32> to vector<64x256xf32>
    %13 = vector.extract_strided_slice %11 {offsets = [0, 256], sizes = [64, 256], strides = [1, 1]} : vector<64x1024xf32> to vector<64x256xf32>
    %14 = arith.maximumf %12, %13 : vector<64x256xf32>
    %15 = vector.extract_strided_slice %11 {offsets = [0, 512], sizes = [64, 256], strides = [1, 1]} : vector<64x1024xf32> to vector<64x256xf32>
    %16 = vector.extract_strided_slice %11 {offsets = [0, 768], sizes = [64, 256], strides = [1, 1]} : vector<64x1024xf32> to vector<64x256xf32>
    %17 = arith.maximumf %15, %16 : vector<64x256xf32>
    %18 = arith.maximumf %14, %17 : vector<64x256xf32>
    %19 = arith.truncf %18 : vector<64x256xf32> to vector<64x256xbf16>
    %c0_9 = arith.constant 0 : index
    %c0_10 = arith.constant 0 : index
    %c0_11 = arith.constant 0 : index
    %20 = vector.load %arg5[%c0_9, %c0_10, %c0_11] : memref<2x64x256xbf16, #tpu.memory_space<vmem>>, vector<1x64x256xbf16>
    %21 = vector.shape_cast %20 : vector<1x64x256xbf16> to vector<64x256xbf16>
    %22 = vector.shape_cast %19 : vector<64x256xbf16> to vector<1x64x256xbf16>
    tpu.vector_store %arg5[%c0_9, %c0_10, %c0_11], %22 {strides = array<i32>} : memref<2x64x256xbf16, #tpu.memory_space<vmem>>, vector<1x64x256xbf16>,
    %c1 = arith.constant 1 : index
    %c0_12 = arith.constant 0 : index
    %c0_13 = arith.constant 0 : index
    %23 = vector.load %arg1[%c1, %c0_12, %c0_13] : memref<2x288x1024xbf16, #tpu.memory_space<vmem>>, vector<1x288x1024xbf16>
    %24 = vector.shape_cast %23 : vector<1x288x1024xbf16> to vector<288x1024xbf16>
    %cst_14 = arith.constant dense<0.000000e+00> : vector<64x1024xf32>
    %25 = tpu.matmul %0, %24, %cst_14 {dimension_numbers = #tpu.dot_dimension_numbers<[1], [0], [0], [1], [0, 0, 1, 1], [], []>} : vector<64x288xbf16>, vector<288x1024xbf16>, vector<64x1024xf32> -> vector<64x1024xf32>
    %26 = vector.broadcast %1 : vector<64x1xf32> to vector<64x1024xf32>
    %27 = arith.mulf %25, %26 : vector<64x1024xf32>
    %28 = vector.broadcast %2 : vector<64x1xf32> to vector<64x1024xf32>
    %29 = arith.addf %27, %28 : vector<64x1024xf32>
    %cst_15 = arith.constant 0.000000e+00 : f32
    %30 = vector.broadcast %cst_15 : f32 to vector<64x1024xf32>
    %31 = arith.maximumf %29, %30 : vector<64x1024xf32>
    %32 = vector.extract_strided_slice %31 {offsets = [0, 0], sizes = [64, 256], strides = [1, 1]} : vector<64x1024xf32> to vector<64x256xf32>
    %33 = vector.extract_strided_slice %31 {offsets = [0, 256], sizes = [64, 256], strides = [1, 1]} : vector<64x1024xf32> to vector<64x256xf32>
    %34 = arith.maximumf %32, %33 : vector<64x256xf32>
    %35 = vector.extract_strided_slice %31 {offsets = [0, 512], sizes = [64, 256], strides = [1, 1]} : vector<64x1024xf32> to vector<64x256xf32>
    %36 = vector.extract_strided_slice %31 {offsets = [0, 768], sizes = [64, 256], strides = [1, 1]} : vector<64x1024xf32> to vector<64x256xf32>
    %37 = arith.maximumf %35, %36 : vector<64x256xf32>
    %38 = arith.maximumf %34, %37 : vector<64x256xf32>
    %39 = arith.truncf %38 : vector<64x256xf32> to vector<64x256xbf16>
    %c1_16 = arith.constant 1 : index
    %c0_17 = arith.constant 0 : index
    %c0_18 = arith.constant 0 : index
    %40 = vector.load %arg5[%c1_16, %c0_17, %c0_18] : memref<2x64x256xbf16, #tpu.memory_space<vmem>>, vector<1x64x256xbf16>
    %41 = vector.shape_cast %40 : vector<1x64x256xbf16> to vector<64x256xbf16>
    %42 = vector.shape_cast %39 : vector<64x256xbf16> to vector<1x64x256xbf16>
    tpu.vector_store %arg5[%c1_16, %c0_17, %c0_18], %42 {strides = array<i32>} : memref<2x64x256xbf16, #tpu.memory_space<vmem>>, vector<1x64x256xbf16>,
    return
  }
  func.func @transform_0(%arg0: i32) -> (i32, i32, i32) {
    %c0_i32 = arith.constant 0 : i32
    %c0_i32_0 = arith.constant 0 : i32
    %c0_i32_1 = arith.constant 0 : i32
    return %arg0, %c0_i32, %c0_i32_0 : i32, i32, i32
  }
  func.func @transform_1(%arg0: i32) -> (i32, i32) {
    %c0_i32 = arith.constant 0 : i32
    %c0_i32_0 = arith.constant 0 : i32
    %c0_i32_1 = arith.constant 0 : i32
    return %c0_i32, %c0_i32_0 : i32, i32
  }
  func.func @transform_2(%arg0: i32) -> (i32, i32) {
    %c0_i32 = arith.constant 0 : i32
    %c0_i32_0 = arith.constant 0 : i32
    %c0_i32_1 = arith.constant 0 : i32
    return %c0_i32, %c0_i32_0 : i32, i32
  }
  func.func @transform_3(%arg0: i32) -> (i32, i32) {
    %c0_i32 = arith.constant 0 : i32
    %c0_i32_0 = arith.constant 0 : i32
    %c0_i32_1 = arith.constant 0 : i32
    return %c0_i32, %c0_i32_0 : i32, i32
  }
  func.func @transform_4(%arg0: i32) -> (i32, i32, i32) {
    %c0_i32 = arith.constant 0 : i32
    %c0_i32_0 = arith.constant 0 : i32
    %c0_i32_1 = arith.constant 0 : i32
    return %arg0, %c0_i32, %c0_i32_0 : i32, i32, i32
  }
}

module attributes {stable_mosaic.version = 11 : i64} {
  func.func @_mlp_kernel(%arg0: i32, %arg1: i32, %arg2: memref<2x2048xbf16, #tpu.memory_space<vmem>>, %arg3: memref<1x2048x64xbf16, #tpu.memory_space<vmem>>, %arg4: memref<1x1x64xf32, #tpu.memory_space<vmem>>, %arg5: memref<1x64x4xf32, #tpu.memory_space<vmem>>, %arg6: memref<1x2x4xf32, #tpu.memory_space<vmem>>, %arg7: memref<2x64xf32, #tpu.memory_space<vmem>>) attributes {dimension_semantics = [#tpu.dimension_semantics<parallel>, #tpu.dimension_semantics<arbitrary>], iteration_bounds = array<i64: 2, 8>, scalar_prefetch = 0 : i64, scratch_operands = 1 : i64, tpu.core_type = #tpu.core_type<tc>, window_params = [{transform_indices = @transform_0, window_bounds = array<i64: 2, 2048>}, {transform_indices = @transform_1, window_bounds = array<i64: 1, 2048, 64>}, {transform_indices = @transform_2, window_bounds = array<i64: 1, 1, 64>}, {transform_indices = @transform_3, window_bounds = array<i64: 1, 64, 4>}, {transform_indices = @transform_4, window_bounds = array<i64: 1, 2, 4>}]} {
    %c0_i32 = arith.constant 0 : i32
    %0 = arith.cmpi eq, %arg1, %c0_i32 : i32
    %1 = arith.extui %0 : i1 to i32
    %c0_i32_0 = arith.constant 0 : i32
    %2 = arith.cmpi ne, %1, %c0_i32_0 : i32
    scf.if %2 {
      %cst_10 = arith.constant 0.000000e+00 : f32
      %13 = vector.broadcast %cst_10 : f32 to vector<2x64xf32>
      %c0_11 = arith.constant 0 : index
      %c0_12 = arith.constant 0 : index
      %14 = vector.load %arg7[%c0_11, %c0_12] : memref<2x64xf32, #tpu.memory_space<vmem>>, vector<2x64xf32>
      tpu.vector_store %arg7[%c0_11, %c0_12], %13 {strides = array<i32>} : memref<2x64xf32, #tpu.memory_space<vmem>>, vector<2x64xf32>,
    } else {
    }
    %c0 = arith.constant 0 : index
    %c0_1 = arith.constant 0 : index
    %3 = vector.load %arg7[%c0, %c0_1] : memref<2x64xf32, #tpu.memory_space<vmem>>, vector<2x64xf32>
    %c0_2 = arith.constant 0 : index
    %c0_3 = arith.constant 0 : index
    %4 = vector.load %arg2[%c0_2, %c0_3] : memref<2x2048xbf16, #tpu.memory_space<vmem>>, vector<2x2048xbf16>
    %c0_4 = arith.constant 0 : index
    %c0_5 = arith.constant 0 : index
    %c0_6 = arith.constant 0 : index
    %5 = vector.load %arg3[%c0_4, %c0_5, %c0_6] : memref<1x2048x64xbf16, #tpu.memory_space<vmem>>, vector<1x2048x64xbf16>
    %6 = vector.shape_cast %5 : vector<1x2048x64xbf16> to vector<2048x64xbf16>
    %cst = arith.constant dense<0.000000e+00> : vector<2x64xf32>
    %7 = tpu.matmul %4, %6, %cst {dimension_numbers = #tpu.dot_dimension_numbers<[1], [0], [0], [1], [0, 0, 1, 1], [], []>} : vector<2x2048xbf16>, vector<2048x64xbf16>, vector<2x64xf32> -> vector<2x64xf32>
    %8 = arith.addf %3, %7 : vector<2x64xf32>
    %c0_7 = arith.constant 0 : index
    %c0_8 = arith.constant 0 : index
    %9 = vector.load %arg7[%c0_7, %c0_8] : memref<2x64xf32, #tpu.memory_space<vmem>>, vector<2x64xf32>
    tpu.vector_store %arg7[%c0_7, %c0_8], %8 {strides = array<i32>} : memref<2x64xf32, #tpu.memory_space<vmem>>, vector<2x64xf32>,
    %c7_i32 = arith.constant 7 : i32
    %10 = arith.cmpi eq, %arg1, %c7_i32 : i32
    %11 = arith.extui %10 : i1 to i32
    %c0_i32_9 = arith.constant 0 : i32
    %12 = arith.cmpi ne, %11, %c0_i32_9 : i32
    scf.if %12 {
      %c0_10 = arith.constant 0 : index
      %c0_11 = arith.constant 0 : index
      %13 = vector.load %arg7[%c0_10, %c0_11] : memref<2x64xf32, #tpu.memory_space<vmem>>, vector<2x64xf32>
      %c0_12 = arith.constant 0 : index
      %c0_13 = arith.constant 0 : index
      %c0_14 = arith.constant 0 : index
      %14 = vector.load %arg4[%c0_12, %c0_13, %c0_14] : memref<1x1x64xf32, #tpu.memory_space<vmem>>, vector<1x1x64xf32>
      %15 = vector.shape_cast %14 : vector<1x1x64xf32> to vector<1x64xf32>
      %16 = vector.broadcast %15 : vector<1x64xf32> to vector<2x64xf32>
      %17 = arith.addf %13, %16 : vector<2x64xf32>
      %cst_15 = arith.constant 0.000000e+00 : f32
      %18 = vector.broadcast %cst_15 : f32 to vector<2x64xf32>
      %19 = arith.maximumf %17, %18 : vector<2x64xf32>
      %c0_16 = arith.constant 0 : index
      %c0_17 = arith.constant 0 : index
      %c0_18 = arith.constant 0 : index
      %20 = vector.load %arg5[%c0_16, %c0_17, %c0_18] : memref<1x64x4xf32, #tpu.memory_space<vmem>>, vector<1x64x4xf32>
      %21 = vector.shape_cast %20 : vector<1x64x4xf32> to vector<64x4xf32>
      %cst_19 = arith.constant dense<0.000000e+00> : vector<2x4xf32>
      %22 = tpu.matmul %19, %21, %cst_19 {dimension_numbers = #tpu.dot_dimension_numbers<[1], [0], [0], [1], [0, 0, 1, 1], [], []>} : vector<2x64xf32>, vector<64x4xf32>, vector<2x4xf32> -> vector<2x4xf32>
      %c0_20 = arith.constant 0 : index
      %c0_21 = arith.constant 0 : index
      %c0_22 = arith.constant 0 : index
      %23 = vector.load %arg6[%c0_20, %c0_21, %c0_22] : memref<1x2x4xf32, #tpu.memory_space<vmem>>, vector<1x2x4xf32>
      %24 = vector.shape_cast %23 : vector<1x2x4xf32> to vector<2x4xf32>
      %25 = vector.shape_cast %22 : vector<2x4xf32> to vector<1x2x4xf32>
      tpu.vector_store %arg6[%c0_20, %c0_21, %c0_22], %25 {strides = array<i32>} : memref<1x2x4xf32, #tpu.memory_space<vmem>>, vector<1x2x4xf32>,
    } else {
    }
    return
  }
  func.func @transform_0(%arg0: i32, %arg1: i32) -> (i32, i32) {
    %c0_i32 = arith.constant 0 : i32
    %c0_i32_0 = arith.constant 0 : i32
    return %c0_i32, %arg1 : i32, i32
  }
  func.func @transform_1(%arg0: i32, %arg1: i32) -> (i32, i32, i32) {
    %c0_i32 = arith.constant 0 : i32
    %c0_i32_0 = arith.constant 0 : i32
    return %arg0, %arg1, %c0_i32 : i32, i32, i32
  }
  func.func @transform_2(%arg0: i32, %arg1: i32) -> (i32, i32, i32) {
    %c0_i32 = arith.constant 0 : i32
    %c0_i32_0 = arith.constant 0 : i32
    %c0_i32_1 = arith.constant 0 : i32
    return %arg0, %c0_i32, %c0_i32_0 : i32, i32, i32
  }
  func.func @transform_3(%arg0: i32, %arg1: i32) -> (i32, i32, i32) {
    %c0_i32 = arith.constant 0 : i32
    %c0_i32_0 = arith.constant 0 : i32
    %c0_i32_1 = arith.constant 0 : i32
    return %arg0, %c0_i32, %c0_i32_0 : i32, i32, i32
  }
  func.func @transform_4(%arg0: i32, %arg1: i32) -> (i32, i32, i32) {
    %c0_i32 = arith.constant 0 : i32
    %c0_i32_0 = arith.constant 0 : i32
    %c0_i32_1 = arith.constant 0 : i32
    return %arg0, %c0_i32, %c0_i32_0 : i32, i32, i32
  }
}

</mosaic_0001>

<llo_original>
// kernel: cnn_forward.3
$region0: #{cnn_forward.3}
  #allocation0 [shape = 'u32[]', space=smem, size = 0x4, offset = 0x4, fixed_abs, tag = 'smem constant byte address 0x4 - core index']
  #allocation1 [shape = 'u32[144,128]{1,0:T(1,128)}', space=vmem, size = 0x12000, scoped, tag = 'internal scratch']
  %s0 = inlined_call_operand.vmem [shape: bf16[2,16,4096], index: 0, kind: input, shape index: {}]
  %s1 = inlined_call_operand.vmem [shape: bf16[32,16], index: 1, kind: input, shape index: {}]
  %s2 = inlined_call_operand.vmem [shape: f32[32,1], index: 2, kind: input, shape index: {}]
  %s3 = inlined_call_operand.vmem [shape: f32[32,1], index: 3, kind: input, shape index: {}]
  %s4 = inlined_call_operand.vmem [shape: bf16[2,32,1024], index: 4, kind: output, shape index: {}]
  %s5 = sld [smem:[#allocation0]]
  $region26: #{cnn_forward.3} parent=0
    _
  %s7 = ssub.s32 1, %s5
  %s8 = scalar_select 0, %s7, %s5
  // Predicated region
  $region2: #{cnn_forward.3} parent=0 // pred_check
    _
  $region3: #{cnn_forward.3} parent=0 // pred_check_branch
    %10 = sbr.rel (0) target = $region5
  $region4: #{cnn_forward.3} parent=0 // pred_region
    _
  $region5: #{cnn_forward.3} parent=0 // pred_fallthru
    _
  // Predicated region
  $region6: #{cnn_forward.3} parent=0 // pred_check
    _
  $region7: #{cnn_forward.3} parent=0 // pred_check_branch
    %12 = sbr.rel (0) target = $region9
  $region8: #{cnn_forward.3} parent=0 // pred_region
    _
  $region9: #{cnn_forward.3} parent=0 // pred_fallthru
    _
  // Predicated region
  $region10: #{cnn_forward.3} parent=0 // pred_check
    _
  $region11: #{cnn_forward.3} parent=0 // pred_check_branch
    %14 = sbr.rel (0) target = $region13
  $region12: #{cnn_forward.3} parent=0 // pred_region
    _
  $region13: #{cnn_forward.3} parent=0 // pred_fallthru
    _
  // Predicated region
  $region14: #{cnn_forward.3} parent=0 // pred_check
    _
  $region15: #{cnn_forward.3} parent=0 // pred_check_branch
    %16 = sbr.rel (0) target = $region17
  $region16: #{cnn_forward.3} parent=0 // pred_region
    _
  $region17: #{cnn_forward.3} parent=0 // pred_fallthru
    _
  %v18 = vld [vmem:[%s1] sm:$0xf]
  %v19 = vld [vmem:[%s1 + $0x4] sm:$0xf]
  %v20 = vld [vmem:[%s1 + $0x8] sm:$0xf]
  %v21 = vld [vmem:[%s1 + $0xc] sm:$0xf]
  %v22 = vld [vmem:[%s2] sm:$0xff]
  %v23 = vld [vmem:[%s2 + $0x8] sm:$0xff]
  %v24 = vld [vmem:[%s2 + $0x10] sm:$0xff]
  %v25 = vld [vmem:[%s2 + $0x18] sm:$0xff]
  %v26 = vld [vmem:[%s3] sm:$0xff]
  %v27 = vld [vmem:[%s3 + $0x8] sm:$0xff]
  %v28 = vld [vmem:[%s3 + $0x10] sm:$0xff]
  %v29 = vld [vmem:[%s3 + $0x18] sm:$0xff]
  %v30 = vld [vmem:[%s0] sm:$0xff]
  %v31 = vld [vmem:[%s0 + $0x8] sm:$0xff]
  %v32 = vld [vmem:[%s0 + $0x10] sm:$0xff]
  %v33 = vld [vmem:[%s0 + $0x18] sm:$0xff]
  %v34 = vld [vmem:[%s0 + $0x20] sm:$0xff]
  %v35 = vld [vmem:[%s0 + $0x28] sm:$0xff]
  %v36 = vld [vmem:[%s0 + $0x30] sm:$0xff]
  %v37 = vld [vmem:[%s0 + $0x38] sm:$0xff]
  %v38 = vld [vmem:[%s0 + $0x40] sm:$0xff]
  %v39 = vld [vmem:[%s0 + $0x48] sm:$0xff]
  %v40 = vld [vmem:[%s0 + $0x50] sm:$0xff]
  %v41 = vld [vmem:[%s0 + $0x58] sm:$0xff]
  %v42 = vld [vmem:[%s0 + $0x60] sm:$0xff]
  %v43 = vld [vmem:[%s0 + $0x68] sm:$0xff]
  %v44 = vld [vmem:[%s0 + $0x70] sm:$0xff]
  %v45 = vld [vmem:[%s0 + $0x78] sm:$0xff]
  %v46 = vld [vmem:[%s0 + $0x80] sm:$0xff]
  %v47 = vld [vmem:[%s0 + $0x88] sm:$0xff]
  %v48 = vld [vmem:[%s0 + $0x90] sm:$0xff]
  %v49 = vld [vmem:[%s0 + $0x98] sm:$0xff]
  %v50 = vld [vmem:[%s0 + $0xa0] sm:$0xff]
  %v51 = vld [vmem:[%s0 + $0xa8] sm:$0xff]
  %v52 = vld [vmem:[%s0 + $0xb0] sm:$0xff]
  %v53 = vld [vmem:[%s0 + $0xb8] sm:$0xff]
  %v54 = vld [vmem:[%s0 + $0xc0] sm:$0xff]
  %v55 = vld [vmem:[%s0 + $0xc8] sm:$0xff]
  %v56 = vld [vmem:[%s0 + $0xd0] sm:$0xff]
  %v57 = vld [vmem:[%s0 + $0xd8] sm:$0xff]
  %v58 = vld [vmem:[%s0 + $0xe0] sm:$0xff]
  %v59 = vld [vmem:[%s0 + $0xe8] sm:$0xff]
  %v60 = vld [vmem:[%s0 + $0xf0] sm:$0xff]
  %v61 = vld [vmem:[%s0 + $0xf8] sm:$0xff]
  %v66 = vunpack.c.l.b16 %v18
  %v67 = vunpack.c.l.b16 %v19
  %v68 = vunpack.c.l.b16 %v20
  %v69 = vunpack.c.l.b16 %v21
  %v70 = vpack.c.b16 %v67, %v66
  %v71 = vpack.c.b16 %v69, %v68
  %v104 = vunpack.c.l.b16 %v30
  %v105 = vunpack.c.h.b16 %v30
  %v106 = vunpack.c.l.b16 %v31
  %v107 = vunpack.c.h.b16 %v31
  %v108 = vunpack.c.l.b16 %v32
  %v109 = vunpack.c.h.b16 %v32
  %v110 = vunpack.c.l.b16 %v33
  %v111 = vunpack.c.h.b16 %v33
  %v112 = vunpack.c.l.b16 %v34
  %v113 = vunpack.c.h.b16 %v34
  %v114 = vunpack.c.l.b16 %v35
  %v115 = vunpack.c.h.b16 %v35
  %v116 = vunpack.c.l.b16 %v36
  %v117 = vunpack.c.h.b16 %v36
  %v118 = vunpack.c.l.b16 %v37
  %v119 = vunpack.c.h.b16 %v37
  %v120 = vunpack.c.l.b16 %v38
  %v121 = vunpack.c.h.b16 %v38
  %v122 = vunpack.c.l.b16 %v39
  %v123 = vunpack.c.h.b16 %v39
  %v124 = vunpack.c.l.b16 %v40
  %v125 = vunpack.c.h.b16 %v40
  %v126 = vunpack.c.l.b16 %v41
  %v127 = vunpack.c.h.b16 %v41
  %v128 = vunpack.c.l.b16 %v42
  %v129 = vunpack.c.h.b16 %v42
  %v130 = vunpack.c.l.b16 %v43
  %v131 = vunpack.c.h.b16 %v43
  %v132 = vunpack.c.l.b16 %v44
  %v133 = vunpack.c.h.b16 %v44
  %v134 = vunpack.c.l.b16 %v45
  %v135 = vunpack.c.h.b16 %v45
  %v136 = vunpack.c.l.b16 %v46
  %v137 = vunpack.c.h.b16 %v46
  %v138 = vunpack.c.l.b16 %v47
  %v139 = vunpack.c.h.b16 %v47
  %v140 = vunpack.c.l.b16 %v48
  %v141 = vunpack.c.h.b16 %v48
  %v142 = vunpack.c.l.b16 %v49
  %v143 = vunpack.c.h.b16 %v49
  %v144 = vunpack.c.l.b16 %v50
  %v145 = vunpack.c.h.b16 %v50
  %v146 = vunpack.c.l.b16 %v51
  %v147 = vunpack.c.h.b16 %v51
  %v148 = vunpack.c.l.b16 %v52
  %v149 = vunpack.c.h.b16 %v52
  %v150 = vunpack.c.l.b16 %v53
  %v151 = vunpack.c.h.b16 %v53
  %v152 = vunpack.c.l.b16 %v54
  %v153 = vunpack.c.h.b16 %v54
  %v154 = vunpack.c.l.b16 %v55
  %v155 = vunpack.c.h.b16 %v55
  %v156 = vunpack.c.l.b16 %v56
  %v157 = vunpack.c.h.b16 %v56
  %v158 = vunpack.c.l.b16 %v57
  %v159 = vunpack.c.h.b16 %v57
  %v160 = vunpack.c.l.b16 %v58
  %v161 = vunpack.c.h.b16 %v58
  %v162 = vunpack.c.l.b16 %v59
  %v163 = vunpack.c.h.b16 %v59
  %v164 = vunpack.c.l.b16 %v60
  %v165 = vunpack.c.h.b16 %v60
  %v166 = vunpack.c.l.b16 %v61
  %v167 = vunpack.c.h.b16 %v61
  %v168 = vpack.c.b16 %v136, %v104
  %v169 = vpack.c.b16 %v137, %v105
  %v170 = vpack.c.b16 %v138, %v106
  %v171 = vpack.c.b16 %v139, %v107
  %v172 = vpack.c.b16 %v140, %v108
  %v173 = vpack.c.b16 %v141, %v109
  %v174 = vpack.c.b16 %v142, %v110
  %v175 = vpack.c.b16 %v143, %v111
  %v176 = vpack.c.b16 %v144, %v112
  %v177 = vpack.c.b16 %v145, %v113
  %v178 = vpack.c.b16 %v146, %v114
  %v179 = vpack.c.b16 %v147, %v115
  %v180 = vpack.c.b16 %v148, %v116
  %v181 = vpack.c.b16 %v149, %v117
  %v182 = vpack.c.b16 %v150, %v118
  %v183 = vpack.c.b16 %v151, %v119
  %v184 = vpack.c.b16 %v152, %v120
  %v185 = vpack.c.b16 %v153, %v121
  %v186 = vpack.c.b16 %v154, %v122
  %v187 = vpack.c.b16 %v155, %v123
  %v188 = vpack.c.b16 %v156, %v124
  %v189 = vpack.c.b16 %v157, %v125
  %v190 = vpack.c.b16 %v158, %v126
  %v191 = vpack.c.b16 %v159, %v127
  %v192 = vpack.c.b16 %v160, %v128
  %v193 = vpack.c.b16 %v161, %v129
  %v194 = vpack.c.b16 %v162, %v130
  %v195 = vpack.c.b16 %v163, %v131
  %v196 = vpack.c.b16 %v164, %v132
  %v197 = vpack.c.b16 %v165, %v133
  %v198 = vpack.c.b16 %v166, %v134
  %v199 = vpack.c.b16 %v167, %v135
  %vm232 = vcmask 130048
  %v234 = vsel %vm232, %v70, 0
  %v237 = vsel %vm232, %v71, 0
  %239 = vmatprep.subr.bf16.mxu0 %v169
  %240 = vmatpush1.bf16.msra.mxu0 %v168
  %241 = vmatprep.subr.bf16.mxu0 0
  %242 = vmatpush1.bf16.msra.mxu0 0
  %243 = vmatprep.subr.bf16.mxu0 0
  %244 = vmatpush1.bf16.msra.mxu0 0
  %245 = vmatprep.subr.bf16.mxu0 0
  %246 = vmatpush1.bf16.msra.mxu0 0
  %247 = vmatprep.subr.bf16.mxu0 0
  %248 = vmatpush1.bf16.msra.mxu0 0
  %249 = vmatprep.subr.bf16.mxu0 0
  %250 = vmatpush1.bf16.msra.mxu0 0
  %251 = vmatprep.subr.bf16.mxu0 0
  %252 = vmatpush1.bf16.msra.mxu0 0
  %253 = vmatprep.subr.bf16.mxu0 0
  %254 = vmatpush1.bf16.msra.mxu0 0
  %255 = vmatprep.subr.bf16.mxu0 0
  %256 = vmatpush1.bf16.msra.mxu0 0
  %257 = vmatprep.subr.bf16.mxu0 0
  %258 = vmatpush1.bf16.msra.mxu0 0
  %259 = vmatprep.subr.bf16.mxu0 0
  %260 = vmatpush1.bf16.msra.mxu0 0
  %261 = vmatprep.subr.bf16.mxu0 0
  %262 = vmatpush1.bf16.msra.mxu0 0
  %263 = vmatprep.subr.bf16.mxu0 0
  %264 = vmatpush1.bf16.msra.mxu0 0
  %265 = vmatprep.subr.bf16.mxu0 0
  %266 = vmatpush1.bf16.msra.mxu0 0
  %267 = vmatprep.subr.bf16.mxu0 0
  %268 = vmatpush1.bf16.msra.mxu0 0
  %269 = vmatprep.subr.bf16.mxu0 0
  %270 = vmatpush1.bf16.msra.mxu0 0
  %271 = vmatprep.mubr.bf16.mxu0 0
  %272 = vmatmul.mubr.bf16.gmra.mrb[0].mxu0 %v234
  %v273 = vpop.f32.mrb[0].mxu0
  %v274 = vadd.f32 0.0, %v273
  %v275 = vpop.f32.mrb[0].mxu0
  %v276 = vadd.f32 0.0, %v275
  %v277 = vpop.f32.mrb[0].mxu0
  %v278 = vadd.f32 0.0, %v277
  %v279 = vpop.f32.mrb[0].mxu0
  %v280 = vadd.f32 0.0, %v279
  %281 = vmatprep.mubr.bf16.mxu0 0
  %282 = vmatmul.mubr.bf16.gmra.mrb[0].mxu0 %v237
  %v283 = vpop.f32.mrb[0].mxu0
  %v284 = vadd.f32 0.0, %v283
  %v285 = vpop.f32.mrb[0].mxu0
  %v286 = vadd.f32 0.0, %v285
  %v287 = vpop.f32.mrb[0].mxu0
  %v288 = vadd.f32 0.0, %v287
  %v289 = vpop.f32.mrb[0].mxu0
  %v290 = vadd.f32 0.0, %v289
  %291 = vdwg.mxu0
  %292 = vmatprep.subr.bf16.mxu0 %v171
  %293 = vmatpush1.bf16.msra.mxu0 %v170
  %294 = vmatprep.subr.bf16.mxu0 0
  %295 = vmatpush1.bf16.msra.mxu0 0
  %296 = vmatprep.subr.bf16.mxu0 0
  %297 = vmatpush1.bf16.msra.mxu0 0
  %298 = vmatprep.subr.bf16.mxu0 0
  %299 = vmatpush1.bf16.msra.mxu0 0
  %300 = vmatprep.subr.bf16.mxu0 0
  %301 = vmatpush1.bf16.msra.mxu0 0
  %302 = vmatprep.subr.bf16.mxu0 0
  %303 = vmatpush1.bf16.msra.mxu0 0
  %304 = vmatprep.subr.bf16.mxu0 0
  %305 = vmatpush1.bf16.msra.mxu0 0
  %306 = vmatprep.subr.bf16.mxu0 0
  %307 = vmatpush1.bf16.msra.mxu0 0
  %308 = vmatprep.subr.bf16.mxu0 0
  %309 = vmatpush1.bf16.msra.mxu0 0
  %310 = vmatprep.subr.bf16.mxu0 0
  %311 = vmatpush1.bf16.msra.mxu0 0
  %312 = vmatprep.subr.bf16.mxu0 0
  %313 = vmatpush1.bf16.msra.mxu0 0
  %314 = vmatprep.subr.bf16.mxu0 0
  %315 = vmatpush1.bf16.msra.mxu0 0
  %316 = vmatprep.subr.bf16.mxu0 0
  %317 = vmatpush1.bf16.msra.mxu0 0
  %318 = vmatprep.subr.bf16.mxu0 0
  %319 = vmatpush1.bf16.msra.mxu0 0
  %320 = vmatprep.subr.bf16.mxu0 0
  %321 = vmatpush1.bf16.msra.mxu0 0
  %322 = vmatprep.subr.bf16.mxu0 0
  %323 = vmatpush1.bf16.msra.mxu0 0
  %324 = vmatprep.mubr.bf16.mxu0 0
  %325 = vmatmul.mubr.bf16.gmra.mrb[0].mxu0 %v234
  %v326 = vpop.f32.mrb[0].mxu0
  %v327 = vadd.f32 0.0, %v326
  %v328 = vpop.f32.mrb[0].mxu0
  %v329 = vadd.f32 0.0, %v328
  %v330 = vpop.f32.mrb[0].mxu0
  %v331 = vadd.f32 0.0, %v330
  %v332 = vpop.f32.mrb[0].mxu0
  %v333 = vadd.f32 0.0, %v332
  %334 = vmatprep.mubr.bf16.mxu0 0
  %335 = vmatmul.mubr.bf16.gmra.mrb[0].mxu0 %v237
  %v336 = vpop.f32.mrb[0].mxu0
  %v337 = vadd.f32 0.0, %v336
  %v338 = vpop.f32.mrb[0].mxu0
  %v339 = vadd.f32 0.0, %v338
  %v340 = vpop.f32.mrb[0].mxu0
  %v341 = vadd.f32 0.0, %v340
  %v342 = vpop.f32.mrb[0].mxu0
  %v343 = vadd.f32 0.0, %v342
  %344 = vdwg.mxu0
  %345 = vmatprep.subr.bf16.mxu0 %v173
  %346 = vmatpush1.bf16.msra.mxu0 %v172
  %347 = vmatprep.subr.bf16.mxu0 0
  %348 = vmatpush1.bf16.msra.mxu0 0
  %349 = vmatprep.subr.bf16.mxu0 0
  %350 = vmatpush1.bf16.msra.mxu0 0
  %351 = vmatprep.subr.bf16.mxu0 0
  %352 = vmatpush1.bf16.msra.mxu0 0
  %353 = vmatprep.subr.bf16.mxu0 0
  %354 = vmatpush1.bf16.msra.mxu0 0
  %355 = vmatprep.subr.bf16.mxu0 0
  %356 = vmatpush1.bf16.msra.mxu0 0
  %357 = vmatprep.subr.bf16.mxu0 0
  %358 = vmatpush1.bf16.msra.mxu0 0
  %359 = vmatprep.subr.bf16.mxu0 0
  %360 = vmatpush1.bf16.msra.mxu0 0
  %361 = vmatprep.subr.bf16.mxu0 0
  %362 = vmatpush1.bf16.msra.mxu0 0
  %363 = vmatprep.subr.bf16.mxu0 0
  %364 = vmatpush1.bf16.msra.mxu0 0
  %365 = vmatprep.subr.bf16.mxu0 0
  %366 = vmatpush1.bf16.msra.mxu0 0
  %367 = vmatprep.subr.bf16.mxu0 0
  %368 = vmatpush1.bf16.msra.mxu0 0
  %369 = vmatprep.subr.bf16.mxu0 0
  %370 = vmatpush1.bf16.msra.mxu0 0
  %371 = vmatprep.subr.bf16.mxu0 0
  %372 = vmatpush1.bf16.msra.mxu0 0
  %373 = vmatprep.subr.bf16.mxu0 0
  %374 = vmatpush1.bf16.msra.mxu0 0
  %375 = vmatprep.subr.bf16.mxu0 0
  %376 = vmatpush1.bf16.msra.mxu0 0
  %377 = vmatprep.mubr.bf16.mxu0 0
  %378 = vmatmul.mubr.bf16.gmra.mrb[0].mxu0 %v234
  %v379 = vpop.f32.mrb[0].mxu0
  %v380 = vadd.f32 0.0, %v379
  %v381 = vpop.f32.mrb[0].mxu0
  %v382 = vadd.f32 0.0, %v381
  %v383 = vpop.f32.mrb[0].mxu0
  %v384 = vadd.f32 0.0, %v383
  %v385 = vpop.f32.mrb[0].mxu0
  %v386 = vadd.f32 0.0, %v385
  %387 = vmatprep.mubr.bf16.mxu0 0
  %388 = vmatmul.mubr.bf16.gmra.mrb[0].mxu0 %v237
  %v389 = vpop.f32.mrb[0].mxu0
  %v390 = vadd.f32 0.0, %v389
  %v391 = vpop.f32.mrb[0].mxu0
  %v392 = vadd.f32 0.0, %v391
  %v393 = vpop.f32.mrb[0].mxu0
  %v394 = vadd.f32 0.0, %v393
  %v395 = vpop.f32.mrb[0].mxu0
  %v396 = vadd.f32 0.0, %v395
  %397 = vdwg.mxu0
  %398 = vmatprep.subr.bf16.mxu0 %v175
  %399 = vmatpush1.bf16.msra.mxu0 %v174
  %400 = vmatprep.subr.bf16.mxu0 0
  %401 = vmatpush1.bf16.msra.mxu0 0
  %402 = vmatprep.subr.bf16.mxu0 0
  %403 = vmatpush1.bf16.msra.mxu0 0
  %404 = vmatprep.subr.bf16.mxu0 0
  %405 = vmatpush1.bf16.msra.mxu0 0
  %406 = vmatprep.subr.bf16.mxu0 0
  %407 = vmatpush1.bf16.msra.mxu0 0
  %408 = vmatprep.subr.bf16.mxu0 0
  %409 = vmatpush1.bf16.msra.mxu0 0
  %410 = vmatprep.subr.bf16.mxu0 0
  %411 = vmatpush1.bf16.msra.mxu0 0
  %412 = vmatprep.subr.bf16.mxu0 0
  %413 = vmatpush1.bf16.msra.mxu0 0
  %414 = vmatprep.subr.bf16.mxu0 0
  %415 = vmatpush1.bf16.msra.mxu0 0
  %416 = vmatprep.subr.bf16.mxu0 0
  %417 = vmatpush1.bf16.msra.mxu0 0
  %418 = vmatprep.subr.bf16.mxu0 0
  %419 = vmatpush1.bf16.msra.mxu0 0
  %420 = vmatprep.subr.bf16.mxu0 0
  %421 = vmatpush1.bf16.msra.mxu0 0
  %422 = vmatprep.subr.bf16.mxu0 0
  %423 = vmatpush1.bf16.msra.mxu0 0
  %424 = vmatprep.subr.bf16.mxu0 0
  %425 = vmatpush1.bf16.msra.mxu0 0
  %426 = vmatprep.subr.bf16.mxu0 0
  %427 = vmatpush1.bf16.msra.mxu0 0
  %428 = vmatprep.subr.bf16.mxu0 0
  %429 = vmatpush1.bf16.msra.mxu0 0
  %430 = vmatprep.mubr.bf16.mxu0 0
  %431 = vmatmul.mubr.bf16.gmra.mrb[0].mxu0 %v234
  %v432 = vpop.f32.mrb[0].mxu0
  %v433 = vadd.f32 0.0, %v432
  %v434 = vpop.f32.mrb[0].mxu0
  %v435 = vadd.f32 0.0, %v434
  %v436 = vpop.f32.mrb[0].mxu0
  %v437 = vadd.f32 0.0, %v436
  %v438 = vpop.f32.mrb[0].mxu0
  %v439 = vadd.f32 0.0, %v438
  %440 = vmatprep.mubr.bf16.mxu0 0
  %441 = vmatmul.mubr.bf16.gmra.mrb[0].mxu0 %v237
  %v442 = vpop.f32.mrb[0].mxu0
  %v443 = vadd.f32 0.0, %v442
  %v444 = vpop.f32.mrb[0].mxu0
  %v445 = vadd.f32 0.0, %v444
  %v446 = vpop.f32.mrb[0].mxu0
  %v447 = vadd.f32 0.0, %v446
  %v448 = vpop.f32.mrb[0].mxu0
  %v449 = vadd.f32 0.0, %v448
  %450 = vdwg.mxu0
  %451 = vmatprep.subr.bf16.mxu0 %v177
  %452 = vmatpush1.bf16.msra.mxu0 %v176
  %453 = vmatprep.subr.bf16.mxu0 0
  %454 = vmatpush1.bf16.msra.mxu0 0
  %455 = vmatprep.subr.bf16.mxu0 0
  %456 = vmatpush1.bf16.msra.mxu0 0
  %457 = vmatprep.subr.bf16.mxu0 0
  %458 = vmatpush1.bf16.msra.mxu0 0
  %459 = vmatprep.subr.bf16.mxu0 0
  %460 = vmatpush1.bf16.msra.mxu0 0
  %461 = vmatprep.subr.bf16.mxu0 0
  %462 = vmatpush1.bf16.msra.mxu0 0
  %463 = vmatprep.subr.bf16.mxu0 0
  %464 = vmatpush1.bf16.msra.mxu0 0
  %465 = vmatprep.subr.bf16.mxu0 0
  %466 = vmatpush1.bf16.msra.mxu0 0
  %467 = vmatprep.subr.bf16.mxu0 0
  %468 = vmatpush1.bf16.msra.mxu0 0
  %469 = vmatprep.subr.bf16.mxu0 0
  %470 = vmatpush1.bf16.msra.mxu0 0
  %471 = vmatprep.subr.bf16.mxu0 0
  %472 = vmatpush1.bf16.msra.mxu0 0
  %473 = vmatprep.subr.bf16.mxu0 0
  %474 = vmatpush1.bf16.msra.mxu0 0
  %475 = vmatprep.subr.bf16.mxu0 0
  %476 = vmatpush1.bf16.msra.mxu0 0
  %477 = vmatprep.subr.bf16.mxu0 0
  %478 = vmatpush1.bf16.msra.mxu0 0
  %479 = vmatprep.subr.bf16.mxu0 0
  %480 = vmatpush1.bf16.msra.mxu0 0
  %481 = vmatprep.subr.bf16.mxu0 0
  %482 = vmatpush1.bf16.msra.mxu0 0
  %483 = vmatprep.mubr.bf16.mxu0 0
  %484 = vmatmul.mubr.bf16.gmra.mrb[0].mxu0 %v234
  %v485 = vpop.f32.mrb[0].mxu0
  %v486 = vadd.f32 0.0, %v485
  %v487 = vpop.f32.mrb[0].mxu0
  %v488 = vadd.f32 0.0, %v487
  %v489 = vpop.f32.mrb[0].mxu0
  %v490 = vadd.f32 0.0, %v489
  %v491 = vpop.f32.mrb[0].mxu0
  %v492 = vadd.f32 0.0, %v491
  %493 = vmatprep.mubr.bf16.mxu0 0
  %494 = vmatmul.mubr.bf16.gmra.mrb[0].mxu0 %v237
  %v495 = vpop.f32.mrb[0].mxu0
  %v496 = vadd.f32 0.0, %v495
  %v497 = vpop.f32.mrb[0].mxu0
  %v498 = vadd.f32 0.0, %v497
  %v499 = vpop.f32.mrb[0].mxu0
  %v500 = vadd.f32 0.0, %v499
  %v501 = vpop.f32.mrb[0].mxu0
  %v502 = vadd.f32 0.0, %v501
  %503 = vdwg.mxu0
  %504 = vmatprep.subr.bf16.mxu0 %v179
  %505 = vmatpush1.bf16.msra.mxu0 %v178
  %506 = vmatprep.subr.bf16.mxu0 0
  %507 = vmatpush1.bf16.msra.mxu0 0
  %508 = vmatprep.subr.bf16.mxu0 0
  %509 = vmatpush1.bf16.msra.mxu0 0
  %510 = vmatprep.subr.bf16.mxu0 0
  %511 = vmatpush1.bf16.msra.mxu0 0
  %512 = vmatprep.subr.bf16.mxu0 0
  %513 = vmatpush1.bf16.msra.mxu0 0
  %514 = vmatprep.subr.bf16.mxu0 0
  %515 = vmatpush1.bf16.msra.mxu0 0
  %516 = vmatprep.subr.bf16.mxu0 0
  %517 = vmatpush1.bf16.msra.mxu0 0
  %518 = vmatprep.subr.bf16.mxu0 0
  %519 = vmatpush1.bf16.msra.mxu0 0
  %520 = vmatprep.subr.bf16.mxu0 0
  %521 = vmatpush1.bf16.msra.mxu0 0
  %522 = vmatprep.subr.bf16.mxu0 0
  %523 = vmatpush1.bf16.msra.mxu0 0
  %524 = vmatprep.subr.bf16.mxu0 0
  %525 = vmatpush1.bf16.msra.mxu0 0
  %526 = vmatprep.subr.bf16.mxu0 0
  %527 = vmatpush1.bf16.msra.mxu0 0
  %528 = vmatprep.subr.bf16.mxu0 0
  %529 = vmatpush1.bf16.msra.mxu0 0
  %530 = vmatprep.subr.bf16.mxu0 0
  %531 = vmatpush1.bf16.msra.mxu0 0
  %532 = vmatprep.subr.bf16.mxu0 0
  %533 = vmatpush1.bf16.msra.mxu0 0
  %534 = vmatprep.subr.bf16.mxu0 0
  %535 = vmatpush1.bf16.msra.mxu0 0
  %536 = vmatprep.mubr.bf16.mxu0 0
  %537 = vmatmul.mubr.bf16.gmra.mrb[0].mxu0 %v234
  %v538 = vpop.f32.mrb[0].mxu0
  %v539 = vadd.f32 0.0, %v538
  %v540 = vpop.f32.mrb[0].mxu0
  %v541 = vadd.f32 0.0, %v540
  %v542 = vpop.f32.mrb[0].mxu0
  %v543 = vadd.f32 0.0, %v542
  %v544 = vpop.f32.mrb[0].mxu0
  %v545 = vadd.f32 0.0, %v544
  %546 = vmatprep.mubr.bf16.mxu0 0
  %547 = vmatmul.mubr.bf16.gmra.mrb[0].mxu0 %v237
  %v548 = vpop.f32.mrb[0].mxu0
  %v549 = vadd.f32 0.0, %v548
  %v550 = vpop.f32.mrb[0].mxu0
  %v551 = vadd.f32 0.0, %v550
  %v552 = vpop.f32.mrb[0].mxu0
  %v553 = vadd.f32 0.0, %v552
  %v554 = vpop.f32.mrb[0].mxu0
  %v555 = vadd.f32 0.0, %v554
  %556 = vdwg.mxu0
  %557 = vmatprep.subr.bf16.mxu0 %v181
  %558 = vmatpush1.bf16.msra.mxu0 %v180
  %559 = vmatprep.subr.bf16.mxu0 0
  %560 = vmatpush1.bf16.msra.mxu0 0
  %561 = vmatprep.subr.bf16.mxu0 0
  %562 = vmatpush1.bf16.msra.mxu0 0
  %563 = vmatprep.subr.bf16.mxu0 0
  %564 = vmatpush1.bf16.msra.mxu0 0
  %565 = vmatprep.subr.bf16.mxu0 0
  %566 = vmatpush1.bf16.msra.mxu0 0
  %567 = vmatprep.subr.bf16.mxu0 0
  %568 = vmatpush1.bf16.msra.mxu0 0
  %569 = vmatprep.subr.bf16.mxu0 0
  %570 = vmatpush1.bf16.msra.mxu0 0
  %571 = vmatprep.subr.bf16.mxu0 0
  %572 = vmatpush1.bf16.msra.mxu0 0
  %573 = vmatprep.subr.bf16.mxu0 0
  %574 = vmatpush1.bf16.msra.mxu0 0
  %575 = vmatprep.subr.bf16.mxu0 0
  %576 = vmatpush1.bf16.msra.mxu0 0
  %577 = vmatprep.subr.bf16.mxu0 0
  %578 = vmatpush1.bf16.msra.mxu0 0
  %579 = vmatprep.subr.bf16.mxu0 0
  %580 = vmatpush1.bf16.msra.mxu0 0
  %581 = vmatprep.subr.bf16.mxu0 0
  %582 = vmatpush1.bf16.msra.mxu0 0
  %583 = vmatprep.subr.bf16.mxu0 0
  %584 = vmatpush1.bf16.msra.mxu0 0
  %585 = vmatprep.subr.bf16.mxu0 0
  %586 = vmatpush1.bf16.msra.mxu0 0
  %587 = vmatprep.subr.bf16.mxu0 0
  %588 = vmatpush1.bf16.msra.mxu0 0
  %589 = vmatprep.mubr.bf16.mxu0 0
  %590 = vmatmul.mubr.bf16.gmra.mrb[0].mxu0 %v234
  %v591 = vpop.f32.mrb[0].mxu0
  %v592 = vadd.f32 0.0, %v591
  %v593 = vpop.f32.mrb[0].mxu0
  %v594 = vadd.f32 0.0, %v593
  %v595 = vpop.f32.mrb[0].mxu0
  %v596 = vadd.f32 0.0, %v595
  %v597 = vpop.f32.mrb[0].mxu0
  %v598 = vadd.f32 0.0, %v597
  %599 = vmatprep.mubr.bf16.mxu0 0
  %600 = vmatmul.mubr.bf16.gmra.mrb[0].mxu0 %v237
  %v601 = vpop.f32.mrb[0].mxu0
  %v602 = vadd.f32 0.0, %v601
  %v603 = vpop.f32.mrb[0].mxu0
  %v604 = vadd.f32 0.0, %v603
  %v605 = vpop.f32.mrb[0].mxu0
  %v606 = vadd.f32 0.0, %v605
  %v607 = vpop.f32.mrb[0].mxu0
  %v608 = vadd.f32 0.0, %v607
  %609 = vdwg.mxu0
  %610 = vmatprep.subr.bf16.mxu0 %v183
  %611 = vmatpush1.bf16.msra.mxu0 %v182
  %612 = vmatprep.subr.bf16.mxu0 0
  %613 = vmatpush1.bf16.msra.mxu0 0
  %614 = vmatprep.subr.bf16.mxu0 0
  %615 = vmatpush1.bf16.msra.mxu0 0
  %616 = vmatprep.subr.bf16.mxu0 0
  %617 = vmatpush1.bf16.msra.mxu0 0
  %618 = vmatprep.subr.bf16.mxu0 0
  %619 = vmatpush1.bf16.msra.mxu0 0
  %620 = vmatprep.subr.bf16.mxu0 0
  %621 = vmatpush1.bf16.msra.mxu0 0
  %622 = vmatprep.subr.bf16.mxu0 0
  %623 = vmatpush1.bf16.msra.mxu0 0
  %624 = vmatprep.subr.bf16.mxu0 0
  %625 = vmatpush1.bf16.msra.mxu0 0
  %626 = vmatprep.subr.bf16.mxu0 0
  %627 = vmatpush1.bf16.msra.mxu0 0
  %628 = vmatprep.subr.bf16.mxu0 0
  %629 = vmatpush1.bf16.msra.mxu0 0
  %630 = vmatprep.subr.bf16.mxu0 0
  %631 = vmatpush1.bf16.msra.mxu0 0
  %632 = vmatprep.subr.bf16.mxu0 0
  %633 = vmatpush1.bf16.msra.mxu0 0
  %634 = vmatprep.subr.bf16.mxu0 0
  %635 = vmatpush1.bf16.msra.mxu0 0
  %636 = vmatprep.subr.bf16.mxu0 0
  %637 = vmatpush1.bf16.msra.mxu0 0
  %638 = vmatprep.subr.bf16.mxu0 0
  %639 = vmatpush1.bf16.msra.mxu0 0
  %640 = vmatprep.subr.bf16.mxu0 0
  %641 = vmatpush1.bf16.msra.mxu0 0
  %642 = vmatprep.mubr.bf16.mxu0 0
  %643 = vmatmul.mubr.bf16.gmra.mrb[0].mxu0 %v234
  %v644 = vpop.f32.mrb[0].mxu0
  %v645 = vadd.f32 0.0, %v644
  %v646 = vpop.f32.mrb[0].mxu0
  %v647 = vadd.f32 0.0, %v646
  %v648 = vpop.f32.mrb[0].mxu0
  %v649 = vadd.f32 0.0, %v648
  %v650 = vpop.f32.mrb[0].mxu0
  %v651 = vadd.f32 0.0, %v650
  %652 = vmatprep.mubr.bf16.mxu0 0
  %653 = vmatmul.mubr.bf16.gmra.mrb[0].mxu0 %v237
  %v654 = vpop.f32.mrb[0].mxu0
  %v655 = vadd.f32 0.0, %v654
  %v656 = vpop.f32.mrb[0].mxu0
  %v657 = vadd.f32 0.0, %v656
  %v658 = vpop.f32.mrb[0].mxu0
  %v659 = vadd.f32 0.0, %v658
  %v660 = vpop.f32.mrb[0].mxu0
  %v661 = vadd.f32 0.0, %v660
  %662 = vdwg.mxu0
  %663 = vmatprep.subr.bf16.mxu0 %v185
  %664 = vmatpush1.bf16.msra.mxu0 %v184
  %665 = vmatprep.subr.bf16.mxu0 0
  %666 = vmatpush1.bf16.msra.mxu0 0
  %667 = vmatprep.subr.bf16.mxu0 0
  %668 = vmatpush1.bf16.msra.mxu0 0
  %669 = vmatprep.subr.bf16.mxu0 0
  %670 = vmatpush1.bf16.msra.mxu0 0
  %671 = vmatprep.subr.bf16.mxu0 0
  %672 = vmatpush1.bf16.msra.mxu0 0
  %673 = vmatprep.subr.bf16.mxu0 0
  %674 = vmatpush1.bf16.msra.mxu0 0
  %675 = vmatprep.subr.bf16.mxu0 0
  %676 = vmatpush1.bf16.msra.mxu0 0
  %677 = vmatprep.subr.bf16.mxu0 0
  %678 = vmatpush1.bf16.msra.mxu0 0
  %679 = vmatprep.subr.bf16.mxu0 0
  %680 = vmatpush1.bf16.msra.mxu0 0
  %681 = vmatprep.subr.bf16.mxu0 0
  %682 = vmatpush1.bf16.msra.mxu0 0
  %683 = vmatprep.subr.bf16.mxu0 0
  %684 = vmatpush1.bf16.msra.mxu0 0
  %685 = vmatprep.subr.bf16.mxu0 0
  %686 = vmatpush1.bf16.msra.mxu0 0
  %687 = vmatprep.subr.bf16.mxu0 0
  %688 = vmatpush1.bf16.msra.mxu0 0
  %689 = vmatprep.subr.bf16.mxu0 0
  %690 = vmatpush1.bf16.msra.mxu0 0
  %691 = vmatprep.subr.bf16.mxu0 0
  %692 = vmatpush1.bf16.msra.mxu0 0
  %693 = vmatprep.subr.bf16.mxu0 0
  %694 = vmatpush1.bf16.msra.mxu0 0
  %695 = vmatprep.mubr.bf16.mxu0 0
  %696 = vmatmul.mubr.bf16.gmra.mrb[0].mxu0 %v234
  %v697 = vpop.f32.mrb[0].mxu0
  %v698 = vadd.f32 0.0, %v697
  %v699 = vpop.f32.mrb[0].mxu0
  %v700 = vadd.f32 0.0, %v699
  %v701 = vpop.f32.mrb[0].mxu0
  %v702 = vadd.f32 0.0, %v701
  %v703 = vpop.f32.mrb[0].mxu0
  %v704 = vadd.f32 0.0, %v703
  %705 = vmatprep.mubr.bf16.mxu0 0
  %706 = vmatmul.mubr.bf16.gmra.mrb[0].mxu0 %v237
  %v707 = vpop.f32.mrb[0].mxu0
  %v708 = vadd.f32 0.0, %v707
  %v709 = vpop.f32.mrb[0].mxu0
  %v710 = vadd.f32 0.0, %v709
  %v711 = vpop.f32.mrb[0].mxu0
  %v712 = vadd.f32 0.0, %v711
  %v713 = vpop.f32.mrb[0].mxu0
  %v714 = vadd.f32 0.0, %v713
  %715 = vdwg.mxu0
  %716 = vmatprep.subr.bf16.mxu0 %v187
  %717 = vmatpush1.bf16.msra.mxu0 %v186
  %718 = vmatprep.subr.bf16.mxu0 0
  %719 = vmatpush1.bf16.msra.mxu0 0
  %720 = vmatprep.subr.bf16.mxu0 0
  %721 = vmatpush1.bf16.msra.mxu0 0
  %722 = vmatprep.subr.bf16.mxu0 0
  %723 = vmatpush1.bf16.msra.mxu0 0
  %724 = vmatprep.subr.bf16.mxu0 0
  %725 = vmatpush1.bf16.msra.mxu0 0
  %726 = vmatprep.subr.bf16.mxu0 0
  %727 = vmatpush1.bf16.msra.mxu0 0
  %728 = vmatprep.subr.bf16.mxu0 0
  %729 = vmatpush1.bf16.msra.mxu0 0
  %730 = vmatprep.subr.bf16.mxu0 0
  %731 = vmatpush1.bf16.msra.mxu0 0
  %732 = vmatprep.subr.bf16.mxu0 0
  %733 = vmatpush1.bf16.msra.mxu0 0
  %734 = vmatprep.subr.bf16.mxu0 0
  %735 = vmatpush1.bf16.msra.mxu0 0
  %736 = vmatprep.subr.bf16.mxu0 0
  %737 = vmatpush1.bf16.msra.mxu0 0
  %738 = vmatprep.subr.bf16.mxu0 0
  %739 = vmatpush1.bf16.msra.mxu0 0
  %740 = vmatprep.subr.bf16.mxu0 0
  %741 = vmatpush1.bf16.msra.mxu0 0
  %742 = vmatprep.subr.bf16.mxu0 0
  %743 = vmatpush1.bf16.msra.mxu0 0
  %744 = vmatprep.subr.bf16.mxu0 0
  %745 = vmatpush1.bf16.msra.mxu0 0
  %746 = vmatprep.subr.bf16.mxu0 0
  %747 = vmatpush1.bf16.msra.mxu0 0
  %748 = vmatprep.mubr.bf16.mxu0 0
  %749 = vmatmul.mubr.bf16.gmra.mrb[0].mxu0 %v234
  %v750 = vpop.f32.mrb[0].mxu0
  %v751 = vadd.f32 0.0, %v750
  %v752 = vpop.f32.mrb[0].mxu0
  %v753 = vadd.f32 0.0, %v752
  %v754 = vpop.f32.mrb[0].mxu0
  %v755 = vadd.f32 0.0, %v754
  %v756 = vpop.f32.mrb[0].mxu0
  %v757 = vadd.f32 0.0, %v756
  %758 = vmatprep.mubr.bf16.mxu0 0
  %759 = vmatmul.mubr.bf16.gmra.mrb[0].mxu0 %v237
  %v760 = vpop.f32.mrb[0].mxu0
  %v761 = vadd.f32 0.0, %v760
  %v762 = vpop.f32.mrb[0].mxu0
  %v763 = vadd.f32 0.0, %v762
  %v764 = vpop.f32.mrb[0].mxu0
  %v765 = vadd.f32 0.0, %v764
  %v766 = vpop.f32.mrb[0].mxu0
  %v767 = vadd.f32 0.0, %v766
  %768 = vdwg.mxu0
  %769 = vmatprep.subr.bf16.mxu0 %v189
  %770 = vmatpush1.bf16.msra.mxu0 %v188
  %771 = vmatprep.subr.bf16.mxu0 0
  %772 = vmatpush1.bf16.msra.mxu0 0
  %773 = vmatprep.subr.bf16.mxu0 0
  %774 = vmatpush1.bf16.msra.mxu0 0
  %775 = vmatprep.subr.bf16.mxu0 0
  %776 = vmatpush1.bf16.msra.mxu0 0
  %777 = vmatprep.subr.bf16.mxu0 0
  %778 = vmatpush1.bf16.msra.mxu0 0
  %779 = vmatprep.subr.bf16.mxu0 0
  %780 = vmatpush1.bf16.msra.mxu0 0
  %781 = vmatprep.subr.bf16.mxu0 0
  %782 = vmatpush1.bf16.msra.mxu0 0
  %783 = vmatprep.subr.bf16.mxu0 0
  %784 = vmatpush1.bf16.msra.mxu0 0
  %785 = vmatprep.subr.bf16.mxu0 0
  %786 = vmatpush1.bf16.msra.mxu0 0
  %787 = vmatprep.subr.bf16.mxu0 0
  %788 = vmatpush1.bf16.msra.mxu0 0
  %789 = vmatprep.subr.bf16.mxu0 0
  %790 = vmatpush1.bf16.msra.mxu0 0
  %791 = vmatprep.subr.bf16.mxu0 0
  %792 = vmatpush1.bf16.msra.mxu0 0
  %793 = vmatprep.subr.bf16.mxu0 0
  %794 = vmatpush1.bf16.msra.mxu0 0
  %795 = vmatprep.subr.bf16.mxu0 0
  %796 = vmatpush1.bf16.msra.mxu0 0
  %797 = vmatprep.subr.bf16.mxu0 0
  %798 = vmatpush1.bf16.msra.mxu0 0
  %799 = vmatprep.subr.bf16.mxu0 0
  %800 = vmatpush1.bf16.msra.mxu0 0
  %801 = vmatprep.mubr.bf16.mxu0 0
  %802 = vmatmul.mubr.bf16.gmra.mrb[0].mxu0 %v234
  %v803 = vpop.f32.mrb[0].mxu0
  %v804 = vadd.f32 0.0, %v803
  %v805 = vpop.f32.mrb[0].mxu0
  %v806 = vadd.f32 0.0, %v805
  %v807 = vpop.f32.mrb[0].mxu0
  %v808 = vadd.f32 0.0, %v807
  %v809 = vpop.f32.mrb[0].mxu0
  %v810 = vadd.f32 0.0, %v809
  %811 = vmatprep.mubr.bf16.mxu0 0
  %812 = vmatmul.mubr.bf16.gmra.mrb[0].mxu0 %v237
  %v813 = vpop.f32.mrb[0].mxu0
  %v814 = vadd.f32 0.0, %v813
  %v815 = vpop.f32.mrb[0].mxu0
  %v816 = vadd.f32 0.0, %v815
  %v817 = vpop.f32.mrb[0].mxu0
  %v818 = vadd.f32 0.0, %v817
  %v819 = vpop.f32.mrb[0].mxu0
  %v820 = vadd.f32 0.0, %v819
  %821 = vdwg.mxu0
  %822 = vmatprep.subr.bf16.mxu0 %v191
  %823 = vmatpush1.bf16.msra.mxu0 %v190
  %824 = vmatprep.subr.bf16.mxu0 0
  %825 = vmatpush1.bf16.msra.mxu0 0
  %826 = vmatprep.subr.bf16.mxu0 0
  %827 = vmatpush1.bf16.msra.mxu0 0
  %828 = vmatprep.subr.bf16.mxu0 0
  %829 = vmatpush1.bf16.msra.mxu0 0
  %830 = vmatprep.subr.bf16.mxu0 0
  %831 = vmatpush1.bf16.msra.mxu0 0
  %832 = vmatprep.subr.bf16.mxu0 0
  %833 = vmatpush1.bf16.msra.mxu0 0
  %834 = vmatprep.subr.bf16.mxu0 0
  %835 = vmatpush1.bf16.msra.mxu0 0
  %836 = vmatprep.subr.bf16.mxu0 0
  %837 = vmatpush1.bf16.msra.mxu0 0
  %838 = vmatprep.subr.bf16.mxu0 0
  %839 = vmatpush1.bf16.msra.mxu0 0
  %840 = vmatprep.subr.bf16.mxu0 0
  %841 = vmatpush1.bf16.msra.mxu0 0
  %842 = vmatprep.subr.bf16.mxu0 0
  %843 = vmatpush1.bf16.msra.mxu0 0
  %844 = vmatprep.subr.bf16.mxu0 0
  %845 = vmatpush1.bf16.msra.mxu0 0
  %846 = vmatprep.subr.bf16.mxu0 0
  %847 = vmatpush1.bf16.msra.mxu0 0
  %848 = vmatprep.subr.bf16.mxu0 0
  %849 = vmatpush1.bf16.msra.mxu0 0
  %850 = vmatprep.subr.bf16.mxu0 0
  %851 = vmatpush1.bf16.msra.mxu0 0
  %852 = vmatprep.subr.bf16.mxu0 0
  %853 = vmatpush1.bf16.msra.mxu0 0
  %854 = vmatprep.mubr.bf16.mxu0 0
  %855 = vmatmul.mubr.bf16.gmra.mrb[0].mxu0 %v234
  %v856 = vpop.f32.mrb[0].mxu0
  %v857 = vadd.f32 0.0, %v856
  %v858 = vpop.f32.mrb[0].mxu0
  %v859 = vadd.f32 0.0, %v858
  %v860 = vpop.f32.mrb[0].mxu0
  %v861 = vadd.f32 0.0, %v860
  %v862 = vpop.f32.mrb[0].mxu0
  %v863 = vadd.f32 0.0, %v862
  %864 = vmatprep.mubr.bf16.mxu0 0
  %865 = vmatmul.mubr.bf16.gmra.mrb[0].mxu0 %v237
  %v866 = vpop.f32.mrb[0].mxu0
  %v867 = vadd.f32 0.0, %v866
  %v868 = vpop.f32.mrb[0].mxu0
  %v869 = vadd.f32 0.0, %v868
  %v870 = vpop.f32.mrb[0].mxu0
  %v871 = vadd.f32 0.0, %v870
  %v872 = vpop.f32.mrb[0].mxu0
  %v873 = vadd.f32 0.0, %v872
  %874 = vdwg.mxu0
  %875 = vmatprep.subr.bf16.mxu0 %v193
  %876 = vmatpush1.bf16.msra.mxu0 %v192
  %877 = vmatprep.subr.bf16.mxu0 0
  %878 = vmatpush1.bf16.msra.mxu0 0
  %879 = vmatprep.subr.bf16.mxu0 0
  %880 = vmatpush1.bf16.msra.mxu0 0
  %881 = vmatprep.subr.bf16.mxu0 0
  %882 = vmatpush1.bf16.msra.mxu0 0
  %883 = vmatprep.subr.bf16.mxu0 0
  %884 = vmatpush1.bf16.msra.mxu0 0
  %885 = vmatprep.subr.bf16.mxu0 0
  %886 = vmatpush1.bf16.msra.mxu0 0
  %887 = vmatprep.subr.bf16.mxu0 0
  %888 = vmatpush1.bf16.msra.mxu0 0
  %889 = vmatprep.subr.bf16.mxu0 0
  %890 = vmatpush1.bf16.msra.mxu0 0
  %891 = vmatprep.subr.bf16.mxu0 0
  %892 = vmatpush1.bf16.msra.mxu0 0
  %893 = vmatprep.subr.bf16.mxu0 0
  %894 = vmatpush1.bf16.msra.mxu0 0
  %895 = vmatprep.subr.bf16.mxu0 0
  %896 = vmatpush1.bf16.msra.mxu0 0
  %897 = vmatprep.subr.bf16.mxu0 0
  %898 = vmatpush1.bf16.msra.mxu0 0
  %899 = vmatprep.subr.bf16.mxu0 0
  %900 = vmatpush1.bf16.msra.mxu0 0
  %901 = vmatprep.subr.bf16.mxu0 0
  %902 = vmatpush1.bf16.msra.mxu0 0
  %903 = vmatprep.subr.bf16.mxu0 0
  %904 = vmatpush1.bf16.msra.mxu0 0
  %905 = vmatprep.subr.bf16.mxu0 0
  %906 = vmatpush1.bf16.msra.mxu0 0
  %907 = vmatprep.mubr.bf16.mxu0 0
  %908 = vmatmul.mubr.bf16.gmra.mrb[0].mxu0 %v234
  %v909 = vpop.f32.mrb[0].mxu0
  %v910 = vadd.f32 0.0, %v909
  %v911 = vpop.f32.mrb[0].mxu0
  %v912 = vadd.f32 0.0, %v911
  %v913 = vpop.f32.mrb[0].mxu0
  %v914 = vadd.f32 0.0, %v913
  %v915 = vpop.f32.mrb[0].mxu0
  %v916 = vadd.f32 0.0, %v915
  %917 = vmatprep.mubr.bf16.mxu0 0
  %918 = vmatmul.mubr.bf16.gmra.mrb[0].mxu0 %v237
  %v919 = vpop.f32.mrb[0].mxu0
  %v920 = vadd.f32 0.0, %v919
  %v921 = vpop.f32.mrb[0].mxu0
  %v922 = vadd.f32 0.0, %v921
  %v923 = vpop.f32.mrb[0].mxu0
  %v924 = vadd.f32 0.0, %v923
  %v925 = vpop.f32.mrb[0].mxu0
  %v926 = vadd.f32 0.0, %v925
  %927 = vdwg.mxu0
  %928 = vmatprep.subr.bf16.mxu0 %v195
  %929 = vmatpush1.bf16.msra.mxu0 %v194
  %930 = vmatprep.subr.bf16.mxu0 0
  %931 = vmatpush1.bf16.msra.mxu0 0
  %932 = vmatprep.subr.bf16.mxu0 0
  %933 = vmatpush1.bf16.msra.mxu0 0
  %934 = vmatprep.subr.bf16.mxu0 0
  %935 = vmatpush1.bf16.msra.mxu0 0
  %936 = vmatprep.subr.bf16.mxu0 0
  %937 = vmatpush1.bf16.msra.mxu0 0
  %938 = vmatprep.subr.bf16.mxu0 0
  %939 = vmatpush1.bf16.msra.mxu0 0
  %940 = vmatprep.subr.bf16.mxu0 0
  %941 = vmatpush1.bf16.msra.mxu0 0
  %942 = vmatprep.subr.bf16.mxu0 0
  %943 = vmatpush1.bf16.msra.mxu0 0
  %944 = vmatprep.subr.bf16.mxu0 0
  %945 = vmatpush1.bf16.msra.mxu0 0
  %946 = vmatprep.subr.bf16.mxu0 0
  %947 = vmatpush1.bf16.msra.mxu0 0
  %948 = vmatprep.subr.bf16.mxu0 0
  %949 = vmatpush1.bf16.msra.mxu0 0
  %950 = vmatprep.subr.bf16.mxu0 0
  %951 = vmatpush1.bf16.msra.mxu0 0
  %952 = vmatprep.subr.bf16.mxu0 0
  %953 = vmatpush1.bf16.msra.mxu0 0
  %954 = vmatprep.subr.bf16.mxu0 0
  %955 = vmatpush1.bf16.msra.mxu0 0
  %956 = vmatprep.subr.bf16.mxu0 0
  %957 = vmatpush1.bf16.msra.mxu0 0
  %958 = vmatprep.subr.bf16.mxu0 0
  %959 = vmatpush1.bf16.msra.mxu0 0
  %960 = vmatprep.mubr.bf16.mxu0 0
  %961 = vmatmul.mubr.bf16.gmra.mrb[0].mxu0 %v234
  %v962 = vpop.f32.mrb[0].mxu0
  %v963 = vadd.f32 0.0, %v962
  %v964 = vpop.f32.mrb[0].mxu0
  %v965 = vadd.f32 0.0, %v964
  %v966 = vpop.f32.mrb[0].mxu0
  %v967 = vadd.f32 0.0, %v966
  %v968 = vpop.f32.mrb[0].mxu0
  %v969 = vadd.f32 0.0, %v968
  %970 = vmatprep.mubr.bf16.mxu0 0
  %971 = vmatmul.mubr.bf16.gmra.mrb[0].mxu0 %v237
  %v972 = vpop.f32.mrb[0].mxu0
  %v973 = vadd.f32 0.0, %v972
  %v974 = vpop.f32.mrb[0].mxu0
  %v975 = vadd.f32 0.0, %v974
  %v976 = vpop.f32.mrb[0].mxu0
  %v977 = vadd.f32 0.0, %v976
  %v978 = vpop.f32.mrb[0].mxu0
  %v979 = vadd.f32 0.0, %v978
  %980 = vdwg.mxu0
  %981 = vmatprep.subr.bf16.mxu0 %v197
  %982 = vmatpush1.bf16.msra.mxu0 %v196
  %983 = vmatprep.subr.bf16.mxu0 0
  %984 = vmatpush1.bf16.msra.mxu0 0
  %985 = vmatprep.subr.bf16.mxu0 0
  %986 = vmatpush1.bf16.msra.mxu0 0
  %987 = vmatprep.subr.bf16.mxu0 0
  %988 = vmatpush1.bf16.msra.mxu0 0
  %989 = vmatprep.subr.bf16.mxu0 0
  %990 = vmatpush1.bf16.msra.mxu0 0
  %991 = vmatprep.subr.bf16.mxu0 0
  %992 = vmatpush1.bf16.msra.mxu0 0
  %993 = vmatprep.subr.bf16.mxu0 0
  %994 = vmatpush1.bf16.msra.mxu0 0
  %995 = vmatprep.subr.bf16.mxu0 0
  %996 = vmatpush1.bf16.msra.mxu0 0
  %997 = vmatprep.subr.bf16.mxu0 0
  %998 = vmatpush1.bf16.msra.mxu0 0
  %999 = vmatprep.subr.bf16.mxu0 0
  %1000 = vmatpush1.bf16.msra.mxu0 0
  %1001 = vmatprep.subr.bf16.mxu0 0
  %1002 = vmatpush1.bf16.msra.mxu0 0
  %1003 = vmatprep.subr.bf16.mxu0 0
  %1004 = vmatpush1.bf16.msra.mxu0 0
  %1005 = vmatprep.subr.bf16.mxu0 0
  %1006 = vmatpush1.bf16.msra.mxu0 0
  %1007 = vmatprep.subr.bf16.mxu0 0
  %1008 = vmatpush1.bf16.msra.mxu0 0
  %1009 = vmatprep.subr.bf16.mxu0 0
  %1010 = vmatpush1.bf16.msra.mxu0 0
  %1011 = vmatprep.subr.bf16.mxu0 0
  %1012 = vmatpush1.bf16.msra.mxu0 0
  %1013 = vmatprep.mubr.bf16.mxu0 0
  %1014 = vmatmul.mubr.bf16.gmra.mrb[0].mxu0 %v234
  %v1015 = vpop.f32.mrb[0].mxu0
  %v1016 = vadd.f32 0.0, %v1015
  %v1017 = vpop.f32.mrb[0].mxu0
  %v1018 = vadd.f32 0.0, %v1017
  %v1019 = vpop.f32.mrb[0].mxu0
  %v1020 = vadd.f32 0.0, %v1019
  %v1021 = vpop.f32.mrb[0].mxu0
  %v1022 = vadd.f32 0.0, %v1021
  %1023 = vmatprep.mubr.bf16.mxu0 0
  %1024 = vmatmul.mubr.bf16.gmra.mrb[0].mxu0 %v237
  %v1025 = vpop.f32.mrb[0].mxu0
  %v1026 = vadd.f32 0.0, %v1025
  %v1027 = vpop.f32.mrb[0].mxu0
  %v1028 = vadd.f32 0.0, %v1027
  %v1029 = vpop.f32.mrb[0].mxu0
  %v1030 = vadd.f32 0.0, %v1029
  %v1031 = vpop.f32.mrb[0].mxu0
  %v1032 = vadd.f32 0.0, %v1031
  %1033 = vdwg.mxu0
  %1034 = vmatprep.subr.bf16.mxu0 %v199
  %1035 = vmatpush1.bf16.msra.mxu0 %v198
  %1036 = vmatprep.subr.bf16.mxu0 0
  %1037 = vmatpush1.bf16.msra.mxu0 0
  %1038 = vmatprep.subr.bf16.mxu0 0
  %1039 = vmatpush1.bf16.msra.mxu0 0
  %1040 = vmatprep.subr.bf16.mxu0 0
  %1041 = vmatpush1.bf16.msra.mxu0 0
  %1042 = vmatprep.subr.bf16.mxu0 0
  %1043 = vmatpush1.bf16.msra.mxu0 0
  %1044 = vmatprep.subr.bf16.mxu0 0
  %1045 = vmatpush1.bf16.msra.mxu0 0
  %1046 = vmatprep.subr.bf16.mxu0 0
  %1047 = vmatpush1.bf16.msra.mxu0 0
  %1048 = vmatprep.subr.bf16.mxu0 0
  %1049 = vmatpush1.bf16.msra.mxu0 0
  %1050 = vmatprep.subr.bf16.mxu0 0
  %1051 = vmatpush1.bf16.msra.mxu0 0
  %1052 = vmatprep.subr.bf16.mxu0 0
  %1053 = vmatpush1.bf16.msra.mxu0 0
  %1054 = vmatprep.subr.bf16.mxu0 0
  %1055 = vmatpush1.bf16.msra.mxu0 0
  %1056 = vmatprep.subr.bf16.mxu0 0
  %1057 = vmatpush1.bf16.msra.mxu0 0
  %1058 = vmatprep.subr.bf16.mxu0 0
  %1059 = vmatpush1.bf16.msra.mxu0 0
  %1060 = vmatprep.subr.bf16.mxu0 0
  %1061 = vmatpush1.bf16.msra.mxu0 0
  %1062 = vmatprep.subr.bf16.mxu0 0
  %1063 = vmatpush1.bf16.msra.mxu0 0
  %1064 = vmatprep.subr.bf16.mxu0 0
  %1065 = vmatpush1.bf16.msra.mxu0 0
  %1066 = vmatprep.mubr.bf16.mxu0 0
  %1067 = vmatmul.mubr.bf16.gmra.mrb[0].mxu0 %v234
  %v1068 = vpop.f32.mrb[0].mxu0
  %v1069 = vadd.f32 0.0, %v1068
  %v1070 = vpop.f32.mrb[0].mxu0
  %v1071 = vadd.f32 0.0, %v1070
  %v1072 = vpop.f32.mrb[0].mxu0
  %v1073 = vadd.f32 0.0, %v1072
  %v1074 = vpop.f32.mrb[0].mxu0
  %v1075 = vadd.f32 0.0, %v1074
  %1076 = vmatprep.mubr.bf16.mxu0 0
  %1077 = vmatmul.mubr.bf16.gmra.mrb[0].mxu0 %v237
  %v1078 = vpop.f32.mrb[0].mxu0
  %v1079 = vadd.f32 0.0, %v1078
  %v1080 = vpop.f32.mrb[0].mxu0
  %v1081 = vadd.f32 0.0, %v1080
  %v1082 = vpop.f32.mrb[0].mxu0
  %v1083 = vadd.f32 0.0, %v1082
  %v1084 = vpop.f32.mrb[0].mxu0
  %v1085 = vadd.f32 0.0, %v1084
  %1086 = vdwg.mxu0
  %1088 = vset.pattern.permute.xlu0 0
  %1089 = vperm.xlu0 %1088, %v22
  %v1090 = vpop.permute.xlu0 %1089
  %1093 = vset.pattern.permute.xlu0 0
  %1094 = vperm.xlu0 %1093, %v23
  %v1095 = vpop.permute.xlu0 %1094
  %1098 = vset.pattern.permute.xlu0 0
  %1099 = vperm.xlu0 %1098, %v24
  %v1100 = vpop.permute.xlu0 %1099
  %1103 = vset.pattern.permute.xlu0 0
  %1104 = vperm.xlu0 %1103, %v25
  %v1105 = vpop.permute.xlu0 %1104
  %v1107 = vmul.f32 %v274, %v1090
  %v1108 = vmul.f32 %v276, %v1090
  %v1109 = vmul.f32 %v327, %v1090
  %v1110 = vmul.f32 %v329, %v1090
  %v1111 = vmul.f32 %v380, %v1090
  %v1112 = vmul.f32 %v382, %v1090
  %v1113 = vmul.f32 %v433, %v1090
  %v1114 = vmul.f32 %v435, %v1090
  %v1115 = vmul.f32 %v486, %v1090
  %v1116 = vmul.f32 %v488, %v1090
  %v1117 = vmul.f32 %v539, %v1090
  %v1118 = vmul.f32 %v541, %v1090
  %v1119 = vmul.f32 %v592, %v1090
  %v1120 = vmul.f32 %v594, %v1090
  %v1121 = vmul.f32 %v645, %v1090
  %v1122 = vmul.f32 %v647, %v1090
  %v1123 = vmul.f32 %v698, %v1090
  %v1124 = vmul.f32 %v700, %v1090
  %v1125 = vmul.f32 %v751, %v1090
  %v1126 = vmul.f32 %v753, %v1090
  %v1127 = vmul.f32 %v804, %v1090
  %v1128 = vmul.f32 %v806, %v1090
  %v1129 = vmul.f32 %v857, %v1090
  %v1130 = vmul.f32 %v859, %v1090
  %v1131 = vmul.f32 %v910, %v1090
  %v1132 = vmul.f32 %v912, %v1090
  %v1133 = vmul.f32 %v963, %v1090
  %v1134 = vmul.f32 %v965, %v1090
  %v1135 = vmul.f32 %v1016, %v1090
  %v1136 = vmul.f32 %v1018, %v1090
  %v1137 = vmul.f32 %v1069, %v1090
  %v1138 = vmul.f32 %v1071, %v1090
  %v1139 = vmul.f32 %v278, %v1095
  %v1140 = vmul.f32 %v280, %v1095
  %v1141 = vmul.f32 %v331, %v1095
  %v1142 = vmul.f32 %v333, %v1095
  %v1143 = vmul.f32 %v384, %v1095
  %v1144 = vmul.f32 %v386, %v1095
  %v1145 = vmul.f32 %v437, %v1095
  %v1146 = vmul.f32 %v439, %v1095
  %v1147 = vmul.f32 %v490, %v1095
  %v1148 = vmul.f32 %v492, %v1095
  %v1149 = vmul.f32 %v543, %v1095
  %v1150 = vmul.f32 %v545, %v1095
  %v1151 = vmul.f32 %v596, %v1095
  %v1152 = vmul.f32 %v598, %v1095
  %v1153 = vmul.f32 %v649, %v1095
  %v1154 = vmul.f32 %v651, %v1095
  %v1155 = vmul.f32 %v702, %v1095
  %v1156 = vmul.f32 %v704, %v1095
  %v1157 = vmul.f32 %v755, %v1095
  %v1158 = vmul.f32 %v757, %v1095
  %v1159 = vmul.f32 %v808, %v1095
  %v1160 = vmul.f32 %v810, %v1095
  %v1161 = vmul.f32 %v861, %v1095
  %v1162 = vmul.f32 %v863, %v1095
  %v1163 = vmul.f32 %v914, %v1095
  %v1164 = vmul.f32 %v916, %v1095
  %v1165 = vmul.f32 %v967, %v1095
  %v1166 = vmul.f32 %v969, %v1095
  %v1167 = vmul.f32 %v1020, %v1095
  %v1168 = vmul.f32 %v1022, %v1095
  %v1169 = vmul.f32 %v1073, %v1095
  %v1170 = vmul.f32 %v1075, %v1095
  %v1171 = vmul.f32 %v284, %v1100
  %v1172 = vmul.f32 %v286, %v1100
  %v1173 = vmul.f32 %v337, %v1100
  %v1174 = vmul.f32 %v339, %v1100
  %v1175 = vmul.f32 %v390, %v1100
  %v1176 = vmul.f32 %v392, %v1100
  %v1177 = vmul.f32 %v443, %v1100
  %v1178 = vmul.f32 %v445, %v1100
  %v1179 = vmul.f32 %v496, %v1100
  %v1180 = vmul.f32 %v498, %v1100
  %v1181 = vmul.f32 %v549, %v1100
  %v1182 = vmul.f32 %v551, %v1100
  %v1183 = vmul.f32 %v602, %v1100
  %v1184 = vmul.f32 %v604, %v1100
  %v1185 = vmul.f32 %v655, %v1100
  %v1186 = vmul.f32 %v657, %v1100
  %v1187 = vmul.f32 %v708, %v1100
  %v1188 = vmul.f32 %v710, %v1100
  %v1189 = vmul.f32 %v761, %v1100
  %v1190 = vmul.f32 %v763, %v1100
  %v1191 = vmul.f32 %v814, %v1100
  %v1192 = vmul.f32 %v816, %v1100
  %v1193 = vmul.f32 %v867, %v1100
  %v1194 = vmul.f32 %v869, %v1100
  %v1195 = vmul.f32 %v920, %v1100
  %v1196 = vmul.f32 %v922, %v1100
  %v1197 = vmul.f32 %v973, %v1100
  %v1198 = vmul.f32 %v975, %v1100
  %v1199 = vmul.f32 %v1026, %v1100
  %v1200 = vmul.f32 %v1028, %v1100
  %v1201 = vmul.f32 %v1079, %v1100
  %v1202 = vmul.f32 %v1081, %v1100
  %v1203 = vmul.f32 %v288, %v1105
  %v1204 = vmul.f32 %v290, %v1105
  %v1205 = vmul.f32 %v341, %v1105
  %v1206 = vmul.f32 %v343, %v1105
  %v1207 = vmul.f32 %v394, %v1105
  %v1208 = vmul.f32 %v396, %v1105
  %v1209 = vmul.f32 %v447, %v1105
  %v1210 = vmul.f32 %v449, %v1105
  %v1211 = vmul.f32 %v500, %v1105
  %v1212 = vmul.f32 %v502, %v1105
  %v1213 = vmul.f32 %v553, %v1105
  %v1214 = vmul.f32 %v555, %v1105
  %v1215 = vmul.f32 %v606, %v1105
  %v1216 = vmul.f32 %v608, %v1105
  %v1217 = vmul.f32 %v659, %v1105
  %v1218 = vmul.f32 %v661, %v1105
  %v1219 = vmul.f32 %v712, %v1105
  %v1220 = vmul.f32 %v714, %v1105
  %v1221 = vmul.f32 %v765, %v1105
  %v1222 = vmul.f32 %v767, %v1105
  %v1223 = vmul.f32 %v818, %v1105
  %v1224 = vmul.f32 %v820, %v1105
  %v1225 = vmul.f32 %v871, %v1105
  %v1226 = vmul.f32 %v873, %v1105
  %v1227 = vmul.f32 %v924, %v1105
  %v1228 = vmul.f32 %v926, %v1105
  %v1229 = vmul.f32 %v977, %v1105
  %v1230 = vmul.f32 %v979, %v1105
  %v1231 = vmul.f32 %v1030, %v1105
  %v1232 = vmul.f32 %v1032, %v1105
  %v1233 = vmul.f32 %v1083, %v1105
  %v1234 = vmul.f32 %v1085, %v1105
  %1236 = vset.pattern.permute.xlu0 0
  %1237 = vperm.xlu0 %1236, %v26
  %v1238 = vpop.permute.xlu0 %1237
  %1241 = vset.pattern.permute.xlu0 0
  %1242 = vperm.xlu0 %1241, %v27
  %v1243 = vpop.permute.xlu0 %1242
  %1246 = vset.pattern.permute.xlu0 0
  %1247 = vperm.xlu0 %1246, %v28
  %v1248 = vpop.permute.xlu0 %1247
  %1251 = vset.pattern.permute.xlu0 0
  %1252 = vperm.xlu0 %1251, %v29
  %v1253 = vpop.permute.xlu0 %1252
  %v1255 = vadd.f32 %v1107, %v1238
  %v1256 = vadd.f32 %v1108, %v1238
  %v1257 = vadd.f32 %v1109, %v1238
  %v1258 = vadd.f32 %v1110, %v1238
  %v1259 = vadd.f32 %v1111, %v1238
  %v1260 = vadd.f32 %v1112, %v1238
  %v1261 = vadd.f32 %v1113, %v1238
  %v1262 = vadd.f32 %v1114, %v1238
  %v1263 = vadd.f32 %v1115, %v1238
  %v1264 = vadd.f32 %v1116, %v1238
  %v1265 = vadd.f32 %v1117, %v1238
  %v1266 = vadd.f32 %v1118, %v1238
  %v1267 = vadd.f32 %v1119, %v1238
  %v1268 = vadd.f32 %v1120, %v1238
  %v1269 = vadd.f32 %v1121, %v1238
  %v1270 = vadd.f32 %v1122, %v1238
  %v1271 = vadd.f32 %v1123, %v1238
  %v1272 = vadd.f32 %v1124, %v1238
  %v1273 = vadd.f32 %v1125, %v1238
  %v1274 = vadd.f32 %v1126, %v1238
  %v1275 = vadd.f32 %v1127, %v1238
  %v1276 = vadd.f32 %v1128, %v1238
  %v1277 = vadd.f32 %v1129, %v1238
  %v1278 = vadd.f32 %v1130, %v1238
  %v1279 = vadd.f32 %v1131, %v1238
  %v1280 = vadd.f32 %v1132, %v1238
  %v1281 = vadd.f32 %v1133, %v1238
  %v1282 = vadd.f32 %v1134, %v1238
  %v1283 = vadd.f32 %v1135, %v1238
  %v1284 = vadd.f32 %v1136, %v1238
  %v1285 = vadd.f32 %v1137, %v1238
  %v1286 = vadd.f32 %v1138, %v1238
  %v1287 = vadd.f32 %v1139, %v1243
  %v1288 = vadd.f32 %v1140, %v1243
  %v1289 = vadd.f32 %v1141, %v1243
  %v1290 = vadd.f32 %v1142, %v1243
  %v1291 = vadd.f32 %v1143, %v1243
  %v1292 = vadd.f32 %v1144, %v1243
  %v1293 = vadd.f32 %v1145, %v1243
  %v1294 = vadd.f32 %v1146, %v1243
  %v1295 = vadd.f32 %v1147, %v1243
  %v1296 = vadd.f32 %v1148, %v1243
  %v1297 = vadd.f32 %v1149, %v1243
  %v1298 = vadd.f32 %v1150, %v1243
  %v1299 = vadd.f32 %v1151, %v1243
  %v1300 = vadd.f32 %v1152, %v1243
  %v1301 = vadd.f32 %v1153, %v1243
  %v1302 = vadd.f32 %v1154, %v1243
  %v1303 = vadd.f32 %v1155, %v1243
  %v1304 = vadd.f32 %v1156, %v1243
  %v1305 = vadd.f32 %v1157, %v1243
  %v1306 = vadd.f32 %v1158, %v1243
  %v1307 = vadd.f32 %v1159, %v1243
  %v1308 = vadd.f32 %v1160, %v1243
  %v1309 = vadd.f32 %v1161, %v1243
  %v1310 = vadd.f32 %v1162, %v1243
  %v1311 = vadd.f32 %v1163, %v1243
  %v1312 = vadd.f32 %v1164, %v1243
  %v1313 = vadd.f32 %v1165, %v1243
  %v1314 = vadd.f32 %v1166, %v1243
  %v1315 = vadd.f32 %v1167, %v1243
  %v1316 = vadd.f32 %v1168, %v1243
  %v1317 = vadd.f32 %v1169, %v1243
  %v1318 = vadd.f32 %v1170, %v1243
  %v1319 = vadd.f32 %v1171, %v1248
  %v1320 = vadd.f32 %v1172, %v1248
  %v1321 = vadd.f32 %v1173, %v1248
  %v1322 = vadd.f32 %v1174, %v1248
  %v1323 = vadd.f32 %v1175, %v1248
  %v1324 = vadd.f32 %v1176, %v1248
  %v1325 = vadd.f32 %v1177, %v1248
  %v1326 = vadd.f32 %v1178, %v1248
  %v1327 = vadd.f32 %v1179, %v1248
  %v1328 = vadd.f32 %v1180, %v1248
  %v1329 = vadd.f32 %v1181, %v1248
  %v1330 = vadd.f32 %v1182, %v1248
  %v1331 = vadd.f32 %v1183, %v1248
  %v1332 = vadd.f32 %v1184, %v1248
  %v1333 = vadd.f32 %v1185, %v1248
  %v1334 = vadd.f32 %v1186, %v1248
  %v1335 = vadd.f32 %v1187, %v1248
  %v1336 = vadd.f32 %v1188, %v1248
  %v1337 = vadd.f32 %v1189, %v1248
  %v1338 = vadd.f32 %v1190, %v1248
  %v1339 = vadd.f32 %v1191, %v1248
  %v1340 = vadd.f32 %v1192, %v1248
  %v1341 = vadd.f32 %v1193, %v1248
  %v1342 = vadd.f32 %v1194, %v1248
  %v1343 = vadd.f32 %v1195, %v1248
  %v1344 = vadd.f32 %v1196, %v1248
  %v1345 = vadd.f32 %v1197, %v1248
  %v1346 = vadd.f32 %v1198, %v1248
  %v1347 = vadd.f32 %v1199, %v1248
  %v1348 = vadd.f32 %v1200, %v1248
  %v1349 = vadd.f32 %v1201, %v1248
  %v1350 = vadd.f32 %v1202, %v1248
  %v1351 = vadd.f32 %v1203, %v1253
  %v1352 = vadd.f32 %v1204, %v1253
  %v1353 = vadd.f32 %v1205, %v1253
  %v1354 = vadd.f32 %v1206, %v1253
  %v1355 = vadd.f32 %v1207, %v1253
  %v1356 = vadd.f32 %v1208, %v1253
  %v1357 = vadd.f32 %v1209, %v1253
  %v1358 = vadd.f32 %v1210, %v1253
  %v1359 = vadd.f32 %v1211, %v1253
  %v1360 = vadd.f32 %v1212, %v1253
  %v1361 = vadd.f32 %v1213, %v1253
  %v1362 = vadd.f32 %v1214, %v1253
  %v1363 = vadd.f32 %v1215, %v1253
  %v1364 = vadd.f32 %v1216, %v1253
  %v1365 = vadd.f32 %v1217, %v1253
  %v1366 = vadd.f32 %v1218, %v1253
  %v1367 = vadd.f32 %v1219, %v1253
  %v1368 = vadd.f32 %v1220, %v1253
  %v1369 = vadd.f32 %v1221, %v1253
  %v1370 = vadd.f32 %v1222, %v1253
  %v1371 = vadd.f32 %v1223, %v1253
  %v1372 = vadd.f32 %v1224, %v1253
  %v1373 = vadd.f32 %v1225, %v1253
  %v1374 = vadd.f32 %v1226, %v1253
  %v1375 = vadd.f32 %v1227, %v1253
  %v1376 = vadd.f32 %v1228, %v1253
  %v1377 = vadd.f32 %v1229, %v1253
  %v1378 = vadd.f32 %v1230, %v1253
  %v1379 = vadd.f32 %v1231, %v1253
  %v1380 = vadd.f32 %v1232, %v1253
  %v1381 = vadd.f32 %v1233, %v1253
  %v1382 = vadd.f32 %v1234, %v1253
  %v1383 = vmax.f32 %v1255, 0.0
  %v1384 = vmax.f32 %v1256, 0.0
  %v1385 = vmax.f32 %v1257, 0.0
  %v1386 = vmax.f32 %v1258, 0.0
  %v1387 = vmax.f32 %v1259, 0.0
  %v1388 = vmax.f32 %v1260, 0.0
  %v1389 = vmax.f32 %v1261, 0.0
  %v1390 = vmax.f32 %v1262, 0.0
  %v1391 = vmax.f32 %v1263, 0.0
  %v1392 = vmax.f32 %v1264, 0.0
  %v1393 = vmax.f32 %v1265, 0.0
  %v1394 = vmax.f32 %v1266, 0.0
  %v1395 = vmax.f32 %v1267, 0.0
  %v1396 = vmax.f32 %v1268, 0.0
  %v1397 = vmax.f32 %v1269, 0.0
  %v1398 = vmax.f32 %v1270, 0.0
  %v1399 = vmax.f32 %v1271, 0.0
  %v1400 = vmax.f32 %v1272, 0.0
  %v1401 = vmax.f32 %v1273, 0.0
  %v1402 = vmax.f32 %v1274, 0.0
  %v1403 = vmax.f32 %v1275, 0.0
  %v1404 = vmax.f32 %v1276, 0.0
  %v1405 = vmax.f32 %v1277, 0.0
  %v1406 = vmax.f32 %v1278, 0.0
  %v1407 = vmax.f32 %v1279, 0.0
  %v1408 = vmax.f32 %v1280, 0.0
  %v1409 = vmax.f32 %v1281, 0.0
  %v1410 = vmax.f32 %v1282, 0.0
  %v1411 = vmax.f32 %v1283, 0.0
  %v1412 = vmax.f32 %v1284, 0.0
  %v1413 = vmax.f32 %v1285, 0.0
  %v1414 = vmax.f32 %v1286, 0.0
  %v1415 = vmax.f32 %v1287, 0.0
  %v1416 = vmax.f32 %v1288, 0.0
  %v1417 = vmax.f32 %v1289, 0.0
  %v1418 = vmax.f32 %v1290, 0.0
  %v1419 = vmax.f32 %v1291, 0.0
  %v1420 = vmax.f32 %v1292, 0.0
  %v1421 = vmax.f32 %v1293, 0.0
  %v1422 = vmax.f32 %v1294, 0.0
  %v1423 = vmax.f32 %v1295, 0.0
  %v1424 = vmax.f32 %v1296, 0.0
  %v1425 = vmax.f32 %v1297, 0.0
  %v1426 = vmax.f32 %v1298, 0.0
  %v1427 = vmax.f32 %v1299, 0.0
  %v1428 = vmax.f32 %v1300, 0.0
  %v1429 = vmax.f32 %v1301, 0.0
  %v1430 = vmax.f32 %v1302, 0.0
  %v1431 = vmax.f32 %v1303, 0.0
  %v1432 = vmax.f32 %v1304, 0.0
  %v1433 = vmax.f32 %v1305, 0.0
  %v1434 = vmax.f32 %v1306, 0.0
  %v1435 = vmax.f32 %v1307, 0.0
  %v1436 = vmax.f32 %v1308, 0.0
  %v1437 = vmax.f32 %v1309, 0.0
  %v1438 = vmax.f32 %v1310, 0.0
  %v1439 = vmax.f32 %v1311, 0.0
  %v1440 = vmax.f32 %v1312, 0.0
  %v1441 = vmax.f32 %v1313, 0.0
  %v1442 = vmax.f32 %v1314, 0.0
  %v1443 = vmax.f32 %v1315, 0.0
  %v1444 = vmax.f32 %v1316, 0.0
  %v1445 = vmax.f32 %v1317, 0.0
  %v1446 = vmax.f32 %v1318, 0.0
  %v1447 = vmax.f32 %v1319, 0.0
  %v1448 = vmax.f32 %v1320, 0.0
  %v1449 = vmax.f32 %v1321, 0.0
  %v1450 = vmax.f32 %v1322, 0.0
  %v1451 = vmax.f32 %v1323, 0.0
  %v1452 = vmax.f32 %v1324, 0.0
  %v1453 = vmax.f32 %v1325, 0.0
  %v1454 = vmax.f32 %v1326, 0.0
  %v1455 = vmax.f32 %v1327, 0.0
  %v1456 = vmax.f32 %v1328, 0.0
  %v1457 = vmax.f32 %v1329, 0.0
  %v1458 = vmax.f32 %v1330, 0.0
  %v1459 = vmax.f32 %v1331, 0.0
  %v1460 = vmax.f32 %v1332, 0.0
  %v1461 = vmax.f32 %v1333, 0.0
  %v1462 = vmax.f32 %v1334, 0.0
  %v1463 = vmax.f32 %v1335, 0.0
  %v1464 = vmax.f32 %v1336, 0.0
  %v1465 = vmax.f32 %v1337, 0.0
  %v1466 = vmax.f32 %v1338, 0.0
  %v1467 = vmax.f32 %v1339, 0.0
  %v1468 = vmax.f32 %v1340, 0.0
  %v1469 = vmax.f32 %v1341, 0.0
  %v1470 = vmax.f32 %v1342, 0.0
  %v1471 = vmax.f32 %v1343, 0.0
  %v1472 = vmax.f32 %v1344, 0.0
  %v1473 = vmax.f32 %v1345, 0.0
  %v1474 = vmax.f32 %v1346, 0.0
  %v1475 = vmax.f32 %v1347, 0.0
  %v1476 = vmax.f32 %v1348, 0.0
  %v1477 = vmax.f32 %v1349, 0.0
  %v1478 = vmax.f32 %v1350, 0.0
  %v1479 = vmax.f32 %v1351, 0.0
  %v1480 = vmax.f32 %v1352, 0.0
  %v1481 = vmax.f32 %v1353, 0.0
  %v1482 = vmax.f32 %v1354, 0.0
  %v1483 = vmax.f32 %v1355, 0.0
  %v1484 = vmax.f32 %v1356, 0.0
  %v1485 = vmax.f32 %v1357, 0.0
  %v1486 = vmax.f32 %v1358, 0.0
  %v1487 = vmax.f32 %v1359, 0.0
  %v1488 = vmax.f32 %v1360, 0.0
  %v1489 = vmax.f32 %v1361, 0.0
  %v1490 = vmax.f32 %v1362, 0.0
  %v1491 = vmax.f32 %v1363, 0.0
  %v1492 = vmax.f32 %v1364, 0.0
  %v1493 = vmax.f32 %v1365, 0.0
  %v1494 = vmax.f32 %v1366, 0.0
  %v1495 = vmax.f32 %v1367, 0.0
  %v1496 = vmax.f32 %v1368, 0.0
  %v1497 = vmax.f32 %v1369, 0.0
  %v1498 = vmax.f32 %v1370, 0.0
  %v1499 = vmax.f32 %v1371, 0.0
  %v1500 = vmax.f32 %v1372, 0.0
  %v1501 = vmax.f32 %v1373, 0.0
  %v1502 = vmax.f32 %v1374, 0.0
  %v1503 = vmax.f32 %v1375, 0.0
  %v1504 = vmax.f32 %v1376, 0.0
  %v1505 = vmax.f32 %v1377, 0.0
  %v1506 = vmax.f32 %v1378, 0.0
  %v1507 = vmax.f32 %v1379, 0.0
  %v1508 = vmax.f32 %v1380, 0.0
  %v1509 = vmax.f32 %v1381, 0.0
  %v1510 = vmax.f32 %v1382, 0.0
  %v1511 = vmax.f32 %v1383, %v1391
  %v1512 = vmax.f32 %v1384, %v1392
  %v1513 = vmax.f32 %v1385, %v1393
  %v1514 = vmax.f32 %v1386, %v1394
  %v1515 = vmax.f32 %v1387, %v1395
  %v1516 = vmax.f32 %v1388, %v1396
  %v1517 = vmax.f32 %v1389, %v1397
  %v1518 = vmax.f32 %v1390, %v1398
  %v1519 = vmax.f32 %v1415, %v1423
  %v1520 = vmax.f32 %v1416, %v1424
  %v1521 = vmax.f32 %v1417, %v1425
  %v1522 = vmax.f32 %v1418, %v1426
  %v1523 = vmax.f32 %v1419, %v1427
  %v1524 = vmax.f32 %v1420, %v1428
  %v1525 = vmax.f32 %v1421, %v1429
  %v1526 = vmax.f32 %v1422, %v1430
  %v1527 = vmax.f32 %v1447, %v1455
  %v1528 = vmax.f32 %v1448, %v1456
  %v1529 = vmax.f32 %v1449, %v1457
  %v1530 = vmax.f32 %v1450, %v1458
  %v1531 = vmax.f32 %v1451, %v1459
  %v1532 = vmax.f32 %v1452, %v1460
  %v1533 = vmax.f32 %v1453, %v1461
  %v1534 = vmax.f32 %v1454, %v1462
  %v1535 = vmax.f32 %v1479, %v1487
  %v1536 = vmax.f32 %v1480, %v1488
  %v1537 = vmax.f32 %v1481, %v1489
  %v1538 = vmax.f32 %v1482, %v1490
  %v1539 = vmax.f32 %v1483, %v1491
  %v1540 = vmax.f32 %v1484, %v1492
  %v1541 = vmax.f32 %v1485, %v1493
  %v1542 = vmax.f32 %v1486, %v1494
  %v1543 = vmax.f32 %v1399, %v1407
  %v1544 = vmax.f32 %v1400, %v1408
  %v1545 = vmax.f32 %v1401, %v1409
  %v1546 = vmax.f32 %v1402, %v1410
  %v1547 = vmax.f32 %v1403, %v1411
  %v1548 = vmax.f32 %v1404, %v1412
  %v1549 = vmax.f32 %v1405, %v1413
  %v1550 = vmax.f32 %v1406, %v1414
  %v1551 = vmax.f32 %v1431, %v1439
  %v1552 = vmax.f32 %v1432, %v1440
  %v1553 = vmax.f32 %v1433, %v1441
  %v1554 = vmax.f32 %v1434, %v1442
  %v1555 = vmax.f32 %v1435, %v1443
  %v1556 = vmax.f32 %v1436, %v1444
  %v1557 = vmax.f32 %v1437, %v1445
  %v1558 = vmax.f32 %v1438, %v1446
  %v1559 = vmax.f32 %v1463, %v1471
  %v1560 = vmax.f32 %v1464, %v1472
  %v1561 = vmax.f32 %v1465, %v1473
  %v1562 = vmax.f32 %v1466, %v1474
  %v1563 = vmax.f32 %v1467, %v1475
  %v1564 = vmax.f32 %v1468, %v1476
  %v1565 = vmax.f32 %v1469, %v1477
  %v1566 = vmax.f32 %v1470, %v1478
  %v1567 = vmax.f32 %v1495, %v1503
  %v1568 = vmax.f32 %v1496, %v1504
  %v1569 = vmax.f32 %v1497, %v1505
  %v1570 = vmax.f32 %v1498, %v1506
  %v1571 = vmax.f32 %v1499, %v1507
  %v1572 = vmax.f32 %v1500, %v1508
  %v1573 = vmax.f32 %v1501, %v1509
  %v1574 = vmax.f32 %v1502, %v1510
  %v1575 = vmax.f32 %v1511, %v1543
  %v1576 = vmax.f32 %v1512, %v1544
  %v1577 = vmax.f32 %v1513, %v1545
  %v1578 = vmax.f32 %v1514, %v1546
  %v1579 = vmax.f32 %v1515, %v1547
  %v1580 = vmax.f32 %v1516, %v1548
  %v1581 = vmax.f32 %v1517, %v1549
  %v1582 = vmax.f32 %v1518, %v1550
  %v1583 = vmax.f32 %v1519, %v1551
  %v1584 = vmax.f32 %v1520, %v1552
  %v1585 = vmax.f32 %v1521, %v1553
  %v1586 = vmax.f32 %v1522, %v1554
  %v1587 = vmax.f32 %v1523, %v1555
  %v1588 = vmax.f32 %v1524, %v1556
  %v1589 = vmax.f32 %v1525, %v1557
  %v1590 = vmax.f32 %v1526, %v1558
  %v1591 = vmax.f32 %v1527, %v1559
  %v1592 = vmax.f32 %v1528, %v1560
  %v1593 = vmax.f32 %v1529, %v1561
  %v1594 = vmax.f32 %v1530, %v1562
  %v1595 = vmax.f32 %v1531, %v1563
  %v1596 = vmax.f32 %v1532, %v1564
  %v1597 = vmax.f32 %v1533, %v1565
  %v1598 = vmax.f32 %v1534, %v1566
  %v1599 = vmax.f32 %v1535, %v1567
  %v1600 = vmax.f32 %v1536, %v1568
  %v1601 = vmax.f32 %v1537, %v1569
  %v1602 = vmax.f32 %v1538, %v1570
  %v1603 = vmax.f32 %v1539, %v1571
  %v1604 = vmax.f32 %v1540, %v1572
  %v1605 = vmax.f32 %v1541, %v1573
  %v1606 = vmax.f32 %v1542, %v1574
  %v1607 = vpack.c.bf16 %v1583, %v1575
  %v1608 = vpack.c.bf16 %v1584, %v1576
  %v1609 = vpack.c.bf16 %v1585, %v1577
  %v1610 = vpack.c.bf16 %v1586, %v1578
  %v1611 = vpack.c.bf16 %v1587, %v1579
  %v1612 = vpack.c.bf16 %v1588, %v1580
  %v1613 = vpack.c.bf16 %v1589, %v1581
  %v1614 = vpack.c.bf16 %v1590, %v1582
  %v1615 = vpack.c.bf16 %v1599, %v1591
  %v1616 = vpack.c.bf16 %v1600, %v1592
  %v1617 = vpack.c.bf16 %v1601, %v1593
  %v1618 = vpack.c.bf16 %v1602, %v1594
  %v1619 = vpack.c.bf16 %v1603, %v1595
  %v1620 = vpack.c.bf16 %v1604, %v1596
  %v1621 = vpack.c.bf16 %v1605, %v1597
  %v1622 = vpack.c.bf16 %v1606, %v1598
  %v1639 = vunpack.c.l.b16 %v1607
  %v1640 = vunpack.c.l.b16 %v1608
  %v1641 = vunpack.c.l.b16 %v1609
  %v1642 = vunpack.c.l.b16 %v1610
  %v1643 = vunpack.c.l.b16 %v1611
  %v1644 = vunpack.c.l.b16 %v1612
  %v1645 = vunpack.c.l.b16 %v1613
  %v1646 = vunpack.c.l.b16 %v1614
  %v1647 = vunpack.c.h.b16 %v1607
  %v1648 = vunpack.c.h.b16 %v1608
  %v1649 = vunpack.c.h.b16 %v1609
  %v1650 = vunpack.c.h.b16 %v1610
  %v1651 = vunpack.c.h.b16 %v1611
  %v1652 = vunpack.c.h.b16 %v1612
  %v1653 = vunpack.c.h.b16 %v1613
  %v1654 = vunpack.c.h.b16 %v1614
  %v1655 = vunpack.c.l.b16 %v1615
  %v1656 = vunpack.c.l.b16 %v1616
  %v1657 = vunpack.c.l.b16 %v1617
  %v1658 = vunpack.c.l.b16 %v1618
  %v1659 = vunpack.c.l.b16 %v1619
  %v1660 = vunpack.c.l.b16 %v1620
  %v1661 = vunpack.c.l.b16 %v1621
  %v1662 = vunpack.c.l.b16 %v1622
  %v1663 = vunpack.c.h.b16 %v1615
  %v1664 = vunpack.c.h.b16 %v1616
  %v1665 = vunpack.c.h.b16 %v1617
  %v1666 = vunpack.c.h.b16 %v1618
  %v1667 = vunpack.c.h.b16 %v1619
  %v1668 = vunpack.c.h.b16 %v1620
  %v1669 = vunpack.c.h.b16 %v1621
  %v1670 = vunpack.c.h.b16 %v1622
  %v1671 = vpack.c.b16 %v1640, %v1639
  %v1672 = vpack.c.b16 %v1642, %v1641
  %v1673 = vpack.c.b16 %v1644, %v1643
  %v1674 = vpack.c.b16 %v1646, %v1645
  %v1675 = vpack.c.b16 %v1648, %v1647
  %v1676 = vpack.c.b16 %v1650, %v1649
  %v1677 = vpack.c.b16 %v1652, %v1651
  %v1678 = vpack.c.b16 %v1654, %v1653
  %v1679 = vpack.c.b16 %v1656, %v1655
  %v1680 = vpack.c.b16 %v1658, %v1657
  %v1681 = vpack.c.b16 %v1660, %v1659
  %v1682 = vpack.c.b16 %v1662, %v1661
  %v1683 = vpack.c.b16 %v1664, %v1663
  %v1684 = vpack.c.b16 %v1666, %v1665
  %v1685 = vpack.c.b16 %v1668, %v1667
  %v1686 = vpack.c.b16 %v1670, %v1669
  %1703 = vst [vmem:[%s4] sm:$0xff] %v1671
  %1704 = vst [vmem:[%s4 + $0x8] sm:$0xff] %v1672
  %1705 = vst [vmem:[%s4 + $0x10] sm:$0xff] %v1673
  %1706 = vst [vmem:[%s4 + $0x18] sm:$0xff] %v1674
  %1707 = vst [vmem:[%s4 + $0x20] sm:$0xff] %v1675
  %1708 = vst [vmem:[%s4 + $0x28] sm:$0xff] %v1676
  %1709 = vst [vmem:[%s4 + $0x30] sm:$0xff] %v1677
  %1710 = vst [vmem:[%s4 + $0x38] sm:$0xff] %v1678
  %1711 = vst [vmem:[%s4 + $0x40] sm:$0xff] %v1679
  %1712 = vst [vmem:[%s4 + $0x48] sm:$0xff] %v1680
  %1713 = vst [vmem:[%s4 + $0x50] sm:$0xff] %v1681
  %1714 = vst [vmem:[%s4 + $0x58] sm:$0xff] %v1682
  %1715 = vst [vmem:[%s4 + $0x60] sm:$0xff] %v1683
  %1716 = vst [vmem:[%s4 + $0x68] sm:$0xff] %v1684
  %1717 = vst [vmem:[%s4 + $0x70] sm:$0xff] %v1685
  %1718 = vst [vmem:[%s4 + $0x78] sm:$0xff] %v1686
  %s1719 = scalar_lea.vmem %s0, 256
  %v1720 = vld [vmem:[%s1719] sm:$0xff]
  %v1721 = vld [vmem:[%s1719 + $0x8] sm:$0xff]
  %v1722 = vld [vmem:[%s1719 + $0x10] sm:$0xff]
  %v1723 = vld [vmem:[%s1719 + $0x18] sm:$0xff]
  %v1724 = vld [vmem:[%s1719 + $0x20] sm:$0xff]
  %v1725 = vld [vmem:[%s1719 + $0x28] sm:$0xff]
  %v1726 = vld [vmem:[%s1719 + $0x30] sm:$0xff]
  %v1727 = vld [vmem:[%s1719 + $0x38] sm:$0xff]
  %v1728 = vld [vmem:[%s1719 + $0x40] sm:$0xff]
  %v1729 = vld [vmem:[%s1719 + $0x48] sm:$0xff]
  %v1730 = vld [vmem:[%s1719 + $0x50] sm:$0xff]
  %v1731 = vld [vmem:[%s1719 + $0x58] sm:$0xff]
  %v1732 = vld [vmem:[%s1719 + $0x60] sm:$0xff]
  %v1733 = vld [vmem:[%s1719 + $0x68] sm:$0xff]
  %v1734 = vld [vmem:[%s1719 + $0x70] sm:$0xff]
  %v1735 = vld [vmem:[%s1719 + $0x78] sm:$0xff]
  %v1736 = vld [vmem:[%s1719 + $0x80] sm:$0xff]
  %v1737 = vld [vmem:[%s1719 + $0x88] sm:$0xff]
  %v1738 = vld [vmem:[%s1719 + $0x90] sm:$0xff]
  %v1739 = vld [vmem:[%s1719 + $0x98] sm:$0xff]
  %v1740 = vld [vmem:[%s1719 + $0xa0] sm:$0xff]
  %v1741 = vld [vmem:[%s1719 + $0xa8] sm:$0xff]
  %v1742 = vld [vmem:[%s1719 + $0xb0] sm:$0xff]
  %v1743 = vld [vmem:[%s1719 + $0xb8] sm:$0xff]
  %v1744 = vld [vmem:[%s1719 + $0xc0] sm:$0xff]
  %v1745 = vld [vmem:[%s1719 + $0xc8] sm:$0xff]
  %v1746 = vld [vmem:[%s1719 + $0xd0] sm:$0xff]
  %v1747 = vld [vmem:[%s1719 + $0xd8] sm:$0xff]
  %v1748 = vld [vmem:[%s1719 + $0xe0] sm:$0xff]
  %v1749 = vld [vmem:[%s1719 + $0xe8] sm:$0xff]
  %v1750 = vld [vmem:[%s1719 + $0xf0] sm:$0xff]
  %v1751 = vld [vmem:[%s1719 + $0xf8] sm:$0xff]
  %v1784 = vunpack.c.l.b16 %v1720
  %v1785 = vunpack.c.h.b16 %v1720
  %v1786 = vunpack.c.l.b16 %v1721
  %v1787 = vunpack.c.h.b16 %v1721
  %v1788 = vunpack.c.l.b16 %v1722
  %v1789 = vunpack.c.h.b16 %v1722
  %v1790 = vunpack.c.l.b16 %v1723
  %v1791 = vunpack.c.h.b16 %v1723
  %v1792 = vunpack.c.l.b16 %v1724
  %v1793 = vunpack.c.h.b16 %v1724
  %v1794 = vunpack.c.l.b16 %v1725
  %v1795 = vunpack.c.h.b16 %v1725
  %v1796 = vunpack.c.l.b16 %v1726
  %v1797 = vunpack.c.h.b16 %v1726
  %v1798 = vunpack.c.l.b16 %v1727
  %v1799 = vunpack.c.h.b16 %v1727
  %v1800 = vunpack.c.l.b16 %v1728
  %v1801 = vunpack.c.h.b16 %v1728
  %v1802 = vunpack.c.l.b16 %v1729
  %v1803 = vunpack.c.h.b16 %v1729
  %v1804 = vunpack.c.l.b16 %v1730
  %v1805 = vunpack.c.h.b16 %v1730
  %v1806 = vunpack.c.l.b16 %v1731
  %v1807 = vunpack.c.h.b16 %v1731
  %v1808 = vunpack.c.l.b16 %v1732
  %v1809 = vunpack.c.h.b16 %v1732
  %v1810 = vunpack.c.l.b16 %v1733
  %v1811 = vunpack.c.h.b16 %v1733
  %v1812 = vunpack.c.l.b16 %v1734
  %v1813 = vunpack.c.h.b16 %v1734
  %v1814 = vunpack.c.l.b16 %v1735
  %v1815 = vunpack.c.h.b16 %v1735
  %v1816 = vunpack.c.l.b16 %v1736
  %v1817 = vunpack.c.h.b16 %v1736
  %v1818 = vunpack.c.l.b16 %v1737
  %v1819 = vunpack.c.h.b16 %v1737
  %v1820 = vunpack.c.l.b16 %v1738
  %v1821 = vunpack.c.h.b16 %v1738
  %v1822 = vunpack.c.l.b16 %v1739
  %v1823 = vunpack.c.h.b16 %v1739
  %v1824 = vunpack.c.l.b16 %v1740
  %v1825 = vunpack.c.h.b16 %v1740
  %v1826 = vunpack.c.l.b16 %v1741
  %v1827 = vunpack.c.h.b16 %v1741
  %v1828 = vunpack.c.l.b16 %v1742
  %v1829 = vunpack.c.h.b16 %v1742
  %v1830 = vunpack.c.l.b16 %v1743
  %v1831 = vunpack.c.h.b16 %v1743
  %v1832 = vunpack.c.l.b16 %v1744
  %v1833 = vunpack.c.h.b16 %v1744
  %v1834 = vunpack.c.l.b16 %v1745
  %v1835 = vunpack.c.h.b16 %v1745
  %v1836 = vunpack.c.l.b16 %v1746
  %v1837 = vunpack.c.h.b16 %v1746
  %v1838 = vunpack.c.l.b16 %v1747
  %v1839 = vunpack.c.h.b16 %v1747
  %v1840 = vunpack.c.l.b16 %v1748
  %v1841 = vunpack.c.h.b16 %v1748
  %v1842 = vunpack.c.l.b16 %v1749
  %v1843 = vunpack.c.h.b16 %v1749
  %v1844 = vunpack.c.l.b16 %v1750
  %v1845 = vunpack.c.h.b16 %v1750
  %v1846 = vunpack.c.l.b16 %v1751
  %v1847 = vunpack.c.h.b16 %v1751
  %v1848 = vpack.c.b16 %v1816, %v1784
  %v1849 = vpack.c.b16 %v1817, %v1785
  %v1850 = vpack.c.b16 %v1818, %v1786
  %v1851 = vpack.c.b16 %v1819, %v1787
  %v1852 = vpack.c.b16 %v1820, %v1788
  %v1853 = vpack.c.b16 %v1821, %v1789
  %v1854 = vpack.c.b16 %v1822, %v1790
  %v1855 = vpack.c.b16 %v1823, %v1791
  %v1856 = vpack.c.b16 %v1824, %v1792
  %v1857 = vpack.c.b16 %v1825, %v1793
  %v1858 = vpack.c.b16 %v1826, %v1794
  %v1859 = vpack.c.b16 %v1827, %v1795
  %v1860 = vpack.c.b16 %v1828, %v1796
  %v1861 = vpack.c.b16 %v1829, %v1797
  %v1862 = vpack.c.b16 %v1830, %v1798
  %v1863 = vpack.c.b16 %v1831, %v1799
  %v1864 = vpack.c.b16 %v1832, %v1800
  %v1865 = vpack.c.b16 %v1833, %v1801
  %v1866 = vpack.c.b16 %v1834, %v1802
  %v1867 = vpack.c.b16 %v1835, %v1803
  %v1868 = vpack.c.b16 %v1836, %v1804
  %v1869 = vpack.c.b16 %v1837, %v1805
  %v1870 = vpack.c.b16 %v1838, %v1806
  %v1871 = vpack.c.b16 %v1839, %v1807
  %v1872 = vpack.c.b16 %v1840, %v1808
  %v1873 = vpack.c.b16 %v1841, %v1809
  %v1874 = vpack.c.b16 %v1842, %v1810
  %v1875 = vpack.c.b16 %v1843, %v1811
  %v1876 = vpack.c.b16 %v1844, %v1812
  %v1877 = vpack.c.b16 %v1845, %v1813
  %v1878 = vpack.c.b16 %v1846, %v1814
  %v1879 = vpack.c.b16 %v1847, %v1815
  %1912 = vmatprep.subr.bf16.mxu0 %v1849
  %1913 = vmatpush1.bf16.msra.mxu0 %v1848
  %1914 = vmatprep.subr.bf16.mxu0 0
  %1915 = vmatpush1.bf16.msra.mxu0 0
  %1916 = vmatprep.subr.bf16.mxu0 0
  %1917 = vmatpush1.bf16.msra.mxu0 0
  %1918 = vmatprep.subr.bf16.mxu0 0
  %1919 = vmatpush1.bf16.msra.mxu0 0
  %1920 = vmatprep.subr.bf16.mxu0 0
  %1921 = vmatpush1.bf16.msra.mxu0 0
  %1922 = vmatprep.subr.bf16.mxu0 0
  %1923 = vmatpush1.bf16.msra.mxu0 0
  %1924 = vmatprep.subr.bf16.mxu0 0
  %1925 = vmatpush1.bf16.msra.mxu0 0
  %1926 = vmatprep.subr.bf16.mxu0 0
  %1927 = vmatpush1.bf16.msra.mxu0 0
  %1928 = vmatprep.subr.bf16.mxu0 0
  %1929 = vmatpush1.bf16.msra.mxu0 0
  %1930 = vmatprep.subr.bf16.mxu0 0
  %1931 = vmatpush1.bf16.msra.mxu0 0
  %1932 = vmatprep.subr.bf16.mxu0 0
  %1933 = vmatpush1.bf16.msra.mxu0 0
  %1934 = vmatprep.subr.bf16.mxu0 0
  %1935 = vmatpush1.bf16.msra.mxu0 0
  %1936 = vmatprep.subr.bf16.mxu0 0
  %1937 = vmatpush1.bf16.msra.mxu0 0
  %1938 = vmatprep.subr.bf16.mxu0 0
  %1939 = vmatpush1.bf16.msra.mxu0 0
  %1940 = vmatprep.subr.bf16.mxu0 0
  %1941 = vmatpush1.bf16.msra.mxu0 0
  %1942 = vmatprep.subr.bf16.mxu0 0
  %1943 = vmatpush1.bf16.msra.mxu0 0
  %1944 = vmatprep.mubr.bf16.mxu0 0
  %1945 = vmatmul.mubr.bf16.gmra.mrb[0].mxu0 %v234
  %v1946 = vpop.f32.mrb[0].mxu0
  %v1947 = vadd.f32 0.0, %v1946
  %v1948 = vpop.f32.mrb[0].mxu0
  %v1949 = vadd.f32 0.0, %v1948
  %v1950 = vpop.f32.mrb[0].mxu0
  %v1951 = vadd.f32 0.0, %v1950
  %v1952 = vpop.f32.mrb[0].mxu0
  %v1953 = vadd.f32 0.0, %v1952
  %1954 = vmatprep.mubr.bf16.mxu0 0
  %1955 = vmatmul.mubr.bf16.gmra.mrb[0].mxu0 %v237
  %v1956 = vpop.f32.mrb[0].mxu0
  %v1957 = vadd.f32 0.0, %v1956
  %v1958 = vpop.f32.mrb[0].mxu0
  %v1959 = vadd.f32 0.0, %v1958
  %v1960 = vpop.f32.mrb[0].mxu0
  %v1961 = vadd.f32 0.0, %v1960
  %v1962 = vpop.f32.mrb[0].mxu0
  %v1963 = vadd.f32 0.0, %v1962
  %1964 = vdwg.mxu0
  %1965 = vmatprep.subr.bf16.mxu0 %v1851
  %1966 = vmatpush1.bf16.msra.mxu0 %v1850
  %1967 = vmatprep.subr.bf16.mxu0 0
  %1968 = vmatpush1.bf16.msra.mxu0 0
  %1969 = vmatprep.subr.bf16.mxu0 0
  %1970 = vmatpush1.bf16.msra.mxu0 0
  %1971 = vmatprep.subr.bf16.mxu0 0
  %1972 = vmatpush1.bf16.msra.mxu0 0
  %1973 = vmatprep.subr.bf16.mxu0 0
  %1974 = vmatpush1.bf16.msra.mxu0 0
  %1975 = vmatprep.subr.bf16.mxu0 0
  %1976 = vmatpush1.bf16.msra.mxu0 0
  %1977 = vmatprep.subr.bf16.mxu0 0
  %1978 = vmatpush1.bf16.msra.mxu0 0
  %1979 = vmatprep.subr.bf16.mxu0 0
  %1980 = vmatpush1.bf16.msra.mxu0 0
  %1981 = vmatprep.subr.bf16.mxu0 0
  %1982 = vmatpush1.bf16.msra.mxu0 0
  %1983 = vmatprep.subr.bf16.mxu0 0
  %1984 = vmatpush1.bf16.msra.mxu0 0
  %1985 = vmatprep.subr.bf16.mxu0 0
  %1986 = vmatpush1.bf16.msra.mxu0 0
  %1987 = vmatprep.subr.bf16.mxu0 0
  %1988 = vmatpush1.bf16.msra.mxu0 0
  %1989 = vmatprep.subr.bf16.mxu0 0
  %1990 = vmatpush1.bf16.msra.mxu0 0
  %1991 = vmatprep.subr.bf16.mxu0 0
  %1992 = vmatpush1.bf16.msra.mxu0 0
  %1993 = vmatprep.subr.bf16.mxu0 0
  %1994 = vmatpush1.bf16.msra.mxu0 0
  %1995 = vmatprep.subr.bf16.mxu0 0
  %1996 = vmatpush1.bf16.msra.mxu0 0
  %1997 = vmatprep.mubr.bf16.mxu0 0
  %1998 = vmatmul.mubr.bf16.gmra.mrb[0].mxu0 %v234
  %v1999 = vpop.f32.mrb[0].mxu0
  %v2000 = vadd.f32 0.0, %v1999
  %v2001 = vpop.f32.mrb[0].mxu0
  %v2002 = vadd.f32 0.0, %v2001
  %v2003 = vpop.f32.mrb[0].mxu0
  %v2004 = vadd.f32 0.0, %v2003
  %v2005 = vpop.f32.mrb[0].mxu0
  %v2006 = vadd.f32 0.0, %v2005
  %2007 = vmatprep.mubr.bf16.mxu0 0
  %2008 = vmatmul.mubr.bf16.gmra.mrb[0].mxu0 %v237
  %v2009 = vpop.f32.mrb[0].mxu0
  %v2010 = vadd.f32 0.0, %v2009
  %v2011 = vpop.f32.mrb[0].mxu0
  %v2012 = vadd.f32 0.0, %v2011
  %v2013 = vpop.f32.mrb[0].mxu0
  %v2014 = vadd.f32 0.0, %v2013
  %v2015 = vpop.f32.mrb[0].mxu0
  %v2016 = vadd.f32 0.0, %v2015
  %2017 = vdwg.mxu0
  %2018 = vmatprep.subr.bf16.mxu0 %v1853
  %2019 = vmatpush1.bf16.msra.mxu0 %v1852
  %2020 = vmatprep.subr.bf16.mxu0 0
  %2021 = vmatpush1.bf16.msra.mxu0 0
  %2022 = vmatprep.subr.bf16.mxu0 0
  %2023 = vmatpush1.bf16.msra.mxu0 0
  %2024 = vmatprep.subr.bf16.mxu0 0
  %2025 = vmatpush1.bf16.msra.mxu0 0
  %2026 = vmatprep.subr.bf16.mxu0 0
  %2027 = vmatpush1.bf16.msra.mxu0 0
  %2028 = vmatprep.subr.bf16.mxu0 0
  %2029 = vmatpush1.bf16.msra.mxu0 0
  %2030 = vmatprep.subr.bf16.mxu0 0
  %2031 = vmatpush1.bf16.msra.mxu0 0
  %2032 = vmatprep.subr.bf16.mxu0 0
  %2033 = vmatpush1.bf16.msra.mxu0 0
  %2034 = vmatprep.subr.bf16.mxu0 0
  %2035 = vmatpush1.bf16.msra.mxu0 0
  %2036 = vmatprep.subr.bf16.mxu0 0
  %2037 = vmatpush1.bf16.msra.mxu0 0
  %2038 = vmatprep.subr.bf16.mxu0 0
  %2039 = vmatpush1.bf16.msra.mxu0 0
  %2040 = vmatprep.subr.bf16.mxu0 0
  %2041 = vmatpush1.bf16.msra.mxu0 0
  %2042 = vmatprep.subr.bf16.mxu0 0
  %2043 = vmatpush1.bf16.msra.mxu0 0
  %2044 = vmatprep.subr.bf16.mxu0 0
  %2045 = vmatpush1.bf16.msra.mxu0 0
  %2046 = vmatprep.subr.bf16.mxu0 0
  %2047 = vmatpush1.bf16.msra.mxu0 0
  %2048 = vmatprep.subr.bf16.mxu0 0
  %2049 = vmatpush1.bf16.msra.mxu0 0
  %2050 = vmatprep.mubr.bf16.mxu0 0
  %2051 = vmatmul.mubr.bf16.gmra.mrb[0].mxu0 %v234
  %v2052 = vpop.f32.mrb[0].mxu0
  %v2053 = vadd.f32 0.0, %v2052
  %v2054 = vpop.f32.mrb[0].mxu0
  %v2055 = vadd.f32 0.0, %v2054
  %v2056 = vpop.f32.mrb[0].mxu0
  %v2057 = vadd.f32 0.0, %v2056
  %v2058 = vpop.f32.mrb[0].mxu0
  %v2059 = vadd.f32 0.0, %v2058
  %2060 = vmatprep.mubr.bf16.mxu0 0
  %2061 = vmatmul.mubr.bf16.gmra.mrb[0].mxu0 %v237
  %v2062 = vpop.f32.mrb[0].mxu0
  %v2063 = vadd.f32 0.0, %v2062
  %v2064 = vpop.f32.mrb[0].mxu0
  %v2065 = vadd.f32 0.0, %v2064
  %v2066 = vpop.f32.mrb[0].mxu0
  %v2067 = vadd.f32 0.0, %v2066
  %v2068 = vpop.f32.mrb[0].mxu0
  %v2069 = vadd.f32 0.0, %v2068
  %2070 = vdwg.mxu0
  %2071 = vmatprep.subr.bf16.mxu0 %v1855
  %2072 = vmatpush1.bf16.msra.mxu0 %v1854
  %2073 = vmatprep.subr.bf16.mxu0 0
  %2074 = vmatpush1.bf16.msra.mxu0 0
  %2075 = vmatprep.subr.bf16.mxu0 0
  %2076 = vmatpush1.bf16.msra.mxu0 0
  %2077 = vmatprep.subr.bf16.mxu0 0
  %2078 = vmatpush1.bf16.msra.mxu0 0
  %2079 = vmatprep.subr.bf16.mxu0 0
  %2080 = vmatpush1.bf16.msra.mxu0 0
  %2081 = vmatprep.subr.bf16.mxu0 0
  %2082 = vmatpush1.bf16.msra.mxu0 0
  %2083 = vmatprep.subr.bf16.mxu0 0
  %2084 = vmatpush1.bf16.msra.mxu0 0
  %2085 = vmatprep.subr.bf16.mxu0 0
  %2086 = vmatpush1.bf16.msra.mxu0 0
  %2087 = vmatprep.subr.bf16.mxu0 0
  %2088 = vmatpush1.bf16.msra.mxu0 0
  %2089 = vmatprep.subr.bf16.mxu0 0
  %2090 = vmatpush1.bf16.msra.mxu0 0
  %2091 = vmatprep.subr.bf16.mxu0 0
  %2092 = vmatpush1.bf16.msra.mxu0 0
  %2093 = vmatprep.subr.bf16.mxu0 0
  %2094 = vmatpush1.bf16.msra.mxu0 0
  %2095 = vmatprep.subr.bf16.mxu0 0
  %2096 = vmatpush1.bf16.msra.mxu0 0
  %2097 = vmatprep.subr.bf16.mxu0 0
  %2098 = vmatpush1.bf16.msra.mxu0 0
  %2099 = vmatprep.subr.bf16.mxu0 0
  %2100 = vmatpush1.bf16.msra.mxu0 0
  %2101 = vmatprep.subr.bf16.mxu0 0
  %2102 = vmatpush1.bf16.msra.mxu0 0
  %2103 = vmatprep.mubr.bf16.mxu0 0
  %2104 = vmatmul.mubr.bf16.gmra.mrb[0].mxu0 %v234
  %v2105 = vpop.f32.mrb[0].mxu0
  %v2106 = vadd.f32 0.0, %v2105
  %v2107 = vpop.f32.mrb[0].mxu0
  %v2108 = vadd.f32 0.0, %v2107
  %v2109 = vpop.f32.mrb[0].mxu0
  %v2110 = vadd.f32 0.0, %v2109
  %v2111 = vpop.f32.mrb[0].mxu0
  %v2112 = vadd.f32 0.0, %v2111
  %2113 = vmatprep.mubr.bf16.mxu0 0
  %2114 = vmatmul.mubr.bf16.gmra.mrb[0].mxu0 %v237
  %v2115 = vpop.f32.mrb[0].mxu0
  %v2116 = vadd.f32 0.0, %v2115
  %v2117 = vpop.f32.mrb[0].mxu0
  %v2118 = vadd.f32 0.0, %v2117
  %v2119 = vpop.f32.mrb[0].mxu0
  %v2120 = vadd.f32 0.0, %v2119
  %v2121 = vpop.f32.mrb[0].mxu0
  %v2122 = vadd.f32 0.0, %v2121
  %2123 = vdwg.mxu0
  %2124 = vmatprep.subr.bf16.mxu0 %v1857
  %2125 = vmatpush1.bf16.msra.mxu0 %v1856
  %2126 = vmatprep.subr.bf16.mxu0 0
  %2127 = vmatpush1.bf16.msra.mxu0 0
  %2128 = vmatprep.subr.bf16.mxu0 0
  %2129 = vmatpush1.bf16.msra.mxu0 0
  %2130 = vmatprep.subr.bf16.mxu0 0
  %2131 = vmatpush1.bf16.msra.mxu0 0
  %2132 = vmatprep.subr.bf16.mxu0 0
  %2133 = vmatpush1.bf16.msra.mxu0 0
  %2134 = vmatprep.subr.bf16.mxu0 0
  %2135 = vmatpush1.bf16.msra.mxu0 0
  %2136 = vmatprep.subr.bf16.mxu0 0
  %2137 = vmatpush1.bf16.msra.mxu0 0
  %2138 = vmatprep.subr.bf16.mxu0 0
  %2139 = vmatpush1.bf16.msra.mxu0 0
  %2140 = vmatprep.subr.bf16.mxu0 0
  %2141 = vmatpush1.bf16.msra.mxu0 0
  %2142 = vmatprep.subr.bf16.mxu0 0
  %2143 = vmatpush1.bf16.msra.mxu0 0
  %2144 = vmatprep.subr.bf16.mxu0 0
  %2145 = vmatpush1.bf16.msra.mxu0 0
  %2146 = vmatprep.subr.bf16.mxu0 0
  %2147 = vmatpush1.bf16.msra.mxu0 0
  %2148 = vmatprep.subr.bf16.mxu0 0
  %2149 = vmatpush1.bf16.msra.mxu0 0
  %2150 = vmatprep.subr.bf16.mxu0 0
  %2151 = vmatpush1.bf16.msra.mxu0 0
  %2152 = vmatprep.subr.bf16.mxu0 0
  %2153 = vmatpush1.bf16.msra.mxu0 0
  %2154 = vmatprep.subr.bf16.mxu0 0
  %2155 = vmatpush1.bf16.msra.mxu0 0
  %2156 = vmatprep.mubr.bf16.mxu0 0
  %2157 = vmatmul.mubr.bf16.gmra.mrb[0].mxu0 %v234
  %v2158 = vpop.f32.mrb[0].mxu0
  %v2159 = vadd.f32 0.0, %v2158
  %v2160 = vpop.f32.mrb[0].mxu0
  %v2161 = vadd.f32 0.0, %v2160
  %v2162 = vpop.f32.mrb[0].mxu0
  %v2163 = vadd.f32 0.0, %v2162
  %v2164 = vpop.f32.mrb[0].mxu0
  %v2165 = vadd.f32 0.0, %v2164
  %2166 = vmatprep.mubr.bf16.mxu0 0
  %2167 = vmatmul.mubr.bf16.gmra.mrb[0].mxu0 %v237
  %v2168 = vpop.f32.mrb[0].mxu0
  %v2169 = vadd.f32 0.0, %v2168
  %v2170 = vpop.f32.mrb[0].mxu0
  %v2171 = vadd.f32 0.0, %v2170
  %v2172 = vpop.f32.mrb[0].mxu0
  %v2173 = vadd.f32 0.0, %v2172
  %v2174 = vpop.f32.mrb[0].mxu0
  %v2175 = vadd.f32 0.0, %v2174
  %2176 = vdwg.mxu0
  %2177 = vmatprep.subr.bf16.mxu0 %v1859
  %2178 = vmatpush1.bf16.msra.mxu0 %v1858
  %2179 = vmatprep.subr.bf16.mxu0 0
  %2180 = vmatpush1.bf16.msra.mxu0 0
  %2181 = vmatprep.subr.bf16.mxu0 0
  %2182 = vmatpush1.bf16.msra.mxu0 0
  %2183 = vmatprep.subr.bf16.mxu0 0
  %2184 = vmatpush1.bf16.msra.mxu0 0
  %2185 = vmatprep.subr.bf16.mxu0 0
  %2186 = vmatpush1.bf16.msra.mxu0 0
  %2187 = vmatprep.subr.bf16.mxu0 0
  %2188 = vmatpush1.bf16.msra.mxu0 0
  %2189 = vmatprep.subr.bf16.mxu0 0
  %2190 = vmatpush1.bf16.msra.mxu0 0
  %2191 = vmatprep.subr.bf16.mxu0 0
  %2192 = vmatpush1.bf16.msra.mxu0 0
  %2193 = vmatprep.subr.bf16.mxu0 0
  %2194 = vmatpush1.bf16.msra.mxu0 0
  %2195 = vmatprep.subr.bf16.mxu0 0
  %2196 = vmatpush1.bf16.msra.mxu0 0
  %2197 = vmatprep.subr.bf16.mxu0 0
  %2198 = vmatpush1.bf16.msra.mxu0 0
  %2199 = vmatprep.subr.bf16.mxu0 0
  %2200 = vmatpush1.bf16.msra.mxu0 0
  %2201 = vmatprep.subr.bf16.mxu0 0
  %2202 = vmatpush1.bf16.msra.mxu0 0
  %2203 = vmatprep.subr.bf16.mxu0 0
  %2204 = vmatpush1.bf16.msra.mxu0 0
  %2205 = vmatprep.subr.bf16.mxu0 0
  %2206 = vmatpush1.bf16.msra.mxu0 0
  %2207 = vmatprep.subr.bf16.mxu0 0
  %2208 = vmatpush1.bf16.msra.mxu0 0
  %2209 = vmatprep.mubr.bf16.mxu0 0
  %2210 = vmatmul.mubr.bf16.gmra.mrb[0].mxu0 %v234
  %v2211 = vpop.f32.mrb[0].mxu0
  %v2212 = vadd.f32 0.0, %v2211
  %v2213 = vpop.f32.mrb[0].mxu0
  %v2214 = vadd.f32 0.0, %v2213
  %v2215 = vpop.f32.mrb[0].mxu0
  %v2216 = vadd.f32 0.0, %v2215
  %v2217 = vpop.f32.mrb[0].mxu0
  %v2218 = vadd.f32 0.0, %v2217
  %2219 = vmatprep.mubr.bf16.mxu0 0
  %2220 = vmatmul.mubr.bf16.gmra.mrb[0].mxu0 %v237
  %v2221 = vpop.f32.mrb[0].mxu0
  %v2222 = vadd.f32 0.0, %v2221
  %v2223 = vpop.f32.mrb[0].mxu0
  %v2224 = vadd.f32 0.0, %v2223
  %v2225 = vpop.f32.mrb[0].mxu0
  %v2226 = vadd.f32 0.0, %v2225
  %v2227 = vpop.f32.mrb[0].mxu0
  %v2228 = vadd.f32 0.0, %v2227
  %2229 = vdwg.mxu0
  %2230 = vmatprep.subr.bf16.mxu0 %v1861
  %2231 = vmatpush1.bf16.msra.mxu0 %v1860
  %2232 = vmatprep.subr.bf16.mxu0 0
  %2233 = vmatpush1.bf16.msra.mxu0 0
  %2234 = vmatprep.subr.bf16.mxu0 0
  %2235 = vmatpush1.bf16.msra.mxu0 0
  %2236 = vmatprep.subr.bf16.mxu0 0
  %2237 = vmatpush1.bf16.msra.mxu0 0
  %2238 = vmatprep.subr.bf16.mxu0 0
  %2239 = vmatpush1.bf16.msra.mxu0 0
  %2240 = vmatprep.subr.bf16.mxu0 0
  %2241 = vmatpush1.bf16.msra.mxu0 0
  %2242 = vmatprep.subr.bf16.mxu0 0
  %2243 = vmatpush1.bf16.msra.mxu0 0
  %2244 = vmatprep.subr.bf16.mxu0 0
  %2245 = vmatpush1.bf16.msra.mxu0 0
  %2246 = vmatprep.subr.bf16.mxu0 0
  %2247 = vmatpush1.bf16.msra.mxu0 0
  %2248 = vmatprep.subr.bf16.mxu0 0
  %2249 = vmatpush1.bf16.msra.mxu0 0
  %2250 = vmatprep.subr.bf16.mxu0 0
  %2251 = vmatpush1.bf16.msra.mxu0 0
  %2252 = vmatprep.subr.bf16.mxu0 0
  %2253 = vmatpush1.bf16.msra.mxu0 0
  %2254 = vmatprep.subr.bf16.mxu0 0
  %2255 = vmatpush1.bf16.msra.mxu0 0
  %2256 = vmatprep.subr.bf16.mxu0 0
  %2257 = vmatpush1.bf16.msra.mxu0 0
  %2258 = vmatprep.subr.bf16.mxu0 0
  %2259 = vmatpush1.bf16.msra.mxu0 0
  %2260 = vmatprep.subr.bf16.mxu0 0
  %2261 = vmatpush1.bf16.msra.mxu0 0
  %2262 = vmatprep.mubr.bf16.mxu0 0
  %2263 = vmatmul.mubr.bf16.gmra.mrb[0].mxu0 %v234
  %v2264 = vpop.f32.mrb[0].mxu0
  %v2265 = vadd.f32 0.0, %v2264
  %v2266 = vpop.f32.mrb[0].mxu0
  %v2267 = vadd.f32 0.0, %v2266
  %v2268 = vpop.f32.mrb[0].mxu0
  %v2269 = vadd.f32 0.0, %v2268
  %v2270 = vpop.f32.mrb[0].mxu0
  %v2271 = vadd.f32 0.0, %v2270
  %2272 = vmatprep.mubr.bf16.mxu0 0
  %2273 = vmatmul.mubr.bf16.gmra.mrb[0].mxu0 %v237
  %v2274 = vpop.f32.mrb[0].mxu0
  %v2275 = vadd.f32 0.0, %v2274
  %v2276 = vpop.f32.mrb[0].mxu0
  %v2277 = vadd.f32 0.0, %v2276
  %v2278 = vpop.f32.mrb[0].mxu0
  %v2279 = vadd.f32 0.0, %v2278
  %v2280 = vpop.f32.mrb[0].mxu0
  %v2281 = vadd.f32 0.0, %v2280
  %2282 = vdwg.mxu0
  %2283 = vmatprep.subr.bf16.mxu0 %v1863
  %2284 = vmatpush1.bf16.msra.mxu0 %v1862
  %2285 = vmatprep.subr.bf16.mxu0 0
  %2286 = vmatpush1.bf16.msra.mxu0 0
  %2287 = vmatprep.subr.bf16.mxu0 0
  %2288 = vmatpush1.bf16.msra.mxu0 0
  %2289 = vmatprep.subr.bf16.mxu0 0
  %2290 = vmatpush1.bf16.msra.mxu0 0
  %2291 = vmatprep.subr.bf16.mxu0 0
  %2292 = vmatpush1.bf16.msra.mxu0 0
  %2293 = vmatprep.subr.bf16.mxu0 0
  %2294 = vmatpush1.bf16.msra.mxu0 0
  %2295 = vmatprep.subr.bf16.mxu0 0
  %2296 = vmatpush1.bf16.msra.mxu0 0
  %2297 = vmatprep.subr.bf16.mxu0 0
  %2298 = vmatpush1.bf16.msra.mxu0 0
  %2299 = vmatprep.subr.bf16.mxu0 0
  %2300 = vmatpush1.bf16.msra.mxu0 0
  %2301 = vmatprep.subr.bf16.mxu0 0
  %2302 = vmatpush1.bf16.msra.mxu0 0
  %2303 = vmatprep.subr.bf16.mxu0 0
  %2304 = vmatpush1.bf16.msra.mxu0 0
  %2305 = vmatprep.subr.bf16.mxu0 0
  %2306 = vmatpush1.bf16.msra.mxu0 0
  %2307 = vmatprep.subr.bf16.mxu0 0
  %2308 = vmatpush1.bf16.msra.mxu0 0
  %2309 = vmatprep.subr.bf16.mxu0 0
  %2310 = vmatpush1.bf16.msra.mxu0 0
  %2311 = vmatprep.subr.bf16.mxu0 0
  %2312 = vmatpush1.bf16.msra.mxu0 0
  %2313 = vmatprep.subr.bf16.mxu0 0
  %2314 = vmatpush1.bf16.msra.mxu0 0
  %2315 = vmatprep.mubr.bf16.mxu0 0
  %2316 = vmatmul.mubr.bf16.gmra.mrb[0].mxu0 %v234
  %v2317 = vpop.f32.mrb[0].mxu0
  %v2318 = vadd.f32 0.0, %v2317
  %v2319 = vpop.f32.mrb[0].mxu0
  %v2320 = vadd.f32 0.0, %v2319
  %v2321 = vpop.f32.mrb[0].mxu0
  %v2322 = vadd.f32 0.0, %v2321
  %v2323 = vpop.f32.mrb[0].mxu0
  %v2324 = vadd.f32 0.0, %v2323
  %2325 = vmatprep.mubr.bf16.mxu0 0
  %2326 = vmatmul.mubr.bf16.gmra.mrb[0].mxu0 %v237
  %v2327 = vpop.f32.mrb[0].mxu0
  %v2328 = vadd.f32 0.0, %v2327
  %v2329 = vpop.f32.mrb[0].mxu0
  %v2330 = vadd.f32 0.0, %v2329
  %v2331 = vpop.f32.mrb[0].mxu0
  %v2332 = vadd.f32 0.0, %v2331
  %v2333 = vpop.f32.mrb[0].mxu0
  %v2334 = vadd.f32 0.0, %v2333
  %2335 = vdwg.mxu0
  %2336 = vmatprep.subr.bf16.mxu0 %v1865
  %2337 = vmatpush1.bf16.msra.mxu0 %v1864
  %2338 = vmatprep.subr.bf16.mxu0 0
  %2339 = vmatpush1.bf16.msra.mxu0 0
  %2340 = vmatprep.subr.bf16.mxu0 0
  %2341 = vmatpush1.bf16.msra.mxu0 0
  %2342 = vmatprep.subr.bf16.mxu0 0
  %2343 = vmatpush1.bf16.msra.mxu0 0
  %2344 = vmatprep.subr.bf16.mxu0 0
  %2345 = vmatpush1.bf16.msra.mxu0 0
  %2346 = vmatprep.subr.bf16.mxu0 0
  %2347 = vmatpush1.bf16.msra.mxu0 0
  %2348 = vmatprep.subr.bf16.mxu0 0
  %2349 = vmatpush1.bf16.msra.mxu0 0
  %2350 = vmatprep.subr.bf16.mxu0 0
  %2351 = vmatpush1.bf16.msra.mxu0 0
  %2352 = vmatprep.subr.bf16.mxu0 0
  %2353 = vmatpush1.bf16.msra.mxu0 0
  %2354 = vmatprep.subr.bf16.mxu0 0
  %2355 = vmatpush1.bf16.msra.mxu0 0
  %2356 = vmatprep.subr.bf16.mxu0 0
  %2357 = vmatpush1.bf16.msra.mxu0 0
  %2358 = vmatprep.subr.bf16.mxu0 0
  %2359 = vmatpush1.bf16.msra.mxu0 0
  %2360 = vmatprep.subr.bf16.mxu0 0
  %2361 = vmatpush1.bf16.msra.mxu0 0
  %2362 = vmatprep.subr.bf16.mxu0 0
  %2363 = vmatpush1.bf16.msra.mxu0 0
  %2364 = vmatprep.subr.bf16.mxu0 0
  %2365 = vmatpush1.bf16.msra.mxu0 0
  %2366 = vmatprep.subr.bf16.mxu0 0
  %2367 = vmatpush1.bf16.msra.mxu0 0
  %2368 = vmatprep.mubr.bf16.mxu0 0
  %2369 = vmatmul.mubr.bf16.gmra.mrb[0].mxu0 %v234
  %v2370 = vpop.f32.mrb[0].mxu0
  %v2371 = vadd.f32 0.0, %v2370
  %v2372 = vpop.f32.mrb[0].mxu0
  %v2373 = vadd.f32 0.0, %v2372
  %v2374 = vpop.f32.mrb[0].mxu0
  %v2375 = vadd.f32 0.0, %v2374
  %v2376 = vpop.f32.mrb[0].mxu0
  %v2377 = vadd.f32 0.0, %v2376
  %2378 = vmatprep.mubr.bf16.mxu0 0
  %2379 = vmatmul.mubr.bf16.gmra.mrb[0].mxu0 %v237
  %v2380 = vpop.f32.mrb[0].mxu0
  %v2381 = vadd.f32 0.0, %v2380
  %v2382 = vpop.f32.mrb[0].mxu0
  %v2383 = vadd.f32 0.0, %v2382
  %v2384 = vpop.f32.mrb[0].mxu0
  %v2385 = vadd.f32 0.0, %v2384
  %v2386 = vpop.f32.mrb[0].mxu0
  %v2387 = vadd.f32 0.0, %v2386
  %2388 = vdwg.mxu0
  %2389 = vmatprep.subr.bf16.mxu0 %v1867
  %2390 = vmatpush1.bf16.msra.mxu0 %v1866
  %2391 = vmatprep.subr.bf16.mxu0 0
  %2392 = vmatpush1.bf16.msra.mxu0 0
  %2393 = vmatprep.subr.bf16.mxu0 0
  %2394 = vmatpush1.bf16.msra.mxu0 0
  %2395 = vmatprep.subr.bf16.mxu0 0
  %2396 = vmatpush1.bf16.msra.mxu0 0
  %2397 = vmatprep.subr.bf16.mxu0 0
  %2398 = vmatpush1.bf16.msra.mxu0 0
  %2399 = vmatprep.subr.bf16.mxu0 0
  %2400 = vmatpush1.bf16.msra.mxu0 0
  %2401 = vmatprep.subr.bf16.mxu0 0
  %2402 = vmatpush1.bf16.msra.mxu0 0
  %2403 = vmatprep.subr.bf16.mxu0 0
  %2404 = vmatpush1.bf16.msra.mxu0 0
  %2405 = vmatprep.subr.bf16.mxu0 0
  %2406 = vmatpush1.bf16.msra.mxu0 0
  %2407 = vmatprep.subr.bf16.mxu0 0
  %2408 = vmatpush1.bf16.msra.mxu0 0
  %2409 = vmatprep.subr.bf16.mxu0 0
  %2410 = vmatpush1.bf16.msra.mxu0 0
  %2411 = vmatprep.subr.bf16.mxu0 0
  %2412 = vmatpush1.bf16.msra.mxu0 0
  %2413 = vmatprep.subr.bf16.mxu0 0
  %2414 = vmatpush1.bf16.msra.mxu0 0
  %2415 = vmatprep.subr.bf16.mxu0 0
  %2416 = vmatpush1.bf16.msra.mxu0 0
  %2417 = vmatprep.subr.bf16.mxu0 0
  %2418 = vmatpush1.bf16.msra.mxu0 0
  %2419 = vmatprep.subr.bf16.mxu0 0
  %2420 = vmatpush1.bf16.msra.mxu0 0
  %2421 = vmatprep.mubr.bf16.mxu0 0
  %2422 = vmatmul.mubr.bf16.gmra.mrb[0].mxu0 %v234
  %v2423 = vpop.f32.mrb[0].mxu0
  %v2424 = vadd.f32 0.0, %v2423
  %v2425 = vpop.f32.mrb[0].mxu0
  %v2426 = vadd.f32 0.0, %v2425
  %v2427 = vpop.f32.mrb[0].mxu0
  %v2428 = vadd.f32 0.0, %v2427
  %v2429 = vpop.f32.mrb[0].mxu0
  %v2430 = vadd.f32 0.0, %v2429
  %2431 = vmatprep.mubr.bf16.mxu0 0
  %2432 = vmatmul.mubr.bf16.gmra.mrb[0].mxu0 %v237
  %v2433 = vpop.f32.mrb[0].mxu0
  %v2434 = vadd.f32 0.0, %v2433
  %v2435 = vpop.f32.mrb[0].mxu0
  %v2436 = vadd.f32 0.0, %v2435
  %v2437 = vpop.f32.mrb[0].mxu0
  %v2438 = vadd.f32 0.0, %v2437
  %v2439 = vpop.f32.mrb[0].mxu0
  %v2440 = vadd.f32 0.0, %v2439
  %2441 = vdwg.mxu0
  %2442 = vmatprep.subr.bf16.mxu0 %v1869
  %2443 = vmatpush1.bf16.msra.mxu0 %v1868
  %2444 = vmatprep.subr.bf16.mxu0 0
  %2445 = vmatpush1.bf16.msra.mxu0 0
  %2446 = vmatprep.subr.bf16.mxu0 0
  %2447 = vmatpush1.bf16.msra.mxu0 0
  %2448 = vmatprep.subr.bf16.mxu0 0
  %2449 = vmatpush1.bf16.msra.mxu0 0
  %2450 = vmatprep.subr.bf16.mxu0 0
  %2451 = vmatpush1.bf16.msra.mxu0 0
  %2452 = vmatprep.subr.bf16.mxu0 0
  %2453 = vmatpush1.bf16.msra.mxu0 0
  %2454 = vmatprep.subr.bf16.mxu0 0
  %2455 = vmatpush1.bf16.msra.mxu0 0
  %2456 = vmatprep.subr.bf16.mxu0 0
  %2457 = vmatpush1.bf16.msra.mxu0 0
  %2458 = vmatprep.subr.bf16.mxu0 0
  %2459 = vmatpush1.bf16.msra.mxu0 0
  %2460 = vmatprep.subr.bf16.mxu0 0
  %2461 = vmatpush1.bf16.msra.mxu0 0
  %2462 = vmatprep.subr.bf16.mxu0 0
  %2463 = vmatpush1.bf16.msra.mxu0 0
  %2464 = vmatprep.subr.bf16.mxu0 0
  %2465 = vmatpush1.bf16.msra.mxu0 0
  %2466 = vmatprep.subr.bf16.mxu0 0
  %2467 = vmatpush1.bf16.msra.mxu0 0
  %2468 = vmatprep.subr.bf16.mxu0 0
  %2469 = vmatpush1.bf16.msra.mxu0 0
  %2470 = vmatprep.subr.bf16.mxu0 0
  %2471 = vmatpush1.bf16.msra.mxu0 0
  %2472 = vmatprep.subr.bf16.mxu0 0
  %2473 = vmatpush1.bf16.msra.mxu0 0
  %2474 = vmatprep.mubr.bf16.mxu0 0
  %2475 = vmatmul.mubr.bf16.gmra.mrb[0].mxu0 %v234
  %v2476 = vpop.f32.mrb[0].mxu0
  %v2477 = vadd.f32 0.0, %v2476
  %v2478 = vpop.f32.mrb[0].mxu0
  %v2479 = vadd.f32 0.0, %v2478
  %v2480 = vpop.f32.mrb[0].mxu0
  %v2481 = vadd.f32 0.0, %v2480
  %v2482 = vpop.f32.mrb[0].mxu0
  %v2483 = vadd.f32 0.0, %v2482
  %2484 = vmatprep.mubr.bf16.mxu0 0
  %2485 = vmatmul.mubr.bf16.gmra.mrb[0].mxu0 %v237
  %v2486 = vpop.f32.mrb[0].mxu0
  %v2487 = vadd.f32 0.0, %v2486
  %v2488 = vpop.f32.mrb[0].mxu0
  %v2489 = vadd.f32 0.0, %v2488
  %v2490 = vpop.f32.mrb[0].mxu0
  %v2491 = vadd.f32 0.0, %v2490
  %v2492 = vpop.f32.mrb[0].mxu0
  %v2493 = vadd.f32 0.0, %v2492
  %2494 = vdwg.mxu0
  %2495 = vmatprep.subr.bf16.mxu0 %v1871
  %2496 = vmatpush1.bf16.msra.mxu0 %v1870
  %2497 = vmatprep.subr.bf16.mxu0 0
  %2498 = vmatpush1.bf16.msra.mxu0 0
  %2499 = vmatprep.subr.bf16.mxu0 0
  %2500 = vmatpush1.bf16.msra.mxu0 0
  %2501 = vmatprep.subr.bf16.mxu0 0
  %2502 = vmatpush1.bf16.msra.mxu0 0
  %2503 = vmatprep.subr.bf16.mxu0 0
  %2504 = vmatpush1.bf16.msra.mxu0 0
  %2505 = vmatprep.subr.bf16.mxu0 0
  %2506 = vmatpush1.bf16.msra.mxu0 0
  %2507 = vmatprep.subr.bf16.mxu0 0
  %2508 = vmatpush1.bf16.msra.mxu0 0
  %2509 = vmatprep.subr.bf16.mxu0 0
  %2510 = vmatpush1.bf16.msra.mxu0 0
  %2511 = vmatprep.subr.bf16.mxu0 0
  %2512 = vmatpush1.bf16.msra.mxu0 0
  %2513 = vmatprep.subr.bf16.mxu0 0
  %2514 = vmatpush1.bf16.msra.mxu0 0
  %2515 = vmatprep.subr.bf16.mxu0 0
  %2516 = vmatpush1.bf16.msra.mxu0 0
  %2517 = vmatprep.subr.bf16.mxu0 0
  %2518 = vmatpush1.bf16.msra.mxu0 0
  %2519 = vmatprep.subr.bf16.mxu0 0
  %2520 = vmatpush1.bf16.msra.mxu0 0
  %2521 = vmatprep.subr.bf16.mxu0 0
  %2522 = vmatpush1.bf16.msra.mxu0 0
  %2523 = vmatprep.subr.bf16.mxu0 0
  %2524 = vmatpush1.bf16.msra.mxu0 0
  %2525 = vmatprep.subr.bf16.mxu0 0
  %2526 = vmatpush1.bf16.msra.mxu0 0
  %2527 = vmatprep.mubr.bf16.mxu0 0
  %2528 = vmatmul.mubr.bf16.gmra.mrb[0].mxu0 %v234
  %v2529 = vpop.f32.mrb[0].mxu0
  %v2530 = vadd.f32 0.0, %v2529
  %v2531 = vpop.f32.mrb[0].mxu0
  %v2532 = vadd.f32 0.0, %v2531
  %v2533 = vpop.f32.mrb[0].mxu0
  %v2534 = vadd.f32 0.0, %v2533
  %v2535 = vpop.f32.mrb[0].mxu0
  %v2536 = vadd.f32 0.0, %v2535
  %2537 = vmatprep.mubr.bf16.mxu0 0
  %2538 = vmatmul.mubr.bf16.gmra.mrb[0].mxu0 %v237
  %v2539 = vpop.f32.mrb[0].mxu0
  %v2540 = vadd.f32 0.0, %v2539
  %v2541 = vpop.f32.mrb[0].mxu0
  %v2542 = vadd.f32 0.0, %v2541
  %v2543 = vpop.f32.mrb[0].mxu0
  %v2544 = vadd.f32 0.0, %v2543
  %v2545 = vpop.f32.mrb[0].mxu0
  %v2546 = vadd.f32 0.0, %v2545
  %2547 = vdwg.mxu0
  %2548 = vmatprep.subr.bf16.mxu0 %v1873
  %2549 = vmatpush1.bf16.msra.mxu0 %v1872
  %2550 = vmatprep.subr.bf16.mxu0 0
  %2551 = vmatpush1.bf16.msra.mxu0 0
  %2552 = vmatprep.subr.bf16.mxu0 0
  %2553 = vmatpush1.bf16.msra.mxu0 0
  %2554 = vmatprep.subr.bf16.mxu0 0
  %2555 = vmatpush1.bf16.msra.mxu0 0
  %2556 = vmatprep.subr.bf16.mxu0 0
  %2557 = vmatpush1.bf16.msra.mxu0 0
  %2558 = vmatprep.subr.bf16.mxu0 0
  %2559 = vmatpush1.bf16.msra.mxu0 0
  %2560 = vmatprep.subr.bf16.mxu0 0
  %2561 = vmatpush1.bf16.msra.mxu0 0
  %2562 = vmatprep.subr.bf16.mxu0 0
  %2563 = vmatpush1.bf16.msra.mxu0 0
  %2564 = vmatprep.subr.bf16.mxu0 0
  %2565 = vmatpush1.bf16.msra.mxu0 0
  %2566 = vmatprep.subr.bf16.mxu0 0
  %2567 = vmatpush1.bf16.msra.mxu0 0
  %2568 = vmatprep.subr.bf16.mxu0 0
  %2569 = vmatpush1.bf16.msra.mxu0 0
  %2570 = vmatprep.subr.bf16.mxu0 0
  %2571 = vmatpush1.bf16.msra.mxu0 0
  %2572 = vmatprep.subr.bf16.mxu0 0
  %2573 = vmatpush1.bf16.msra.mxu0 0
  %2574 = vmatprep.subr.bf16.mxu0 0
  %2575 = vmatpush1.bf16.msra.mxu0 0
  %2576 = vmatprep.subr.bf16.mxu0 0
  %2577 = vmatpush1.bf16.msra.mxu0 0
  %2578 = vmatprep.subr.bf16.mxu0 0
  %2579 = vmatpush1.bf16.msra.mxu0 0
  %2580 = vmatprep.mubr.bf16.mxu0 0
  %2581 = vmatmul.mubr.bf16.gmra.mrb[0].mxu0 %v234
  %v2582 = vpop.f32.mrb[0].mxu0
  %v2583 = vadd.f32 0.0, %v2582
  %v2584 = vpop.f32.mrb[0].mxu0
  %v2585 = vadd.f32 0.0, %v2584
  %v2586 = vpop.f32.mrb[0].mxu0
  %v2587 = vadd.f32 0.0, %v2586
  %v2588 = vpop.f32.mrb[0].mxu0
  %v2589 = vadd.f32 0.0, %v2588
  %2590 = vmatprep.mubr.bf16.mxu0 0
  %2591 = vmatmul.mubr.bf16.gmra.mrb[0].mxu0 %v237
  %v2592 = vpop.f32.mrb[0].mxu0
  %v2593 = vadd.f32 0.0, %v2592
  %v2594 = vpop.f32.mrb[0].mxu0
  %v2595 = vadd.f32 0.0, %v2594
  %v2596 = vpop.f32.mrb[0].mxu0
  %v2597 = vadd.f32 0.0, %v2596
  %v2598 = vpop.f32.mrb[0].mxu0
  %v2599 = vadd.f32 0.0, %v2598
  %2600 = vdwg.mxu0
  %2601 = vmatprep.subr.bf16.mxu0 %v1875
  %2602 = vmatpush1.bf16.msra.mxu0 %v1874
  %2603 = vmatprep.subr.bf16.mxu0 0
  %2604 = vmatpush1.bf16.msra.mxu0 0
  %2605 = vmatprep.subr.bf16.mxu0 0
  %2606 = vmatpush1.bf16.msra.mxu0 0
  %2607 = vmatprep.subr.bf16.mxu0 0
  %2608 = vmatpush1.bf16.msra.mxu0 0
  %2609 = vmatprep.subr.bf16.mxu0 0
  %2610 = vmatpush1.bf16.msra.mxu0 0
  %2611 = vmatprep.subr.bf16.mxu0 0
  %2612 = vmatpush1.bf16.msra.mxu0 0
  %2613 = vmatprep.subr.bf16.mxu0 0
  %2614 = vmatpush1.bf16.msra.mxu0 0
  %2615 = vmatprep.subr.bf16.mxu0 0
  %2616 = vmatpush1.bf16.msra.mxu0 0
  %2617 = vmatprep.subr.bf16.mxu0 0
  %2618 = vmatpush1.bf16.msra.mxu0 0
  %2619 = vmatprep.subr.bf16.mxu0 0
  %2620 = vmatpush1.bf16.msra.mxu0 0
  %2621 = vmatprep.subr.bf16.mxu0 0
  %2622 = vmatpush1.bf16.msra.mxu0 0
  %2623 = vmatprep.subr.bf16.mxu0 0
  %2624 = vmatpush1.bf16.msra.mxu0 0
  %2625 = vmatprep.subr.bf16.mxu0 0
  %2626 = vmatpush1.bf16.msra.mxu0 0
  %2627 = vmatprep.subr.bf16.mxu0 0
  %2628 = vmatpush1.bf16.msra.mxu0 0
  %2629 = vmatprep.subr.bf16.mxu0 0
  %2630 = vmatpush1.bf16.msra.mxu0 0
  %2631 = vmatprep.subr.bf16.mxu0 0
  %2632 = vmatpush1.bf16.msra.mxu0 0
  %2633 = vmatprep.mubr.bf16.mxu0 0
  %2634 = vmatmul.mubr.bf16.gmra.mrb[0].mxu0 %v234
  %v2635 = vpop.f32.mrb[0].mxu0
  %v2636 = vadd.f32 0.0, %v2635
  %v2637 = vpop.f32.mrb[0].mxu0
  %v2638 = vadd.f32 0.0, %v2637
  %v2639 = vpop.f32.mrb[0].mxu0
  %v2640 = vadd.f32 0.0, %v2639
  %v2641 = vpop.f32.mrb[0].mxu0
  %v2642 = vadd.f32 0.0, %v2641
  %2643 = vmatprep.mubr.bf16.mxu0 0
  %2644 = vmatmul.mubr.bf16.gmra.mrb[0].mxu0 %v237
  %v2645 = vpop.f32.mrb[0].mxu0
  %v2646 = vadd.f32 0.0, %v2645
  %v2647 = vpop.f32.mrb[0].mxu0
  %v2648 = vadd.f32 0.0, %v2647
  %v2649 = vpop.f32.mrb[0].mxu0
  %v2650 = vadd.f32 0.0, %v2649
  %v2651 = vpop.f32.mrb[0].mxu0
  %v2652 = vadd.f32 0.0, %v2651
  %2653 = vdwg.mxu0
  %2654 = vmatprep.subr.bf16.mxu0 %v1877
  %2655 = vmatpush1.bf16.msra.mxu0 %v1876
  %2656 = vmatprep.subr.bf16.mxu0 0
  %2657 = vmatpush1.bf16.msra.mxu0 0
  %2658 = vmatprep.subr.bf16.mxu0 0
  %2659 = vmatpush1.bf16.msra.mxu0 0
  %2660 = vmatprep.subr.bf16.mxu0 0
  %2661 = vmatpush1.bf16.msra.mxu0 0
  %2662 = vmatprep.subr.bf16.mxu0 0
  %2663 = vmatpush1.bf16.msra.mxu0 0
  %2664 = vmatprep.subr.bf16.mxu0 0
  %2665 = vmatpush1.bf16.msra.mxu0 0
  %2666 = vmatprep.subr.bf16.mxu0 0
  %2667 = vmatpush1.bf16.msra.mxu0 0
  %2668 = vmatprep.subr.bf16.mxu0 0
  %2669 = vmatpush1.bf16.msra.mxu0 0
  %2670 = vmatprep.subr.bf16.mxu0 0
  %2671 = vmatpush1.bf16.msra.mxu0 0
  %2672 = vmatprep.subr.bf16.mxu0 0
  %2673 = vmatpush1.bf16.msra.mxu0 0
  %2674 = vmatprep.subr.bf16.mxu0 0
  %2675 = vmatpush1.bf16.msra.mxu0 0
  %2676 = vmatprep.subr.bf16.mxu0 0
  %2677 = vmatpush1.bf16.msra.mxu0 0
  %2678 = vmatprep.subr.bf16.mxu0 0
  %2679 = vmatpush1.bf16.msra.mxu0 0
  %2680 = vmatprep.subr.bf16.mxu0 0
  %2681 = vmatpush1.bf16.msra.mxu0 0
  %2682 = vmatprep.subr.bf16.mxu0 0
  %2683 = vmatpush1.bf16.msra.mxu0 0
  %2684 = vmatprep.subr.bf16.mxu0 0
  %2685 = vmatpush1.bf16.msra.mxu0 0
  %2686 = vmatprep.mubr.bf16.mxu0 0
  %2687 = vmatmul.mubr.bf16.gmra.mrb[0].mxu0 %v234
  %v2688 = vpop.f32.mrb[0].mxu0
  %v2689 = vadd.f32 0.0, %v2688
  %v2690 = vpop.f32.mrb[0].mxu0
  %v2691 = vadd.f32 0.0, %v2690
  %v2692 = vpop.f32.mrb[0].mxu0
  %v2693 = vadd.f32 0.0, %v2692
  %v2694 = vpop.f32.mrb[0].mxu0
  %v2695 = vadd.f32 0.0, %v2694
  %2696 = vmatprep.mubr.bf16.mxu0 0
  %2697 = vmatmul.mubr.bf16.gmra.mrb[0].mxu0 %v237
  %v2698 = vpop.f32.mrb[0].mxu0
  %v2699 = vadd.f32 0.0, %v2698
  %v2700 = vpop.f32.mrb[0].mxu0
  %v2701 = vadd.f32 0.0, %v2700
  %v2702 = vpop.f32.mrb[0].mxu0
  %v2703 = vadd.f32 0.0, %v2702
  %v2704 = vpop.f32.mrb[0].mxu0
  %v2705 = vadd.f32 0.0, %v2704
  %2706 = vdwg.mxu0
  %2707 = vmatprep.subr.bf16.mxu0 %v1879
  %2708 = vmatpush1.bf16.msra.mxu0 %v1878
  %2709 = vmatprep.subr.bf16.mxu0 0
  %2710 = vmatpush1.bf16.msra.mxu0 0
  %2711 = vmatprep.subr.bf16.mxu0 0
  %2712 = vmatpush1.bf16.msra.mxu0 0
  %2713 = vmatprep.subr.bf16.mxu0 0
  %2714 = vmatpush1.bf16.msra.mxu0 0
  %2715 = vmatprep.subr.bf16.mxu0 0
  %2716 = vmatpush1.bf16.msra.mxu0 0
  %2717 = vmatprep.subr.bf16.mxu0 0
  %2718 = vmatpush1.bf16.msra.mxu0 0
  %2719 = vmatprep.subr.bf16.mxu0 0
  %2720 = vmatpush1.bf16.msra.mxu0 0
  %2721 = vmatprep.subr.bf16.mxu0 0
  %2722 = vmatpush1.bf16.msra.mxu0 0
  %2723 = vmatprep.subr.bf16.mxu0 0
  %2724 = vmatpush1.bf16.msra.mxu0 0
  %2725 = vmatprep.subr.bf16.mxu0 0
  %2726 = vmatpush1.bf16.msra.mxu0 0
  %2727 = vmatprep.subr.bf16.mxu0 0
  %2728 = vmatpush1.bf16.msra.mxu0 0
  %2729 = vmatprep.subr.bf16.mxu0 0
  %2730 = vmatpush1.bf16.msra.mxu0 0
  %2731 = vmatprep.subr.bf16.mxu0 0
  %2732 = vmatpush1.bf16.msra.mxu0 0
  %2733 = vmatprep.subr.bf16.mxu0 0
  %2734 = vmatpush1.bf16.msra.mxu0 0
  %2735 = vmatprep.subr.bf16.mxu0 0
  %2736 = vmatpush1.bf16.msra.mxu0 0
  %2737 = vmatprep.subr.bf16.mxu0 0
  %2738 = vmatpush1.bf16.msra.mxu0 0
  %2739 = vmatprep.mubr.bf16.mxu0 0
  %2740 = vmatmul.mubr.bf16.gmra.mrb[0].mxu0 %v234
  %v2741 = vpop.f32.mrb[0].mxu0
  %v2742 = vadd.f32 0.0, %v2741
  %v2743 = vpop.f32.mrb[0].mxu0
  %v2744 = vadd.f32 0.0, %v2743
  %v2745 = vpop.f32.mrb[0].mxu0
  %v2746 = vadd.f32 0.0, %v2745
  %v2747 = vpop.f32.mrb[0].mxu0
  %v2748 = vadd.f32 0.0, %v2747
  %2749 = vmatprep.mubr.bf16.mxu0 0
  %2750 = vmatmul.mubr.bf16.gmra.mrb[0].mxu0 %v237
  %v2751 = vpop.f32.mrb[0].mxu0
  %v2752 = vadd.f32 0.0, %v2751
  %v2753 = vpop.f32.mrb[0].mxu0
  %v2754 = vadd.f32 0.0, %v2753
  %v2755 = vpop.f32.mrb[0].mxu0
  %v2756 = vadd.f32 0.0, %v2755
  %v2757 = vpop.f32.mrb[0].mxu0
  %v2758 = vadd.f32 0.0, %v2757
  %2759 = vdwg.mxu0
  %v2760 = vmul.f32 %v1947, %v1090
  %v2761 = vmul.f32 %v1949, %v1090
  %v2762 = vmul.f32 %v2000, %v1090
  %v2763 = vmul.f32 %v2002, %v1090
  %v2764 = vmul.f32 %v2053, %v1090
  %v2765 = vmul.f32 %v2055, %v1090
  %v2766 = vmul.f32 %v2106, %v1090
  %v2767 = vmul.f32 %v2108, %v1090
  %v2768 = vmul.f32 %v2159, %v1090
  %v2769 = vmul.f32 %v2161, %v1090
  %v2770 = vmul.f32 %v2212, %v1090
  %v2771 = vmul.f32 %v2214, %v1090
  %v2772 = vmul.f32 %v2265, %v1090
  %v2773 = vmul.f32 %v2267, %v1090
  %v2774 = vmul.f32 %v2318, %v1090
  %v2775 = vmul.f32 %v2320, %v1090
  %v2776 = vmul.f32 %v2371, %v1090
  %v2777 = vmul.f32 %v2373, %v1090
  %v2778 = vmul.f32 %v2424, %v1090
  %v2779 = vmul.f32 %v2426, %v1090
  %v2780 = vmul.f32 %v2477, %v1090
  %v2781 = vmul.f32 %v2479, %v1090
  %v2782 = vmul.f32 %v2530, %v1090
  %v2783 = vmul.f32 %v2532, %v1090
  %v2784 = vmul.f32 %v2583, %v1090
  %v2785 = vmul.f32 %v2585, %v1090
  %v2786 = vmul.f32 %v2636, %v1090
  %v2787 = vmul.f32 %v2638, %v1090
  %v2788 = vmul.f32 %v2689, %v1090
  %v2789 = vmul.f32 %v2691, %v1090
  %v2790 = vmul.f32 %v2742, %v1090
  %v2791 = vmul.f32 %v2744, %v1090
  %v2792 = vmul.f32 %v1951, %v1095
  %v2793 = vmul.f32 %v1953, %v1095
  %v2794 = vmul.f32 %v2004, %v1095
  %v2795 = vmul.f32 %v2006, %v1095
  %v2796 = vmul.f32 %v2057, %v1095
  %v2797 = vmul.f32 %v2059, %v1095
  %v2798 = vmul.f32 %v2110, %v1095
  %v2799 = vmul.f32 %v2112, %v1095
  %v2800 = vmul.f32 %v2163, %v1095
  %v2801 = vmul.f32 %v2165, %v1095
  %v2802 = vmul.f32 %v2216, %v1095
  %v2803 = vmul.f32 %v2218, %v1095
  %v2804 = vmul.f32 %v2269, %v1095
  %v2805 = vmul.f32 %v2271, %v1095
  %v2806 = vmul.f32 %v2322, %v1095
  %v2807 = vmul.f32 %v2324, %v1095
  %v2808 = vmul.f32 %v2375, %v1095
  %v2809 = vmul.f32 %v2377, %v1095
  %v2810 = vmul.f32 %v2428, %v1095
  %v2811 = vmul.f32 %v2430, %v1095
  %v2812 = vmul.f32 %v2481, %v1095
  %v2813 = vmul.f32 %v2483, %v1095
  %v2814 = vmul.f32 %v2534, %v1095
  %v2815 = vmul.f32 %v2536, %v1095
  %v2816 = vmul.f32 %v2587, %v1095
  %v2817 = vmul.f32 %v2589, %v1095
  %v2818 = vmul.f32 %v2640, %v1095
  %v2819 = vmul.f32 %v2642, %v1095
  %v2820 = vmul.f32 %v2693, %v1095
  %v2821 = vmul.f32 %v2695, %v1095
  %v2822 = vmul.f32 %v2746, %v1095
  %v2823 = vmul.f32 %v2748, %v1095
  %v2824 = vmul.f32 %v1957, %v1100
  %v2825 = vmul.f32 %v1959, %v1100
  %v2826 = vmul.f32 %v2010, %v1100
  %v2827 = vmul.f32 %v2012, %v1100
  %v2828 = vmul.f32 %v2063, %v1100
  %v2829 = vmul.f32 %v2065, %v1100
  %v2830 = vmul.f32 %v2116, %v1100
  %v2831 = vmul.f32 %v2118, %v1100
  %v2832 = vmul.f32 %v2169, %v1100
  %v2833 = vmul.f32 %v2171, %v1100
  %v2834 = vmul.f32 %v2222, %v1100
  %v2835 = vmul.f32 %v2224, %v1100
  %v2836 = vmul.f32 %v2275, %v1100
  %v2837 = vmul.f32 %v2277, %v1100
  %v2838 = vmul.f32 %v2328, %v1100
  %v2839 = vmul.f32 %v2330, %v1100
  %v2840 = vmul.f32 %v2381, %v1100
  %v2841 = vmul.f32 %v2383, %v1100
  %v2842 = vmul.f32 %v2434, %v1100
  %v2843 = vmul.f32 %v2436, %v1100
  %v2844 = vmul.f32 %v2487, %v1100
  %v2845 = vmul.f32 %v2489, %v1100
  %v2846 = vmul.f32 %v2540, %v1100
  %v2847 = vmul.f32 %v2542, %v1100
  %v2848 = vmul.f32 %v2593, %v1100
  %v2849 = vmul.f32 %v2595, %v1100
  %v2850 = vmul.f32 %v2646, %v1100
  %v2851 = vmul.f32 %v2648, %v1100
  %v2852 = vmul.f32 %v2699, %v1100
  %v2853 = vmul.f32 %v2701, %v1100
  %v2854 = vmul.f32 %v2752, %v1100
  %v2855 = vmul.f32 %v2754, %v1100
  %v2856 = vmul.f32 %v1961, %v1105
  %v2857 = vmul.f32 %v1963, %v1105
  %v2858 = vmul.f32 %v2014, %v1105
  %v2859 = vmul.f32 %v2016, %v1105
  %v2860 = vmul.f32 %v2067, %v1105
  %v2861 = vmul.f32 %v2069, %v1105
  %v2862 = vmul.f32 %v2120, %v1105
  %v2863 = vmul.f32 %v2122, %v1105
  %v2864 = vmul.f32 %v2173, %v1105
  %v2865 = vmul.f32 %v2175, %v1105
  %v2866 = vmul.f32 %v2226, %v1105
  %v2867 = vmul.f32 %v2228, %v1105
  %v2868 = vmul.f32 %v2279, %v1105
  %v2869 = vmul.f32 %v2281, %v1105
  %v2870 = vmul.f32 %v2332, %v1105
  %v2871 = vmul.f32 %v2334, %v1105
  %v2872 = vmul.f32 %v2385, %v1105
  %v2873 = vmul.f32 %v2387, %v1105
  %v2874 = vmul.f32 %v2438, %v1105
  %v2875 = vmul.f32 %v2440, %v1105
  %v2876 = vmul.f32 %v2491, %v1105
  %v2877 = vmul.f32 %v2493, %v1105
  %v2878 = vmul.f32 %v2544, %v1105
  %v2879 = vmul.f32 %v2546, %v1105
  %v2880 = vmul.f32 %v2597, %v1105
  %v2881 = vmul.f32 %v2599, %v1105
  %v2882 = vmul.f32 %v2650, %v1105
  %v2883 = vmul.f32 %v2652, %v1105
  %v2884 = vmul.f32 %v2703, %v1105
  %v2885 = vmul.f32 %v2705, %v1105
  %v2886 = vmul.f32 %v2756, %v1105
  %v2887 = vmul.f32 %v2758, %v1105
  %v2888 = vadd.f32 %v2760, %v1238
  %v2889 = vadd.f32 %v2761, %v1238
  %v2890 = vadd.f32 %v2762, %v1238
  %v2891 = vadd.f32 %v2763, %v1238
  %v2892 = vadd.f32 %v2764, %v1238
  %v2893 = vadd.f32 %v2765, %v1238
  %v2894 = vadd.f32 %v2766, %v1238
  %v2895 = vadd.f32 %v2767, %v1238
  %v2896 = vadd.f32 %v2768, %v1238
  %v2897 = vadd.f32 %v2769, %v1238
  %v2898 = vadd.f32 %v2770, %v1238
  %v2899 = vadd.f32 %v2771, %v1238
  %v2900 = vadd.f32 %v2772, %v1238
  %v2901 = vadd.f32 %v2773, %v1238
  %v2902 = vadd.f32 %v2774, %v1238
  %v2903 = vadd.f32 %v2775, %v1238
  %v2904 = vadd.f32 %v2776, %v1238
  %v2905 = vadd.f32 %v2777, %v1238
  %v2906 = vadd.f32 %v2778, %v1238
  %v2907 = vadd.f32 %v2779, %v1238
  %v2908 = vadd.f32 %v2780, %v1238
  %v2909 = vadd.f32 %v2781, %v1238
  %v2910 = vadd.f32 %v2782, %v1238
  %v2911 = vadd.f32 %v2783, %v1238
  %v2912 = vadd.f32 %v2784, %v1238
  %v2913 = vadd.f32 %v2785, %v1238
  %v2914 = vadd.f32 %v2786, %v1238
  %v2915 = vadd.f32 %v2787, %v1238
  %v2916 = vadd.f32 %v2788, %v1238
  %v2917 = vadd.f32 %v2789, %v1238
  %v2918 = vadd.f32 %v2790, %v1238
  %v2919 = vadd.f32 %v2791, %v1238
  %v2920 = vadd.f32 %v2792, %v1243
  %v2921 = vadd.f32 %v2793, %v1243
  %v2922 = vadd.f32 %v2794, %v1243
  %v2923 = vadd.f32 %v2795, %v1243
  %v2924 = vadd.f32 %v2796, %v1243
  %v2925 = vadd.f32 %v2797, %v1243
  %v2926 = vadd.f32 %v2798, %v1243
  %v2927 = vadd.f32 %v2799, %v1243
  %v2928 = vadd.f32 %v2800, %v1243
  %v2929 = vadd.f32 %v2801, %v1243
  %v2930 = vadd.f32 %v2802, %v1243
  %v2931 = vadd.f32 %v2803, %v1243
  %v2932 = vadd.f32 %v2804, %v1243
  %v2933 = vadd.f32 %v2805, %v1243
  %v2934 = vadd.f32 %v2806, %v1243
  %v2935 = vadd.f32 %v2807, %v1243
  %v2936 = vadd.f32 %v2808, %v1243
  %v2937 = vadd.f32 %v2809, %v1243
  %v2938 = vadd.f32 %v2810, %v1243
  %v2939 = vadd.f32 %v2811, %v1243
  %v2940 = vadd.f32 %v2812, %v1243
  %v2941 = vadd.f32 %v2813, %v1243
  %v2942 = vadd.f32 %v2814, %v1243
  %v2943 = vadd.f32 %v2815, %v1243
  %v2944 = vadd.f32 %v2816, %v1243
  %v2945 = vadd.f32 %v2817, %v1243
  %v2946 = vadd.f32 %v2818, %v1243
  %v2947 = vadd.f32 %v2819, %v1243
  %v2948 = vadd.f32 %v2820, %v1243
  %v2949 = vadd.f32 %v2821, %v1243
  %v2950 = vadd.f32 %v2822, %v1243
  %v2951 = vadd.f32 %v2823, %v1243
  %v2952 = vadd.f32 %v2824, %v1248
  %v2953 = vadd.f32 %v2825, %v1248
  %v2954 = vadd.f32 %v2826, %v1248
  %v2955 = vadd.f32 %v2827, %v1248
  %v2956 = vadd.f32 %v2828, %v1248
  %v2957 = vadd.f32 %v2829, %v1248
  %v2958 = vadd.f32 %v2830, %v1248
  %v2959 = vadd.f32 %v2831, %v1248
  %v2960 = vadd.f32 %v2832, %v1248
  %v2961 = vadd.f32 %v2833, %v1248
  %v2962 = vadd.f32 %v2834, %v1248
  %v2963 = vadd.f32 %v2835, %v1248
  %v2964 = vadd.f32 %v2836, %v1248
  %v2965 = vadd.f32 %v2837, %v1248
  %v2966 = vadd.f32 %v2838, %v1248
  %v2967 = vadd.f32 %v2839, %v1248
  %v2968 = vadd.f32 %v2840, %v1248
  %v2969 = vadd.f32 %v2841, %v1248
  %v2970 = vadd.f32 %v2842, %v1248
  %v2971 = vadd.f32 %v2843, %v1248
  %v2972 = vadd.f32 %v2844, %v1248
  %v2973 = vadd.f32 %v2845, %v1248
  %v2974 = vadd.f32 %v2846, %v1248
  %v2975 = vadd.f32 %v2847, %v1248
  %v2976 = vadd.f32 %v2848, %v1248
  %v2977 = vadd.f32 %v2849, %v1248
  %v2978 = vadd.f32 %v2850, %v1248
  %v2979 = vadd.f32 %v2851, %v1248
  %v2980 = vadd.f32 %v2852, %v1248
  %v2981 = vadd.f32 %v2853, %v1248
  %v2982 = vadd.f32 %v2854, %v1248
  %v2983 = vadd.f32 %v2855, %v1248
  %v2984 = vadd.f32 %v2856, %v1253
  %v2985 = vadd.f32 %v2857, %v1253
  %v2986 = vadd.f32 %v2858, %v1253
  %v2987 = vadd.f32 %v2859, %v1253
  %v2988 = vadd.f32 %v2860, %v1253
  %v2989 = vadd.f32 %v2861, %v1253
  %v2990 = vadd.f32 %v2862, %v1253
  %v2991 = vadd.f32 %v2863, %v1253
  %v2992 = vadd.f32 %v2864, %v1253
  %v2993 = vadd.f32 %v2865, %v1253
  %v2994 = vadd.f32 %v2866, %v1253
  %v2995 = vadd.f32 %v2867, %v1253
  %v2996 = vadd.f32 %v2868, %v1253
  %v2997 = vadd.f32 %v2869, %v1253
  %v2998 = vadd.f32 %v2870, %v1253
  %v2999 = vadd.f32 %v2871, %v1253
  %v3000 = vadd.f32 %v2872, %v1253
  %v3001 = vadd.f32 %v2873, %v1253
  %v3002 = vadd.f32 %v2874, %v1253
  %v3003 = vadd.f32 %v2875, %v1253
  %v3004 = vadd.f32 %v2876, %v1253
  %v3005 = vadd.f32 %v2877, %v1253
  %v3006 = vadd.f32 %v2878, %v1253
  %v3007 = vadd.f32 %v2879, %v1253
  %v3008 = vadd.f32 %v2880, %v1253
  %v3009 = vadd.f32 %v2881, %v1253
  %v3010 = vadd.f32 %v2882, %v1253
  %v3011 = vadd.f32 %v2883, %v1253
  %v3012 = vadd.f32 %v2884, %v1253
  %v3013 = vadd.f32 %v2885, %v1253
  %v3014 = vadd.f32 %v2886, %v1253
  %v3015 = vadd.f32 %v2887, %v1253
  %v3016 = vmax.f32 %v2888, 0.0
  %v3017 = vmax.f32 %v2889, 0.0
  %v3018 = vmax.f32 %v2890, 0.0
  %v3019 = vmax.f32 %v2891, 0.0
  %v3020 = vmax.f32 %v2892, 0.0
  %v3021 = vmax.f32 %v2893, 0.0
  %v3022 = vmax.f32 %v2894, 0.0
  %v3023 = vmax.f32 %v2895, 0.0
  %v3024 = vmax.f32 %v2896, 0.0
  %v3025 = vmax.f32 %v2897, 0.0
  %v3026 = vmax.f32 %v2898, 0.0
  %v3027 = vmax.f32 %v2899, 0.0
  %v3028 = vmax.f32 %v2900, 0.0
  %v3029 = vmax.f32 %v2901, 0.0
  %v3030 = vmax.f32 %v2902, 0.0
  %v3031 = vmax.f32 %v2903, 0.0
  %v3032 = vmax.f32 %v2904, 0.0
  %v3033 = vmax.f32 %v2905, 0.0
  %v3034 = vmax.f32 %v2906, 0.0
  %v3035 = vmax.f32 %v2907, 0.0
  %v3036 = vmax.f32 %v2908, 0.0
  %v3037 = vmax.f32 %v2909, 0.0
  %v3038 = vmax.f32 %v2910, 0.0
  %v3039 = vmax.f32 %v2911, 0.0
  %v3040 = vmax.f32 %v2912, 0.0
  %v3041 = vmax.f32 %v2913, 0.0
  %v3042 = vmax.f32 %v2914, 0.0
  %v3043 = vmax.f32 %v2915, 0.0
  %v3044 = vmax.f32 %v2916, 0.0
  %v3045 = vmax.f32 %v2917, 0.0
  %v3046 = vmax.f32 %v2918, 0.0
  %v3047 = vmax.f32 %v2919, 0.0
  %v3048 = vmax.f32 %v2920, 0.0
  %v3049 = vmax.f32 %v2921, 0.0
  %v3050 = vmax.f32 %v2922, 0.0
  %v3051 = vmax.f32 %v2923, 0.0
  %v3052 = vmax.f32 %v2924, 0.0
  %v3053 = vmax.f32 %v2925, 0.0
  %v3054 = vmax.f32 %v2926, 0.0
  %v3055 = vmax.f32 %v2927, 0.0
  %v3056 = vmax.f32 %v2928, 0.0
  %v3057 = vmax.f32 %v2929, 0.0
  %v3058 = vmax.f32 %v2930, 0.0
  %v3059 = vmax.f32 %v2931, 0.0
  %v3060 = vmax.f32 %v2932, 0.0
  %v3061 = vmax.f32 %v2933, 0.0
  %v3062 = vmax.f32 %v2934, 0.0
  %v3063 = vmax.f32 %v2935, 0.0
  %v3064 = vmax.f32 %v2936, 0.0
  %v3065 = vmax.f32 %v2937, 0.0
  %v3066 = vmax.f32 %v2938, 0.0
  %v3067 = vmax.f32 %v2939, 0.0
  %v3068 = vmax.f32 %v2940, 0.0
  %v3069 = vmax.f32 %v2941, 0.0
  %v3070 = vmax.f32 %v2942, 0.0
  %v3071 = vmax.f32 %v2943, 0.0
  %v3072 = vmax.f32 %v2944, 0.0
  %v3073 = vmax.f32 %v2945, 0.0
  %v3074 = vmax.f32 %v2946, 0.0
  %v3075 = vmax.f32 %v2947, 0.0
  %v3076 = vmax.f32 %v2948, 0.0
  %v3077 = vmax.f32 %v2949, 0.0
  %v3078 = vmax.f32 %v2950, 0.0
  %v3079 = vmax.f32 %v2951, 0.0
  %v3080 = vmax.f32 %v2952, 0.0
  %v3081 = vmax.f32 %v2953, 0.0
  %v3082 = vmax.f32 %v2954, 0.0
  %v3083 = vmax.f32 %v2955, 0.0
  %v3084 = vmax.f32 %v2956, 0.0
  %v3085 = vmax.f32 %v2957, 0.0
  %v3086 = vmax.f32 %v2958, 0.0
  %v3087 = vmax.f32 %v2959, 0.0
  %v3088 = vmax.f32 %v2960, 0.0
  %v3089 = vmax.f32 %v2961, 0.0
  %v3090 = vmax.f32 %v2962, 0.0
  %v3091 = vmax.f32 %v2963, 0.0
  %v3092 = vmax.f32 %v2964, 0.0
  %v3093 = vmax.f32 %v2965, 0.0
  %v3094 = vmax.f32 %v2966, 0.0
  %v3095 = vmax.f32 %v2967, 0.0
  %v3096 = vmax.f32 %v2968, 0.0
  %v3097 = vmax.f32 %v2969, 0.0
  %v3098 = vmax.f32 %v2970, 0.0
  %v3099 = vmax.f32 %v2971, 0.0
  %v3100 = vmax.f32 %v2972, 0.0
  %v3101 = vmax.f32 %v2973, 0.0
  %v3102 = vmax.f32 %v2974, 0.0
  %v3103 = vmax.f32 %v2975, 0.0
  %v3104 = vmax.f32 %v2976, 0.0
  %v3105 = vmax.f32 %v2977, 0.0
  %v3106 = vmax.f32 %v2978, 0.0
  %v3107 = vmax.f32 %v2979, 0.0
  %v3108 = vmax.f32 %v2980, 0.0
  %v3109 = vmax.f32 %v2981, 0.0
  %v3110 = vmax.f32 %v2982, 0.0
  %v3111 = vmax.f32 %v2983, 0.0
  %v3112 = vmax.f32 %v2984, 0.0
  %v3113 = vmax.f32 %v2985, 0.0
  %v3114 = vmax.f32 %v2986, 0.0
  %v3115 = vmax.f32 %v2987, 0.0
  %v3116 = vmax.f32 %v2988, 0.0
  %v3117 = vmax.f32 %v2989, 0.0
  %v3118 = vmax.f32 %v2990, 0.0
  %v3119 = vmax.f32 %v2991, 0.0
  %v3120 = vmax.f32 %v2992, 0.0
  %v3121 = vmax.f32 %v2993, 0.0
  %v3122 = vmax.f32 %v2994, 0.0
  %v3123 = vmax.f32 %v2995, 0.0
  %v3124 = vmax.f32 %v2996, 0.0
  %v3125 = vmax.f32 %v2997, 0.0
  %v3126 = vmax.f32 %v2998, 0.0
  %v3127 = vmax.f32 %v2999, 0.0
  %v3128 = vmax.f32 %v3000, 0.0
  %v3129 = vmax.f32 %v3001, 0.0
  %v3130 = vmax.f32 %v3002, 0.0
  %v3131 = vmax.f32 %v3003, 0.0
  %v3132 = vmax.f32 %v3004, 0.0
  %v3133 = vmax.f32 %v3005, 0.0
  %v3134 = vmax.f32 %v3006, 0.0
  %v3135 = vmax.f32 %v3007, 0.0
  %v3136 = vmax.f32 %v3008, 0.0
  %v3137 = vmax.f32 %v3009, 0.0
  %v3138 = vmax.f32 %v3010, 0.0
  %v3139 = vmax.f32 %v3011, 0.0
  %v3140 = vmax.f32 %v3012, 0.0
  %v3141 = vmax.f32 %v3013, 0.0
  %v3142 = vmax.f32 %v3014, 0.0
  %v3143 = vmax.f32 %v3015, 0.0
  %v3144 = vmax.f32 %v3016, %v3024
  %v3145 = vmax.f32 %v3017, %v3025
  %v3146 = vmax.f32 %v3018, %v3026
  %v3147 = vmax.f32 %v3019, %v3027
  %v3148 = vmax.f32 %v3020, %v3028
  %v3149 = vmax.f32 %v3021, %v3029
  %v3150 = vmax.f32 %v3022, %v3030
  %v3151 = vmax.f32 %v3023, %v3031
  %v3152 = vmax.f32 %v3048, %v3056
  %v3153 = vmax.f32 %v3049, %v3057
  %v3154 = vmax.f32 %v3050, %v3058
  %v3155 = vmax.f32 %v3051, %v3059
  %v3156 = vmax.f32 %v3052, %v3060
  %v3157 = vmax.f32 %v3053, %v3061
  %v3158 = vmax.f32 %v3054, %v3062
  %v3159 = vmax.f32 %v3055, %v3063
  %v3160 = vmax.f32 %v3080, %v3088
  %v3161 = vmax.f32 %v3081, %v3089
  %v3162 = vmax.f32 %v3082, %v3090
  %v3163 = vmax.f32 %v3083, %v3091
  %v3164 = vmax.f32 %v3084, %v3092
  %v3165 = vmax.f32 %v3085, %v3093
  %v3166 = vmax.f32 %v3086, %v3094
  %v3167 = vmax.f32 %v3087, %v3095
  %v3168 = vmax.f32 %v3112, %v3120
  %v3169 = vmax.f32 %v3113, %v3121
  %v3170 = vmax.f32 %v3114, %v3122
  %v3171 = vmax.f32 %v3115, %v3123
  %v3172 = vmax.f32 %v3116, %v3124
  %v3173 = vmax.f32 %v3117, %v3125
  %v3174 = vmax.f32 %v3118, %v3126
  %v3175 = vmax.f32 %v3119, %v3127
  %v3176 = vmax.f32 %v3032, %v3040
  %v3177 = vmax.f32 %v3033, %v3041
  %v3178 = vmax.f32 %v3034, %v3042
  %v3179 = vmax.f32 %v3035, %v3043
  %v3180 = vmax.f32 %v3036, %v3044
  %v3181 = vmax.f32 %v3037, %v3045
  %v3182 = vmax.f32 %v3038, %v3046
  %v3183 = vmax.f32 %v3039, %v3047
  %v3184 = vmax.f32 %v3064, %v3072
  %v3185 = vmax.f32 %v3065, %v3073
  %v3186 = vmax.f32 %v3066, %v3074
  %v3187 = vmax.f32 %v3067, %v3075
  %v3188 = vmax.f32 %v3068, %v3076
  %v3189 = vmax.f32 %v3069, %v3077
  %v3190 = vmax.f32 %v3070, %v3078
  %v3191 = vmax.f32 %v3071, %v3079
  %v3192 = vmax.f32 %v3096, %v3104
  %v3193 = vmax.f32 %v3097, %v3105
  %v3194 = vmax.f32 %v3098, %v3106
  %v3195 = vmax.f32 %v3099, %v3107
  %v3196 = vmax.f32 %v3100, %v3108
  %v3197 = vmax.f32 %v3101, %v3109
  %v3198 = vmax.f32 %v3102, %v3110
  %v3199 = vmax.f32 %v3103, %v3111
  %v3200 = vmax.f32 %v3128, %v3136
  %v3201 = vmax.f32 %v3129, %v3137
  %v3202 = vmax.f32 %v3130, %v3138
  %v3203 = vmax.f32 %v3131, %v3139
  %v3204 = vmax.f32 %v3132, %v3140
  %v3205 = vmax.f32 %v3133, %v3141
  %v3206 = vmax.f32 %v3134, %v3142
  %v3207 = vmax.f32 %v3135, %v3143
  %v3208 = vmax.f32 %v3144, %v3176
  %v3209 = vmax.f32 %v3145, %v3177
  %v3210 = vmax.f32 %v3146, %v3178
  %v3211 = vmax.f32 %v3147, %v3179
  %v3212 = vmax.f32 %v3148, %v3180
  %v3213 = vmax.f32 %v3149, %v3181
  %v3214 = vmax.f32 %v3150, %v3182
  %v3215 = vmax.f32 %v3151, %v3183
  %v3216 = vmax.f32 %v3152, %v3184
  %v3217 = vmax.f32 %v3153, %v3185
  %v3218 = vmax.f32 %v3154, %v3186
  %v3219 = vmax.f32 %v3155, %v3187
  %v3220 = vmax.f32 %v3156, %v3188
  %v3221 = vmax.f32 %v3157, %v3189
  %v3222 = vmax.f32 %v3158, %v3190
  %v3223 = vmax.f32 %v3159, %v3191
  %v3224 = vmax.f32 %v3160, %v3192
  %v3225 = vmax.f32 %v3161, %v3193
  %v3226 = vmax.f32 %v3162, %v3194
  %v3227 = vmax.f32 %v3163, %v3195
  %v3228 = vmax.f32 %v3164, %v3196
  %v3229 = vmax.f32 %v3165, %v3197
  %v3230 = vmax.f32 %v3166, %v3198
  %v3231 = vmax.f32 %v3167, %v3199
  %v3232 = vmax.f32 %v3168, %v3200
  %v3233 = vmax.f32 %v3169, %v3201
  %v3234 = vmax.f32 %v3170, %v3202
  %v3235 = vmax.f32 %v3171, %v3203
  %v3236 = vmax.f32 %v3172, %v3204
  %v3237 = vmax.f32 %v3173, %v3205
  %v3238 = vmax.f32 %v3174, %v3206
  %v3239 = vmax.f32 %v3175, %v3207
  %v3240 = vpack.c.bf16 %v3216, %v3208
  %v3241 = vpack.c.bf16 %v3217, %v3209
  %v3242 = vpack.c.bf16 %v3218, %v3210
  %v3243 = vpack.c.bf16 %v3219, %v3211
  %v3244 = vpack.c.bf16 %v3220, %v3212
  %v3245 = vpack.c.bf16 %v3221, %v3213
  %v3246 = vpack.c.bf16 %v3222, %v3214
  %v3247 = vpack.c.bf16 %v3223, %v3215
  %v3248 = vpack.c.bf16 %v3232, %v3224
  %v3249 = vpack.c.bf16 %v3233, %v3225
  %v3250 = vpack.c.bf16 %v3234, %v3226
  %v3251 = vpack.c.bf16 %v3235, %v3227
  %v3252 = vpack.c.bf16 %v3236, %v3228
  %v3253 = vpack.c.bf16 %v3237, %v3229
  %v3254 = vpack.c.bf16 %v3238, %v3230
  %v3255 = vpack.c.bf16 %v3239, %v3231
  %v3272 = vunpack.c.l.b16 %v3240
  %v3273 = vunpack.c.l.b16 %v3241
  %v3274 = vunpack.c.l.b16 %v3242
  %v3275 = vunpack.c.l.b16 %v3243
  %v3276 = vunpack.c.l.b16 %v3244
  %v3277 = vunpack.c.l.b16 %v3245
  %v3278 = vunpack.c.l.b16 %v3246
  %v3279 = vunpack.c.l.b16 %v3247
  %v3280 = vunpack.c.h.b16 %v3240
  %v3281 = vunpack.c.h.b16 %v3241
  %v3282 = vunpack.c.h.b16 %v3242
  %v3283 = vunpack.c.h.b16 %v3243
  %v3284 = vunpack.c.h.b16 %v3244
  %v3285 = vunpack.c.h.b16 %v3245
  %v3286 = vunpack.c.h.b16 %v3246
  %v3287 = vunpack.c.h.b16 %v3247
  %v3288 = vunpack.c.l.b16 %v3248
  %v3289 = vunpack.c.l.b16 %v3249
  %v3290 = vunpack.c.l.b16 %v3250
  %v3291 = vunpack.c.l.b16 %v3251
  %v3292 = vunpack.c.l.b16 %v3252
  %v3293 = vunpack.c.l.b16 %v3253
  %v3294 = vunpack.c.l.b16 %v3254
  %v3295 = vunpack.c.l.b16 %v3255
  %v3296 = vunpack.c.h.b16 %v3248
  %v3297 = vunpack.c.h.b16 %v3249
  %v3298 = vunpack.c.h.b16 %v3250
  %v3299 = vunpack.c.h.b16 %v3251
  %v3300 = vunpack.c.h.b16 %v3252
  %v3301 = vunpack.c.h.b16 %v3253
  %v3302 = vunpack.c.h.b16 %v3254
  %v3303 = vunpack.c.h.b16 %v3255
  %v3304 = vpack.c.b16 %v3273, %v3272
  %v3305 = vpack.c.b16 %v3275, %v3274
  %v3306 = vpack.c.b16 %v3277, %v3276
  %v3307 = vpack.c.b16 %v3279, %v3278
  %v3308 = vpack.c.b16 %v3281, %v3280
  %v3309 = vpack.c.b16 %v3283, %v3282
  %v3310 = vpack.c.b16 %v3285, %v3284
  %v3311 = vpack.c.b16 %v3287, %v3286
  %v3312 = vpack.c.b16 %v3289, %v3288
  %v3313 = vpack.c.b16 %v3291, %v3290
  %v3314 = vpack.c.b16 %v3293, %v3292
  %v3315 = vpack.c.b16 %v3295, %v3294
  %v3316 = vpack.c.b16 %v3297, %v3296
  %v3317 = vpack.c.b16 %v3299, %v3298
  %v3318 = vpack.c.b16 %v3301, %v3300
  %v3319 = vpack.c.b16 %v3303, %v3302
  %s3336 = scalar_lea.vmem %s4, 128
  %3337 = vst [vmem:[%s3336] sm:$0xff] %v3304
  %3338 = vst [vmem:[%s3336 + $0x8] sm:$0xff] %v3305
  %3339 = vst [vmem:[%s3336 + $0x10] sm:$0xff] %v3306
  %3340 = vst [vmem:[%s3336 + $0x18] sm:$0xff] %v3307
  %3341 = vst [vmem:[%s3336 + $0x20] sm:$0xff] %v3308
  %3342 = vst [vmem:[%s3336 + $0x28] sm:$0xff] %v3309
  %3343 = vst [vmem:[%s3336 + $0x30] sm:$0xff] %v3310
  %3344 = vst [vmem:[%s3336 + $0x38] sm:$0xff] %v3311
  %3345 = vst [vmem:[%s3336 + $0x40] sm:$0xff] %v3312
  %3346 = vst [vmem:[%s3336 + $0x48] sm:$0xff] %v3313
  %3347 = vst [vmem:[%s3336 + $0x50] sm:$0xff] %v3314
  %3348 = vst [vmem:[%s3336 + $0x58] sm:$0xff] %v3315
  %3349 = vst [vmem:[%s3336 + $0x60] sm:$0xff] %v3316
  %3350 = vst [vmem:[%s3336 + $0x68] sm:$0xff] %v3317
  %3351 = vst [vmem:[%s3336 + $0x70] sm:$0xff] %v3318
  %3352 = vst [vmem:[%s3336 + $0x78] sm:$0xff] %v3319
  // Predicated region
  $region18: #{cnn_forward.3} parent=0 // pred_check
    _
  $region19: #{cnn_forward.3} parent=0 // pred_check_branch
    %3354 = sbr.rel (0) target = $region21
  $region20: #{cnn_forward.3} parent=0 // pred_region
    _
  $region21: #{cnn_forward.3} parent=0 // pred_fallthru
    _
  // Predicated region
  $region22: #{cnn_forward.3} parent=0 // pred_check
    _
  $region23: #{cnn_forward.3} parent=0 // pred_check_branch
    %3356 = sbr.rel (0) target = $region25
  $region24: #{cnn_forward.3} parent=0 // pred_region
    _
  $region25: #{cnn_forward.3} parent=0 // pred_fallthru
    _

// kernel: cnn_forward.4
$region0: #{cnn_forward.4}
  #allocation0 [shape = 'u32[]', space=smem, size = 0x4, offset = 0x4, fixed_abs, tag = 'smem constant byte address 0x4 - core index']
  #allocation1 [shape = 'u32[144,128]{1,0:T(1,128)}', space=vmem, size = 0x12000, scoped, tag = 'internal scratch']
  %s0 = inlined_call_operand.vmem [shape: bf16[2,288,1024], index: 0, kind: input, shape index: {}]
  %s1 = inlined_call_operand.vmem [shape: bf16[64,288], index: 1, kind: input, shape index: {}]
  %s2 = inlined_call_operand.vmem [shape: f32[64,1], index: 2, kind: input, shape index: {}]
  %s3 = inlined_call_operand.vmem [shape: f32[64,1], index: 3, kind: input, shape index: {}]
  %s4 = inlined_call_operand.vmem [shape: bf16[2,64,256], index: 4, kind: output, shape index: {}]
  %s5 = sld [smem:[#allocation0]]
  $region26: #{cnn_forward.4} parent=0
    _
  %s7 = ssub.s32 1, %s5
  %s8 = scalar_select 0, %s7, %s5
  // Predicated region
  $region2: #{cnn_forward.4} parent=0 // pred_check
    _
  $region3: #{cnn_forward.4} parent=0 // pred_check_branch
    %10 = sbr.rel (0) target = $region5
  $region4: #{cnn_forward.4} parent=0 // pred_region
    _
  $region5: #{cnn_forward.4} parent=0 // pred_fallthru
    _
  // Predicated region
  $region6: #{cnn_forward.4} parent=0 // pred_check
    _
  $region7: #{cnn_forward.4} parent=0 // pred_check_branch
    %12 = sbr.rel (0) target = $region9
  $region8: #{cnn_forward.4} parent=0 // pred_region
    _
  $region9: #{cnn_forward.4} parent=0 // pred_fallthru
    _
  // Predicated region
  $region10: #{cnn_forward.4} parent=0 // pred_check
    _
  $region11: #{cnn_forward.4} parent=0 // pred_check_branch
    %14 = sbr.rel (0) target = $region13
  $region12: #{cnn_forward.4} parent=0 // pred_region
    _
  $region13: #{cnn_forward.4} parent=0 // pred_fallthru
    _
  // Predicated region
  $region14: #{cnn_forward.4} parent=0 // pred_check
    _
  $region15: #{cnn_forward.4} parent=0 // pred_check_branch
    %16 = sbr.rel (0) target = $region17
  $region16: #{cnn_forward.4} parent=0 // pred_region
    _
  $region17: #{cnn_forward.4} parent=0 // pred_fallthru
    _
  %v18 = vld [vmem:[%s1] sm:$0xff]
  %v19 = vld [vmem:[%s1 + $0x8] sm:$0xf]
  %v20 = vld [vmem:[%s1 + $0xc] sm:$0xff]
  %v21 = vld [vmem:[%s1 + $0x14] sm:$0xf]
  %v22 = vld [vmem:[%s1 + $0x18] sm:$0xff]
  %v23 = vld [vmem:[%s1 + $0x20] sm:$0xf]
  %v24 = vld [vmem:[%s1 + $0x24] sm:$0xff]
  %v25 = vld [vmem:[%s1 + $0x2c] sm:$0xf]
  %v26 = vld [vmem:[%s1 + $0x30] sm:$0xff]
  %v27 = vld [vmem:[%s1 + $0x38] sm:$0xf]
  %v28 = vld [vmem:[%s1 + $0x3c] sm:$0xff]
  %v29 = vld [vmem:[%s1 + $0x44] sm:$0xf]
  %v30 = vld [vmem:[%s1 + $0x48] sm:$0xff]
  %v31 = vld [vmem:[%s1 + $0x50] sm:$0xf]
  %v32 = vld [vmem:[%s1 + $0x54] sm:$0xff]
  %v33 = vld [vmem:[%s1 + $0x5c] sm:$0xf]
  %v34 = vld [vmem:[%s2] sm:$0xff]
  %v35 = vld [vmem:[%s2 + $0x8] sm:$0xff]
  %v36 = vld [vmem:[%s2 + $0x10] sm:$0xff]
  %v37 = vld [vmem:[%s2 + $0x18] sm:$0xff]
  %v38 = vld [vmem:[%s2 + $0x20] sm:$0xff]
  %v39 = vld [vmem:[%s2 + $0x28] sm:$0xff]
  %v40 = vld [vmem:[%s2 + $0x30] sm:$0xff]
  %v41 = vld [vmem:[%s2 + $0x38] sm:$0xff]
  %v42 = vld [vmem:[%s3] sm:$0xff]
  %v43 = vld [vmem:[%s3 + $0x8] sm:$0xff]
  %v44 = vld [vmem:[%s3 + $0x10] sm:$0xff]
  %v45 = vld [vmem:[%s3 + $0x18] sm:$0xff]
  %v46 = vld [vmem:[%s3 + $0x20] sm:$0xff]
  %v47 = vld [vmem:[%s3 + $0x28] sm:$0xff]
  %v48 = vld [vmem:[%s3 + $0x30] sm:$0xff]
  %v49 = vld [vmem:[%s3 + $0x38] sm:$0xff]
  %v50 = vld [vmem:[%s0] sm:$0xff]
  %v51 = vld [vmem:[%s0 + $0x8] sm:$0xff]
  %v52 = vld [vmem:[%s0 + $0x10] sm:$0xff]
  %v53 = vld [vmem:[%s0 + $0x18] sm:$0xff]
  %v54 = vld [vmem:[%s0 + $0x20] sm:$0xff]
  %v55 = vld [vmem:[%s0 + $0x28] sm:$0xff]
  %v56 = vld [vmem:[%s0 + $0x30] sm:$0xff]
  %v57 = vld [vmem:[%s0 + $0x38] sm:$0xff]
  %v58 = vld [vmem:[%s0 + $0x40] sm:$0xff]
  %v59 = vld [vmem:[%s0 + $0x48] sm:$0xff]
  %v60 = vld [vmem:[%s0 + $0x50] sm:$0xff]
  %v61 = vld [vmem:[%s0 + $0x58] sm:$0xff]
  %v62 = vld [vmem:[%s0 + $0x60] sm:$0xff]
  %v63 = vld [vmem:[%s0 + $0x68] sm:$0xff]
  %v64 = vld [vmem:[%s0 + $0x70] sm:$0xff]
  %v65 = vld [vmem:[%s0 + $0x78] sm:$0xff]
  %v66 = vld [vmem:[%s0 + $0x80] sm:$0xff]
  %v67 = vld [vmem:[%s0 + $0x88] sm:$0xff]
  %v68 = vld [vmem:[%s0 + $0x90] sm:$0xff]
  %v69 = vld [vmem:[%s0 + $0x98] sm:$0xff]
  %v70 = vld [vmem:[%s0 + $0xa0] sm:$0xff]
  %v71 = vld [vmem:[%s0 + $0xa8] sm:$0xff]
  %v72 = vld [vmem:[%s0 + $0xb0] sm:$0xff]
  %v73 = vld [vmem:[%s0 + $0xb8] sm:$0xff]
  %v74 = vld [vmem:[%s0 + $0xc0] sm:$0xff]
  %v75 = vld [vmem:[%s0 + $0xc8] sm:$0xff]
  %v76 = vld [vmem:[%s0 + $0xd0] sm:$0xff]
  %v77 = vld [vmem:[%s0 + $0xd8] sm:$0xff]
  %v78 = vld [vmem:[%s0 + $0xe0] sm:$0xff]
  %v79 = vld [vmem:[%s0 + $0xe8] sm:$0xff]
  %v80 = vld [vmem:[%s0 + $0xf0] sm:$0xff]
  %v81 = vld [vmem:[%s0 + $0xf8] sm:$0xff]
  %v82 = vld [vmem:[%s0 + $0x100] sm:$0xff]
  %v83 = vld [vmem:[%s0 + $0x108] sm:$0xff]
  %v84 = vld [vmem:[%s0 + $0x110] sm:$0xff]
  %v85 = vld [vmem:[%s0 + $0x118] sm:$0xff]
  %v86 = vld [vmem:[%s0 + $0x120] sm:$0xff]
  %v87 = vld [vmem:[%s0 + $0x128] sm:$0xff]
  %v88 = vld [vmem:[%s0 + $0x130] sm:$0xff]
  %v89 = vld [vmem:[%s0 + $0x138] sm:$0xff]
  %v90 = vld [vmem:[%s0 + $0x140] sm:$0xff]
  %v91 = vld [vmem:[%s0 + $0x148] sm:$0xff]
  %v92 = vld [vmem:[%s0 + $0x150] sm:$0xff]
  %v93 = vld [vmem:[%s0 + $0x158] sm:$0xff]
  %v94 = vld [vmem:[%s0 + $0x160] sm:$0xff]
  %v95 = vld [vmem:[%s0 + $0x168] sm:$0xff]
  %v96 = vld [vmem:[%s0 + $0x170] sm:$0xff]
  %v97 = vld [vmem:[%s0 + $0x178] sm:$0xff]
  %v98 = vld [vmem:[%s0 + $0x180] sm:$0xff]
  %v99 = vld [vmem:[%s0 + $0x188] sm:$0xff]
  %v100 = vld [vmem:[%s0 + $0x190] sm:$0xff]
  %v101 = vld [vmem:[%s0 + $0x198] sm:$0xff]
  %v102 = vld [vmem:[%s0 + $0x1a0] sm:$0xff]
  %v103 = vld [vmem:[%s0 + $0x1a8] sm:$0xff]
  %v104 = vld [vmem:[%s0 + $0x1b0] sm:$0xff]
  %v105 = vld [vmem:[%s0 + $0x1b8] sm:$0xff]
  %v106 = vld [vmem:[%s0 + $0x1c0] sm:$0xff]
  %v107 = vld [vmem:[%s0 + $0x1c8] sm:$0xff]
  %v108 = vld [vmem:[%s0 + $0x1d0] sm:$0xff]
  %v109 = vld [vmem:[%s0 + $0x1d8] sm:$0xff]
  %v110 = vld [vmem:[%s0 + $0x1e0] sm:$0xff]
  %v111 = vld [vmem:[%s0 + $0x1e8] sm:$0xff]
  %v112 = vld [vmem:[%s0 + $0x1f0] sm:$0xff]
  %v113 = vld [vmem:[%s0 + $0x1f8] sm:$0xff]
  %v114 = vld [vmem:[%s0 + $0x200] sm:$0xff]
  %v115 = vld [vmem:[%s0 + $0x208] sm:$0xff]
  %v116 = vld [vmem:[%s0 + $0x210] sm:$0xff]
  %v117 = vld [vmem:[%s0 + $0x218] sm:$0xff]
  %v118 = vld [vmem:[%s0 + $0x220] sm:$0xff]
  %v119 = vld [vmem:[%s0 + $0x228] sm:$0xff]
  %v120 = vld [vmem:[%s0 + $0x230] sm:$0xff]
  %v121 = vld [vmem:[%s0 + $0x238] sm:$0xff]
  %v122 = vld [vmem:[%s0 + $0x240] sm:$0xff]
  %v123 = vld [vmem:[%s0 + $0x248] sm:$0xff]
  %v124 = vld [vmem:[%s0 + $0x250] sm:$0xff]
  %v125 = vld [vmem:[%s0 + $0x258] sm:$0xff]
  %v126 = vld [vmem:[%s0 + $0x260] sm:$0xff]
  %v127 = vld [vmem:[%s0 + $0x268] sm:$0xff]
  %v128 = vld [vmem:[%s0 + $0x270] sm:$0xff]
  %v129 = vld [vmem:[%s0 + $0x278] sm:$0xff]
  %v130 = vld [vmem:[%s0 + $0x280] sm:$0xff]
  %v131 = vld [vmem:[%s0 + $0x288] sm:$0xff]
  %v132 = vld [vmem:[%s0 + $0x290] sm:$0xff]
  %v133 = vld [vmem:[%s0 + $0x298] sm:$0xff]
  %v134 = vld [vmem:[%s0 + $0x2a0] sm:$0xff]
  %v135 = vld [vmem:[%s0 + $0x2a8] sm:$0xff]
  %v136 = vld [vmem:[%s0 + $0x2b0] sm:$0xff]
  %v137 = vld [vmem:[%s0 + $0x2b8] sm:$0xff]
  %v138 = vld [vmem:[%s0 + $0x2c0] sm:$0xff]
  %v139 = vld [vmem:[%s0 + $0x2c8] sm:$0xff]
  %v140 = vld [vmem:[%s0 + $0x2d0] sm:$0xff]
  %v141 = vld [vmem:[%s0 + $0x2d8] sm:$0xff]
  %v142 = vld [vmem:[%s0 + $0x2e0] sm:$0xff]
  %v143 = vld [vmem:[%s0 + $0x2e8] sm:$0xff]
  %v144 = vld [vmem:[%s0 + $0x2f0] sm:$0xff]
  %v145 = vld [vmem:[%s0 + $0x2f8] sm:$0xff]
  %v146 = vld [vmem:[%s0 + $0x300] sm:$0xff]
  %v147 = vld [vmem:[%s0 + $0x308] sm:$0xff]
  %v148 = vld [vmem:[%s0 + $0x310] sm:$0xff]
  %v149 = vld [vmem:[%s0 + $0x318] sm:$0xff]
  %v150 = vld [vmem:[%s0 + $0x320] sm:$0xff]
  %v151 = vld [vmem:[%s0 + $0x328] sm:$0xff]
  %v152 = vld [vmem:[%s0 + $0x330] sm:$0xff]
  %v153 = vld [vmem:[%s0 + $0x338] sm:$0xff]
  %v154 = vld [vmem:[%s0 + $0x340] sm:$0xff]
  %v155 = vld [vmem:[%s0 + $0x348] sm:$0xff]
  %v156 = vld [vmem:[%s0 + $0x350] sm:$0xff]
  %v157 = vld [vmem:[%s0 + $0x358] sm:$0xff]
  %v158 = vld [vmem:[%s0 + $0x360] sm:$0xff]
  %v159 = vld [vmem:[%s0 + $0x368] sm:$0xff]
  %v160 = vld [vmem:[%s0 + $0x370] sm:$0xff]
  %v161 = vld [vmem:[%s0 + $0x378] sm:$0xff]
  %v162 = vld [vmem:[%s0 + $0x380] sm:$0xff]
  %v163 = vld [vmem:[%s0 + $0x388] sm:$0xff]
  %v164 = vld [vmem:[%s0 + $0x390] sm:$0xff]
  %v165 = vld [vmem:[%s0 + $0x398] sm:$0xff]
  %v166 = vld [vmem:[%s0 + $0x3a0] sm:$0xff]
  %v167 = vld [vmem:[%s0 + $0x3a8] sm:$0xff]
  %v168 = vld [vmem:[%s0 + $0x3b0] sm:$0xff]
  %v169 = vld [vmem:[%s0 + $0x3b8] sm:$0xff]
  %v170 = vld [vmem:[%s0 + $0x3c0] sm:$0xff]
  %v171 = vld [vmem:[%s0 + $0x3c8] sm:$0xff]
  %v172 = vld [vmem:[%s0 + $0x3d0] sm:$0xff]
  %v173 = vld [vmem:[%s0 + $0x3d8] sm:$0xff]
  %v174 = vld [vmem:[%s0 + $0x3e0] sm:$0xff]
  %v175 = vld [vmem:[%s0 + $0x3e8] sm:$0xff]
  %v176 = vld [vmem:[%s0 + $0x3f0] sm:$0xff]
  %v177 = vld [vmem:[%s0 + $0x3f8] sm:$0xff]
  %v178 = vld [vmem:[%s0 + $0x400] sm:$0xff]
  %v179 = vld [vmem:[%s0 + $0x408] sm:$0xff]
  %v180 = vld [vmem:[%s0 + $0x410] sm:$0xff]
  %v181 = vld [vmem:[%s0 + $0x418] sm:$0xff]
  %v182 = vld [vmem:[%s0 + $0x420] sm:$0xff]
  %v183 = vld [vmem:[%s0 + $0x428] sm:$0xff]
  %v184 = vld [vmem:[%s0 + $0x430] sm:$0xff]
  %v185 = vld [vmem:[%s0 + $0x438] sm:$0xff]
  %v186 = vld [vmem:[%s0 + $0x440] sm:$0xff]
  %v187 = vld [vmem:[%s0 + $0x448] sm:$0xff]
  %v188 = vld [vmem:[%s0 + $0x450] sm:$0xff]
  %v189 = vld [vmem:[%s0 + $0x458] sm:$0xff]
  %v190 = vld [vmem:[%s0 + $0x460] sm:$0xff]
  %v191 = vld [vmem:[%s0 + $0x468] sm:$0xff]
  %v192 = vld [vmem:[%s0 + $0x470] sm:$0xff]
  %v193 = vld [vmem:[%s0 + $0x478] sm:$0xff]
  %v210 = vunpack.c.l.b16 %v18
  %v211 = vunpack.c.h.b16 %v18
  %v212 = vunpack.c.l.b16 %v19
  %v213 = vunpack.c.l.b16 %v20
  %v214 = vunpack.c.h.b16 %v20
  %v215 = vunpack.c.l.b16 %v21
  %v216 = vunpack.c.l.b16 %v22
  %v217 = vunpack.c.h.b16 %v22
  %v218 = vunpack.c.l.b16 %v23
  %v219 = vunpack.c.l.b16 %v24
  %v220 = vunpack.c.h.b16 %v24
  %v221 = vunpack.c.l.b16 %v25
  %v222 = vunpack.c.l.b16 %v26
  %v223 = vunpack.c.h.b16 %v26
  %v224 = vunpack.c.l.b16 %v27
  %v225 = vunpack.c.l.b16 %v28
  %v226 = vunpack.c.h.b16 %v28
  %v227 = vunpack.c.l.b16 %v29
  %v228 = vunpack.c.l.b16 %v30
  %v229 = vunpack.c.h.b16 %v30
  %v230 = vunpack.c.l.b16 %v31
  %v231 = vunpack.c.l.b16 %v32
  %v232 = vunpack.c.h.b16 %v32
  %v233 = vunpack.c.l.b16 %v33
  %v234 = vpack.c.b16 %v213, %v210
  %v235 = vpack.c.b16 %v214, %v211
  %v236 = vpack.c.b16 %v215, %v212
  %v237 = vpack.c.b16 %v219, %v216
  %v238 = vpack.c.b16 %v220, %v217
  %v239 = vpack.c.b16 %v221, %v218
  %v240 = vpack.c.b16 %v225, %v222
  %v241 = vpack.c.b16 %v226, %v223
  %v242 = vpack.c.b16 %v227, %v224
  %v243 = vpack.c.b16 %v231, %v228
  %v244 = vpack.c.b16 %v232, %v229
  %v245 = vpack.c.b16 %v233, %v230
  %v398 = vunpack.c.l.b16 %v50
  %v399 = vunpack.c.h.b16 %v50
  %v400 = vunpack.c.l.b16 %v51
  %v401 = vunpack.c.h.b16 %v51
  %v402 = vunpack.c.l.b16 %v52
  %v403 = vunpack.c.h.b16 %v52
  %v404 = vunpack.c.l.b16 %v53
  %v405 = vunpack.c.h.b16 %v53
  %v406 = vunpack.c.l.b16 %v54
  %v407 = vunpack.c.h.b16 %v54
  %v408 = vunpack.c.l.b16 %v55
  %v409 = vunpack.c.h.b16 %v55
  %v410 = vunpack.c.l.b16 %v56
  %v411 = vunpack.c.h.b16 %v56
  %v412 = vunpack.c.l.b16 %v57
  %v413 = vunpack.c.h.b16 %v57
  %v414 = vunpack.c.l.b16 %v58
  %v415 = vunpack.c.h.b16 %v58
  %v416 = vunpack.c.l.b16 %v59
  %v417 = vunpack.c.h.b16 %v59
  %v418 = vunpack.c.l.b16 %v60
  %v419 = vunpack.c.h.b16 %v60
  %v420 = vunpack.c.l.b16 %v61
  %v421 = vunpack.c.h.b16 %v61
  %v422 = vunpack.c.l.b16 %v62
  %v423 = vunpack.c.h.b16 %v62
  %v424 = vunpack.c.l.b16 %v63
  %v425 = vunpack.c.h.b16 %v63
  %v426 = vunpack.c.l.b16 %v64
  %v427 = vunpack.c.h.b16 %v64
  %v428 = vunpack.c.l.b16 %v65
  %v429 = vunpack.c.h.b16 %v65
  %v430 = vunpack.c.l.b16 %v66
  %v431 = vunpack.c.h.b16 %v66
  %v432 = vunpack.c.l.b16 %v67
  %v433 = vunpack.c.h.b16 %v67
  %v434 = vunpack.c.l.b16 %v68
  %v435 = vunpack.c.h.b16 %v68
  %v436 = vunpack.c.l.b16 %v69
  %v437 = vunpack.c.h.b16 %v69
  %v438 = vunpack.c.l.b16 %v70
  %v439 = vunpack.c.h.b16 %v70
  %v440 = vunpack.c.l.b16 %v71
  %v441 = vunpack.c.h.b16 %v71
  %v442 = vunpack.c.l.b16 %v72
  %v443 = vunpack.c.h.b16 %v72
  %v444 = vunpack.c.l.b16 %v73
  %v445 = vunpack.c.h.b16 %v73
  %v446 = vunpack.c.l.b16 %v74
  %v447 = vunpack.c.h.b16 %v74
  %v448 = vunpack.c.l.b16 %v75
  %v449 = vunpack.c.h.b16 %v75
  %v450 = vunpack.c.l.b16 %v76
  %v451 = vunpack.c.h.b16 %v76
  %v452 = vunpack.c.l.b16 %v77
  %v453 = vunpack.c.h.b16 %v77
  %v454 = vunpack.c.l.b16 %v78
  %v455 = vunpack.c.h.b16 %v78
  %v456 = vunpack.c.l.b16 %v79
  %v457 = vunpack.c.h.b16 %v79
  %v458 = vunpack.c.l.b16 %v80
  %v459 = vunpack.c.h.b16 %v80
  %v460 = vunpack.c.l.b16 %v81
  %v461 = vunpack.c.h.b16 %v81
  %v462 = vunpack.c.l.b16 %v82
  %v463 = vunpack.c.h.b16 %v82
  %v464 = vunpack.c.l.b16 %v83
  %v465 = vunpack.c.h.b16 %v83
  %v466 = vunpack.c.l.b16 %v84
  %v467 = vunpack.c.h.b16 %v84
  %v468 = vunpack.c.l.b16 %v85
  %v469 = vunpack.c.h.b16 %v85
  %v470 = vunpack.c.l.b16 %v86
  %v471 = vunpack.c.h.b16 %v86
  %v472 = vunpack.c.l.b16 %v87
  %v473 = vunpack.c.h.b16 %v87
  %v474 = vunpack.c.l.b16 %v88
  %v475 = vunpack.c.h.b16 %v88
  %v476 = vunpack.c.l.b16 %v89
  %v477 = vunpack.c.h.b16 %v89
  %v478 = vunpack.c.l.b16 %v90
  %v479 = vunpack.c.h.b16 %v90
  %v480 = vunpack.c.l.b16 %v91
  %v481 = vunpack.c.h.b16 %v91
  %v482 = vunpack.c.l.b16 %v92
  %v483 = vunpack.c.h.b16 %v92
  %v484 = vunpack.c.l.b16 %v93
  %v485 = vunpack.c.h.b16 %v93
  %v486 = vunpack.c.l.b16 %v94
  %v487 = vunpack.c.h.b16 %v94
  %v488 = vunpack.c.l.b16 %v95
  %v489 = vunpack.c.h.b16 %v95
  %v490 = vunpack.c.l.b16 %v96
  %v491 = vunpack.c.h.b16 %v96
  %v492 = vunpack.c.l.b16 %v97
  %v493 = vunpack.c.h.b16 %v97
  %v494 = vunpack.c.l.b16 %v98
  %v495 = vunpack.c.h.b16 %v98
  %v496 = vunpack.c.l.b16 %v99
  %v497 = vunpack.c.h.b16 %v99
  %v498 = vunpack.c.l.b16 %v100
  %v499 = vunpack.c.h.b16 %v100
  %v500 = vunpack.c.l.b16 %v101
  %v501 = vunpack.c.h.b16 %v101
  %v502 = vunpack.c.l.b16 %v102
  %v503 = vunpack.c.h.b16 %v102
  %v504 = vunpack.c.l.b16 %v103
  %v505 = vunpack.c.h.b16 %v103
  %v506 = vunpack.c.l.b16 %v104
  %v507 = vunpack.c.h.b16 %v104
  %v508 = vunpack.c.l.b16 %v105
  %v509 = vunpack.c.h.b16 %v105
  %v510 = vunpack.c.l.b16 %v106
  %v511 = vunpack.c.h.b16 %v106
  %v512 = vunpack.c.l.b16 %v107
  %v513 = vunpack.c.h.b16 %v107
  %v514 = vunpack.c.l.b16 %v108
  %v515 = vunpack.c.h.b16 %v108
  %v516 = vunpack.c.l.b16 %v109
  %v517 = vunpack.c.h.b16 %v109
  %v518 = vunpack.c.l.b16 %v110
  %v519 = vunpack.c.h.b16 %v110
  %v520 = vunpack.c.l.b16 %v111
  %v521 = vunpack.c.h.b16 %v111
  %v522 = vunpack.c.l.b16 %v112
  %v523 = vunpack.c.h.b16 %v112
  %v524 = vunpack.c.l.b16 %v113
  %v525 = vunpack.c.h.b16 %v113
  %v526 = vunpack.c.l.b16 %v114
  %v527 = vunpack.c.h.b16 %v114
  %v528 = vunpack.c.l.b16 %v115
  %v529 = vunpack.c.h.b16 %v115
  %v530 = vunpack.c.l.b16 %v116
  %v531 = vunpack.c.h.b16 %v116
  %v532 = vunpack.c.l.b16 %v117
  %v533 = vunpack.c.h.b16 %v117
  %v534 = vunpack.c.l.b16 %v118
  %v535 = vunpack.c.h.b16 %v118
  %v536 = vunpack.c.l.b16 %v119
  %v537 = vunpack.c.h.b16 %v119
  %v538 = vunpack.c.l.b16 %v120
  %v539 = vunpack.c.h.b16 %v120
  %v540 = vunpack.c.l.b16 %v121
  %v541 = vunpack.c.h.b16 %v121
  %v542 = vunpack.c.l.b16 %v122
  %v543 = vunpack.c.h.b16 %v122
  %v544 = vunpack.c.l.b16 %v123
  %v545 = vunpack.c.h.b16 %v123
  %v546 = vunpack.c.l.b16 %v124
  %v547 = vunpack.c.h.b16 %v124
  %v548 = vunpack.c.l.b16 %v125
  %v549 = vunpack.c.h.b16 %v125
  %v550 = vunpack.c.l.b16 %v126
  %v551 = vunpack.c.h.b16 %v126
  %v552 = vunpack.c.l.b16 %v127
  %v553 = vunpack.c.h.b16 %v127
  %v554 = vunpack.c.l.b16 %v128
  %v555 = vunpack.c.h.b16 %v128
  %v556 = vunpack.c.l.b16 %v129
  %v557 = vunpack.c.h.b16 %v129
  %v558 = vunpack.c.l.b16 %v130
  %v559 = vunpack.c.h.b16 %v130
  %v560 = vunpack.c.l.b16 %v131
  %v561 = vunpack.c.h.b16 %v131
  %v562 = vunpack.c.l.b16 %v132
  %v563 = vunpack.c.h.b16 %v132
  %v564 = vunpack.c.l.b16 %v133
  %v565 = vunpack.c.h.b16 %v133
  %v566 = vunpack.c.l.b16 %v134
  %v567 = vunpack.c.h.b16 %v134
  %v568 = vunpack.c.l.b16 %v135
  %v569 = vunpack.c.h.b16 %v135
  %v570 = vunpack.c.l.b16 %v136
  %v571 = vunpack.c.h.b16 %v136
  %v572 = vunpack.c.l.b16 %v137
  %v573 = vunpack.c.h.b16 %v137
  %v574 = vunpack.c.l.b16 %v138
  %v575 = vunpack.c.h.b16 %v138
  %v576 = vunpack.c.l.b16 %v139
  %v577 = vunpack.c.h.b16 %v139
  %v578 = vunpack.c.l.b16 %v140
  %v579 = vunpack.c.h.b16 %v140
  %v580 = vunpack.c.l.b16 %v141
  %v581 = vunpack.c.h.b16 %v141
  %v582 = vunpack.c.l.b16 %v142
  %v583 = vunpack.c.h.b16 %v142
  %v584 = vunpack.c.l.b16 %v143
  %v585 = vunpack.c.h.b16 %v143
  %v586 = vunpack.c.l.b16 %v144
  %v587 = vunpack.c.h.b16 %v144
  %v588 = vunpack.c.l.b16 %v145
  %v589 = vunpack.c.h.b16 %v145
  %v590 = vunpack.c.l.b16 %v146
  %v591 = vunpack.c.h.b16 %v146
  %v592 = vunpack.c.l.b16 %v147
  %v593 = vunpack.c.h.b16 %v147
  %v594 = vunpack.c.l.b16 %v148
  %v595 = vunpack.c.h.b16 %v148
  %v596 = vunpack.c.l.b16 %v149
  %v597 = vunpack.c.h.b16 %v149
  %v598 = vunpack.c.l.b16 %v150
  %v599 = vunpack.c.h.b16 %v150
  %v600 = vunpack.c.l.b16 %v151
  %v601 = vunpack.c.h.b16 %v151
  %v602 = vunpack.c.l.b16 %v152
  %v603 = vunpack.c.h.b16 %v152
  %v604 = vunpack.c.l.b16 %v153
  %v605 = vunpack.c.h.b16 %v153
  %v606 = vunpack.c.l.b16 %v154
  %v607 = vunpack.c.h.b16 %v154
  %v608 = vunpack.c.l.b16 %v155
  %v609 = vunpack.c.h.b16 %v155
  %v610 = vunpack.c.l.b16 %v156
  %v611 = vunpack.c.h.b16 %v156
  %v612 = vunpack.c.l.b16 %v157
  %v613 = vunpack.c.h.b16 %v157
  %v614 = vunpack.c.l.b16 %v158
  %v615 = vunpack.c.h.b16 %v158
  %v616 = vunpack.c.l.b16 %v159
  %v617 = vunpack.c.h.b16 %v159
  %v618 = vunpack.c.l.b16 %v160
  %v619 = vunpack.c.h.b16 %v160
  %v620 = vunpack.c.l.b16 %v161
  %v621 = vunpack.c.h.b16 %v161
  %v622 = vunpack.c.l.b16 %v162
  %v623 = vunpack.c.h.b16 %v162
  %v624 = vunpack.c.l.b16 %v163
  %v625 = vunpack.c.h.b16 %v163
  %v626 = vunpack.c.l.b16 %v164
  %v627 = vunpack.c.h.b16 %v164
  %v628 = vunpack.c.l.b16 %v165
  %v629 = vunpack.c.h.b16 %v165
  %v630 = vunpack.c.l.b16 %v166
  %v631 = vunpack.c.h.b16 %v166
  %v632 = vunpack.c.l.b16 %v167
  %v633 = vunpack.c.h.b16 %v167
  %v634 = vunpack.c.l.b16 %v168
  %v635 = vunpack.c.h.b16 %v168
  %v636 = vunpack.c.l.b16 %v169
  %v637 = vunpack.c.h.b16 %v169
  %v638 = vunpack.c.l.b16 %v170
  %v639 = vunpack.c.h.b16 %v170
  %v640 = vunpack.c.l.b16 %v171
  %v641 = vunpack.c.h.b16 %v171
  %v642 = vunpack.c.l.b16 %v172
  %v643 = vunpack.c.h.b16 %v172
  %v644 = vunpack.c.l.b16 %v173
  %v645 = vunpack.c.h.b16 %v173
  %v646 = vunpack.c.l.b16 %v174
  %v647 = vunpack.c.h.b16 %v174
  %v648 = vunpack.c.l.b16 %v175
  %v649 = vunpack.c.h.b16 %v175
  %v650 = vunpack.c.l.b16 %v176
  %v651 = vunpack.c.h.b16 %v176
  %v652 = vunpack.c.l.b16 %v177
  %v653 = vunpack.c.h.b16 %v177
  %v654 = vunpack.c.l.b16 %v178
  %v655 = vunpack.c.h.b16 %v178
  %v656 = vunpack.c.l.b16 %v179
  %v657 = vunpack.c.h.b16 %v179
  %v658 = vunpack.c.l.b16 %v180
  %v659 = vunpack.c.h.b16 %v180
  %v660 = vunpack.c.l.b16 %v181
  %v661 = vunpack.c.h.b16 %v181
  %v662 = vunpack.c.l.b16 %v182
  %v663 = vunpack.c.h.b16 %v182
  %v664 = vunpack.c.l.b16 %v183
  %v665 = vunpack.c.h.b16 %v183
  %v666 = vunpack.c.l.b16 %v184
  %v667 = vunpack.c.h.b16 %v184
  %v668 = vunpack.c.l.b16 %v185
  %v669 = vunpack.c.h.b16 %v185
  %v670 = vunpack.c.l.b16 %v186
  %v671 = vunpack.c.h.b16 %v186
  %v672 = vunpack.c.l.b16 %v187
  %v673 = vunpack.c.h.b16 %v187
  %v674 = vunpack.c.l.b16 %v188
  %v675 = vunpack.c.h.b16 %v188
  %v676 = vunpack.c.l.b16 %v189
  %v677 = vunpack.c.h.b16 %v189
  %v678 = vunpack.c.l.b16 %v190
  %v679 = vunpack.c.h.b16 %v190
  %v680 = vunpack.c.l.b16 %v191
  %v681 = vunpack.c.h.b16 %v191
  %v682 = vunpack.c.l.b16 %v192
  %v683 = vunpack.c.h.b16 %v192
  %v684 = vunpack.c.l.b16 %v193
  %v685 = vunpack.c.h.b16 %v193
  %v686 = vpack.c.b16 %v406, %v398
  %v687 = vpack.c.b16 %v407, %v399
  %v688 = vpack.c.b16 %v408, %v400
  %v689 = vpack.c.b16 %v409, %v401
  %v690 = vpack.c.b16 %v410, %v402
  %v691 = vpack.c.b16 %v411, %v403
  %v692 = vpack.c.b16 %v412, %v404
  %v693 = vpack.c.b16 %v413, %v405
  %v694 = vpack.c.b16 %v422, %v414
  %v695 = vpack.c.b16 %v423, %v415
  %v696 = vpack.c.b16 %v424, %v416
  %v697 = vpack.c.b16 %v425, %v417
  %v698 = vpack.c.b16 %v426, %v418
  %v699 = vpack.c.b16 %v427, %v419
  %v700 = vpack.c.b16 %v428, %v420
  %v701 = vpack.c.b16 %v429, %v421
  %v702 = vpack.c.b16 %v438, %v430
  %v703 = vpack.c.b16 %v439, %v431
  %v704 = vpack.c.b16 %v440, %v432
  %v705 = vpack.c.b16 %v441, %v433
  %v706 = vpack.c.b16 %v442, %v434
  %v707 = vpack.c.b16 %v443, %v435
  %v708 = vpack.c.b16 %v444, %v436
  %v709 = vpack.c.b16 %v445, %v437
  %v710 = vpack.c.b16 %v454, %v446
  %v711 = vpack.c.b16 %v455, %v447
  %v712 = vpack.c.b16 %v456, %v448
  %v713 = vpack.c.b16 %v457, %v449
  %v714 = vpack.c.b16 %v458, %v450
  %v715 = vpack.c.b16 %v459, %v451
  %v716 = vpack.c.b16 %v460, %v452
  %v717 = vpack.c.b16 %v461, %v453
  %v718 = vpack.c.b16 %v470, %v462
  %v719 = vpack.c.b16 %v471, %v463
  %v720 = vpack.c.b16 %v472, %v464
  %v721 = vpack.c.b16 %v473, %v465
  %v722 = vpack.c.b16 %v474, %v466
  %v723 = vpack.c.b16 %v475, %v467
  %v724 = vpack.c.b16 %v476, %v468
  %v725 = vpack.c.b16 %v477, %v469
  %v726 = vpack.c.b16 %v486, %v478
  %v727 = vpack.c.b16 %v487, %v479
  %v728 = vpack.c.b16 %v488, %v480
  %v729 = vpack.c.b16 %v489, %v481
  %v730 = vpack.c.b16 %v490, %v482
  %v731 = vpack.c.b16 %v491, %v483
  %v732 = vpack.c.b16 %v492, %v484
  %v733 = vpack.c.b16 %v493, %v485
  %v734 = vpack.c.b16 %v502, %v494
  %v735 = vpack.c.b16 %v503, %v495
  %v736 = vpack.c.b16 %v504, %v496
  %v737 = vpack.c.b16 %v505, %v497
  %v738 = vpack.c.b16 %v506, %v498
  %v739 = vpack.c.b16 %v507, %v499
  %v740 = vpack.c.b16 %v508, %v500
  %v741 = vpack.c.b16 %v509, %v501
  %v742 = vpack.c.b16 %v518, %v510
  %v743 = vpack.c.b16 %v519, %v511
  %v744 = vpack.c.b16 %v520, %v512
  %v745 = vpack.c.b16 %v521, %v513
  %v746 = vpack.c.b16 %v522, %v514
  %v747 = vpack.c.b16 %v523, %v515
  %v748 = vpack.c.b16 %v524, %v516
  %v749 = vpack.c.b16 %v525, %v517
  %v750 = vpack.c.b16 %v534, %v526
  %v751 = vpack.c.b16 %v535, %v527
  %v752 = vpack.c.b16 %v536, %v528
  %v753 = vpack.c.b16 %v537, %v529
  %v754 = vpack.c.b16 %v538, %v530
  %v755 = vpack.c.b16 %v539, %v531
  %v756 = vpack.c.b16 %v540, %v532
  %v757 = vpack.c.b16 %v541, %v533
  %v758 = vpack.c.b16 %v550, %v542
  %v759 = vpack.c.b16 %v551, %v543
  %v760 = vpack.c.b16 %v552, %v544
  %v761 = vpack.c.b16 %v553, %v545
  %v762 = vpack.c.b16 %v554, %v546
  %v763 = vpack.c.b16 %v555, %v547
  %v764 = vpack.c.b16 %v556, %v548
  %v765 = vpack.c.b16 %v557, %v549
  %v766 = vpack.c.b16 %v566, %v558
  %v767 = vpack.c.b16 %v567, %v559
  %v768 = vpack.c.b16 %v568, %v560
  %v769 = vpack.c.b16 %v569, %v561
  %v770 = vpack.c.b16 %v570, %v562
  %v771 = vpack.c.b16 %v571, %v563
  %v772 = vpack.c.b16 %v572, %v564
  %v773 = vpack.c.b16 %v573, %v565
  %v774 = vpack.c.b16 %v582, %v574
  %v775 = vpack.c.b16 %v583, %v575
  %v776 = vpack.c.b16 %v584, %v576
  %v777 = vpack.c.b16 %v585, %v577
  %v778 = vpack.c.b16 %v586, %v578
  %v779 = vpack.c.b16 %v587, %v579
  %v780 = vpack.c.b16 %v588, %v580
  %v781 = vpack.c.b16 %v589, %v581
  %v782 = vpack.c.b16 %v598, %v590
  %v783 = vpack.c.b16 %v599, %v591
  %v784 = vpack.c.b16 %v600, %v592
  %v785 = vpack.c.b16 %v601, %v593
  %v786 = vpack.c.b16 %v602, %v594
  %v787 = vpack.c.b16 %v603, %v595
  %v788 = vpack.c.b16 %v604, %v596
  %v789 = vpack.c.b16 %v605, %v597
  %v790 = vpack.c.b16 %v614, %v606
  %v791 = vpack.c.b16 %v615, %v607
  %v792 = vpack.c.b16 %v616, %v608
  %v793 = vpack.c.b16 %v617, %v609
  %v794 = vpack.c.b16 %v618, %v610
  %v795 = vpack.c.b16 %v619, %v611
  %v796 = vpack.c.b16 %v620, %v612
  %v797 = vpack.c.b16 %v621, %v613
  %v798 = vpack.c.b16 %v630, %v622
  %v799 = vpack.c.b16 %v631, %v623
  %v800 = vpack.c.b16 %v632, %v624
  %v801 = vpack.c.b16 %v633, %v625
  %v802 = vpack.c.b16 %v634, %v626
  %v803 = vpack.c.b16 %v635, %v627
  %v804 = vpack.c.b16 %v636, %v628
  %v805 = vpack.c.b16 %v637, %v629
  %v806 = vpack.c.b16 %v646, %v638
  %v807 = vpack.c.b16 %v647, %v639
  %v808 = vpack.c.b16 %v648, %v640
  %v809 = vpack.c.b16 %v649, %v641
  %v810 = vpack.c.b16 %v650, %v642
  %v811 = vpack.c.b16 %v651, %v643
  %v812 = vpack.c.b16 %v652, %v644
  %v813 = vpack.c.b16 %v653, %v645
  %v814 = vpack.c.b16 %v662, %v654
  %v815 = vpack.c.b16 %v663, %v655
  %v816 = vpack.c.b16 %v664, %v656
  %v817 = vpack.c.b16 %v665, %v657
  %v818 = vpack.c.b16 %v666, %v658
  %v819 = vpack.c.b16 %v667, %v659
  %v820 = vpack.c.b16 %v668, %v660
  %v821 = vpack.c.b16 %v669, %v661
  %v822 = vpack.c.b16 %v678, %v670
  %v823 = vpack.c.b16 %v679, %v671
  %v824 = vpack.c.b16 %v680, %v672
  %v825 = vpack.c.b16 %v681, %v673
  %v826 = vpack.c.b16 %v682, %v674
  %v827 = vpack.c.b16 %v683, %v675
  %v828 = vpack.c.b16 %v684, %v676
  %v829 = vpack.c.b16 %v685, %v677
  %vm974 = vcmask 261120
  %v976 = vsel %vm974, %v236, 0
  %v979 = vsel %vm974, %v239, 0
  %v982 = vsel %vm974, %v242, 0
  %v985 = vsel %vm974, %v245, 0
  %987 = vmatprep.subr.bf16.mxu0 %v687
  %988 = vmatpush1.bf16.msra.mxu0 %v686
  %989 = vmatprep.subr.bf16.mxu0 %v695
  %990 = vmatpush1.bf16.msra.mxu0 %v694
  %991 = vmatprep.subr.bf16.mxu0 %v703
  %992 = vmatpush1.bf16.msra.mxu0 %v702
  %993 = vmatprep.subr.bf16.mxu0 %v711
  %994 = vmatpush1.bf16.msra.mxu0 %v710
  %995 = vmatprep.subr.bf16.mxu0 %v719
  %996 = vmatpush1.bf16.msra.mxu0 %v718
  %997 = vmatprep.subr.bf16.mxu0 %v727
  %998 = vmatpush1.bf16.msra.mxu0 %v726
  %999 = vmatprep.subr.bf16.mxu0 %v735
  %1000 = vmatpush1.bf16.msra.mxu0 %v734
  %1001 = vmatprep.subr.bf16.mxu0 %v743
  %1002 = vmatpush1.bf16.msra.mxu0 %v742
  %1003 = vmatprep.subr.bf16.mxu0 %v751
  %1004 = vmatpush1.bf16.msra.mxu0 %v750
  %1005 = vmatprep.subr.bf16.mxu0 %v759
  %1006 = vmatpush1.bf16.msra.mxu0 %v758
  %1007 = vmatprep.subr.bf16.mxu0 %v767
  %1008 = vmatpush1.bf16.msra.mxu0 %v766
  %1009 = vmatprep.subr.bf16.mxu0 %v775
  %1010 = vmatpush1.bf16.msra.mxu0 %v774
  %1011 = vmatprep.subr.bf16.mxu0 %v783
  %1012 = vmatpush1.bf16.msra.mxu0 %v782
  %1013 = vmatprep.subr.bf16.mxu0 %v791
  %1014 = vmatpush1.bf16.msra.mxu0 %v790
  %1015 = vmatprep.subr.bf16.mxu0 %v799
  %1016 = vmatpush1.bf16.msra.mxu0 %v798
  %1017 = vmatprep.subr.bf16.mxu0 %v807
  %1018 = vmatpush1.bf16.msra.mxu0 %v806
  %1019 = vmatprep.mubr.bf16.mxu0 %v235
  %1020 = vmatmul.mubr.bf16.gmra.mrb[0].mxu0 %v234
  %v1021 = vpop.f32.mrb[0].mxu0
  %v1022 = vadd.f32 0.0, %v1021
  %v1023 = vpop.f32.mrb[0].mxu0
  %v1024 = vadd.f32 0.0, %v1023
  %v1025 = vpop.f32.mrb[0].mxu0
  %v1026 = vadd.f32 0.0, %v1025
  %v1027 = vpop.f32.mrb[0].mxu0
  %v1028 = vadd.f32 0.0, %v1027
  %1029 = vmatprep.mubr.bf16.mxu0 %v238
  %1030 = vmatmul.mubr.bf16.gmra.mrb[0].mxu0 %v237
  %v1031 = vpop.f32.mrb[0].mxu0
  %v1032 = vadd.f32 0.0, %v1031
  %v1033 = vpop.f32.mrb[0].mxu0
  %v1034 = vadd.f32 0.0, %v1033
  %v1035 = vpop.f32.mrb[0].mxu0
  %v1036 = vadd.f32 0.0, %v1035
  %v1037 = vpop.f32.mrb[0].mxu0
  %v1038 = vadd.f32 0.0, %v1037
  %1039 = vmatprep.mubr.bf16.mxu0 %v241
  %1040 = vmatmul.mubr.bf16.gmra.mrb[0].mxu0 %v240
  %v1041 = vpop.f32.mrb[0].mxu0
  %v1042 = vadd.f32 0.0, %v1041
  %v1043 = vpop.f32.mrb[0].mxu0
  %v1044 = vadd.f32 0.0, %v1043
  %v1045 = vpop.f32.mrb[0].mxu0
  %v1046 = vadd.f32 0.0, %v1045
  %v1047 = vpop.f32.mrb[0].mxu0
  %v1048 = vadd.f32 0.0, %v1047
  %1049 = vmatprep.mubr.bf16.mxu0 %v244
  %1050 = vmatmul.mubr.bf16.gmra.mrb[0].mxu0 %v243
  %v1051 = vpop.f32.mrb[0].mxu0
  %v1052 = vadd.f32 0.0, %v1051
  %v1053 = vpop.f32.mrb[0].mxu0
  %v1054 = vadd.f32 0.0, %v1053
  %v1055 = vpop.f32.mrb[0].mxu0
  %v1056 = vadd.f32 0.0, %v1055
  %v1057 = vpop.f32.mrb[0].mxu0
  %v1058 = vadd.f32 0.0, %v1057
  %1059 = vdwg.mxu0
  %1060 = vmatprep.subr.bf16.mxu0 %v815
  %1061 = vmatpush1.bf16.msra.mxu0 %v814
  %1062 = vmatprep.subr.bf16.mxu0 %v823
  %1063 = vmatpush1.bf16.msra.mxu0 %v822
  %1064 = vmatprep.subr.bf16.mxu0 0
  %1065 = vmatpush1.bf16.msra.mxu0 0
  %1066 = vmatprep.subr.bf16.mxu0 0
  %1067 = vmatpush1.bf16.msra.mxu0 0
  %1068 = vmatprep.subr.bf16.mxu0 0
  %1069 = vmatpush1.bf16.msra.mxu0 0
  %1070 = vmatprep.subr.bf16.mxu0 0
  %1071 = vmatpush1.bf16.msra.mxu0 0
  %1072 = vmatprep.subr.bf16.mxu0 0
  %1073 = vmatpush1.bf16.msra.mxu0 0
  %1074 = vmatprep.subr.bf16.mxu0 0
  %1075 = vmatpush1.bf16.msra.mxu0 0
  %1076 = vmatprep.subr.bf16.mxu0 0
  %1077 = vmatpush1.bf16.msra.mxu0 0
  %1078 = vmatprep.subr.bf16.mxu0 0
  %1079 = vmatpush1.bf16.msra.mxu0 0
  %1080 = vmatprep.subr.bf16.mxu0 0
  %1081 = vmatpush1.bf16.msra.mxu0 0
  %1082 = vmatprep.subr.bf16.mxu0 0
  %1083 = vmatpush1.bf16.msra.mxu0 0
  %1084 = vmatprep.subr.bf16.mxu0 0
  %1085 = vmatpush1.bf16.msra.mxu0 0
  %1086 = vmatprep.subr.bf16.mxu0 0
  %1087 = vmatpush1.bf16.msra.mxu0 0
  %1088 = vmatprep.subr.bf16.mxu0 0
  %1089 = vmatpush1.bf16.msra.mxu0 0
  %1090 = vmatprep.subr.bf16.mxu0 0
  %1091 = vmatpush1.bf16.msra.mxu0 0
  %1092 = vmatprep.mubr.bf16.mxu0 0
  %1093 = vmatmul.mubr.bf16.gmra.mrb[0].mxu0 %v976
  %v1094 = vpop.f32.mrb[0].mxu0
  %v1095 = vadd.f32 %v1022, %v1094
  %v1096 = vpop.f32.mrb[0].mxu0
  %v1097 = vadd.f32 %v1024, %v1096
  %v1098 = vpop.f32.mrb[0].mxu0
  %v1099 = vadd.f32 %v1026, %v1098
  %v1100 = vpop.f32.mrb[0].mxu0
  %v1101 = vadd.f32 %v1028, %v1100
  %1102 = vmatprep.mubr.bf16.mxu0 0
  %1103 = vmatmul.mubr.bf16.gmra.mrb[0].mxu0 %v979
  %v1104 = vpop.f32.mrb[0].mxu0
  %v1105 = vadd.f32 %v1032, %v1104
  %v1106 = vpop.f32.mrb[0].mxu0
  %v1107 = vadd.f32 %v1034, %v1106
  %v1108 = vpop.f32.mrb[0].mxu0
  %v1109 = vadd.f32 %v1036, %v1108
  %v1110 = vpop.f32.mrb[0].mxu0
  %v1111 = vadd.f32 %v1038, %v1110
  %1112 = vmatprep.mubr.bf16.mxu0 0
  %1113 = vmatmul.mubr.bf16.gmra.mrb[0].mxu0 %v982
  %v1114 = vpop.f32.mrb[0].mxu0
  %v1115 = vadd.f32 %v1042, %v1114
  %v1116 = vpop.f32.mrb[0].mxu0
  %v1117 = vadd.f32 %v1044, %v1116
  %v1118 = vpop.f32.mrb[0].mxu0
  %v1119 = vadd.f32 %v1046, %v1118
  %v1120 = vpop.f32.mrb[0].mxu0
  %v1121 = vadd.f32 %v1048, %v1120
  %1122 = vmatprep.mubr.bf16.mxu0 0
  %1123 = vmatmul.mubr.bf16.gmra.mrb[0].mxu0 %v985
  %v1124 = vpop.f32.mrb[0].mxu0
  %v1125 = vadd.f32 %v1052, %v1124
  %v1126 = vpop.f32.mrb[0].mxu0
  %v1127 = vadd.f32 %v1054, %v1126
  %v1128 = vpop.f32.mrb[0].mxu0
  %v1129 = vadd.f32 %v1056, %v1128
  %v1130 = vpop.f32.mrb[0].mxu0
  %v1131 = vadd.f32 %v1058, %v1130
  %1132 = vdwg.mxu0
  %1133 = vmatprep.subr.bf16.mxu0 %v689
  %1134 = vmatpush1.bf16.msra.mxu0 %v688
  %1135 = vmatprep.subr.bf16.mxu0 %v697
  %1136 = vmatpush1.bf16.msra.mxu0 %v696
  %1137 = vmatprep.subr.bf16.mxu0 %v705
  %1138 = vmatpush1.bf16.msra.mxu0 %v704
  %1139 = vmatprep.subr.bf16.mxu0 %v713
  %1140 = vmatpush1.bf16.msra.mxu0 %v712
  %1141 = vmatprep.subr.bf16.mxu0 %v721
  %1142 = vmatpush1.bf16.msra.mxu0 %v720
  %1143 = vmatprep.subr.bf16.mxu0 %v729
  %1144 = vmatpush1.bf16.msra.mxu0 %v728
  %1145 = vmatprep.subr.bf16.mxu0 %v737
  %1146 = vmatpush1.bf16.msra.mxu0 %v736
  %1147 = vmatprep.subr.bf16.mxu0 %v745
  %1148 = vmatpush1.bf16.msra.mxu0 %v744
  %1149 = vmatprep.subr.bf16.mxu0 %v753
  %1150 = vmatpush1.bf16.msra.mxu0 %v752
  %1151 = vmatprep.subr.bf16.mxu0 %v761
  %1152 = vmatpush1.bf16.msra.mxu0 %v760
  %1153 = vmatprep.subr.bf16.mxu0 %v769
  %1154 = vmatpush1.bf16.msra.mxu0 %v768
  %1155 = vmatprep.subr.bf16.mxu0 %v777
  %1156 = vmatpush1.bf16.msra.mxu0 %v776
  %1157 = vmatprep.subr.bf16.mxu0 %v785
  %1158 = vmatpush1.bf16.msra.mxu0 %v784
  %1159 = vmatprep.subr.bf16.mxu0 %v793
  %1160 = vmatpush1.bf16.msra.mxu0 %v792
  %1161 = vmatprep.subr.bf16.mxu0 %v801
  %1162 = vmatpush1.bf16.msra.mxu0 %v800
  %1163 = vmatprep.subr.bf16.mxu0 %v809
  %1164 = vmatpush1.bf16.msra.mxu0 %v808
  %1165 = vmatprep.mubr.bf16.mxu0 %v235
  %1166 = vmatmul.mubr.bf16.gmra.mrb[0].mxu0 %v234
  %v1167 = vpop.f32.mrb[0].mxu0
  %v1168 = vadd.f32 0.0, %v1167
  %v1169 = vpop.f32.mrb[0].mxu0
  %v1170 = vadd.f32 0.0, %v1169
  %v1171 = vpop.f32.mrb[0].mxu0
  %v1172 = vadd.f32 0.0, %v1171
  %v1173 = vpop.f32.mrb[0].mxu0
  %v1174 = vadd.f32 0.0, %v1173
  %1175 = vmatprep.mubr.bf16.mxu0 %v238
  %1176 = vmatmul.mubr.bf16.gmra.mrb[0].mxu0 %v237
  %v1177 = vpop.f32.mrb[0].mxu0
  %v1178 = vadd.f32 0.0, %v1177
  %v1179 = vpop.f32.mrb[0].mxu0
  %v1180 = vadd.f32 0.0, %v1179
  %v1181 = vpop.f32.mrb[0].mxu0
  %v1182 = vadd.f32 0.0, %v1181
  %v1183 = vpop.f32.mrb[0].mxu0
  %v1184 = vadd.f32 0.0, %v1183
  %1185 = vmatprep.mubr.bf16.mxu0 %v241
  %1186 = vmatmul.mubr.bf16.gmra.mrb[0].mxu0 %v240
  %v1187 = vpop.f32.mrb[0].mxu0
  %v1188 = vadd.f32 0.0, %v1187
  %v1189 = vpop.f32.mrb[0].mxu0
  %v1190 = vadd.f32 0.0, %v1189
  %v1191 = vpop.f32.mrb[0].mxu0
  %v1192 = vadd.f32 0.0, %v1191
  %v1193 = vpop.f32.mrb[0].mxu0
  %v1194 = vadd.f32 0.0, %v1193
  %1195 = vmatprep.mubr.bf16.mxu0 %v244
  %1196 = vmatmul.mubr.bf16.gmra.mrb[0].mxu0 %v243
  %v1197 = vpop.f32.mrb[0].mxu0
  %v1198 = vadd.f32 0.0, %v1197
  %v1199 = vpop.f32.mrb[0].mxu0
  %v1200 = vadd.f32 0.0, %v1199
  %v1201 = vpop.f32.mrb[0].mxu0
  %v1202 = vadd.f32 0.0, %v1201
  %v1203 = vpop.f32.mrb[0].mxu0
  %v1204 = vadd.f32 0.0, %v1203
  %1205 = vdwg.mxu0
  %1206 = vmatprep.subr.bf16.mxu0 %v817
  %1207 = vmatpush1.bf16.msra.mxu0 %v816
  %1208 = vmatprep.subr.bf16.mxu0 %v825
  %1209 = vmatpush1.bf16.msra.mxu0 %v824
  %1210 = vmatprep.subr.bf16.mxu0 0
  %1211 = vmatpush1.bf16.msra.mxu0 0
  %1212 = vmatprep.subr.bf16.mxu0 0
  %1213 = vmatpush1.bf16.msra.mxu0 0
  %1214 = vmatprep.subr.bf16.mxu0 0
  %1215 = vmatpush1.bf16.msra.mxu0 0
  %1216 = vmatprep.subr.bf16.mxu0 0
  %1217 = vmatpush1.bf16.msra.mxu0 0
  %1218 = vmatprep.subr.bf16.mxu0 0
  %1219 = vmatpush1.bf16.msra.mxu0 0
  %1220 = vmatprep.subr.bf16.mxu0 0
  %1221 = vmatpush1.bf16.msra.mxu0 0
  %1222 = vmatprep.subr.bf16.mxu0 0
  %1223 = vmatpush1.bf16.msra.mxu0 0
  %1224 = vmatprep.subr.bf16.mxu0 0
  %1225 = vmatpush1.bf16.msra.mxu0 0
  %1226 = vmatprep.subr.bf16.mxu0 0
  %1227 = vmatpush1.bf16.msra.mxu0 0
  %1228 = vmatprep.subr.bf16.mxu0 0
  %1229 = vmatpush1.bf16.msra.mxu0 0
  %1230 = vmatprep.subr.bf16.mxu0 0
  %1231 = vmatpush1.bf16.msra.mxu0 0
  %1232 = vmatprep.subr.bf16.mxu0 0
  %1233 = vmatpush1.bf16.msra.mxu0 0
  %1234 = vmatprep.subr.bf16.mxu0 0
  %1235 = vmatpush1.bf16.msra.mxu0 0
  %1236 = vmatprep.subr.bf16.mxu0 0
  %1237 = vmatpush1.bf16.msra.mxu0 0
  %1238 = vmatprep.mubr.bf16.mxu0 0
  %1239 = vmatmul.mubr.bf16.gmra.mrb[0].mxu0 %v976
  %v1240 = vpop.f32.mrb[0].mxu0
  %v1241 = vadd.f32 %v1168, %v1240
  %v1242 = vpop.f32.mrb[0].mxu0
  %v1243 = vadd.f32 %v1170, %v1242
  %v1244 = vpop.f32.mrb[0].mxu0
  %v1245 = vadd.f32 %v1172, %v1244
  %v1246 = vpop.f32.mrb[0].mxu0
  %v1247 = vadd.f32 %v1174, %v1246
  %1248 = vmatprep.mubr.bf16.mxu0 0
  %1249 = vmatmul.mubr.bf16.gmra.mrb[0].mxu0 %v979
  %v1250 = vpop.f32.mrb[0].mxu0
  %v1251 = vadd.f32 %v1178, %v1250
  %v1252 = vpop.f32.mrb[0].mxu0
  %v1253 = vadd.f32 %v1180, %v1252
  %v1254 = vpop.f32.mrb[0].mxu0
  %v1255 = vadd.f32 %v1182, %v1254
  %v1256 = vpop.f32.mrb[0].mxu0
  %v1257 = vadd.f32 %v1184, %v1256
  %1258 = vmatprep.mubr.bf16.mxu0 0
  %1259 = vmatmul.mubr.bf16.gmra.mrb[0].mxu0 %v982
  %v1260 = vpop.f32.mrb[0].mxu0
  %v1261 = vadd.f32 %v1188, %v1260
  %v1262 = vpop.f32.mrb[0].mxu0
  %v1263 = vadd.f32 %v1190, %v1262
  %v1264 = vpop.f32.mrb[0].mxu0
  %v1265 = vadd.f32 %v1192, %v1264
  %v1266 = vpop.f32.mrb[0].mxu0
  %v1267 = vadd.f32 %v1194, %v1266
  %1268 = vmatprep.mubr.bf16.mxu0 0
  %1269 = vmatmul.mubr.bf16.gmra.mrb[0].mxu0 %v985
  %v1270 = vpop.f32.mrb[0].mxu0
  %v1271 = vadd.f32 %v1198, %v1270
  %v1272 = vpop.f32.mrb[0].mxu0
  %v1273 = vadd.f32 %v1200, %v1272
  %v1274 = vpop.f32.mrb[0].mxu0
  %v1275 = vadd.f32 %v1202, %v1274
  %v1276 = vpop.f32.mrb[0].mxu0
  %v1277 = vadd.f32 %v1204, %v1276
  %1278 = vdwg.mxu0
  %1279 = vmatprep.subr.bf16.mxu0 %v691
  %1280 = vmatpush1.bf16.msra.mxu0 %v690
  %1281 = vmatprep.subr.bf16.mxu0 %v699
  %1282 = vmatpush1.bf16.msra.mxu0 %v698
  %1283 = vmatprep.subr.bf16.mxu0 %v707
  %1284 = vmatpush1.bf16.msra.mxu0 %v706
  %1285 = vmatprep.subr.bf16.mxu0 %v715
  %1286 = vmatpush1.bf16.msra.mxu0 %v714
  %1287 = vmatprep.subr.bf16.mxu0 %v723
  %1288 = vmatpush1.bf16.msra.mxu0 %v722
  %1289 = vmatprep.subr.bf16.mxu0 %v731
  %1290 = vmatpush1.bf16.msra.mxu0 %v730
  %1291 = vmatprep.subr.bf16.mxu0 %v739
  %1292 = vmatpush1.bf16.msra.mxu0 %v738
  %1293 = vmatprep.subr.bf16.mxu0 %v747
  %1294 = vmatpush1.bf16.msra.mxu0 %v746
  %1295 = vmatprep.subr.bf16.mxu0 %v755
  %1296 = vmatpush1.bf16.msra.mxu0 %v754
  %1297 = vmatprep.subr.bf16.mxu0 %v763
  %1298 = vmatpush1.bf16.msra.mxu0 %v762
  %1299 = vmatprep.subr.bf16.mxu0 %v771
  %1300 = vmatpush1.bf16.msra.mxu0 %v770
  %1301 = vmatprep.subr.bf16.mxu0 %v779
  %1302 = vmatpush1.bf16.msra.mxu0 %v778
  %1303 = vmatprep.subr.bf16.mxu0 %v787
  %1304 = vmatpush1.bf16.msra.mxu0 %v786
  %1305 = vmatprep.subr.bf16.mxu0 %v795
  %1306 = vmatpush1.bf16.msra.mxu0 %v794
  %1307 = vmatprep.subr.bf16.mxu0 %v803
  %1308 = vmatpush1.bf16.msra.mxu0 %v802
  %1309 = vmatprep.subr.bf16.mxu0 %v811
  %1310 = vmatpush1.bf16.msra.mxu0 %v810
  %1311 = vmatprep.mubr.bf16.mxu0 %v235
  %1312 = vmatmul.mubr.bf16.gmra.mrb[0].mxu0 %v234
  %v1313 = vpop.f32.mrb[0].mxu0
  %v1314 = vadd.f32 0.0, %v1313
  %v1315 = vpop.f32.mrb[0].mxu0
  %v1316 = vadd.f32 0.0, %v1315
  %v1317 = vpop.f32.mrb[0].mxu0
  %v1318 = vadd.f32 0.0, %v1317
  %v1319 = vpop.f32.mrb[0].mxu0
  %v1320 = vadd.f32 0.0, %v1319
  %1321 = vmatprep.mubr.bf16.mxu0 %v238
  %1322 = vmatmul.mubr.bf16.gmra.mrb[0].mxu0 %v237
  %v1323 = vpop.f32.mrb[0].mxu0
  %v1324 = vadd.f32 0.0, %v1323
  %v1325 = vpop.f32.mrb[0].mxu0
  %v1326 = vadd.f32 0.0, %v1325
  %v1327 = vpop.f32.mrb[0].mxu0
  %v1328 = vadd.f32 0.0, %v1327
  %v1329 = vpop.f32.mrb[0].mxu0
  %v1330 = vadd.f32 0.0, %v1329
  %1331 = vmatprep.mubr.bf16.mxu0 %v241
  %1332 = vmatmul.mubr.bf16.gmra.mrb[0].mxu0 %v240
  %v1333 = vpop.f32.mrb[0].mxu0
  %v1334 = vadd.f32 0.0, %v1333
  %v1335 = vpop.f32.mrb[0].mxu0
  %v1336 = vadd.f32 0.0, %v1335
  %v1337 = vpop.f32.mrb[0].mxu0
  %v1338 = vadd.f32 0.0, %v1337
  %v1339 = vpop.f32.mrb[0].mxu0
  %v1340 = vadd.f32 0.0, %v1339
  %1341 = vmatprep.mubr.bf16.mxu0 %v244
  %1342 = vmatmul.mubr.bf16.gmra.mrb[0].mxu0 %v243
  %v1343 = vpop.f32.mrb[0].mxu0
  %v1344 = vadd.f32 0.0, %v1343
  %v1345 = vpop.f32.mrb[0].mxu0
  %v1346 = vadd.f32 0.0, %v1345
  %v1347 = vpop.f32.mrb[0].mxu0
  %v1348 = vadd.f32 0.0, %v1347
  %v1349 = vpop.f32.mrb[0].mxu0
  %v1350 = vadd.f32 0.0, %v1349
  %1351 = vdwg.mxu0
  %1352 = vmatprep.subr.bf16.mxu0 %v819
  %1353 = vmatpush1.bf16.msra.mxu0 %v818
  %1354 = vmatprep.subr.bf16.mxu0 %v827
  %1355 = vmatpush1.bf16.msra.mxu0 %v826
  %1356 = vmatprep.subr.bf16.mxu0 0
  %1357 = vmatpush1.bf16.msra.mxu0 0
  %1358 = vmatprep.subr.bf16.mxu0 0
  %1359 = vmatpush1.bf16.msra.mxu0 0
  %1360 = vmatprep.subr.bf16.mxu0 0
  %1361 = vmatpush1.bf16.msra.mxu0 0
  %1362 = vmatprep.subr.bf16.mxu0 0
  %1363 = vmatpush1.bf16.msra.mxu0 0
  %1364 = vmatprep.subr.bf16.mxu0 0
  %1365 = vmatpush1.bf16.msra.mxu0 0
  %1366 = vmatprep.subr.bf16.mxu0 0
  %1367 = vmatpush1.bf16.msra.mxu0 0
  %1368 = vmatprep.subr.bf16.mxu0 0
  %1369 = vmatpush1.bf16.msra.mxu0 0
  %1370 = vmatprep.subr.bf16.mxu0 0
  %1371 = vmatpush1.bf16.msra.mxu0 0
  %1372 = vmatprep.subr.bf16.mxu0 0
  %1373 = vmatpush1.bf16.msra.mxu0 0
  %1374 = vmatprep.subr.bf16.mxu0 0
  %1375 = vmatpush1.bf16.msra.mxu0 0
  %1376 = vmatprep.subr.bf16.mxu0 0
  %1377 = vmatpush1.bf16.msra.mxu0 0
  %1378 = vmatprep.subr.bf16.mxu0 0
  %1379 = vmatpush1.bf16.msra.mxu0 0
  %1380 = vmatprep.subr.bf16.mxu0 0
  %1381 = vmatpush1.bf16.msra.mxu0 0
  %1382 = vmatprep.subr.bf16.mxu0 0
  %1383 = vmatpush1.bf16.msra.mxu0 0
  %1384 = vmatprep.mubr.bf16.mxu0 0
  %1385 = vmatmul.mubr.bf16.gmra.mrb[0].mxu0 %v976
  %v1386 = vpop.f32.mrb[0].mxu0
  %v1387 = vadd.f32 %v1314, %v1386
  %v1388 = vpop.f32.mrb[0].mxu0
  %v1389 = vadd.f32 %v1316, %v1388
  %v1390 = vpop.f32.mrb[0].mxu0
  %v1391 = vadd.f32 %v1318, %v1390
  %v1392 = vpop.f32.mrb[0].mxu0
  %v1393 = vadd.f32 %v1320, %v1392
  %1394 = vmatprep.mubr.bf16.mxu0 0
  %1395 = vmatmul.mubr.bf16.gmra.mrb[0].mxu0 %v979
  %v1396 = vpop.f32.mrb[0].mxu0
  %v1397 = vadd.f32 %v1324, %v1396
  %v1398 = vpop.f32.mrb[0].mxu0
  %v1399 = vadd.f32 %v1326, %v1398
  %v1400 = vpop.f32.mrb[0].mxu0
  %v1401 = vadd.f32 %v1328, %v1400
  %v1402 = vpop.f32.mrb[0].mxu0
  %v1403 = vadd.f32 %v1330, %v1402
  %1404 = vmatprep.mubr.bf16.mxu0 0
  %1405 = vmatmul.mubr.bf16.gmra.mrb[0].mxu0 %v982
  %v1406 = vpop.f32.mrb[0].mxu0
  %v1407 = vadd.f32 %v1334, %v1406
  %v1408 = vpop.f32.mrb[0].mxu0
  %v1409 = vadd.f32 %v1336, %v1408
  %v1410 = vpop.f32.mrb[0].mxu0
  %v1411 = vadd.f32 %v1338, %v1410
  %v1412 = vpop.f32.mrb[0].mxu0
  %v1413 = vadd.f32 %v1340, %v1412
  %1414 = vmatprep.mubr.bf16.mxu0 0
  %1415 = vmatmul.mubr.bf16.gmra.mrb[0].mxu0 %v985
  %v1416 = vpop.f32.mrb[0].mxu0
  %v1417 = vadd.f32 %v1344, %v1416
  %v1418 = vpop.f32.mrb[0].mxu0
  %v1419 = vadd.f32 %v1346, %v1418
  %v1420 = vpop.f32.mrb[0].mxu0
  %v1421 = vadd.f32 %v1348, %v1420
  %v1422 = vpop.f32.mrb[0].mxu0
  %v1423 = vadd.f32 %v1350, %v1422
  %1424 = vdwg.mxu0
  %1425 = vmatprep.subr.bf16.mxu0 %v693
  %1426 = vmatpush1.bf16.msra.mxu0 %v692
  %1427 = vmatprep.subr.bf16.mxu0 %v701
  %1428 = vmatpush1.bf16.msra.mxu0 %v700
  %1429 = vmatprep.subr.bf16.mxu0 %v709
  %1430 = vmatpush1.bf16.msra.mxu0 %v708
  %1431 = vmatprep.subr.bf16.mxu0 %v717
  %1432 = vmatpush1.bf16.msra.mxu0 %v716
  %1433 = vmatprep.subr.bf16.mxu0 %v725
  %1434 = vmatpush1.bf16.msra.mxu0 %v724
  %1435 = vmatprep.subr.bf16.mxu0 %v733
  %1436 = vmatpush1.bf16.msra.mxu0 %v732
  %1437 = vmatprep.subr.bf16.mxu0 %v741
  %1438 = vmatpush1.bf16.msra.mxu0 %v740
  %1439 = vmatprep.subr.bf16.mxu0 %v749
  %1440 = vmatpush1.bf16.msra.mxu0 %v748
  %1441 = vmatprep.subr.bf16.mxu0 %v757
  %1442 = vmatpush1.bf16.msra.mxu0 %v756
  %1443 = vmatprep.subr.bf16.mxu0 %v765
  %1444 = vmatpush1.bf16.msra.mxu0 %v764
  %1445 = vmatprep.subr.bf16.mxu0 %v773
  %1446 = vmatpush1.bf16.msra.mxu0 %v772
  %1447 = vmatprep.subr.bf16.mxu0 %v781
  %1448 = vmatpush1.bf16.msra.mxu0 %v780
  %1449 = vmatprep.subr.bf16.mxu0 %v789
  %1450 = vmatpush1.bf16.msra.mxu0 %v788
  %1451 = vmatprep.subr.bf16.mxu0 %v797
  %1452 = vmatpush1.bf16.msra.mxu0 %v796
  %1453 = vmatprep.subr.bf16.mxu0 %v805
  %1454 = vmatpush1.bf16.msra.mxu0 %v804
  %1455 = vmatprep.subr.bf16.mxu0 %v813
  %1456 = vmatpush1.bf16.msra.mxu0 %v812
  %1457 = vmatprep.mubr.bf16.mxu0 %v235
  %1458 = vmatmul.mubr.bf16.gmra.mrb[0].mxu0 %v234
  %v1459 = vpop.f32.mrb[0].mxu0
  %v1460 = vadd.f32 0.0, %v1459
  %v1461 = vpop.f32.mrb[0].mxu0
  %v1462 = vadd.f32 0.0, %v1461
  %v1463 = vpop.f32.mrb[0].mxu0
  %v1464 = vadd.f32 0.0, %v1463
  %v1465 = vpop.f32.mrb[0].mxu0
  %v1466 = vadd.f32 0.0, %v1465
  %1467 = vmatprep.mubr.bf16.mxu0 %v238
  %1468 = vmatmul.mubr.bf16.gmra.mrb[0].mxu0 %v237
  %v1469 = vpop.f32.mrb[0].mxu0
  %v1470 = vadd.f32 0.0, %v1469
  %v1471 = vpop.f32.mrb[0].mxu0
  %v1472 = vadd.f32 0.0, %v1471
  %v1473 = vpop.f32.mrb[0].mxu0
  %v1474 = vadd.f32 0.0, %v1473
  %v1475 = vpop.f32.mrb[0].mxu0
  %v1476 = vadd.f32 0.0, %v1475
  %1477 = vmatprep.mubr.bf16.mxu0 %v241
  %1478 = vmatmul.mubr.bf16.gmra.mrb[0].mxu0 %v240
  %v1479 = vpop.f32.mrb[0].mxu0
  %v1480 = vadd.f32 0.0, %v1479
  %v1481 = vpop.f32.mrb[0].mxu0
  %v1482 = vadd.f32 0.0, %v1481
  %v1483 = vpop.f32.mrb[0].mxu0
  %v1484 = vadd.f32 0.0, %v1483
  %v1485 = vpop.f32.mrb[0].mxu0
  %v1486 = vadd.f32 0.0, %v1485
  %1487 = vmatprep.mubr.bf16.mxu0 %v244
  %1488 = vmatmul.mubr.bf16.gmra.mrb[0].mxu0 %v243
  %v1489 = vpop.f32.mrb[0].mxu0
  %v1490 = vadd.f32 0.0, %v1489
  %v1491 = vpop.f32.mrb[0].mxu0
  %v1492 = vadd.f32 0.0, %v1491
  %v1493 = vpop.f32.mrb[0].mxu0
  %v1494 = vadd.f32 0.0, %v1493
  %v1495 = vpop.f32.mrb[0].mxu0
  %v1496 = vadd.f32 0.0, %v1495
  %1497 = vdwg.mxu0
  %1498 = vmatprep.subr.bf16.mxu0 %v821
  %1499 = vmatpush1.bf16.msra.mxu0 %v820
  %1500 = vmatprep.subr.bf16.mxu0 %v829
  %1501 = vmatpush1.bf16.msra.mxu0 %v828
  %1502 = vmatprep.subr.bf16.mxu0 0
  %1503 = vmatpush1.bf16.msra.mxu0 0
  %1504 = vmatprep.subr.bf16.mxu0 0
  %1505 = vmatpush1.bf16.msra.mxu0 0
  %1506 = vmatprep.subr.bf16.mxu0 0
  %1507 = vmatpush1.bf16.msra.mxu0 0
  %1508 = vmatprep.subr.bf16.mxu0 0
  %1509 = vmatpush1.bf16.msra.mxu0 0
  %1510 = vmatprep.subr.bf16.mxu0 0
  %1511 = vmatpush1.bf16.msra.mxu0 0
  %1512 = vmatprep.subr.bf16.mxu0 0
  %1513 = vmatpush1.bf16.msra.mxu0 0
  %1514 = vmatprep.subr.bf16.mxu0 0
  %1515 = vmatpush1.bf16.msra.mxu0 0
  %1516 = vmatprep.subr.bf16.mxu0 0
  %1517 = vmatpush1.bf16.msra.mxu0 0
  %1518 = vmatprep.subr.bf16.mxu0 0
  %1519 = vmatpush1.bf16.msra.mxu0 0
  %1520 = vmatprep.subr.bf16.mxu0 0
  %1521 = vmatpush1.bf16.msra.mxu0 0
  %1522 = vmatprep.subr.bf16.mxu0 0
  %1523 = vmatpush1.bf16.msra.mxu0 0
  %1524 = vmatprep.subr.bf16.mxu0 0
  %1525 = vmatpush1.bf16.msra.mxu0 0
  %1526 = vmatprep.subr.bf16.mxu0 0
  %1527 = vmatpush1.bf16.msra.mxu0 0
  %1528 = vmatprep.subr.bf16.mxu0 0
  %1529 = vmatpush1.bf16.msra.mxu0 0
  %1530 = vmatprep.mubr.bf16.mxu0 0
  %1531 = vmatmul.mubr.bf16.gmra.mrb[0].mxu0 %v976
  %v1532 = vpop.f32.mrb[0].mxu0
  %v1533 = vadd.f32 %v1460, %v1532
  %v1534 = vpop.f32.mrb[0].mxu0
  %v1535 = vadd.f32 %v1462, %v1534
  %v1536 = vpop.f32.mrb[0].mxu0
  %v1537 = vadd.f32 %v1464, %v1536
  %v1538 = vpop.f32.mrb[0].mxu0
  %v1539 = vadd.f32 %v1466, %v1538
  %1540 = vmatprep.mubr.bf16.mxu0 0
  %1541 = vmatmul.mubr.bf16.gmra.mrb[0].mxu0 %v979
  %v1542 = vpop.f32.mrb[0].mxu0
  %v1543 = vadd.f32 %v1470, %v1542
  %v1544 = vpop.f32.mrb[0].mxu0
  %v1545 = vadd.f32 %v1472, %v1544
  %v1546 = vpop.f32.mrb[0].mxu0
  %v1547 = vadd.f32 %v1474, %v1546
  %v1548 = vpop.f32.mrb[0].mxu0
  %v1549 = vadd.f32 %v1476, %v1548
  %1550 = vmatprep.mubr.bf16.mxu0 0
  %1551 = vmatmul.mubr.bf16.gmra.mrb[0].mxu0 %v982
  %v1552 = vpop.f32.mrb[0].mxu0
  %v1553 = vadd.f32 %v1480, %v1552
  %v1554 = vpop.f32.mrb[0].mxu0
  %v1555 = vadd.f32 %v1482, %v1554
  %v1556 = vpop.f32.mrb[0].mxu0
  %v1557 = vadd.f32 %v1484, %v1556
  %v1558 = vpop.f32.mrb[0].mxu0
  %v1559 = vadd.f32 %v1486, %v1558
  %1560 = vmatprep.mubr.bf16.mxu0 0
  %1561 = vmatmul.mubr.bf16.gmra.mrb[0].mxu0 %v985
  %v1562 = vpop.f32.mrb[0].mxu0
  %v1563 = vadd.f32 %v1490, %v1562
  %v1564 = vpop.f32.mrb[0].mxu0
  %v1565 = vadd.f32 %v1492, %v1564
  %v1566 = vpop.f32.mrb[0].mxu0
  %v1567 = vadd.f32 %v1494, %v1566
  %v1568 = vpop.f32.mrb[0].mxu0
  %v1569 = vadd.f32 %v1496, %v1568
  %1570 = vdwg.mxu0
  %1572 = vset.pattern.permute.xlu0 0
  %1573 = vperm.xlu0 %1572, %v34
  %v1574 = vpop.permute.xlu0 %1573
  %1577 = vset.pattern.permute.xlu0 0
  %1578 = vperm.xlu0 %1577, %v35
  %v1579 = vpop.permute.xlu0 %1578
  %1582 = vset.pattern.permute.xlu0 0
  %1583 = vperm.xlu0 %1582, %v36
  %v1584 = vpop.permute.xlu0 %1583
  %1587 = vset.pattern.permute.xlu0 0
  %1588 = vperm.xlu0 %1587, %v37
  %v1589 = vpop.permute.xlu0 %1588
  %1592 = vset.pattern.permute.xlu0 0
  %1593 = vperm.xlu0 %1592, %v38
  %v1594 = vpop.permute.xlu0 %1593
  %1597 = vset.pattern.permute.xlu0 0
  %1598 = vperm.xlu0 %1597, %v39
  %v1599 = vpop.permute.xlu0 %1598
  %1602 = vset.pattern.permute.xlu0 0
  %1603 = vperm.xlu0 %1602, %v40
  %v1604 = vpop.permute.xlu0 %1603
  %1607 = vset.pattern.permute.xlu0 0
  %1608 = vperm.xlu0 %1607, %v41
  %v1609 = vpop.permute.xlu0 %1608
  %v1611 = vmul.f32 %v1095, %v1574
  %v1612 = vmul.f32 %v1097, %v1574
  %v1613 = vmul.f32 %v1241, %v1574
  %v1614 = vmul.f32 %v1243, %v1574
  %v1615 = vmul.f32 %v1387, %v1574
  %v1616 = vmul.f32 %v1389, %v1574
  %v1617 = vmul.f32 %v1533, %v1574
  %v1618 = vmul.f32 %v1535, %v1574
  %v1619 = vmul.f32 %v1099, %v1579
  %v1620 = vmul.f32 %v1101, %v1579
  %v1621 = vmul.f32 %v1245, %v1579
  %v1622 = vmul.f32 %v1247, %v1579
  %v1623 = vmul.f32 %v1391, %v1579
  %v1624 = vmul.f32 %v1393, %v1579
  %v1625 = vmul.f32 %v1537, %v1579
  %v1626 = vmul.f32 %v1539, %v1579
  %v1627 = vmul.f32 %v1105, %v1584
  %v1628 = vmul.f32 %v1107, %v1584
  %v1629 = vmul.f32 %v1251, %v1584
  %v1630 = vmul.f32 %v1253, %v1584
  %v1631 = vmul.f32 %v1397, %v1584
  %v1632 = vmul.f32 %v1399, %v1584
  %v1633 = vmul.f32 %v1543, %v1584
  %v1634 = vmul.f32 %v1545, %v1584
  %v1635 = vmul.f32 %v1109, %v1589
  %v1636 = vmul.f32 %v1111, %v1589
  %v1637 = vmul.f32 %v1255, %v1589
  %v1638 = vmul.f32 %v1257, %v1589
  %v1639 = vmul.f32 %v1401, %v1589
  %v1640 = vmul.f32 %v1403, %v1589
  %v1641 = vmul.f32 %v1547, %v1589
  %v1642 = vmul.f32 %v1549, %v1589
  %v1643 = vmul.f32 %v1115, %v1594
  %v1644 = vmul.f32 %v1117, %v1594
  %v1645 = vmul.f32 %v1261, %v1594
  %v1646 = vmul.f32 %v1263, %v1594
  %v1647 = vmul.f32 %v1407, %v1594
  %v1648 = vmul.f32 %v1409, %v1594
  %v1649 = vmul.f32 %v1553, %v1594
  %v1650 = vmul.f32 %v1555, %v1594
  %v1651 = vmul.f32 %v1119, %v1599
  %v1652 = vmul.f32 %v1121, %v1599
  %v1653 = vmul.f32 %v1265, %v1599
  %v1654 = vmul.f32 %v1267, %v1599
  %v1655 = vmul.f32 %v1411, %v1599
  %v1656 = vmul.f32 %v1413, %v1599
  %v1657 = vmul.f32 %v1557, %v1599
  %v1658 = vmul.f32 %v1559, %v1599
  %v1659 = vmul.f32 %v1125, %v1604
  %v1660 = vmul.f32 %v1127, %v1604
  %v1661 = vmul.f32 %v1271, %v1604
  %v1662 = vmul.f32 %v1273, %v1604
  %v1663 = vmul.f32 %v1417, %v1604
  %v1664 = vmul.f32 %v1419, %v1604
  %v1665 = vmul.f32 %v1563, %v1604
  %v1666 = vmul.f32 %v1565, %v1604
  %v1667 = vmul.f32 %v1129, %v1609
  %v1668 = vmul.f32 %v1131, %v1609
  %v1669 = vmul.f32 %v1275, %v1609
  %v1670 = vmul.f32 %v1277, %v1609
  %v1671 = vmul.f32 %v1421, %v1609
  %v1672 = vmul.f32 %v1423, %v1609
  %v1673 = vmul.f32 %v1567, %v1609
  %v1674 = vmul.f32 %v1569, %v1609
  %1676 = vset.pattern.permute.xlu0 0
  %1677 = vperm.xlu0 %1676, %v42
  %v1678 = vpop.permute.xlu0 %1677
  %1681 = vset.pattern.permute.xlu0 0
  %1682 = vperm.xlu0 %1681, %v43
  %v1683 = vpop.permute.xlu0 %1682
  %1686 = vset.pattern.permute.xlu0 0
  %1687 = vperm.xlu0 %1686, %v44
  %v1688 = vpop.permute.xlu0 %1687
  %1691 = vset.pattern.permute.xlu0 0
  %1692 = vperm.xlu0 %1691, %v45
  %v1693 = vpop.permute.xlu0 %1692
  %1696 = vset.pattern.permute.xlu0 0
  %1697 = vperm.xlu0 %1696, %v46
  %v1698 = vpop.permute.xlu0 %1697
  %1701 = vset.pattern.permute.xlu0 0
  %1702 = vperm.xlu0 %1701, %v47
  %v1703 = vpop.permute.xlu0 %1702
  %1706 = vset.pattern.permute.xlu0 0
  %1707 = vperm.xlu0 %1706, %v48
  %v1708 = vpop.permute.xlu0 %1707
  %1711 = vset.pattern.permute.xlu0 0
  %1712 = vperm.xlu0 %1711, %v49
  %v1713 = vpop.permute.xlu0 %1712
  %v1715 = vadd.f32 %v1611, %v1678
  %v1716 = vadd.f32 %v1612, %v1678
  %v1717 = vadd.f32 %v1613, %v1678
  %v1718 = vadd.f32 %v1614, %v1678
  %v1719 = vadd.f32 %v1615, %v1678
  %v1720 = vadd.f32 %v1616, %v1678
  %v1721 = vadd.f32 %v1617, %v1678
  %v1722 = vadd.f32 %v1618, %v1678
  %v1723 = vadd.f32 %v1619, %v1683
  %v1724 = vadd.f32 %v1620, %v1683
  %v1725 = vadd.f32 %v1621, %v1683
  %v1726 = vadd.f32 %v1622, %v1683
  %v1727 = vadd.f32 %v1623, %v1683
  %v1728 = vadd.f32 %v1624, %v1683
  %v1729 = vadd.f32 %v1625, %v1683
  %v1730 = vadd.f32 %v1626, %v1683
  %v1731 = vadd.f32 %v1627, %v1688
  %v1732 = vadd.f32 %v1628, %v1688
  %v1733 = vadd.f32 %v1629, %v1688
  %v1734 = vadd.f32 %v1630, %v1688
  %v1735 = vadd.f32 %v1631, %v1688
  %v1736 = vadd.f32 %v1632, %v1688
  %v1737 = vadd.f32 %v1633, %v1688
  %v1738 = vadd.f32 %v1634, %v1688
  %v1739 = vadd.f32 %v1635, %v1693
  %v1740 = vadd.f32 %v1636, %v1693
  %v1741 = vadd.f32 %v1637, %v1693
  %v1742 = vadd.f32 %v1638, %v1693
  %v1743 = vadd.f32 %v1639, %v1693
  %v1744 = vadd.f32 %v1640, %v1693
  %v1745 = vadd.f32 %v1641, %v1693
  %v1746 = vadd.f32 %v1642, %v1693
  %v1747 = vadd.f32 %v1643, %v1698
  %v1748 = vadd.f32 %v1644, %v1698
  %v1749 = vadd.f32 %v1645, %v1698
  %v1750 = vadd.f32 %v1646, %v1698
  %v1751 = vadd.f32 %v1647, %v1698
  %v1752 = vadd.f32 %v1648, %v1698
  %v1753 = vadd.f32 %v1649, %v1698
  %v1754 = vadd.f32 %v1650, %v1698
  %v1755 = vadd.f32 %v1651, %v1703
  %v1756 = vadd.f32 %v1652, %v1703
  %v1757 = vadd.f32 %v1653, %v1703
  %v1758 = vadd.f32 %v1654, %v1703
  %v1759 = vadd.f32 %v1655, %v1703
  %v1760 = vadd.f32 %v1656, %v1703
  %v1761 = vadd.f32 %v1657, %v1703
  %v1762 = vadd.f32 %v1658, %v1703
  %v1763 = vadd.f32 %v1659, %v1708
  %v1764 = vadd.f32 %v1660, %v1708
  %v1765 = vadd.f32 %v1661, %v1708
  %v1766 = vadd.f32 %v1662, %v1708
  %v1767 = vadd.f32 %v1663, %v1708
  %v1768 = vadd.f32 %v1664, %v1708
  %v1769 = vadd.f32 %v1665, %v1708
  %v1770 = vadd.f32 %v1666, %v1708
  %v1771 = vadd.f32 %v1667, %v1713
  %v1772 = vadd.f32 %v1668, %v1713
  %v1773 = vadd.f32 %v1669, %v1713
  %v1774 = vadd.f32 %v1670, %v1713
  %v1775 = vadd.f32 %v1671, %v1713
  %v1776 = vadd.f32 %v1672, %v1713
  %v1777 = vadd.f32 %v1673, %v1713
  %v1778 = vadd.f32 %v1674, %v1713
  %v1779 = vmax.f32 %v1715, 0.0
  %v1780 = vmax.f32 %v1716, 0.0
  %v1781 = vmax.f32 %v1717, 0.0
  %v1782 = vmax.f32 %v1718, 0.0
  %v1783 = vmax.f32 %v1719, 0.0
  %v1784 = vmax.f32 %v1720, 0.0
  %v1785 = vmax.f32 %v1721, 0.0
  %v1786 = vmax.f32 %v1722, 0.0
  %v1787 = vmax.f32 %v1723, 0.0
  %v1788 = vmax.f32 %v1724, 0.0
  %v1789 = vmax.f32 %v1725, 0.0
  %v1790 = vmax.f32 %v1726, 0.0
  %v1791 = vmax.f32 %v1727, 0.0
  %v1792 = vmax.f32 %v1728, 0.0
  %v1793 = vmax.f32 %v1729, 0.0
  %v1794 = vmax.f32 %v1730, 0.0
  %v1795 = vmax.f32 %v1731, 0.0
  %v1796 = vmax.f32 %v1732, 0.0
  %v1797 = vmax.f32 %v1733, 0.0
  %v1798 = vmax.f32 %v1734, 0.0
  %v1799 = vmax.f32 %v1735, 0.0
  %v1800 = vmax.f32 %v1736, 0.0
  %v1801 = vmax.f32 %v1737, 0.0
  %v1802 = vmax.f32 %v1738, 0.0
  %v1803 = vmax.f32 %v1739, 0.0
  %v1804 = vmax.f32 %v1740, 0.0
  %v1805 = vmax.f32 %v1741, 0.0
  %v1806 = vmax.f32 %v1742, 0.0
  %v1807 = vmax.f32 %v1743, 0.0
  %v1808 = vmax.f32 %v1744, 0.0
  %v1809 = vmax.f32 %v1745, 0.0
  %v1810 = vmax.f32 %v1746, 0.0
  %v1811 = vmax.f32 %v1747, 0.0
  %v1812 = vmax.f32 %v1748, 0.0
  %v1813 = vmax.f32 %v1749, 0.0
  %v1814 = vmax.f32 %v1750, 0.0
  %v1815 = vmax.f32 %v1751, 0.0
  %v1816 = vmax.f32 %v1752, 0.0
  %v1817 = vmax.f32 %v1753, 0.0
  %v1818 = vmax.f32 %v1754, 0.0
  %v1819 = vmax.f32 %v1755, 0.0
  %v1820 = vmax.f32 %v1756, 0.0
  %v1821 = vmax.f32 %v1757, 0.0
  %v1822 = vmax.f32 %v1758, 0.0
  %v1823 = vmax.f32 %v1759, 0.0
  %v1824 = vmax.f32 %v1760, 0.0
  %v1825 = vmax.f32 %v1761, 0.0
  %v1826 = vmax.f32 %v1762, 0.0
  %v1827 = vmax.f32 %v1763, 0.0
  %v1828 = vmax.f32 %v1764, 0.0
  %v1829 = vmax.f32 %v1765, 0.0
  %v1830 = vmax.f32 %v1766, 0.0
  %v1831 = vmax.f32 %v1767, 0.0
  %v1832 = vmax.f32 %v1768, 0.0
  %v1833 = vmax.f32 %v1769, 0.0
  %v1834 = vmax.f32 %v1770, 0.0
  %v1835 = vmax.f32 %v1771, 0.0
  %v1836 = vmax.f32 %v1772, 0.0
  %v1837 = vmax.f32 %v1773, 0.0
  %v1838 = vmax.f32 %v1774, 0.0
  %v1839 = vmax.f32 %v1775, 0.0
  %v1840 = vmax.f32 %v1776, 0.0
  %v1841 = vmax.f32 %v1777, 0.0
  %v1842 = vmax.f32 %v1778, 0.0
  %v1843 = vmax.f32 %v1779, %v1781
  %v1844 = vmax.f32 %v1780, %v1782
  %v1845 = vmax.f32 %v1787, %v1789
  %v1846 = vmax.f32 %v1788, %v1790
  %v1847 = vmax.f32 %v1795, %v1797
  %v1848 = vmax.f32 %v1796, %v1798
  %v1849 = vmax.f32 %v1803, %v1805
  %v1850 = vmax.f32 %v1804, %v1806
  %v1851 = vmax.f32 %v1811, %v1813
  %v1852 = vmax.f32 %v1812, %v1814
  %v1853 = vmax.f32 %v1819, %v1821
  %v1854 = vmax.f32 %v1820, %v1822
  %v1855 = vmax.f32 %v1827, %v1829
  %v1856 = vmax.f32 %v1828, %v1830
  %v1857 = vmax.f32 %v1835, %v1837
  %v1858 = vmax.f32 %v1836, %v1838
  %v1859 = vmax.f32 %v1783, %v1785
  %v1860 = vmax.f32 %v1784, %v1786
  %v1861 = vmax.f32 %v1791, %v1793
  %v1862 = vmax.f32 %v1792, %v1794
  %v1863 = vmax.f32 %v1799, %v1801
  %v1864 = vmax.f32 %v1800, %v1802
  %v1865 = vmax.f32 %v1807, %v1809
  %v1866 = vmax.f32 %v1808, %v1810
  %v1867 = vmax.f32 %v1815, %v1817
  %v1868 = vmax.f32 %v1816, %v1818
  %v1869 = vmax.f32 %v1823, %v1825
  %v1870 = vmax.f32 %v1824, %v1826
  %v1871 = vmax.f32 %v1831, %v1833
  %v1872 = vmax.f32 %v1832, %v1834
  %v1873 = vmax.f32 %v1839, %v1841
  %v1874 = vmax.f32 %v1840, %v1842
  %v1875 = vmax.f32 %v1843, %v1859
  %v1876 = vmax.f32 %v1844, %v1860
  %v1877 = vmax.f32 %v1845, %v1861
  %v1878 = vmax.f32 %v1846, %v1862
  %v1879 = vmax.f32 %v1847, %v1863
  %v1880 = vmax.f32 %v1848, %v1864
  %v1881 = vmax.f32 %v1849, %v1865
  %v1882 = vmax.f32 %v1850, %v1866
  %v1883 = vmax.f32 %v1851, %v1867
  %v1884 = vmax.f32 %v1852, %v1868
  %v1885 = vmax.f32 %v1853, %v1869
  %v1886 = vmax.f32 %v1854, %v1870
  %v1887 = vmax.f32 %v1855, %v1871
  %v1888 = vmax.f32 %v1856, %v1872
  %v1889 = vmax.f32 %v1857, %v1873
  %v1890 = vmax.f32 %v1858, %v1874
  %v1891 = vpack.c.bf16 %v1877, %v1875
  %v1892 = vpack.c.bf16 %v1878, %v1876
  %v1893 = vpack.c.bf16 %v1881, %v1879
  %v1894 = vpack.c.bf16 %v1882, %v1880
  %v1895 = vpack.c.bf16 %v1885, %v1883
  %v1896 = vpack.c.bf16 %v1886, %v1884
  %v1897 = vpack.c.bf16 %v1889, %v1887
  %v1898 = vpack.c.bf16 %v1890, %v1888
  %v1907 = vunpack.c.l.b16 %v1891
  %v1908 = vunpack.c.l.b16 %v1892
  %v1909 = vunpack.c.h.b16 %v1891
  %v1910 = vunpack.c.h.b16 %v1892
  %v1911 = vunpack.c.l.b16 %v1893
  %v1912 = vunpack.c.l.b16 %v1894
  %v1913 = vunpack.c.h.b16 %v1893
  %v1914 = vunpack.c.h.b16 %v1894
  %v1915 = vunpack.c.l.b16 %v1895
  %v1916 = vunpack.c.l.b16 %v1896
  %v1917 = vunpack.c.h.b16 %v1895
  %v1918 = vunpack.c.h.b16 %v1896
  %v1919 = vunpack.c.l.b16 %v1897
  %v1920 = vunpack.c.l.b16 %v1898
  %v1921 = vunpack.c.h.b16 %v1897
  %v1922 = vunpack.c.h.b16 %v1898
  %v1923 = vpack.c.b16 %v1908, %v1907
  %v1924 = vpack.c.b16 %v1910, %v1909
  %v1925 = vpack.c.b16 %v1912, %v1911
  %v1926 = vpack.c.b16 %v1914, %v1913
  %v1927 = vpack.c.b16 %v1916, %v1915
  %v1928 = vpack.c.b16 %v1918, %v1917
  %v1929 = vpack.c.b16 %v1920, %v1919
  %v1930 = vpack.c.b16 %v1922, %v1921
  %1939 = vst [vmem:[%s4] sm:$0xff] %v1923
  %1940 = vst [vmem:[%s4 + $0x8] sm:$0xff] %v1924
  %1941 = vst [vmem:[%s4 + $0x10] sm:$0xff] %v1925
  %1942 = vst [vmem:[%s4 + $0x18] sm:$0xff] %v1926
  %1943 = vst [vmem:[%s4 + $0x20] sm:$0xff] %v1927
  %1944 = vst [vmem:[%s4 + $0x28] sm:$0xff] %v1928
  %1945 = vst [vmem:[%s4 + $0x30] sm:$0xff] %v1929
  %1946 = vst [vmem:[%s4 + $0x38] sm:$0xff] %v1930
  %s1947 = scalar_lea.vmem %s0, 1152
  %v1948 = vld [vmem:[%s1947] sm:$0xff]
  %v1949 = vld [vmem:[%s1947 + $0x8] sm:$0xff]
  %v1950 = vld [vmem:[%s1947 + $0x10] sm:$0xff]
  %v1951 = vld [vmem:[%s1947 + $0x18] sm:$0xff]
  %v1952 = vld [vmem:[%s1947 + $0x20] sm:$0xff]
  %v1953 = vld [vmem:[%s1947 + $0x28] sm:$0xff]
  %v1954 = vld [vmem:[%s1947 + $0x30] sm:$0xff]
  %v1955 = vld [vmem:[%s1947 + $0x38] sm:$0xff]
  %v1956 = vld [vmem:[%s1947 + $0x40] sm:$0xff]
  %v1957 = vld [vmem:[%s1947 + $0x48] sm:$0xff]
  %v1958 = vld [vmem:[%s1947 + $0x50] sm:$0xff]
  %v1959 = vld [vmem:[%s1947 + $0x58] sm:$0xff]
  %v1960 = vld [vmem:[%s1947 + $0x60] sm:$0xff]
  %v1961 = vld [vmem:[%s1947 + $0x68] sm:$0xff]
  %v1962 = vld [vmem:[%s1947 + $0x70] sm:$0xff]
  %v1963 = vld [vmem:[%s1947 + $0x78] sm:$0xff]
  %v1964 = vld [vmem:[%s1947 + $0x80] sm:$0xff]
  %v1965 = vld [vmem:[%s1947 + $0x88] sm:$0xff]
  %v1966 = vld [vmem:[%s1947 + $0x90] sm:$0xff]
  %v1967 = vld [vmem:[%s1947 + $0x98] sm:$0xff]
  %v1968 = vld [vmem:[%s1947 + $0xa0] sm:$0xff]
  %v1969 = vld [vmem:[%s1947 + $0xa8] sm:$0xff]
  %v1970 = vld [vmem:[%s1947 + $0xb0] sm:$0xff]
  %v1971 = vld [vmem:[%s1947 + $0xb8] sm:$0xff]
  %v1972 = vld [vmem:[%s1947 + $0xc0] sm:$0xff]
  %v1973 = vld [vmem:[%s1947 + $0xc8] sm:$0xff]
  %v1974 = vld [vmem:[%s1947 + $0xd0] sm:$0xff]
  %v1975 = vld [vmem:[%s1947 + $0xd8] sm:$0xff]
  %v1976 = vld [vmem:[%s1947 + $0xe0] sm:$0xff]
  %v1977 = vld [vmem:[%s1947 + $0xe8] sm:$0xff]
  %v1978 = vld [vmem:[%s1947 + $0xf0] sm:$0xff]
  %v1979 = vld [vmem:[%s1947 + $0xf8] sm:$0xff]
  %v1980 = vld [vmem:[%s1947 + $0x100] sm:$0xff]
  %v1981 = vld [vmem:[%s1947 + $0x108] sm:$0xff]
  %v1982 = vld [vmem:[%s1947 + $0x110] sm:$0xff]
  %v1983 = vld [vmem:[%s1947 + $0x118] sm:$0xff]
  %v1984 = vld [vmem:[%s1947 + $0x120] sm:$0xff]
  %v1985 = vld [vmem:[%s1947 + $0x128] sm:$0xff]
  %v1986 = vld [vmem:[%s1947 + $0x130] sm:$0xff]
  %v1987 = vld [vmem:[%s1947 + $0x138] sm:$0xff]
  %v1988 = vld [vmem:[%s1947 + $0x140] sm:$0xff]
  %v1989 = vld [vmem:[%s1947 + $0x148] sm:$0xff]
  %v1990 = vld [vmem:[%s1947 + $0x150] sm:$0xff]
  %v1991 = vld [vmem:[%s1947 + $0x158] sm:$0xff]
  %v1992 = vld [vmem:[%s1947 + $0x160] sm:$0xff]
  %v1993 = vld [vmem:[%s1947 + $0x168] sm:$0xff]
  %v1994 = vld [vmem:[%s1947 + $0x170] sm:$0xff]
  %v1995 = vld [vmem:[%s1947 + $0x178] sm:$0xff]
  %v1996 = vld [vmem:[%s1947 + $0x180] sm:$0xff]
  %v1997 = vld [vmem:[%s1947 + $0x188] sm:$0xff]
  %v1998 = vld [vmem:[%s1947 + $0x190] sm:$0xff]
  %v1999 = vld [vmem:[%s1947 + $0x198] sm:$0xff]
  %v2000 = vld [vmem:[%s1947 + $0x1a0] sm:$0xff]
  %v2001 = vld [vmem:[%s1947 + $0x1a8] sm:$0xff]
  %v2002 = vld [vmem:[%s1947 + $0x1b0] sm:$0xff]
  %v2003 = vld [vmem:[%s1947 + $0x1b8] sm:$0xff]
  %v2004 = vld [vmem:[%s1947 + $0x1c0] sm:$0xff]
  %v2005 = vld [vmem:[%s1947 + $0x1c8] sm:$0xff]
  %v2006 = vld [vmem:[%s1947 + $0x1d0] sm:$0xff]
  %v2007 = vld [vmem:[%s1947 + $0x1d8] sm:$0xff]
  %v2008 = vld [vmem:[%s1947 + $0x1e0] sm:$0xff]
  %v2009 = vld [vmem:[%s1947 + $0x1e8] sm:$0xff]
  %v2010 = vld [vmem:[%s1947 + $0x1f0] sm:$0xff]
  %v2011 = vld [vmem:[%s1947 + $0x1f8] sm:$0xff]
  %v2012 = vld [vmem:[%s1947 + $0x200] sm:$0xff]
  %v2013 = vld [vmem:[%s1947 + $0x208] sm:$0xff]
  %v2014 = vld [vmem:[%s1947 + $0x210] sm:$0xff]
  %v2015 = vld [vmem:[%s1947 + $0x218] sm:$0xff]
  %v2016 = vld [vmem:[%s1947 + $0x220] sm:$0xff]
  %v2017 = vld [vmem:[%s1947 + $0x228] sm:$0xff]
  %v2018 = vld [vmem:[%s1947 + $0x230] sm:$0xff]
  %v2019 = vld [vmem:[%s1947 + $0x238] sm:$0xff]
  %v2020 = vld [vmem:[%s1947 + $0x240] sm:$0xff]
  %v2021 = vld [vmem:[%s1947 + $0x248] sm:$0xff]
  %v2022 = vld [vmem:[%s1947 + $0x250] sm:$0xff]
  %v2023 = vld [vmem:[%s1947 + $0x258] sm:$0xff]
  %v2024 = vld [vmem:[%s1947 + $0x260] sm:$0xff]
  %v2025 = vld [vmem:[%s1947 + $0x268] sm:$0xff]
  %v2026 = vld [vmem:[%s1947 + $0x270] sm:$0xff]
  %v2027 = vld [vmem:[%s1947 + $0x278] sm:$0xff]
  %v2028 = vld [vmem:[%s1947 + $0x280] sm:$0xff]
  %v2029 = vld [vmem:[%s1947 + $0x288] sm:$0xff]
  %v2030 = vld [vmem:[%s1947 + $0x290] sm:$0xff]
  %v2031 = vld [vmem:[%s1947 + $0x298] sm:$0xff]
  %v2032 = vld [vmem:[%s1947 + $0x2a0] sm:$0xff]
  %v2033 = vld [vmem:[%s1947 + $0x2a8] sm:$0xff]
  %v2034 = vld [vmem:[%s1947 + $0x2b0] sm:$0xff]
  %v2035 = vld [vmem:[%s1947 + $0x2b8] sm:$0xff]
  %v2036 = vld [vmem:[%s1947 + $0x2c0] sm:$0xff]
  %v2037 = vld [vmem:[%s1947 + $0x2c8] sm:$0xff]
  %v2038 = vld [vmem:[%s1947 + $0x2d0] sm:$0xff]
  %v2039 = vld [vmem:[%s1947 + $0x2d8] sm:$0xff]
  %v2040 = vld [vmem:[%s1947 + $0x2e0] sm:$0xff]
  %v2041 = vld [vmem:[%s1947 + $0x2e8] sm:$0xff]
  %v2042 = vld [vmem:[%s1947 + $0x2f0] sm:$0xff]
  %v2043 = vld [vmem:[%s1947 + $0x2f8] sm:$0xff]
  %v2044 = vld [vmem:[%s1947 + $0x300] sm:$0xff]
  %v2045 = vld [vmem:[%s1947 + $0x308] sm:$0xff]
  %v2046 = vld [vmem:[%s1947 + $0x310] sm:$0xff]
  %v2047 = vld [vmem:[%s1947 + $0x318] sm:$0xff]
  %v2048 = vld [vmem:[%s1947 + $0x320] sm:$0xff]
  %v2049 = vld [vmem:[%s1947 + $0x328] sm:$0xff]
  %v2050 = vld [vmem:[%s1947 + $0x330] sm:$0xff]
  %v2051 = vld [vmem:[%s1947 + $0x338] sm:$0xff]
  %v2052 = vld [vmem:[%s1947 + $0x340] sm:$0xff]
  %v2053 = vld [vmem:[%s1947 + $0x348] sm:$0xff]
  %v2054 = vld [vmem:[%s1947 + $0x350] sm:$0xff]
  %v2055 = vld [vmem:[%s1947 + $0x358] sm:$0xff]
  %v2056 = vld [vmem:[%s1947 + $0x360] sm:$0xff]
  %v2057 = vld [vmem:[%s1947 + $0x368] sm:$0xff]
  %v2058 = vld [vmem:[%s1947 + $0x370] sm:$0xff]
  %v2059 = vld [vmem:[%s1947 + $0x378] sm:$0xff]
  %v2060 = vld [vmem:[%s1947 + $0x380] sm:$0xff]
  %v2061 = vld [vmem:[%s1947 + $0x388] sm:$0xff]
  %v2062 = vld [vmem:[%s1947 + $0x390] sm:$0xff]
  %v2063 = vld [vmem:[%s1947 + $0x398] sm:$0xff]
  %v2064 = vld [vmem:[%s1947 + $0x3a0] sm:$0xff]
  %v2065 = vld [vmem:[%s1947 + $0x3a8] sm:$0xff]
  %v2066 = vld [vmem:[%s1947 + $0x3b0] sm:$0xff]
  %v2067 = vld [vmem:[%s1947 + $0x3b8] sm:$0xff]
  %v2068 = vld [vmem:[%s1947 + $0x3c0] sm:$0xff]
  %v2069 = vld [vmem:[%s1947 + $0x3c8] sm:$0xff]
  %v2070 = vld [vmem:[%s1947 + $0x3d0] sm:$0xff]
  %v2071 = vld [vmem:[%s1947 + $0x3d8] sm:$0xff]
  %v2072 = vld [vmem:[%s1947 + $0x3e0] sm:$0xff]
  %v2073 = vld [vmem:[%s1947 + $0x3e8] sm:$0xff]
  %v2074 = vld [vmem:[%s1947 + $0x3f0] sm:$0xff]
  %v2075 = vld [vmem:[%s1947 + $0x3f8] sm:$0xff]
  %v2076 = vld [vmem:[%s1947 + $0x400] sm:$0xff]
  %v2077 = vld [vmem:[%s1947 + $0x408] sm:$0xff]
  %v2078 = vld [vmem:[%s1947 + $0x410] sm:$0xff]
  %v2079 = vld [vmem:[%s1947 + $0x418] sm:$0xff]
  %v2080 = vld [vmem:[%s1947 + $0x420] sm:$0xff]
  %v2081 = vld [vmem:[%s1947 + $0x428] sm:$0xff]
  %v2082 = vld [vmem:[%s1947 + $0x430] sm:$0xff]
  %v2083 = vld [vmem:[%s1947 + $0x438] sm:$0xff]
  %v2084 = vld [vmem:[%s1947 + $0x440] sm:$0xff]
  %v2085 = vld [vmem:[%s1947 + $0x448] sm:$0xff]
  %v2086 = vld [vmem:[%s1947 + $0x450] sm:$0xff]
  %v2087 = vld [vmem:[%s1947 + $0x458] sm:$0xff]
  %v2088 = vld [vmem:[%s1947 + $0x460] sm:$0xff]
  %v2089 = vld [vmem:[%s1947 + $0x468] sm:$0xff]
  %v2090 = vld [vmem:[%s1947 + $0x470] sm:$0xff]
  %v2091 = vld [vmem:[%s1947 + $0x478] sm:$0xff]
  %v2236 = vunpack.c.l.b16 %v1948
  %v2237 = vunpack.c.h.b16 %v1948
  %v2238 = vunpack.c.l.b16 %v1949
  %v2239 = vunpack.c.h.b16 %v1949
  %v2240 = vunpack.c.l.b16 %v1950
  %v2241 = vunpack.c.h.b16 %v1950
  %v2242 = vunpack.c.l.b16 %v1951
  %v2243 = vunpack.c.h.b16 %v1951
  %v2244 = vunpack.c.l.b16 %v1952
  %v2245 = vunpack.c.h.b16 %v1952
  %v2246 = vunpack.c.l.b16 %v1953
  %v2247 = vunpack.c.h.b16 %v1953
  %v2248 = vunpack.c.l.b16 %v1954
  %v2249 = vunpack.c.h.b16 %v1954
  %v2250 = vunpack.c.l.b16 %v1955
  %v2251 = vunpack.c.h.b16 %v1955
  %v2252 = vunpack.c.l.b16 %v1956
  %v2253 = vunpack.c.h.b16 %v1956
  %v2254 = vunpack.c.l.b16 %v1957
  %v2255 = vunpack.c.h.b16 %v1957
  %v2256 = vunpack.c.l.b16 %v1958
  %v2257 = vunpack.c.h.b16 %v1958
  %v2258 = vunpack.c.l.b16 %v1959
  %v2259 = vunpack.c.h.b16 %v1959
  %v2260 = vunpack.c.l.b16 %v1960
  %v2261 = vunpack.c.h.b16 %v1960
  %v2262 = vunpack.c.l.b16 %v1961
  %v2263 = vunpack.c.h.b16 %v1961
  %v2264 = vunpack.c.l.b16 %v1962
  %v2265 = vunpack.c.h.b16 %v1962
  %v2266 = vunpack.c.l.b16 %v1963
  %v2267 = vunpack.c.h.b16 %v1963
  %v2268 = vunpack.c.l.b16 %v1964
  %v2269 = vunpack.c.h.b16 %v1964
  %v2270 = vunpack.c.l.b16 %v1965
  %v2271 = vunpack.c.h.b16 %v1965
  %v2272 = vunpack.c.l.b16 %v1966
  %v2273 = vunpack.c.h.b16 %v1966
  %v2274 = vunpack.c.l.b16 %v1967
  %v2275 = vunpack.c.h.b16 %v1967
  %v2276 = vunpack.c.l.b16 %v1968
  %v2277 = vunpack.c.h.b16 %v1968
  %v2278 = vunpack.c.l.b16 %v1969
  %v2279 = vunpack.c.h.b16 %v1969
  %v2280 = vunpack.c.l.b16 %v1970
  %v2281 = vunpack.c.h.b16 %v1970
  %v2282 = vunpack.c.l.b16 %v1971
  %v2283 = vunpack.c.h.b16 %v1971
  %v2284 = vunpack.c.l.b16 %v1972
  %v2285 = vunpack.c.h.b16 %v1972
  %v2286 = vunpack.c.l.b16 %v1973
  %v2287 = vunpack.c.h.b16 %v1973
  %v2288 = vunpack.c.l.b16 %v1974
  %v2289 = vunpack.c.h.b16 %v1974
  %v2290 = vunpack.c.l.b16 %v1975
  %v2291 = vunpack.c.h.b16 %v1975
  %v2292 = vunpack.c.l.b16 %v1976
  %v2293 = vunpack.c.h.b16 %v1976
  %v2294 = vunpack.c.l.b16 %v1977
  %v2295 = vunpack.c.h.b16 %v1977
  %v2296 = vunpack.c.l.b16 %v1978
  %v2297 = vunpack.c.h.b16 %v1978
  %v2298 = vunpack.c.l.b16 %v1979
  %v2299 = vunpack.c.h.b16 %v1979
  %v2300 = vunpack.c.l.b16 %v1980
  %v2301 = vunpack.c.h.b16 %v1980
  %v2302 = vunpack.c.l.b16 %v1981
  %v2303 = vunpack.c.h.b16 %v1981
  %v2304 = vunpack.c.l.b16 %v1982
  %v2305 = vunpack.c.h.b16 %v1982
  %v2306 = vunpack.c.l.b16 %v1983
  %v2307 = vunpack.c.h.b16 %v1983
  %v2308 = vunpack.c.l.b16 %v1984
  %v2309 = vunpack.c.h.b16 %v1984
  %v2310 = vunpack.c.l.b16 %v1985
  %v2311 = vunpack.c.h.b16 %v1985
  %v2312 = vunpack.c.l.b16 %v1986
  %v2313 = vunpack.c.h.b16 %v1986
  %v2314 = vunpack.c.l.b16 %v1987
  %v2315 = vunpack.c.h.b16 %v1987
  %v2316 = vunpack.c.l.b16 %v1988
  %v2317 = vunpack.c.h.b16 %v1988
  %v2318 = vunpack.c.l.b16 %v1989
  %v2319 = vunpack.c.h.b16 %v1989
  %v2320 = vunpack.c.l.b16 %v1990
  %v2321 = vunpack.c.h.b16 %v1990
  %v2322 = vunpack.c.l.b16 %v1991
  %v2323 = vunpack.c.h.b16 %v1991
  %v2324 = vunpack.c.l.b16 %v1992
  %v2325 = vunpack.c.h.b16 %v1992
  %v2326 = vunpack.c.l.b16 %v1993
  %v2327 = vunpack.c.h.b16 %v1993
  %v2328 = vunpack.c.l.b16 %v1994
  %v2329 = vunpack.c.h.b16 %v1994
  %v2330 = vunpack.c.l.b16 %v1995
  %v2331 = vunpack.c.h.b16 %v1995
  %v2332 = vunpack.c.l.b16 %v1996
  %v2333 = vunpack.c.h.b16 %v1996
  %v2334 = vunpack.c.l.b16 %v1997
  %v2335 = vunpack.c.h.b16 %v1997
  %v2336 = vunpack.c.l.b16 %v1998
  %v2337 = vunpack.c.h.b16 %v1998
  %v2338 = vunpack.c.l.b16 %v1999
  %v2339 = vunpack.c.h.b16 %v1999
  %v2340 = vunpack.c.l.b16 %v2000
  %v2341 = vunpack.c.h.b16 %v2000
  %v2342 = vunpack.c.l.b16 %v2001
  %v2343 = vunpack.c.h.b16 %v2001
  %v2344 = vunpack.c.l.b16 %v2002
  %v2345 = vunpack.c.h.b16 %v2002
  %v2346 = vunpack.c.l.b16 %v2003
  %v2347 = vunpack.c.h.b16 %v2003
  %v2348 = vunpack.c.l.b16 %v2004
  %v2349 = vunpack.c.h.b16 %v2004
  %v2350 = vunpack.c.l.b16 %v2005
  %v2351 = vunpack.c.h.b16 %v2005
  %v2352 = vunpack.c.l.b16 %v2006
  %v2353 = vunpack.c.h.b16 %v2006
  %v2354 = vunpack.c.l.b16 %v2007
  %v2355 = vunpack.c.h.b16 %v2007
  %v2356 = vunpack.c.l.b16 %v2008
  %v2357 = vunpack.c.h.b16 %v2008
  %v2358 = vunpack.c.l.b16 %v2009
  %v2359 = vunpack.c.h.b16 %v2009
  %v2360 = vunpack.c.l.b16 %v2010
  %v2361 = vunpack.c.h.b16 %v2010
  %v2362 = vunpack.c.l.b16 %v2011
  %v2363 = vunpack.c.h.b16 %v2011
  %v2364 = vunpack.c.l.b16 %v2012
  %v2365 = vunpack.c.h.b16 %v2012
  %v2366 = vunpack.c.l.b16 %v2013
  %v2367 = vunpack.c.h.b16 %v2013
  %v2368 = vunpack.c.l.b16 %v2014
  %v2369 = vunpack.c.h.b16 %v2014
  %v2370 = vunpack.c.l.b16 %v2015
  %v2371 = vunpack.c.h.b16 %v2015
  %v2372 = vunpack.c.l.b16 %v2016
  %v2373 = vunpack.c.h.b16 %v2016
  %v2374 = vunpack.c.l.b16 %v2017
  %v2375 = vunpack.c.h.b16 %v2017
  %v2376 = vunpack.c.l.b16 %v2018
  %v2377 = vunpack.c.h.b16 %v2018
  %v2378 = vunpack.c.l.b16 %v2019
  %v2379 = vunpack.c.h.b16 %v2019
  %v2380 = vunpack.c.l.b16 %v2020
  %v2381 = vunpack.c.h.b16 %v2020
  %v2382 = vunpack.c.l.b16 %v2021
  %v2383 = vunpack.c.h.b16 %v2021
  %v2384 = vunpack.c.l.b16 %v2022
  %v2385 = vunpack.c.h.b16 %v2022
  %v2386 = vunpack.c.l.b16 %v2023
  %v2387 = vunpack.c.h.b16 %v2023
  %v2388 = vunpack.c.l.b16 %v2024
  %v2389 = vunpack.c.h.b16 %v2024
  %v2390 = vunpack.c.l.b16 %v2025
  %v2391 = vunpack.c.h.b16 %v2025
  %v2392 = vunpack.c.l.b16 %v2026
  %v2393 = vunpack.c.h.b16 %v2026
  %v2394 = vunpack.c.l.b16 %v2027
  %v2395 = vunpack.c.h.b16 %v2027
  %v2396 = vunpack.c.l.b16 %v2028
  %v2397 = vunpack.c.h.b16 %v2028
  %v2398 = vunpack.c.l.b16 %v2029
  %v2399 = vunpack.c.h.b16 %v2029
  %v2400 = vunpack.c.l.b16 %v2030
  %v2401 = vunpack.c.h.b16 %v2030
  %v2402 = vunpack.c.l.b16 %v2031
  %v2403 = vunpack.c.h.b16 %v2031
  %v2404 = vunpack.c.l.b16 %v2032
  %v2405 = vunpack.c.h.b16 %v2032
  %v2406 = vunpack.c.l.b16 %v2033
  %v2407 = vunpack.c.h.b16 %v2033
  %v2408 = vunpack.c.l.b16 %v2034
  %v2409 = vunpack.c.h.b16 %v2034
  %v2410 = vunpack.c.l.b16 %v2035
  %v2411 = vunpack.c.h.b16 %v2035
  %v2412 = vunpack.c.l.b16 %v2036
  %v2413 = vunpack.c.h.b16 %v2036
  %v2414 = vunpack.c.l.b16 %v2037
  %v2415 = vunpack.c.h.b16 %v2037
  %v2416 = vunpack.c.l.b16 %v2038
  %v2417 = vunpack.c.h.b16 %v2038
  %v2418 = vunpack.c.l.b16 %v2039
  %v2419 = vunpack.c.h.b16 %v2039
  %v2420 = vunpack.c.l.b16 %v2040
  %v2421 = vunpack.c.h.b16 %v2040
  %v2422 = vunpack.c.l.b16 %v2041
  %v2423 = vunpack.c.h.b16 %v2041
  %v2424 = vunpack.c.l.b16 %v2042
  %v2425 = vunpack.c.h.b16 %v2042
  %v2426 = vunpack.c.l.b16 %v2043
  %v2427 = vunpack.c.h.b16 %v2043
  %v2428 = vunpack.c.l.b16 %v2044
  %v2429 = vunpack.c.h.b16 %v2044
  %v2430 = vunpack.c.l.b16 %v2045
  %v2431 = vunpack.c.h.b16 %v2045
  %v2432 = vunpack.c.l.b16 %v2046
  %v2433 = vunpack.c.h.b16 %v2046
  %v2434 = vunpack.c.l.b16 %v2047
  %v2435 = vunpack.c.h.b16 %v2047
  %v2436 = vunpack.c.l.b16 %v2048
  %v2437 = vunpack.c.h.b16 %v2048
  %v2438 = vunpack.c.l.b16 %v2049
  %v2439 = vunpack.c.h.b16 %v2049
  %v2440 = vunpack.c.l.b16 %v2050
  %v2441 = vunpack.c.h.b16 %v2050
  %v2442 = vunpack.c.l.b16 %v2051
  %v2443 = vunpack.c.h.b16 %v2051
  %v2444 = vunpack.c.l.b16 %v2052
  %v2445 = vunpack.c.h.b16 %v2052
  %v2446 = vunpack.c.l.b16 %v2053
  %v2447 = vunpack.c.h.b16 %v2053
  %v2448 = vunpack.c.l.b16 %v2054
  %v2449 = vunpack.c.h.b16 %v2054
  %v2450 = vunpack.c.l.b16 %v2055
  %v2451 = vunpack.c.h.b16 %v2055
  %v2452 = vunpack.c.l.b16 %v2056
  %v2453 = vunpack.c.h.b16 %v2056
  %v2454 = vunpack.c.l.b16 %v2057
  %v2455 = vunpack.c.h.b16 %v2057
  %v2456 = vunpack.c.l.b16 %v2058
  %v2457 = vunpack.c.h.b16 %v2058
  %v2458 = vunpack.c.l.b16 %v2059
  %v2459 = vunpack.c.h.b16 %v2059
  %v2460 = vunpack.c.l.b16 %v2060
  %v2461 = vunpack.c.h.b16 %v2060
  %v2462 = vunpack.c.l.b16 %v2061
  %v2463 = vunpack.c.h.b16 %v2061
  %v2464 = vunpack.c.l.b16 %v2062
  %v2465 = vunpack.c.h.b16 %v2062
  %v2466 = vunpack.c.l.b16 %v2063
  %v2467 = vunpack.c.h.b16 %v2063
  %v2468 = vunpack.c.l.b16 %v2064
  %v2469 = vunpack.c.h.b16 %v2064
  %v2470 = vunpack.c.l.b16 %v2065
  %v2471 = vunpack.c.h.b16 %v2065
  %v2472 = vunpack.c.l.b16 %v2066
  %v2473 = vunpack.c.h.b16 %v2066
  %v2474 = vunpack.c.l.b16 %v2067
  %v2475 = vunpack.c.h.b16 %v2067
  %v2476 = vunpack.c.l.b16 %v2068
  %v2477 = vunpack.c.h.b16 %v2068
  %v2478 = vunpack.c.l.b16 %v2069
  %v2479 = vunpack.c.h.b16 %v2069
  %v2480 = vunpack.c.l.b16 %v2070
  %v2481 = vunpack.c.h.b16 %v2070
  %v2482 = vunpack.c.l.b16 %v2071
  %v2483 = vunpack.c.h.b16 %v2071
  %v2484 = vunpack.c.l.b16 %v2072
  %v2485 = vunpack.c.h.b16 %v2072
  %v2486 = vunpack.c.l.b16 %v2073
  %v2487 = vunpack.c.h.b16 %v2073
  %v2488 = vunpack.c.l.b16 %v2074
  %v2489 = vunpack.c.h.b16 %v2074
  %v2490 = vunpack.c.l.b16 %v2075
  %v2491 = vunpack.c.h.b16 %v2075
  %v2492 = vunpack.c.l.b16 %v2076
  %v2493 = vunpack.c.h.b16 %v2076
  %v2494 = vunpack.c.l.b16 %v2077
  %v2495 = vunpack.c.h.b16 %v2077
  %v2496 = vunpack.c.l.b16 %v2078
  %v2497 = vunpack.c.h.b16 %v2078
  %v2498 = vunpack.c.l.b16 %v2079
  %v2499 = vunpack.c.h.b16 %v2079
  %v2500 = vunpack.c.l.b16 %v2080
  %v2501 = vunpack.c.h.b16 %v2080
  %v2502 = vunpack.c.l.b16 %v2081
  %v2503 = vunpack.c.h.b16 %v2081
  %v2504 = vunpack.c.l.b16 %v2082
  %v2505 = vunpack.c.h.b16 %v2082
  %v2506 = vunpack.c.l.b16 %v2083
  %v2507 = vunpack.c.h.b16 %v2083
  %v2508 = vunpack.c.l.b16 %v2084
  %v2509 = vunpack.c.h.b16 %v2084
  %v2510 = vunpack.c.l.b16 %v2085
  %v2511 = vunpack.c.h.b16 %v2085
  %v2512 = vunpack.c.l.b16 %v2086
  %v2513 = vunpack.c.h.b16 %v2086
  %v2514 = vunpack.c.l.b16 %v2087
  %v2515 = vunpack.c.h.b16 %v2087
  %v2516 = vunpack.c.l.b16 %v2088
  %v2517 = vunpack.c.h.b16 %v2088
  %v2518 = vunpack.c.l.b16 %v2089
  %v2519 = vunpack.c.h.b16 %v2089
  %v2520 = vunpack.c.l.b16 %v2090
  %v2521 = vunpack.c.h.b16 %v2090
  %v2522 = vunpack.c.l.b16 %v2091
  %v2523 = vunpack.c.h.b16 %v2091
  %v2524 = vpack.c.b16 %v2244, %v2236
  %v2525 = vpack.c.b16 %v2245, %v2237
  %v2526 = vpack.c.b16 %v2246, %v2238
  %v2527 = vpack.c.b16 %v2247, %v2239
  %v2528 = vpack.c.b16 %v2248, %v2240
  %v2529 = vpack.c.b16 %v2249, %v2241
  %v2530 = vpack.c.b16 %v2250, %v2242
  %v2531 = vpack.c.b16 %v2251, %v2243
  %v2532 = vpack.c.b16 %v2260, %v2252
  %v2533 = vpack.c.b16 %v2261, %v2253
  %v2534 = vpack.c.b16 %v2262, %v2254
  %v2535 = vpack.c.b16 %v2263, %v2255
  %v2536 = vpack.c.b16 %v2264, %v2256
  %v2537 = vpack.c.b16 %v2265, %v2257
  %v2538 = vpack.c.b16 %v2266, %v2258
  %v2539 = vpack.c.b16 %v2267, %v2259
  %v2540 = vpack.c.b16 %v2276, %v2268
  %v2541 = vpack.c.b16 %v2277, %v2269
  %v2542 = vpack.c.b16 %v2278, %v2270
  %v2543 = vpack.c.b16 %v2279, %v2271
  %v2544 = vpack.c.b16 %v2280, %v2272
  %v2545 = vpack.c.b16 %v2281, %v2273
  %v2546 = vpack.c.b16 %v2282, %v2274
  %v2547 = vpack.c.b16 %v2283, %v2275
  %v2548 = vpack.c.b16 %v2292, %v2284
  %v2549 = vpack.c.b16 %v2293, %v2285
  %v2550 = vpack.c.b16 %v2294, %v2286
  %v2551 = vpack.c.b16 %v2295, %v2287
  %v2552 = vpack.c.b16 %v2296, %v2288
  %v2553 = vpack.c.b16 %v2297, %v2289
  %v2554 = vpack.c.b16 %v2298, %v2290
  %v2555 = vpack.c.b16 %v2299, %v2291
  %v2556 = vpack.c.b16 %v2308, %v2300
  %v2557 = vpack.c.b16 %v2309, %v2301
  %v2558 = vpack.c.b16 %v2310, %v2302
  %v2559 = vpack.c.b16 %v2311, %v2303
  %v2560 = vpack.c.b16 %v2312, %v2304
  %v2561 = vpack.c.b16 %v2313, %v2305
  %v2562 = vpack.c.b16 %v2314, %v2306
  %v2563 = vpack.c.b16 %v2315, %v2307
  %v2564 = vpack.c.b16 %v2324, %v2316
  %v2565 = vpack.c.b16 %v2325, %v2317
  %v2566 = vpack.c.b16 %v2326, %v2318
  %v2567 = vpack.c.b16 %v2327, %v2319
  %v2568 = vpack.c.b16 %v2328, %v2320
  %v2569 = vpack.c.b16 %v2329, %v2321
  %v2570 = vpack.c.b16 %v2330, %v2322
  %v2571 = vpack.c.b16 %v2331, %v2323
  %v2572 = vpack.c.b16 %v2340, %v2332
  %v2573 = vpack.c.b16 %v2341, %v2333
  %v2574 = vpack.c.b16 %v2342, %v2334
  %v2575 = vpack.c.b16 %v2343, %v2335
  %v2576 = vpack.c.b16 %v2344, %v2336
  %v2577 = vpack.c.b16 %v2345, %v2337
  %v2578 = vpack.c.b16 %v2346, %v2338
  %v2579 = vpack.c.b16 %v2347, %v2339
  %v2580 = vpack.c.b16 %v2356, %v2348
  %v2581 = vpack.c.b16 %v2357, %v2349
  %v2582 = vpack.c.b16 %v2358, %v2350
  %v2583 = vpack.c.b16 %v2359, %v2351
  %v2584 = vpack.c.b16 %v2360, %v2352
  %v2585 = vpack.c.b16 %v2361, %v2353
  %v2586 = vpack.c.b16 %v2362, %v2354
  %v2587 = vpack.c.b16 %v2363, %v2355
  %v2588 = vpack.c.b16 %v2372, %v2364
  %v2589 = vpack.c.b16 %v2373, %v2365
  %v2590 = vpack.c.b16 %v2374, %v2366
  %v2591 = vpack.c.b16 %v2375, %v2367
  %v2592 = vpack.c.b16 %v2376, %v2368
  %v2593 = vpack.c.b16 %v2377, %v2369
  %v2594 = vpack.c.b16 %v2378, %v2370
  %v2595 = vpack.c.b16 %v2379, %v2371
  %v2596 = vpack.c.b16 %v2388, %v2380
  %v2597 = vpack.c.b16 %v2389, %v2381
  %v2598 = vpack.c.b16 %v2390, %v2382
  %v2599 = vpack.c.b16 %v2391, %v2383
  %v2600 = vpack.c.b16 %v2392, %v2384
  %v2601 = vpack.c.b16 %v2393, %v2385
  %v2602 = vpack.c.b16 %v2394, %v2386
  %v2603 = vpack.c.b16 %v2395, %v2387
  %v2604 = vpack.c.b16 %v2404, %v2396
  %v2605 = vpack.c.b16 %v2405, %v2397
  %v2606 = vpack.c.b16 %v2406, %v2398
  %v2607 = vpack.c.b16 %v2407, %v2399
  %v2608 = vpack.c.b16 %v2408, %v2400
  %v2609 = vpack.c.b16 %v2409, %v2401
  %v2610 = vpack.c.b16 %v2410, %v2402
  %v2611 = vpack.c.b16 %v2411, %v2403
  %v2612 = vpack.c.b16 %v2420, %v2412
  %v2613 = vpack.c.b16 %v2421, %v2413
  %v2614 = vpack.c.b16 %v2422, %v2414
  %v2615 = vpack.c.b16 %v2423, %v2415
  %v2616 = vpack.c.b16 %v2424, %v2416
  %v2617 = vpack.c.b16 %v2425, %v2417
  %v2618 = vpack.c.b16 %v2426, %v2418
  %v2619 = vpack.c.b16 %v2427, %v2419
  %v2620 = vpack.c.b16 %v2436, %v2428
  %v2621 = vpack.c.b16 %v2437, %v2429
  %v2622 = vpack.c.b16 %v2438, %v2430
  %v2623 = vpack.c.b16 %v2439, %v2431
  %v2624 = vpack.c.b16 %v2440, %v2432
  %v2625 = vpack.c.b16 %v2441, %v2433
  %v2626 = vpack.c.b16 %v2442, %v2434
  %v2627 = vpack.c.b16 %v2443, %v2435
  %v2628 = vpack.c.b16 %v2452, %v2444
  %v2629 = vpack.c.b16 %v2453, %v2445
  %v2630 = vpack.c.b16 %v2454, %v2446
  %v2631 = vpack.c.b16 %v2455, %v2447
  %v2632 = vpack.c.b16 %v2456, %v2448
  %v2633 = vpack.c.b16 %v2457, %v2449
  %v2634 = vpack.c.b16 %v2458, %v2450
  %v2635 = vpack.c.b16 %v2459, %v2451
  %v2636 = vpack.c.b16 %v2468, %v2460
  %v2637 = vpack.c.b16 %v2469, %v2461
  %v2638 = vpack.c.b16 %v2470, %v2462
  %v2639 = vpack.c.b16 %v2471, %v2463
  %v2640 = vpack.c.b16 %v2472, %v2464
  %v2641 = vpack.c.b16 %v2473, %v2465
  %v2642 = vpack.c.b16 %v2474, %v2466
  %v2643 = vpack.c.b16 %v2475, %v2467
  %v2644 = vpack.c.b16 %v2484, %v2476
  %v2645 = vpack.c.b16 %v2485, %v2477
  %v2646 = vpack.c.b16 %v2486, %v2478
  %v2647 = vpack.c.b16 %v2487, %v2479
  %v2648 = vpack.c.b16 %v2488, %v2480
  %v2649 = vpack.c.b16 %v2489, %v2481
  %v2650 = vpack.c.b16 %v2490, %v2482
  %v2651 = vpack.c.b16 %v2491, %v2483
  %v2652 = vpack.c.b16 %v2500, %v2492
  %v2653 = vpack.c.b16 %v2501, %v2493
  %v2654 = vpack.c.b16 %v2502, %v2494
  %v2655 = vpack.c.b16 %v2503, %v2495
  %v2656 = vpack.c.b16 %v2504, %v2496
  %v2657 = vpack.c.b16 %v2505, %v2497
  %v2658 = vpack.c.b16 %v2506, %v2498
  %v2659 = vpack.c.b16 %v2507, %v2499
  %v2660 = vpack.c.b16 %v2516, %v2508
  %v2661 = vpack.c.b16 %v2517, %v2509
  %v2662 = vpack.c.b16 %v2518, %v2510
  %v2663 = vpack.c.b16 %v2519, %v2511
  %v2664 = vpack.c.b16 %v2520, %v2512
  %v2665 = vpack.c.b16 %v2521, %v2513
  %v2666 = vpack.c.b16 %v2522, %v2514
  %v2667 = vpack.c.b16 %v2523, %v2515
  %2812 = vmatprep.subr.bf16.mxu0 %v2525
  %2813 = vmatpush1.bf16.msra.mxu0 %v2524
  %2814 = vmatprep.subr.bf16.mxu0 %v2533
  %2815 = vmatpush1.bf16.msra.mxu0 %v2532
  %2816 = vmatprep.subr.bf16.mxu0 %v2541
  %2817 = vmatpush1.bf16.msra.mxu0 %v2540
  %2818 = vmatprep.subr.bf16.mxu0 %v2549
  %2819 = vmatpush1.bf16.msra.mxu0 %v2548
  %2820 = vmatprep.subr.bf16.mxu0 %v2557
  %2821 = vmatpush1.bf16.msra.mxu0 %v2556
  %2822 = vmatprep.subr.bf16.mxu0 %v2565
  %2823 = vmatpush1.bf16.msra.mxu0 %v2564
  %2824 = vmatprep.subr.bf16.mxu0 %v2573
  %2825 = vmatpush1.bf16.msra.mxu0 %v2572
  %2826 = vmatprep.subr.bf16.mxu0 %v2581
  %2827 = vmatpush1.bf16.msra.mxu0 %v2580
  %2828 = vmatprep.subr.bf16.mxu0 %v2589
  %2829 = vmatpush1.bf16.msra.mxu0 %v2588
  %2830 = vmatprep.subr.bf16.mxu0 %v2597
  %2831 = vmatpush1.bf16.msra.mxu0 %v2596
  %2832 = vmatprep.subr.bf16.mxu0 %v2605
  %2833 = vmatpush1.bf16.msra.mxu0 %v2604
  %2834 = vmatprep.subr.bf16.mxu0 %v2613
  %2835 = vmatpush1.bf16.msra.mxu0 %v2612
  %2836 = vmatprep.subr.bf16.mxu0 %v2621
  %2837 = vmatpush1.bf16.msra.mxu0 %v2620
  %2838 = vmatprep.subr.bf16.mxu0 %v2629
  %2839 = vmatpush1.bf16.msra.mxu0 %v2628
  %2840 = vmatprep.subr.bf16.mxu0 %v2637
  %2841 = vmatpush1.bf16.msra.mxu0 %v2636
  %2842 = vmatprep.subr.bf16.mxu0 %v2645
  %2843 = vmatpush1.bf16.msra.mxu0 %v2644
  %2844 = vmatprep.mubr.bf16.mxu0 %v235
  %2845 = vmatmul.mubr.bf16.gmra.mrb[0].mxu0 %v234
  %v2846 = vpop.f32.mrb[0].mxu0
  %v2847 = vadd.f32 0.0, %v2846
  %v2848 = vpop.f32.mrb[0].mxu0
  %v2849 = vadd.f32 0.0, %v2848
  %v2850 = vpop.f32.mrb[0].mxu0
  %v2851 = vadd.f32 0.0, %v2850
  %v2852 = vpop.f32.mrb[0].mxu0
  %v2853 = vadd.f32 0.0, %v2852
  %2854 = vmatprep.mubr.bf16.mxu0 %v238
  %2855 = vmatmul.mubr.bf16.gmra.mrb[0].mxu0 %v237
  %v2856 = vpop.f32.mrb[0].mxu0
  %v2857 = vadd.f32 0.0, %v2856
  %v2858 = vpop.f32.mrb[0].mxu0
  %v2859 = vadd.f32 0.0, %v2858
  %v2860 = vpop.f32.mrb[0].mxu0
  %v2861 = vadd.f32 0.0, %v2860
  %v2862 = vpop.f32.mrb[0].mxu0
  %v2863 = vadd.f32 0.0, %v2862
  %2864 = vmatprep.mubr.bf16.mxu0 %v241
  %2865 = vmatmul.mubr.bf16.gmra.mrb[0].mxu0 %v240
  %v2866 = vpop.f32.mrb[0].mxu0
  %v2867 = vadd.f32 0.0, %v2866
  %v2868 = vpop.f32.mrb[0].mxu0
  %v2869 = vadd.f32 0.0, %v2868
  %v2870 = vpop.f32.mrb[0].mxu0
  %v2871 = vadd.f32 0.0, %v2870
  %v2872 = vpop.f32.mrb[0].mxu0
  %v2873 = vadd.f32 0.0, %v2872
  %2874 = vmatprep.mubr.bf16.mxu0 %v244
  %2875 = vmatmul.mubr.bf16.gmra.mrb[0].mxu0 %v243
  %v2876 = vpop.f32.mrb[0].mxu0
  %v2877 = vadd.f32 0.0, %v2876
  %v2878 = vpop.f32.mrb[0].mxu0
  %v2879 = vadd.f32 0.0, %v2878
  %v2880 = vpop.f32.mrb[0].mxu0
  %v2881 = vadd.f32 0.0, %v2880
  %v2882 = vpop.f32.mrb[0].mxu0
  %v2883 = vadd.f32 0.0, %v2882
  %2884 = vdwg.mxu0
  %2885 = vmatprep.subr.bf16.mxu0 %v2653
  %2886 = vmatpush1.bf16.msra.mxu0 %v2652
  %2887 = vmatprep.subr.bf16.mxu0 %v2661
  %2888 = vmatpush1.bf16.msra.mxu0 %v2660
  %2889 = vmatprep.subr.bf16.mxu0 0
  %2890 = vmatpush1.bf16.msra.mxu0 0
  %2891 = vmatprep.subr.bf16.mxu0 0
  %2892 = vmatpush1.bf16.msra.mxu0 0
  %2893 = vmatprep.subr.bf16.mxu0 0
  %2894 = vmatpush1.bf16.msra.mxu0 0
  %2895 = vmatprep.subr.bf16.mxu0 0
  %2896 = vmatpush1.bf16.msra.mxu0 0
  %2897 = vmatprep.subr.bf16.mxu0 0
  %2898 = vmatpush1.bf16.msra.mxu0 0
  %2899 = vmatprep.subr.bf16.mxu0 0
  %2900 = vmatpush1.bf16.msra.mxu0 0
  %2901 = vmatprep.subr.bf16.mxu0 0
  %2902 = vmatpush1.bf16.msra.mxu0 0
  %2903 = vmatprep.subr.bf16.mxu0 0
  %2904 = vmatpush1.bf16.msra.mxu0 0
  %2905 = vmatprep.subr.bf16.mxu0 0
  %2906 = vmatpush1.bf16.msra.mxu0 0
  %2907 = vmatprep.subr.bf16.mxu0 0
  %2908 = vmatpush1.bf16.msra.mxu0 0
  %2909 = vmatprep.subr.bf16.mxu0 0
  %2910 = vmatpush1.bf16.msra.mxu0 0
  %2911 = vmatprep.subr.bf16.mxu0 0
  %2912 = vmatpush1.bf16.msra.mxu0 0
  %2913 = vmatprep.subr.bf16.mxu0 0
  %2914 = vmatpush1.bf16.msra.mxu0 0
  %2915 = vmatprep.subr.bf16.mxu0 0
  %2916 = vmatpush1.bf16.msra.mxu0 0
  %2917 = vmatprep.mubr.bf16.mxu0 0
  %2918 = vmatmul.mubr.bf16.gmra.mrb[0].mxu0 %v976
  %v2919 = vpop.f32.mrb[0].mxu0
  %v2920 = vadd.f32 %v2847, %v2919
  %v2921 = vpop.f32.mrb[0].mxu0
  %v2922 = vadd.f32 %v2849, %v2921
  %v2923 = vpop.f32.mrb[0].mxu0
  %v2924 = vadd.f32 %v2851, %v2923
  %v2925 = vpop.f32.mrb[0].mxu0
  %v2926 = vadd.f32 %v2853, %v2925
  %2927 = vmatprep.mubr.bf16.mxu0 0
  %2928 = vmatmul.mubr.bf16.gmra.mrb[0].mxu0 %v979
  %v2929 = vpop.f32.mrb[0].mxu0
  %v2930 = vadd.f32 %v2857, %v2929
  %v2931 = vpop.f32.mrb[0].mxu0
  %v2932 = vadd.f32 %v2859, %v2931
  %v2933 = vpop.f32.mrb[0].mxu0
  %v2934 = vadd.f32 %v2861, %v2933
  %v2935 = vpop.f32.mrb[0].mxu0
  %v2936 = vadd.f32 %v2863, %v2935
  %2937 = vmatprep.mubr.bf16.mxu0 0
  %2938 = vmatmul.mubr.bf16.gmra.mrb[0].mxu0 %v982
  %v2939 = vpop.f32.mrb[0].mxu0
  %v2940 = vadd.f32 %v2867, %v2939
  %v2941 = vpop.f32.mrb[0].mxu0
  %v2942 = vadd.f32 %v2869, %v2941
  %v2943 = vpop.f32.mrb[0].mxu0
  %v2944 = vadd.f32 %v2871, %v2943
  %v2945 = vpop.f32.mrb[0].mxu0
  %v2946 = vadd.f32 %v2873, %v2945
  %2947 = vmatprep.mubr.bf16.mxu0 0
  %2948 = vmatmul.mubr.bf16.gmra.mrb[0].mxu0 %v985
  %v2949 = vpop.f32.mrb[0].mxu0
  %v2950 = vadd.f32 %v2877, %v2949
  %v2951 = vpop.f32.mrb[0].mxu0
  %v2952 = vadd.f32 %v2879, %v2951
  %v2953 = vpop.f32.mrb[0].mxu0
  %v2954 = vadd.f32 %v2881, %v2953
  %v2955 = vpop.f32.mrb[0].mxu0
  %v2956 = vadd.f32 %v2883, %v2955
  %2957 = vdwg.mxu0
  %2958 = vmatprep.subr.bf16.mxu0 %v2527
  %2959 = vmatpush1.bf16.msra.mxu0 %v2526
  %2960 = vmatprep.subr.bf16.mxu0 %v2535
  %2961 = vmatpush1.bf16.msra.mxu0 %v2534
  %2962 = vmatprep.subr.bf16.mxu0 %v2543
  %2963 = vmatpush1.bf16.msra.mxu0 %v2542
  %2964 = vmatprep.subr.bf16.mxu0 %v2551
  %2965 = vmatpush1.bf16.msra.mxu0 %v2550
  %2966 = vmatprep.subr.bf16.mxu0 %v2559
  %2967 = vmatpush1.bf16.msra.mxu0 %v2558
  %2968 = vmatprep.subr.bf16.mxu0 %v2567
  %2969 = vmatpush1.bf16.msra.mxu0 %v2566
  %2970 = vmatprep.subr.bf16.mxu0 %v2575
  %2971 = vmatpush1.bf16.msra.mxu0 %v2574
  %2972 = vmatprep.subr.bf16.mxu0 %v2583
  %2973 = vmatpush1.bf16.msra.mxu0 %v2582
  %2974 = vmatprep.subr.bf16.mxu0 %v2591
  %2975 = vmatpush1.bf16.msra.mxu0 %v2590
  %2976 = vmatprep.subr.bf16.mxu0 %v2599
  %2977 = vmatpush1.bf16.msra.mxu0 %v2598
  %2978 = vmatprep.subr.bf16.mxu0 %v2607
  %2979 = vmatpush1.bf16.msra.mxu0 %v2606
  %2980 = vmatprep.subr.bf16.mxu0 %v2615
  %2981 = vmatpush1.bf16.msra.mxu0 %v2614
  %2982 = vmatprep.subr.bf16.mxu0 %v2623
  %2983 = vmatpush1.bf16.msra.mxu0 %v2622
  %2984 = vmatprep.subr.bf16.mxu0 %v2631
  %2985 = vmatpush1.bf16.msra.mxu0 %v2630
  %2986 = vmatprep.subr.bf16.mxu0 %v2639
  %2987 = vmatpush1.bf16.msra.mxu0 %v2638
  %2988 = vmatprep.subr.bf16.mxu0 %v2647
  %2989 = vmatpush1.bf16.msra.mxu0 %v2646
  %2990 = vmatprep.mubr.bf16.mxu0 %v235
  %2991 = vmatmul.mubr.bf16.gmra.mrb[0].mxu0 %v234
  %v2992 = vpop.f32.mrb[0].mxu0
  %v2993 = vadd.f32 0.0, %v2992
  %v2994 = vpop.f32.mrb[0].mxu0
  %v2995 = vadd.f32 0.0, %v2994
  %v2996 = vpop.f32.mrb[0].mxu0
  %v2997 = vadd.f32 0.0, %v2996
  %v2998 = vpop.f32.mrb[0].mxu0
  %v2999 = vadd.f32 0.0, %v2998
  %3000 = vmatprep.mubr.bf16.mxu0 %v238
  %3001 = vmatmul.mubr.bf16.gmra.mrb[0].mxu0 %v237
  %v3002 = vpop.f32.mrb[0].mxu0
  %v3003 = vadd.f32 0.0, %v3002
  %v3004 = vpop.f32.mrb[0].mxu0
  %v3005 = vadd.f32 0.0, %v3004
  %v3006 = vpop.f32.mrb[0].mxu0
  %v3007 = vadd.f32 0.0, %v3006
  %v3008 = vpop.f32.mrb[0].mxu0
  %v3009 = vadd.f32 0.0, %v3008
  %3010 = vmatprep.mubr.bf16.mxu0 %v241
  %3011 = vmatmul.mubr.bf16.gmra.mrb[0].mxu0 %v240
  %v3012 = vpop.f32.mrb[0].mxu0
  %v3013 = vadd.f32 0.0, %v3012
  %v3014 = vpop.f32.mrb[0].mxu0
  %v3015 = vadd.f32 0.0, %v3014
  %v3016 = vpop.f32.mrb[0].mxu0
  %v3017 = vadd.f32 0.0, %v3016
  %v3018 = vpop.f32.mrb[0].mxu0
  %v3019 = vadd.f32 0.0, %v3018
  %3020 = vmatprep.mubr.bf16.mxu0 %v244
  %3021 = vmatmul.mubr.bf16.gmra.mrb[0].mxu0 %v243
  %v3022 = vpop.f32.mrb[0].mxu0
  %v3023 = vadd.f32 0.0, %v3022
  %v3024 = vpop.f32.mrb[0].mxu0
  %v3025 = vadd.f32 0.0, %v3024
  %v3026 = vpop.f32.mrb[0].mxu0
  %v3027 = vadd.f32 0.0, %v3026
  %v3028 = vpop.f32.mrb[0].mxu0
  %v3029 = vadd.f32 0.0, %v3028
  %3030 = vdwg.mxu0
  %3031 = vmatprep.subr.bf16.mxu0 %v2655
  %3032 = vmatpush1.bf16.msra.mxu0 %v2654
  %3033 = vmatprep.subr.bf16.mxu0 %v2663
  %3034 = vmatpush1.bf16.msra.mxu0 %v2662
  %3035 = vmatprep.subr.bf16.mxu0 0
  %3036 = vmatpush1.bf16.msra.mxu0 0
  %3037 = vmatprep.subr.bf16.mxu0 0
  %3038 = vmatpush1.bf16.msra.mxu0 0
  %3039 = vmatprep.subr.bf16.mxu0 0
  %3040 = vmatpush1.bf16.msra.mxu0 0
  %3041 = vmatprep.subr.bf16.mxu0 0
  %3042 = vmatpush1.bf16.msra.mxu0 0
  %3043 = vmatprep.subr.bf16.mxu0 0
  %3044 = vmatpush1.bf16.msra.mxu0 0
  %3045 = vmatprep.subr.bf16.mxu0 0
  %3046 = vmatpush1.bf16.msra.mxu0 0
  %3047 = vmatprep.subr.bf16.mxu0 0
  %3048 = vmatpush1.bf16.msra.mxu0 0
  %3049 = vmatprep.subr.bf16.mxu0 0
  %3050 = vmatpush1.bf16.msra.mxu0 0
  %3051 = vmatprep.subr.bf16.mxu0 0
  %3052 = vmatpush1.bf16.msra.mxu0 0
  %3053 = vmatprep.subr.bf16.mxu0 0
  %3054 = vmatpush1.bf16.msra.mxu0 0
  %3055 = vmatprep.subr.bf16.mxu0 0
  %3056 = vmatpush1.bf16.msra.mxu0 0
  %3057 = vmatprep.subr.bf16.mxu0 0
  %3058 = vmatpush1.bf16.msra.mxu0 0
  %3059 = vmatprep.subr.bf16.mxu0 0
  %3060 = vmatpush1.bf16.msra.mxu0 0
  %3061 = vmatprep.subr.bf16.mxu0 0
  %3062 = vmatpush1.bf16.msra.mxu0 0
  %3063 = vmatprep.mubr.bf16.mxu0 0
  %3064 = vmatmul.mubr.bf16.gmra.mrb[0].mxu0 %v976
  %v3065 = vpop.f32.mrb[0].mxu0
  %v3066 = vadd.f32 %v2993, %v3065
  %v3067 = vpop.f32.mrb[0].mxu0
  %v3068 = vadd.f32 %v2995, %v3067
  %v3069 = vpop.f32.mrb[0].mxu0
  %v3070 = vadd.f32 %v2997, %v3069
  %v3071 = vpop.f32.mrb[0].mxu0
  %v3072 = vadd.f32 %v2999, %v3071
  %3073 = vmatprep.mubr.bf16.mxu0 0
  %3074 = vmatmul.mubr.bf16.gmra.mrb[0].mxu0 %v979
  %v3075 = vpop.f32.mrb[0].mxu0
  %v3076 = vadd.f32 %v3003, %v3075
  %v3077 = vpop.f32.mrb[0].mxu0
  %v3078 = vadd.f32 %v3005, %v3077
  %v3079 = vpop.f32.mrb[0].mxu0
  %v3080 = vadd.f32 %v3007, %v3079
  %v3081 = vpop.f32.mrb[0].mxu0
  %v3082 = vadd.f32 %v3009, %v3081
  %3083 = vmatprep.mubr.bf16.mxu0 0
  %3084 = vmatmul.mubr.bf16.gmra.mrb[0].mxu0 %v982
  %v3085 = vpop.f32.mrb[0].mxu0
  %v3086 = vadd.f32 %v3013, %v3085
  %v3087 = vpop.f32.mrb[0].mxu0
  %v3088 = vadd.f32 %v3015, %v3087
  %v3089 = vpop.f32.mrb[0].mxu0
  %v3090 = vadd.f32 %v3017, %v3089
  %v3091 = vpop.f32.mrb[0].mxu0
  %v3092 = vadd.f32 %v3019, %v3091
  %3093 = vmatprep.mubr.bf16.mxu0 0
  %3094 = vmatmul.mubr.bf16.gmra.mrb[0].mxu0 %v985
  %v3095 = vpop.f32.mrb[0].mxu0
  %v3096 = vadd.f32 %v3023, %v3095
  %v3097 = vpop.f32.mrb[0].mxu0
  %v3098 = vadd.f32 %v3025, %v3097
  %v3099 = vpop.f32.mrb[0].mxu0
  %v3100 = vadd.f32 %v3027, %v3099
  %v3101 = vpop.f32.mrb[0].mxu0
  %v3102 = vadd.f32 %v3029, %v3101
  %3103 = vdwg.mxu0
  %3104 = vmatprep.subr.bf16.mxu0 %v2529
  %3105 = vmatpush1.bf16.msra.mxu0 %v2528
  %3106 = vmatprep.subr.bf16.mxu0 %v2537
  %3107 = vmatpush1.bf16.msra.mxu0 %v2536
  %3108 = vmatprep.subr.bf16.mxu0 %v2545
  %3109 = vmatpush1.bf16.msra.mxu0 %v2544
  %3110 = vmatprep.subr.bf16.mxu0 %v2553
  %3111 = vmatpush1.bf16.msra.mxu0 %v2552
  %3112 = vmatprep.subr.bf16.mxu0 %v2561
  %3113 = vmatpush1.bf16.msra.mxu0 %v2560
  %3114 = vmatprep.subr.bf16.mxu0 %v2569
  %3115 = vmatpush1.bf16.msra.mxu0 %v2568
  %3116 = vmatprep.subr.bf16.mxu0 %v2577
  %3117 = vmatpush1.bf16.msra.mxu0 %v2576
  %3118 = vmatprep.subr.bf16.mxu0 %v2585
  %3119 = vmatpush1.bf16.msra.mxu0 %v2584
  %3120 = vmatprep.subr.bf16.mxu0 %v2593
  %3121 = vmatpush1.bf16.msra.mxu0 %v2592
  %3122 = vmatprep.subr.bf16.mxu0 %v2601
  %3123 = vmatpush1.bf16.msra.mxu0 %v2600
  %3124 = vmatprep.subr.bf16.mxu0 %v2609
  %3125 = vmatpush1.bf16.msra.mxu0 %v2608
  %3126 = vmatprep.subr.bf16.mxu0 %v2617
  %3127 = vmatpush1.bf16.msra.mxu0 %v2616
  %3128 = vmatprep.subr.bf16.mxu0 %v2625
  %3129 = vmatpush1.bf16.msra.mxu0 %v2624
  %3130 = vmatprep.subr.bf16.mxu0 %v2633
  %3131 = vmatpush1.bf16.msra.mxu0 %v2632
  %3132 = vmatprep.subr.bf16.mxu0 %v2641
  %3133 = vmatpush1.bf16.msra.mxu0 %v2640
  %3134 = vmatprep.subr.bf16.mxu0 %v2649
  %3135 = vmatpush1.bf16.msra.mxu0 %v2648
  %3136 = vmatprep.mubr.bf16.mxu0 %v235
  %3137 = vmatmul.mubr.bf16.gmra.mrb[0].mxu0 %v234
  %v3138 = vpop.f32.mrb[0].mxu0
  %v3139 = vadd.f32 0.0, %v3138
  %v3140 = vpop.f32.mrb[0].mxu0
  %v3141 = vadd.f32 0.0, %v3140
  %v3142 = vpop.f32.mrb[0].mxu0
  %v3143 = vadd.f32 0.0, %v3142
  %v3144 = vpop.f32.mrb[0].mxu0
  %v3145 = vadd.f32 0.0, %v3144
  %3146 = vmatprep.mubr.bf16.mxu0 %v238
  %3147 = vmatmul.mubr.bf16.gmra.mrb[0].mxu0 %v237
  %v3148 = vpop.f32.mrb[0].mxu0
  %v3149 = vadd.f32 0.0, %v3148
  %v3150 = vpop.f32.mrb[0].mxu0
  %v3151 = vadd.f32 0.0, %v3150
  %v3152 = vpop.f32.mrb[0].mxu0
  %v3153 = vadd.f32 0.0, %v3152
  %v3154 = vpop.f32.mrb[0].mxu0
  %v3155 = vadd.f32 0.0, %v3154
  %3156 = vmatprep.mubr.bf16.mxu0 %v241
  %3157 = vmatmul.mubr.bf16.gmra.mrb[0].mxu0 %v240
  %v3158 = vpop.f32.mrb[0].mxu0
  %v3159 = vadd.f32 0.0, %v3158
  %v3160 = vpop.f32.mrb[0].mxu0
  %v3161 = vadd.f32 0.0, %v3160
  %v3162 = vpop.f32.mrb[0].mxu0
  %v3163 = vadd.f32 0.0, %v3162
  %v3164 = vpop.f32.mrb[0].mxu0
  %v3165 = vadd.f32 0.0, %v3164
  %3166 = vmatprep.mubr.bf16.mxu0 %v244
  %3167 = vmatmul.mubr.bf16.gmra.mrb[0].mxu0 %v243
  %v3168 = vpop.f32.mrb[0].mxu0
  %v3169 = vadd.f32 0.0, %v3168
  %v3170 = vpop.f32.mrb[0].mxu0
  %v3171 = vadd.f32 0.0, %v3170
  %v3172 = vpop.f32.mrb[0].mxu0
  %v3173 = vadd.f32 0.0, %v3172
  %v3174 = vpop.f32.mrb[0].mxu0
  %v3175 = vadd.f32 0.0, %v3174
  %3176 = vdwg.mxu0
  %3177 = vmatprep.subr.bf16.mxu0 %v2657
  %3178 = vmatpush1.bf16.msra.mxu0 %v2656
  %3179 = vmatprep.subr.bf16.mxu0 %v2665
  %3180 = vmatpush1.bf16.msra.mxu0 %v2664
  %3181 = vmatprep.subr.bf16.mxu0 0
  %3182 = vmatpush1.bf16.msra.mxu0 0
  %3183 = vmatprep.subr.bf16.mxu0 0
  %3184 = vmatpush1.bf16.msra.mxu0 0
  %3185 = vmatprep.subr.bf16.mxu0 0
  %3186 = vmatpush1.bf16.msra.mxu0 0
  %3187 = vmatprep.subr.bf16.mxu0 0
  %3188 = vmatpush1.bf16.msra.mxu0 0
  %3189 = vmatprep.subr.bf16.mxu0 0
  %3190 = vmatpush1.bf16.msra.mxu0 0
  %3191 = vmatprep.subr.bf16.mxu0 0
  %3192 = vmatpush1.bf16.msra.mxu0 0
  %3193 = vmatprep.subr.bf16.mxu0 0
  %3194 = vmatpush1.bf16.msra.mxu0 0
  %3195 = vmatprep.subr.bf16.mxu0 0
  %3196 = vmatpush1.bf16.msra.mxu0 0
  %3197 = vmatprep.subr.bf16.mxu0 0
  %3198 = vmatpush1.bf16.msra.mxu0 0
  %3199 = vmatprep.subr.bf16.mxu0 0
  %3200 = vmatpush1.bf16.msra.mxu0 0
  %3201 = vmatprep.subr.bf16.mxu0 0
  %3202 = vmatpush1.bf16.msra.mxu0 0
  %3203 = vmatprep.subr.bf16.mxu0 0
  %3204 = vmatpush1.bf16.msra.mxu0 0
  %3205 = vmatprep.subr.bf16.mxu0 0
  %3206 = vmatpush1.bf16.msra.mxu0 0
  %3207 = vmatprep.subr.bf16.mxu0 0
  %3208 = vmatpush1.bf16.msra.mxu0 0
  %3209 = vmatprep.mubr.bf16.mxu0 0
  %3210 = vmatmul.mubr.bf16.gmra.mrb[0].mxu0 %v976
  %v3211 = vpop.f32.mrb[0].mxu0
  %v3212 = vadd.f32 %v3139, %v3211
  %v3213 = vpop.f32.mrb[0].mxu0
  %v3214 = vadd.f32 %v3141, %v3213
  %v3215 = vpop.f32.mrb[0].mxu0
  %v3216 = vadd.f32 %v3143, %v3215
  %v3217 = vpop.f32.mrb[0].mxu0
  %v3218 = vadd.f32 %v3145, %v3217
  %3219 = vmatprep.mubr.bf16.mxu0 0
  %3220 = vmatmul.mubr.bf16.gmra.mrb[0].mxu0 %v979
  %v3221 = vpop.f32.mrb[0].mxu0
  %v3222 = vadd.f32 %v3149, %v3221
  %v3223 = vpop.f32.mrb[0].mxu0
  %v3224 = vadd.f32 %v3151, %v3223
  %v3225 = vpop.f32.mrb[0].mxu0
  %v3226 = vadd.f32 %v3153, %v3225
  %v3227 = vpop.f32.mrb[0].mxu0
  %v3228 = vadd.f32 %v3155, %v3227
  %3229 = vmatprep.mubr.bf16.mxu0 0
  %3230 = vmatmul.mubr.bf16.gmra.mrb[0].mxu0 %v982
  %v3231 = vpop.f32.mrb[0].mxu0
  %v3232 = vadd.f32 %v3159, %v3231
  %v3233 = vpop.f32.mrb[0].mxu0
  %v3234 = vadd.f32 %v3161, %v3233
  %v3235 = vpop.f32.mrb[0].mxu0
  %v3236 = vadd.f32 %v3163, %v3235
  %v3237 = vpop.f32.mrb[0].mxu0
  %v3238 = vadd.f32 %v3165, %v3237
  %3239 = vmatprep.mubr.bf16.mxu0 0
  %3240 = vmatmul.mubr.bf16.gmra.mrb[0].mxu0 %v985
  %v3241 = vpop.f32.mrb[0].mxu0
  %v3242 = vadd.f32 %v3169, %v3241
  %v3243 = vpop.f32.mrb[0].mxu0
  %v3244 = vadd.f32 %v3171, %v3243
  %v3245 = vpop.f32.mrb[0].mxu0
  %v3246 = vadd.f32 %v3173, %v3245
  %v3247 = vpop.f32.mrb[0].mxu0
  %v3248 = vadd.f32 %v3175, %v3247
  %3249 = vdwg.mxu0
  %3250 = vmatprep.subr.bf16.mxu0 %v2531
  %3251 = vmatpush1.bf16.msra.mxu0 %v2530
  %3252 = vmatprep.subr.bf16.mxu0 %v2539
  %3253 = vmatpush1.bf16.msra.mxu0 %v2538
  %3254 = vmatprep.subr.bf16.mxu0 %v2547
  %3255 = vmatpush1.bf16.msra.mxu0 %v2546
  %3256 = vmatprep.subr.bf16.mxu0 %v2555
  %3257 = vmatpush1.bf16.msra.mxu0 %v2554
  %3258 = vmatprep.subr.bf16.mxu0 %v2563
  %3259 = vmatpush1.bf16.msra.mxu0 %v2562
  %3260 = vmatprep.subr.bf16.mxu0 %v2571
  %3261 = vmatpush1.bf16.msra.mxu0 %v2570
  %3262 = vmatprep.subr.bf16.mxu0 %v2579
  %3263 = vmatpush1.bf16.msra.mxu0 %v2578
  %3264 = vmatprep.subr.bf16.mxu0 %v2587
  %3265 = vmatpush1.bf16.msra.mxu0 %v2586
  %3266 = vmatprep.subr.bf16.mxu0 %v2595
  %3267 = vmatpush1.bf16.msra.mxu0 %v2594
  %3268 = vmatprep.subr.bf16.mxu0 %v2603
  %3269 = vmatpush1.bf16.msra.mxu0 %v2602
  %3270 = vmatprep.subr.bf16.mxu0 %v2611
  %3271 = vmatpush1.bf16.msra.mxu0 %v2610
  %3272 = vmatprep.subr.bf16.mxu0 %v2619
  %3273 = vmatpush1.bf16.msra.mxu0 %v2618
  %3274 = vmatprep.subr.bf16.mxu0 %v2627
  %3275 = vmatpush1.bf16.msra.mxu0 %v2626
  %3276 = vmatprep.subr.bf16.mxu0 %v2635
  %3277 = vmatpush1.bf16.msra.mxu0 %v2634
  %3278 = vmatprep.subr.bf16.mxu0 %v2643
  %3279 = vmatpush1.bf16.msra.mxu0 %v2642
  %3280 = vmatprep.subr.bf16.mxu0 %v2651
  %3281 = vmatpush1.bf16.msra.mxu0 %v2650
  %3282 = vmatprep.mubr.bf16.mxu0 %v235
  %3283 = vmatmul.mubr.bf16.gmra.mrb[0].mxu0 %v234
  %v3284 = vpop.f32.mrb[0].mxu0
  %v3285 = vadd.f32 0.0, %v3284
  %v3286 = vpop.f32.mrb[0].mxu0
  %v3287 = vadd.f32 0.0, %v3286
  %v3288 = vpop.f32.mrb[0].mxu0
  %v3289 = vadd.f32 0.0, %v3288
  %v3290 = vpop.f32.mrb[0].mxu0
  %v3291 = vadd.f32 0.0, %v3290
  %3292 = vmatprep.mubr.bf16.mxu0 %v238
  %3293 = vmatmul.mubr.bf16.gmra.mrb[0].mxu0 %v237
  %v3294 = vpop.f32.mrb[0].mxu0
  %v3295 = vadd.f32 0.0, %v3294
  %v3296 = vpop.f32.mrb[0].mxu0
  %v3297 = vadd.f32 0.0, %v3296
  %v3298 = vpop.f32.mrb[0].mxu0
  %v3299 = vadd.f32 0.0, %v3298
  %v3300 = vpop.f32.mrb[0].mxu0
  %v3301 = vadd.f32 0.0, %v3300
  %3302 = vmatprep.mubr.bf16.mxu0 %v241
  %3303 = vmatmul.mubr.bf16.gmra.mrb[0].mxu0 %v240
  %v3304 = vpop.f32.mrb[0].mxu0
  %v3305 = vadd.f32 0.0, %v3304
  %v3306 = vpop.f32.mrb[0].mxu0
  %v3307 = vadd.f32 0.0, %v3306
  %v3308 = vpop.f32.mrb[0].mxu0
  %v3309 = vadd.f32 0.0, %v3308
  %v3310 = vpop.f32.mrb[0].mxu0
  %v3311 = vadd.f32 0.0, %v3310
  %3312 = vmatprep.mubr.bf16.mxu0 %v244
  %3313 = vmatmul.mubr.bf16.gmra.mrb[0].mxu0 %v243
  %v3314 = vpop.f32.mrb[0].mxu0
  %v3315 = vadd.f32 0.0, %v3314
  %v3316 = vpop.f32.mrb[0].mxu0
  %v3317 = vadd.f32 0.0, %v3316
  %v3318 = vpop.f32.mrb[0].mxu0
  %v3319 = vadd.f32 0.0, %v3318
  %v3320 = vpop.f32.mrb[0].mxu0
  %v3321 = vadd.f32 0.0, %v3320
  %3322 = vdwg.mxu0
  %3323 = vmatprep.subr.bf16.mxu0 %v2659
  %3324 = vmatpush1.bf16.msra.mxu0 %v2658
  %3325 = vmatprep.subr.bf16.mxu0 %v2667
  %3326 = vmatpush1.bf16.msra.mxu0 %v2666
  %3327 = vmatprep.subr.bf16.mxu0 0
  %3328 = vmatpush1.bf16.msra.mxu0 0
  %3329 = vmatprep.subr.bf16.mxu0 0
  %3330 = vmatpush1.bf16.msra.mxu0 0
  %3331 = vmatprep.subr.bf16.mxu0 0
  %3332 = vmatpush1.bf16.msra.mxu0 0
  %3333 = vmatprep.subr.bf16.mxu0 0
  %3334 = vmatpush1.bf16.msra.mxu0 0
  %3335 = vmatprep.subr.bf16.mxu0 0
  %3336 = vmatpush1.bf16.msra.mxu0 0
  %3337 = vmatprep.subr.bf16.mxu0 0
  %3338 = vmatpush1.bf16.msra.mxu0 0
  %3339 = vmatprep.subr.bf16.mxu0 0
  %3340 = vmatpush1.bf16.msra.mxu0 0
  %3341 = vmatprep.subr.bf16.mxu0 0
  %3342 = vmatpush1.bf16.msra.mxu0 0
  %3343 = vmatprep.subr.bf16.mxu0 0
  %3344 = vmatpush1.bf16.msra.mxu0 0
  %3345 = vmatprep.subr.bf16.mxu0 0
  %3346 = vmatpush1.bf16.msra.mxu0 0
  %3347 = vmatprep.subr.bf16.mxu0 0
  %3348 = vmatpush1.bf16.msra.mxu0 0
  %3349 = vmatprep.subr.bf16.mxu0 0
  %3350 = vmatpush1.bf16.msra.mxu0 0
  %3351 = vmatprep.subr.bf16.mxu0 0
  %3352 = vmatpush1.bf16.msra.mxu0 0
  %3353 = vmatprep.subr.bf16.mxu0 0
  %3354 = vmatpush1.bf16.msra.mxu0 0
  %3355 = vmatprep.mubr.bf16.mxu0 0
  %3356 = vmatmul.mubr.bf16.gmra.mrb[0].mxu0 %v976
  %v3357 = vpop.f32.mrb[0].mxu0
  %v3358 = vadd.f32 %v3285, %v3357
  %v3359 = vpop.f32.mrb[0].mxu0
  %v3360 = vadd.f32 %v3287, %v3359
  %v3361 = vpop.f32.mrb[0].mxu0
  %v3362 = vadd.f32 %v3289, %v3361
  %v3363 = vpop.f32.mrb[0].mxu0
  %v3364 = vadd.f32 %v3291, %v3363
  %3365 = vmatprep.mubr.bf16.mxu0 0
  %3366 = vmatmul.mubr.bf16.gmra.mrb[0].mxu0 %v979
  %v3367 = vpop.f32.mrb[0].mxu0
  %v3368 = vadd.f32 %v3295, %v3367
  %v3369 = vpop.f32.mrb[0].mxu0
  %v3370 = vadd.f32 %v3297, %v3369
  %v3371 = vpop.f32.mrb[0].mxu0
  %v3372 = vadd.f32 %v3299, %v3371
  %v3373 = vpop.f32.mrb[0].mxu0
  %v3374 = vadd.f32 %v3301, %v3373
  %3375 = vmatprep.mubr.bf16.mxu0 0
  %3376 = vmatmul.mubr.bf16.gmra.mrb[0].mxu0 %v982
  %v3377 = vpop.f32.mrb[0].mxu0
  %v3378 = vadd.f32 %v3305, %v3377
  %v3379 = vpop.f32.mrb[0].mxu0
  %v3380 = vadd.f32 %v3307, %v3379
  %v3381 = vpop.f32.mrb[0].mxu0
  %v3382 = vadd.f32 %v3309, %v3381
  %v3383 = vpop.f32.mrb[0].mxu0
  %v3384 = vadd.f32 %v3311, %v3383
  %3385 = vmatprep.mubr.bf16.mxu0 0
  %3386 = vmatmul.mubr.bf16.gmra.mrb[0].mxu0 %v985
  %v3387 = vpop.f32.mrb[0].mxu0
  %v3388 = vadd.f32 %v3315, %v3387
  %v3389 = vpop.f32.mrb[0].mxu0
  %v3390 = vadd.f32 %v3317, %v3389
  %v3391 = vpop.f32.mrb[0].mxu0
  %v3392 = vadd.f32 %v3319, %v3391
  %v3393 = vpop.f32.mrb[0].mxu0
  %v3394 = vadd.f32 %v3321, %v3393
  %3395 = vdwg.mxu0
  %v3396 = vmul.f32 %v2920, %v1574
  %v3397 = vmul.f32 %v2922, %v1574
  %v3398 = vmul.f32 %v3066, %v1574
  %v3399 = vmul.f32 %v3068, %v1574
  %v3400 = vmul.f32 %v3212, %v1574
  %v3401 = vmul.f32 %v3214, %v1574
  %v3402 = vmul.f32 %v3358, %v1574
  %v3403 = vmul.f32 %v3360, %v1574
  %v3404 = vmul.f32 %v2924, %v1579
  %v3405 = vmul.f32 %v2926, %v1579
  %v3406 = vmul.f32 %v3070, %v1579
  %v3407 = vmul.f32 %v3072, %v1579
  %v3408 = vmul.f32 %v3216, %v1579
  %v3409 = vmul.f32 %v3218, %v1579
  %v3410 = vmul.f32 %v3362, %v1579
  %v3411 = vmul.f32 %v3364, %v1579
  %v3412 = vmul.f32 %v2930, %v1584
  %v3413 = vmul.f32 %v2932, %v1584
  %v3414 = vmul.f32 %v3076, %v1584
  %v3415 = vmul.f32 %v3078, %v1584
  %v3416 = vmul.f32 %v3222, %v1584
  %v3417 = vmul.f32 %v3224, %v1584
  %v3418 = vmul.f32 %v3368, %v1584
  %v3419 = vmul.f32 %v3370, %v1584
  %v3420 = vmul.f32 %v2934, %v1589
  %v3421 = vmul.f32 %v2936, %v1589
  %v3422 = vmul.f32 %v3080, %v1589
  %v3423 = vmul.f32 %v3082, %v1589
  %v3424 = vmul.f32 %v3226, %v1589
  %v3425 = vmul.f32 %v3228, %v1589
  %v3426 = vmul.f32 %v3372, %v1589
  %v3427 = vmul.f32 %v3374, %v1589
  %v3428 = vmul.f32 %v2940, %v1594
  %v3429 = vmul.f32 %v2942, %v1594
  %v3430 = vmul.f32 %v3086, %v1594
  %v3431 = vmul.f32 %v3088, %v1594
  %v3432 = vmul.f32 %v3232, %v1594
  %v3433 = vmul.f32 %v3234, %v1594
  %v3434 = vmul.f32 %v3378, %v1594
  %v3435 = vmul.f32 %v3380, %v1594
  %v3436 = vmul.f32 %v2944, %v1599
  %v3437 = vmul.f32 %v2946, %v1599
  %v3438 = vmul.f32 %v3090, %v1599
  %v3439 = vmul.f32 %v3092, %v1599
  %v3440 = vmul.f32 %v3236, %v1599
  %v3441 = vmul.f32 %v3238, %v1599
  %v3442 = vmul.f32 %v3382, %v1599
  %v3443 = vmul.f32 %v3384, %v1599
  %v3444 = vmul.f32 %v2950, %v1604
  %v3445 = vmul.f32 %v2952, %v1604
  %v3446 = vmul.f32 %v3096, %v1604
  %v3447 = vmul.f32 %v3098, %v1604
  %v3448 = vmul.f32 %v3242, %v1604
  %v3449 = vmul.f32 %v3244, %v1604
  %v3450 = vmul.f32 %v3388, %v1604
  %v3451 = vmul.f32 %v3390, %v1604
  %v3452 = vmul.f32 %v2954, %v1609
  %v3453 = vmul.f32 %v2956, %v1609
  %v3454 = vmul.f32 %v3100, %v1609
  %v3455 = vmul.f32 %v3102, %v1609
  %v3456 = vmul.f32 %v3246, %v1609
  %v3457 = vmul.f32 %v3248, %v1609
  %v3458 = vmul.f32 %v3392, %v1609
  %v3459 = vmul.f32 %v3394, %v1609
  %v3460 = vadd.f32 %v3396, %v1678
  %v3461 = vadd.f32 %v3397, %v1678
  %v3462 = vadd.f32 %v3398, %v1678
  %v3463 = vadd.f32 %v3399, %v1678
  %v3464 = vadd.f32 %v3400, %v1678
  %v3465 = vadd.f32 %v3401, %v1678
  %v3466 = vadd.f32 %v3402, %v1678
  %v3467 = vadd.f32 %v3403, %v1678
  %v3468 = vadd.f32 %v3404, %v1683
  %v3469 = vadd.f32 %v3405, %v1683
  %v3470 = vadd.f32 %v3406, %v1683
  %v3471 = vadd.f32 %v3407, %v1683
  %v3472 = vadd.f32 %v3408, %v1683
  %v3473 = vadd.f32 %v3409, %v1683
  %v3474 = vadd.f32 %v3410, %v1683
  %v3475 = vadd.f32 %v3411, %v1683
  %v3476 = vadd.f32 %v3412, %v1688
  %v3477 = vadd.f32 %v3413, %v1688
  %v3478 = vadd.f32 %v3414, %v1688
  %v3479 = vadd.f32 %v3415, %v1688
  %v3480 = vadd.f32 %v3416, %v1688
  %v3481 = vadd.f32 %v3417, %v1688
  %v3482 = vadd.f32 %v3418, %v1688
  %v3483 = vadd.f32 %v3419, %v1688
  %v3484 = vadd.f32 %v3420, %v1693
  %v3485 = vadd.f32 %v3421, %v1693
  %v3486 = vadd.f32 %v3422, %v1693
  %v3487 = vadd.f32 %v3423, %v1693
  %v3488 = vadd.f32 %v3424, %v1693
  %v3489 = vadd.f32 %v3425, %v1693
  %v3490 = vadd.f32 %v3426, %v1693
  %v3491 = vadd.f32 %v3427, %v1693
  %v3492 = vadd.f32 %v3428, %v1698
  %v3493 = vadd.f32 %v3429, %v1698
  %v3494 = vadd.f32 %v3430, %v1698
  %v3495 = vadd.f32 %v3431, %v1698
  %v3496 = vadd.f32 %v3432, %v1698
  %v3497 = vadd.f32 %v3433, %v1698
  %v3498 = vadd.f32 %v3434, %v1698
  %v3499 = vadd.f32 %v3435, %v1698
  %v3500 = vadd.f32 %v3436, %v1703
  %v3501 = vadd.f32 %v3437, %v1703
  %v3502 = vadd.f32 %v3438, %v1703
  %v3503 = vadd.f32 %v3439, %v1703
  %v3504 = vadd.f32 %v3440, %v1703
  %v3505 = vadd.f32 %v3441, %v1703
  %v3506 = vadd.f32 %v3442, %v1703
  %v3507 = vadd.f32 %v3443, %v1703
  %v3508 = vadd.f32 %v3444, %v1708
  %v3509 = vadd.f32 %v3445, %v1708
  %v3510 = vadd.f32 %v3446, %v1708
  %v3511 = vadd.f32 %v3447, %v1708
  %v3512 = vadd.f32 %v3448, %v1708
  %v3513 = vadd.f32 %v3449, %v1708
  %v3514 = vadd.f32 %v3450, %v1708
  %v3515 = vadd.f32 %v3451, %v1708
  %v3516 = vadd.f32 %v3452, %v1713
  %v3517 = vadd.f32 %v3453, %v1713
  %v3518 = vadd.f32 %v3454, %v1713
  %v3519 = vadd.f32 %v3455, %v1713
  %v3520 = vadd.f32 %v3456, %v1713
  %v3521 = vadd.f32 %v3457, %v1713
  %v3522 = vadd.f32 %v3458, %v1713
  %v3523 = vadd.f32 %v3459, %v1713
  %v3524 = vmax.f32 %v3460, 0.0
  %v3525 = vmax.f32 %v3461, 0.0
  %v3526 = vmax.f32 %v3462, 0.0
  %v3527 = vmax.f32 %v3463, 0.0
  %v3528 = vmax.f32 %v3464, 0.0
  %v3529 = vmax.f32 %v3465, 0.0
  %v3530 = vmax.f32 %v3466, 0.0
  %v3531 = vmax.f32 %v3467, 0.0
  %v3532 = vmax.f32 %v3468, 0.0
  %v3533 = vmax.f32 %v3469, 0.0
  %v3534 = vmax.f32 %v3470, 0.0
  %v3535 = vmax.f32 %v3471, 0.0
  %v3536 = vmax.f32 %v3472, 0.0
  %v3537 = vmax.f32 %v3473, 0.0
  %v3538 = vmax.f32 %v3474, 0.0
  %v3539 = vmax.f32 %v3475, 0.0
  %v3540 = vmax.f32 %v3476, 0.0
  %v3541 = vmax.f32 %v3477, 0.0
  %v3542 = vmax.f32 %v3478, 0.0
  %v3543 = vmax.f32 %v3479, 0.0
  %v3544 = vmax.f32 %v3480, 0.0
  %v3545 = vmax.f32 %v3481, 0.0
  %v3546 = vmax.f32 %v3482, 0.0
  %v3547 = vmax.f32 %v3483, 0.0
  %v3548 = vmax.f32 %v3484, 0.0
  %v3549 = vmax.f32 %v3485, 0.0
  %v3550 = vmax.f32 %v3486, 0.0
  %v3551 = vmax.f32 %v3487, 0.0
  %v3552 = vmax.f32 %v3488, 0.0
  %v3553 = vmax.f32 %v3489, 0.0
  %v3554 = vmax.f32 %v3490, 0.0
  %v3555 = vmax.f32 %v3491, 0.0
  %v3556 = vmax.f32 %v3492, 0.0
  %v3557 = vmax.f32 %v3493, 0.0
  %v3558 = vmax.f32 %v3494, 0.0
  %v3559 = vmax.f32 %v3495, 0.0
  %v3560 = vmax.f32 %v3496, 0.0
  %v3561 = vmax.f32 %v3497, 0.0
  %v3562 = vmax.f32 %v3498, 0.0
  %v3563 = vmax.f32 %v3499, 0.0
  %v3564 = vmax.f32 %v3500, 0.0
  %v3565 = vmax.f32 %v3501, 0.0
  %v3566 = vmax.f32 %v3502, 0.0
  %v3567 = vmax.f32 %v3503, 0.0
  %v3568 = vmax.f32 %v3504, 0.0
  %v3569 = vmax.f32 %v3505, 0.0
  %v3570 = vmax.f32 %v3506, 0.0
  %v3571 = vmax.f32 %v3507, 0.0
  %v3572 = vmax.f32 %v3508, 0.0
  %v3573 = vmax.f32 %v3509, 0.0
  %v3574 = vmax.f32 %v3510, 0.0
  %v3575 = vmax.f32 %v3511, 0.0
  %v3576 = vmax.f32 %v3512, 0.0
  %v3577 = vmax.f32 %v3513, 0.0
  %v3578 = vmax.f32 %v3514, 0.0
  %v3579 = vmax.f32 %v3515, 0.0
  %v3580 = vmax.f32 %v3516, 0.0
  %v3581 = vmax.f32 %v3517, 0.0
  %v3582 = vmax.f32 %v3518, 0.0
  %v3583 = vmax.f32 %v3519, 0.0
  %v3584 = vmax.f32 %v3520, 0.0
  %v3585 = vmax.f32 %v3521, 0.0
  %v3586 = vmax.f32 %v3522, 0.0
  %v3587 = vmax.f32 %v3523, 0.0
  %v3588 = vmax.f32 %v3524, %v3526
  %v3589 = vmax.f32 %v3525, %v3527
  %v3590 = vmax.f32 %v3532, %v3534
  %v3591 = vmax.f32 %v3533, %v3535
  %v3592 = vmax.f32 %v3540, %v3542
  %v3593 = vmax.f32 %v3541, %v3543
  %v3594 = vmax.f32 %v3548, %v3550
  %v3595 = vmax.f32 %v3549, %v3551
  %v3596 = vmax.f32 %v3556, %v3558
  %v3597 = vmax.f32 %v3557, %v3559
  %v3598 = vmax.f32 %v3564, %v3566
  %v3599 = vmax.f32 %v3565, %v3567
  %v3600 = vmax.f32 %v3572, %v3574
  %v3601 = vmax.f32 %v3573, %v3575
  %v3602 = vmax.f32 %v3580, %v3582
  %v3603 = vmax.f32 %v3581, %v3583
  %v3604 = vmax.f32 %v3528, %v3530
  %v3605 = vmax.f32 %v3529, %v3531
  %v3606 = vmax.f32 %v3536, %v3538
  %v3607 = vmax.f32 %v3537, %v3539
  %v3608 = vmax.f32 %v3544, %v3546
  %v3609 = vmax.f32 %v3545, %v3547
  %v3610 = vmax.f32 %v3552, %v3554
  %v3611 = vmax.f32 %v3553, %v3555
  %v3612 = vmax.f32 %v3560, %v3562
  %v3613 = vmax.f32 %v3561, %v3563
  %v3614 = vmax.f32 %v3568, %v3570
  %v3615 = vmax.f32 %v3569, %v3571
  %v3616 = vmax.f32 %v3576, %v3578
  %v3617 = vmax.f32 %v3577, %v3579
  %v3618 = vmax.f32 %v3584, %v3586
  %v3619 = vmax.f32 %v3585, %v3587
  %v3620 = vmax.f32 %v3588, %v3604
  %v3621 = vmax.f32 %v3589, %v3605
  %v3622 = vmax.f32 %v3590, %v3606
  %v3623 = vmax.f32 %v3591, %v3607
  %v3624 = vmax.f32 %v3592, %v3608
  %v3625 = vmax.f32 %v3593, %v3609
  %v3626 = vmax.f32 %v3594, %v3610
  %v3627 = vmax.f32 %v3595, %v3611
  %v3628 = vmax.f32 %v3596, %v3612
  %v3629 = vmax.f32 %v3597, %v3613
  %v3630 = vmax.f32 %v3598, %v3614
  %v3631 = vmax.f32 %v3599, %v3615
  %v3632 = vmax.f32 %v3600, %v3616
  %v3633 = vmax.f32 %v3601, %v3617
  %v3634 = vmax.f32 %v3602, %v3618
  %v3635 = vmax.f32 %v3603, %v3619
  %v3636 = vpack.c.bf16 %v3622, %v3620
  %v3637 = vpack.c.bf16 %v3623, %v3621
  %v3638 = vpack.c.bf16 %v3626, %v3624
  %v3639 = vpack.c.bf16 %v3627, %v3625
  %v3640 = vpack.c.bf16 %v3630, %v3628
  %v3641 = vpack.c.bf16 %v3631, %v3629
  %v3642 = vpack.c.bf16 %v3634, %v3632
  %v3643 = vpack.c.bf16 %v3635, %v3633
  %v3652 = vunpack.c.l.b16 %v3636
  %v3653 = vunpack.c.l.b16 %v3637
  %v3654 = vunpack.c.h.b16 %v3636
  %v3655 = vunpack.c.h.b16 %v3637
  %v3656 = vunpack.c.l.b16 %v3638
  %v3657 = vunpack.c.l.b16 %v3639
  %v3658 = vunpack.c.h.b16 %v3638
  %v3659 = vunpack.c.h.b16 %v3639
  %v3660 = vunpack.c.l.b16 %v3640
  %v3661 = vunpack.c.l.b16 %v3641
  %v3662 = vunpack.c.h.b16 %v3640
  %v3663 = vunpack.c.h.b16 %v3641
  %v3664 = vunpack.c.l.b16 %v3642
  %v3665 = vunpack.c.l.b16 %v3643
  %v3666 = vunpack.c.h.b16 %v3642
  %v3667 = vunpack.c.h.b16 %v3643
  %v3668 = vpack.c.b16 %v3653, %v3652
  %v3669 = vpack.c.b16 %v3655, %v3654
  %v3670 = vpack.c.b16 %v3657, %v3656
  %v3671 = vpack.c.b16 %v3659, %v3658
  %v3672 = vpack.c.b16 %v3661, %v3660
  %v3673 = vpack.c.b16 %v3663, %v3662
  %v3674 = vpack.c.b16 %v3665, %v3664
  %v3675 = vpack.c.b16 %v3667, %v3666
  %s3684 = scalar_lea.vmem %s4, 64
  %3685 = vst [vmem:[%s3684] sm:$0xff] %v3668
  %3686 = vst [vmem:[%s3684 + $0x8] sm:$0xff] %v3669
  %3687 = vst [vmem:[%s3684 + $0x10] sm:$0xff] %v3670
  %3688 = vst [vmem:[%s3684 + $0x18] sm:$0xff] %v3671
  %3689 = vst [vmem:[%s3684 + $0x20] sm:$0xff] %v3672
  %3690 = vst [vmem:[%s3684 + $0x28] sm:$0xff] %v3673
  %3691 = vst [vmem:[%s3684 + $0x30] sm:$0xff] %v3674
  %3692 = vst [vmem:[%s3684 + $0x38] sm:$0xff] %v3675
  // Predicated region
  $region18: #{cnn_forward.4} parent=0 // pred_check
    _
  $region19: #{cnn_forward.4} parent=0 // pred_check_branch
    %3694 = sbr.rel (0) target = $region21
  $region20: #{cnn_forward.4} parent=0 // pred_region
    _
  $region21: #{cnn_forward.4} parent=0 // pred_fallthru
    _
  // Predicated region
  $region22: #{cnn_forward.4} parent=0 // pred_check
    _
  $region23: #{cnn_forward.4} parent=0 // pred_check_branch
    %3696 = sbr.rel (0) target = $region25
  $region24: #{cnn_forward.4} parent=0 // pred_region
    _
  $region25: #{cnn_forward.4} parent=0 // pred_fallthru
    _

// kernel: cnn_forward.5
$region0: #{cnn_forward.5}
  #allocation0 [shape = 'u32[]', space=smem, size = 0x4, offset = 0x4, fixed_abs, tag = 'smem constant byte address 0x4 - core index']
  #allocation1 [shape = 'u32[144,128]{1,0:T(1,128)}', space=vmem, size = 0x12000, scoped, tag = 'internal scratch']
  #allocation2 [shape = 'f32[2,64]{1,0:T(2,128)}', space=vmem, size = 0x400, scoped, tag = 'scratch operand']
  %s0 = inlined_call_operand.vmem [shape: bf16[2,16384], index: 0, kind: input, shape index: {}]
  %s1 = inlined_call_operand.vmem [shape: bf16[2,16384,64], index: 1, kind: input, shape index: {}]
  %s2 = inlined_call_operand.vmem [shape: f32[2,1,64], index: 2, kind: input, shape index: {}]
  %s3 = inlined_call_operand.vmem [shape: f32[2,64,4], index: 3, kind: input, shape index: {}]
  %s4 = inlined_call_operand.vmem [shape: f32[2,2,4], index: 4, kind: output, shape index: {}]
  %s5 = sld [smem:[#allocation0]]
  $region57: #{cnn_forward.5} parent=0
    _
  %s7 = ssub.s32 1, %s5
  %s8 = scalar_select 0, %s7, %s5
  loop: start=0, step=1, limit=18
  $region2: #{cnn_forward.5} parent=0 // loop_pre_header
    _
  $region3: #{cnn_forward.5} parent=0 // loop_header
    %s10 = sphi 0, %s14
    %p11 = scmp.ge.s32.totalorder %s10, 18
    %s17 = sphi 0, %s29
    %s18 = sphi 0, %s25
    %s19 = sphi 0, %s17
    %s20 = sphi 0, %s18
    %s21 = sphi 0, %s19
    %s22 = sphi 0, %s20
    %s32 = sphi 0, %s34
    %s35 = sphi 0, %s32
    %s36 = sphi 0, %s35
    %s52 = sphi 0, %s36
    %s60 = sphi 0, %s62
    %s63 = sphi 0, %s60
    %s64 = sphi 0, %s63
    %s80 = sphi 0, %s64
    %s86 = sphi 0, %s88
    %s89 = sphi 0, %s86
    %s90 = sphi 0, %s89
    %s106 = sphi 0, %s90
    %s112 = sphi 0, %s114
    %s115 = sphi 0, %s112
    %s116 = sphi 0, %s115
    %s132 = sphi 0, %s116
    %s138 = sphi 0, %s140
    %s141 = sphi 0, %s138
    %s142 = sphi 0, %s141
    %s158 = sphi 0, %s142
  $region4: #{cnn_forward.5} parent=0 // loop_header_branch
    %13 = sbr.rel (%p11) target = $region8
  $region5: #{cnn_forward.5} parent=0 // loop_body
    %s15 = ssub.s32 %s10, 1
    %s16 = ssub.s32 %s10, 2
    %s23 = sadd.s32 1, %s18
    %p24 = scmp.ge.s32.totalorder %s23, 8
    %s25 = scalar_select %p24, 0, %s23
    %s26 = sadd.s32 1, %s17
    %s27 = scalar_select %p24, %s26, %s17
    %p28 = scmp.ge.s32.totalorder %s27, 2
    %s29 = scalar_select %p28, 0, %s27
    %s30 = ssub.s32 %s18, %s25
    %p31 = scmp.eq.s32.totalorder %s30, 0
    %s33 = sadd.s32 %s32, 1
    %s34 = scalar_select %p31, %s32, %s33
    %p37 = pneg %p31
    %p38 = scmp.eq.s32.totalorder %s10, 15
    %p39 = por %p37, %p38
    %p40 = scmp.ne.s32.totalorder %s32, %s35
    %p41 = scmp.eq.s32.totalorder %s10, 0
    %p42 = por %p40, %p41
    %p43 = scmp.ne.s32.totalorder %s32, %s35
    %p44 = scmp.eq.s32.totalorder %s15, 15
    %p45 = por %p43, %p44
    %p46 = scmp.ne.s32.totalorder %s35, %s36
    %p47 = scmp.eq.s32.totalorder %s15, 0
    %p48 = por %p46, %p47
    %p49 = scmp.ne.s32.totalorder %s35, %s36
    %p50 = scmp.eq.s32.totalorder %s16, 15
    %p51 = por %p49, %p50
    %p53 = scmp.ne.s32.totalorder %s36, %s52
    %p54 = scmp.eq.s32.totalorder %s16, 0
    %p55 = por %p53, %p54
    %s56 = ssub.s32 %s17, %s29
    %s57 = ssub.s32 %s18, %s25
    %s58 = sor.u32 %s56, %s57
    %p59 = scmp.eq.s32.totalorder %s58, 0
    %s61 = sadd.s32 %s60, 1
    %s62 = scalar_select %p59, %s60, %s61
    %p65 = pneg %p59
    %p66 = scmp.eq.s32.totalorder %s10, 15
    %p67 = por %p65, %p66
    %p68 = scmp.ne.s32.totalorder %s60, %s63
    %p69 = scmp.eq.s32.totalorder %s10, 0
    %p70 = por %p68, %p69
    %p71 = scmp.ne.s32.totalorder %s60, %s63
    %p72 = scmp.eq.s32.totalorder %s15, 15
    %p73 = por %p71, %p72
    %p74 = scmp.ne.s32.totalorder %s63, %s64
    %p75 = scmp.eq.s32.totalorder %s15, 0
    %p76 = por %p74, %p75
    %p77 = scmp.ne.s32.totalorder %s63, %s64
    %p78 = scmp.eq.s32.totalorder %s16, 15
    %p79 = por %p77, %p78
    %p81 = scmp.ne.s32.totalorder %s64, %s80
    %p82 = scmp.eq.s32.totalorder %s16, 0
    %p83 = por %p81, %p82
    %s84 = ssub.s32 %s17, %s29
    %p85 = scmp.eq.s32.totalorder %s84, 0
    %s87 = sadd.s32 %s86, 1
    %s88 = scalar_select %p85, %s86, %s87
    %p91 = pneg %p85
    %p92 = scmp.eq.s32.totalorder %s10, 15
    %p93 = por %p91, %p92
    %p94 = scmp.ne.s32.totalorder %s86, %s89
    %p95 = scmp.eq.s32.totalorder %s10, 0
    %p96 = por %p94, %p95
    %p97 = scmp.ne.s32.totalorder %s86, %s89
    %p98 = scmp.eq.s32.totalorder %s15, 15
    %p99 = por %p97, %p98
    %p100 = scmp.ne.s32.totalorder %s89, %s90
    %p101 = scmp.eq.s32.totalorder %s15, 0
    %p102 = por %p100, %p101
    %p103 = scmp.ne.s32.totalorder %s89, %s90
    %p104 = scmp.eq.s32.totalorder %s16, 15
    %p105 = por %p103, %p104
    %p107 = scmp.ne.s32.totalorder %s90, %s106
    %p108 = scmp.eq.s32.totalorder %s16, 0
    %p109 = por %p107, %p108
    %s110 = ssub.s32 %s17, %s29
    %p111 = scmp.eq.s32.totalorder %s110, 0
    %s113 = sadd.s32 %s112, 1
    %s114 = scalar_select %p111, %s112, %s113
    %p117 = pneg %p111
    %p118 = scmp.eq.s32.totalorder %s10, 15
    %p119 = por %p117, %p118
    %p120 = scmp.ne.s32.totalorder %s112, %s115
    %p121 = scmp.eq.s32.totalorder %s10, 0
    %p122 = por %p120, %p121
    %p123 = scmp.ne.s32.totalorder %s112, %s115
    %p124 = scmp.eq.s32.totalorder %s15, 15
    %p125 = por %p123, %p124
    %p126 = scmp.ne.s32.totalorder %s115, %s116
    %p127 = scmp.eq.s32.totalorder %s15, 0
    %p128 = por %p126, %p127
    %p129 = scmp.ne.s32.totalorder %s115, %s116
    %p130 = scmp.eq.s32.totalorder %s16, 15
    %p131 = por %p129, %p130
    %p133 = scmp.ne.s32.totalorder %s116, %s132
    %p134 = scmp.eq.s32.totalorder %s16, 0
    %p135 = por %p133, %p134
    %s136 = ssub.s32 %s17, %s29
    %p137 = scmp.eq.s32.totalorder %s136, 0
    %s139 = sadd.s32 %s138, 1
    %s140 = scalar_select %p137, %s138, %s139
    %p143 = pneg %p137
    %p144 = scmp.eq.s32.totalorder %s10, 15
    %p145 = por %p143, %p144
    %p146 = scmp.ne.s32.totalorder %s138, %s141
    %p147 = scmp.eq.s32.totalorder %s10, 0
    %p148 = por %p146, %p147
    %p149 = scmp.ne.s32.totalorder %s138, %s141
    %p150 = scmp.eq.s32.totalorder %s15, 15
    %p151 = por %p149, %p150
    %p152 = scmp.ne.s32.totalorder %s141, %s142
    %p153 = scmp.eq.s32.totalorder %s15, 0
    %p154 = por %p152, %p153
    %p155 = scmp.ne.s32.totalorder %s141, %s142
    %p156 = scmp.eq.s32.totalorder %s16, 15
    %p157 = por %p155, %p156
    %p159 = scmp.ne.s32.totalorder %s142, %s158
    %p160 = scmp.eq.s32.totalorder %s16, 0
    %p161 = por %p159, %p160
    %p162 = scmp.le.s32.totalorder 1, %s10
    %p163 = scmp.lt.s32.totalorder %s10, 17
    %p164 = pnand %p162, %p163
    %p165 = pneg %p164
    // Predicated region
    $region9: #{cnn_forward.5} parent=5 // pred_check
      _
    $region10: #{cnn_forward.5} parent=5 // pred_check_branch
      %167 = sbr.rel (%p164) target = $region12
    $region11: #{cnn_forward.5} parent=5 // pred_region
      %s168 = ssub.s32 %s10, 1
    $region12: #{cnn_forward.5} parent=5 // pred_fallthru
      _
    %p169 = scmp.lt.s32.totalorder %s10, 16
    // Predicated region
    $region13: #{cnn_forward.5} parent=5 // pred_check
      %p170 = pneg %p169
    $region14: #{cnn_forward.5} parent=5 // pred_check_branch
      %172 = sbr.rel (%p170) target = $region16
    $region15: #{cnn_forward.5} parent=5 // pred_region
      // Predicated region
      $region17: #{cnn_forward.5} parent=15 // pred_check
        %p173 = pneg %p42
      $region18: #{cnn_forward.5} parent=15 // pred_check_branch
        %175 = sbr.rel (%p173) target = $region20
      $region19: #{cnn_forward.5} parent=15 // pred_region
        %s176 = smul.u32 16, %s18
        %p177 = scmp.lt.s32.totalorder %s176, 127
        %s178 = scalar_select %p177, %s176, 127
        %s179 = scalar_lea.vmem %s0, %s178
        %s180 = smul.u32 16, %s18
      $region20: #{cnn_forward.5} parent=15 // pred_fallthru
        _
      // Predicated region
      $region21: #{cnn_forward.5} parent=15 // pred_check
        %p181 = pneg %p70
      $region22: #{cnn_forward.5} parent=15 // pred_check_branch
        %183 = sbr.rel (%p181) target = $region24
      $region23: #{cnn_forward.5} parent=15 // pred_region
        %s184 = smul.u32 256, %s18
        %p185 = scmp.lt.s32.totalorder %s17, 1
        %s186 = scalar_select %p185, %s17, 1
        %p187 = scmp.lt.s32.totalorder %s184, 2047
        %s188 = scalar_select %p187, %s184, 2047
        %s189 = smul.addr %s186, 2048
        %s190 = sadd.s32 %s188, %s189
        %s191 = smul.addr %s190, 4
        %s192 = scalar_lea.vmem %s1, %s191
        %s193 = smul.u32 256, %s18
      $region24: #{cnn_forward.5} parent=15 // pred_fallthru
        _
      // Predicated region
      $region25: #{cnn_forward.5} parent=15 // pred_check
        %p194 = pneg %p96
      $region26: #{cnn_forward.5} parent=15 // pred_check_branch
        %196 = sbr.rel (%p194) target = $region28
      $region27: #{cnn_forward.5} parent=15 // pred_region
        %p197 = scmp.lt.s32.totalorder %s17, 1
        %s198 = scalar_select %p197, %s17, 1
        %s199 = scalar_lea.vmem %s2, %s198
      $region28: #{cnn_forward.5} parent=15 // pred_fallthru
        _
      // Predicated region
      $region29: #{cnn_forward.5} parent=15 // pred_check
        %p200 = pneg %p122
      $region30: #{cnn_forward.5} parent=15 // pred_check_branch
        %202 = sbr.rel (%p200) target = $region32
      $region31: #{cnn_forward.5} parent=15 // pred_region
        %p203 = scmp.lt.s32.totalorder %s17, 1
        %s204 = scalar_select %p203, %s17, 1
        %s205 = smul.addr %s204, 8
        %s206 = smul.addr %s205, 8
        %s207 = scalar_lea.vmem %s3, %s206
      $region32: #{cnn_forward.5} parent=15 // pred_fallthru
        _
    $region16: #{cnn_forward.5} parent=5 // pred_fallthru
      _
    %p208 = scmp.le.s32.totalorder 1, %s10
    %p209 = scmp.lt.s32.totalorder %s10, 17
    %p210 = pnand %p208, %p209
    %p211 = pneg %p210
    // Predicated region
    $region33: #{cnn_forward.5} parent=5 // pred_check
      _
    $region34: #{cnn_forward.5} parent=5 // pred_check_branch
      %213 = sbr.rel (%p210) target = $region36
    $region35: #{cnn_forward.5} parent=5 // pred_region
      %s214 = ssub.s32 %s10, 1
      %s215 = smul.u32 16, %s20
      %p216 = scmp.lt.s32.totalorder %s215, 127
      %s217 = scalar_select %p216, %s215, 127
      %s218 = scalar_lea.vmem %s0, %s217
      %p219 = pneg %p48
      %p220 = pneg %p45
      %s221 = smul.u32 256, %s20
      %p222 = scmp.lt.s32.totalorder %s19, 1
      %s223 = scalar_select %p222, %s19, 1
      %p224 = scmp.lt.s32.totalorder %s221, 2047
      %s225 = scalar_select %p224, %s221, 2047
      %s226 = smul.addr %s223, 2048
      %s227 = sadd.s32 %s225, %s226
      %s228 = smul.addr %s227, 4
      %s229 = scalar_lea.vmem %s1, %s228
      %p230 = pneg %p76
      %p231 = pneg %p73
      %p232 = scmp.lt.s32.totalorder %s19, 1
      %s233 = scalar_select %p232, %s19, 1
      %s234 = scalar_lea.vmem %s2, %s233
      %p235 = pneg %p102
      %p236 = pneg %p99
      %p237 = scmp.lt.s32.totalorder %s19, 1
      %s238 = scalar_select %p237, %s19, 1
      %s239 = smul.addr %s238, 8
      %s240 = smul.addr %s239, 8
      %s241 = scalar_lea.vmem %s3, %s240
      %p242 = pneg %p128
      %p243 = pneg %p125
      %p244 = pneg %p154
      %p245 = pneg %p151
      %p246 = scmp.lt.s32.totalorder %s19, 1
      %s247 = scalar_select %p246, %s19, 1
      %s248 = smul.addr %s247, 2
      %s249 = scalar_lea.vmem %s4, %s248
      %s250 = smul.u32 16, %s20
      %p251 = scmp.lt.s32.totalorder %s250, 127
      %s252 = scalar_select %p251, %s250, 127
      %s253 = scalar_lea.vmem %s0, %s252
      %s254 = smul.u32 16, %s20
      %s255 = smul.u32 256, %s20
      %p256 = scmp.lt.s32.totalorder %s19, 1
      %s257 = scalar_select %p256, %s19, 1
      %p258 = scmp.lt.s32.totalorder %s255, 2047
      %s259 = scalar_select %p258, %s255, 2047
      %s260 = smul.addr %s257, 2048
      %s261 = sadd.s32 %s259, %s260
      %s262 = smul.addr %s261, 4
      %s263 = scalar_lea.vmem %s1, %s262
      %s264 = smul.u32 256, %s20
      %p265 = scmp.lt.s32.totalorder %s19, 1
      %s266 = scalar_select %p265, %s19, 1
      %s267 = scalar_lea.vmem %s2, %s266
      %p268 = scmp.lt.s32.totalorder %s19, 1
      %s269 = scalar_select %p268, %s19, 1
      %s270 = smul.addr %s269, 8
      %s271 = smul.addr %s270, 8
      %s272 = scalar_lea.vmem %s3, %s271
      %p273 = scmp.lt.s32.totalorder %s19, 1
      %s274 = scalar_select %p273, %s19, 1
      %s275 = smul.addr %s274, 2
      %s276 = scalar_lea.vmem %s4, %s275
      %p278 = scmp.eq.s32.totalorder %s20, 0
      // Predicated region
      $region37: #{cnn_forward.5} parent=35 // pred_check
        %p279 = pneg %p278
      $region38: #{cnn_forward.5} parent=35 // pred_check_branch
        %281 = sbr.rel (%p279) target = $region40
      $region39: #{cnn_forward.5} parent=35 // pred_region
        %vm282 = vcmask 517120
        %283 = vst.msk [vmem:[#allocation2] sm:$0x3] %vm282, 0.0
      $region40: #{cnn_forward.5} parent=35 // pred_fallthru
        _
      %v284 = vld [vmem:[#allocation2] sm:$0x3]
      %v285 = vld [vmem:[%s253] sm:$0xff]
      %v286 = vld [vmem:[%s253 + $0x8] sm:$0xff]
      %v287 = vld [vmem:[%s263] sm:$0xf]
      %v288 = vld [vmem:[%s263 + $0x4] sm:$0xf]
      %v289 = vld [vmem:[%s263 + $0x8] sm:$0xf]
      %v290 = vld [vmem:[%s263 + $0xc] sm:$0xf]
      %v291 = vld [vmem:[%s263 + $0x10] sm:$0xf]
      %v292 = vld [vmem:[%s263 + $0x14] sm:$0xf]
      %v293 = vld [vmem:[%s263 + $0x18] sm:$0xf]
      %v294 = vld [vmem:[%s263 + $0x1c] sm:$0xf]
      %v295 = vld [vmem:[%s263 + $0x20] sm:$0xf]
      %v296 = vld [vmem:[%s263 + $0x24] sm:$0xf]
      %v297 = vld [vmem:[%s263 + $0x28] sm:$0xf]
      %v298 = vld [vmem:[%s263 + $0x2c] sm:$0xf]
      %v299 = vld [vmem:[%s263 + $0x30] sm:$0xf]
      %v300 = vld [vmem:[%s263 + $0x34] sm:$0xf]
      %v301 = vld [vmem:[%s263 + $0x38] sm:$0xf]
      %v302 = vld [vmem:[%s263 + $0x3c] sm:$0xf]
      %v303 = vld [vmem:[%s263 + $0x40] sm:$0xf]
      %v304 = vld [vmem:[%s263 + $0x44] sm:$0xf]
      %v305 = vld [vmem:[%s263 + $0x48] sm:$0xf]
      %v306 = vld [vmem:[%s263 + $0x4c] sm:$0xf]
      %v307 = vld [vmem:[%s263 + $0x50] sm:$0xf]
      %v308 = vld [vmem:[%s263 + $0x54] sm:$0xf]
      %v309 = vld [vmem:[%s263 + $0x58] sm:$0xf]
      %v310 = vld [vmem:[%s263 + $0x5c] sm:$0xf]
      %v311 = vld [vmem:[%s263 + $0x60] sm:$0xf]
      %v312 = vld [vmem:[%s263 + $0x64] sm:$0xf]
      %v313 = vld [vmem:[%s263 + $0x68] sm:$0xf]
      %v314 = vld [vmem:[%s263 + $0x6c] sm:$0xf]
      %v315 = vld [vmem:[%s263 + $0x70] sm:$0xf]
      %v316 = vld [vmem:[%s263 + $0x74] sm:$0xf]
      %v317 = vld [vmem:[%s263 + $0x78] sm:$0xf]
      %v318 = vld [vmem:[%s263 + $0x7c] sm:$0xf]
      %v319 = vld [vmem:[%s263 + $0x80] sm:$0xf]
      %v320 = vld [vmem:[%s263 + $0x84] sm:$0xf]
      %v321 = vld [vmem:[%s263 + $0x88] sm:$0xf]
      %v322 = vld [vmem:[%s263 + $0x8c] sm:$0xf]
      %v323 = vld [vmem:[%s263 + $0x90] sm:$0xf]
      %v324 = vld [vmem:[%s263 + $0x94] sm:$0xf]
      %v325 = vld [vmem:[%s263 + $0x98] sm:$0xf]
      %v326 = vld [vmem:[%s263 + $0x9c] sm:$0xf]
      %v327 = vld [vmem:[%s263 + $0xa0] sm:$0xf]
      %v328 = vld [vmem:[%s263 + $0xa4] sm:$0xf]
      %v329 = vld [vmem:[%s263 + $0xa8] sm:$0xf]
      %v330 = vld [vmem:[%s263 + $0xac] sm:$0xf]
      %v331 = vld [vmem:[%s263 + $0xb0] sm:$0xf]
      %v332 = vld [vmem:[%s263 + $0xb4] sm:$0xf]
      %v333 = vld [vmem:[%s263 + $0xb8] sm:$0xf]
      %v334 = vld [vmem:[%s263 + $0xbc] sm:$0xf]
      %v335 = vld [vmem:[%s263 + $0xc0] sm:$0xf]
      %v336 = vld [vmem:[%s263 + $0xc4] sm:$0xf]
      %v337 = vld [vmem:[%s263 + $0xc8] sm:$0xf]
      %v338 = vld [vmem:[%s263 + $0xcc] sm:$0xf]
      %v339 = vld [vmem:[%s263 + $0xd0] sm:$0xf]
      %v340 = vld [vmem:[%s263 + $0xd4] sm:$0xf]
      %v341 = vld [vmem:[%s263 + $0xd8] sm:$0xf]
      %v342 = vld [vmem:[%s263 + $0xdc] sm:$0xf]
      %v343 = vld [vmem:[%s263 + $0xe0] sm:$0xf]
      %v344 = vld [vmem:[%s263 + $0xe4] sm:$0xf]
      %v345 = vld [vmem:[%s263 + $0xe8] sm:$0xf]
      %v346 = vld [vmem:[%s263 + $0xec] sm:$0xf]
      %v347 = vld [vmem:[%s263 + $0xf0] sm:$0xf]
      %v348 = vld [vmem:[%s263 + $0xf4] sm:$0xf]
      %v349 = vld [vmem:[%s263 + $0xf8] sm:$0xf]
      %v350 = vld [vmem:[%s263 + $0xfc] sm:$0xf]
      %v351 = vld [vmem:[%s263 + $0x100] sm:$0xf]
      %v352 = vld [vmem:[%s263 + $0x104] sm:$0xf]
      %v353 = vld [vmem:[%s263 + $0x108] sm:$0xf]
      %v354 = vld [vmem:[%s263 + $0x10c] sm:$0xf]
      %v355 = vld [vmem:[%s263 + $0x110] sm:$0xf]
      %v356 = vld [vmem:[%s263 + $0x114] sm:$0xf]
      %v357 = vld [vmem:[%s263 + $0x118] sm:$0xf]
      %v358 = vld [vmem:[%s263 + $0x11c] sm:$0xf]
      %v359 = vld [vmem:[%s263 + $0x120] sm:$0xf]
      %v360 = vld [vmem:[%s263 + $0x124] sm:$0xf]
      %v361 = vld [vmem:[%s263 + $0x128] sm:$0xf]
      %v362 = vld [vmem:[%s263 + $0x12c] sm:$0xf]
      %v363 = vld [vmem:[%s263 + $0x130] sm:$0xf]
      %v364 = vld [vmem:[%s263 + $0x134] sm:$0xf]
      %v365 = vld [vmem:[%s263 + $0x138] sm:$0xf]
      %v366 = vld [vmem:[%s263 + $0x13c] sm:$0xf]
      %v367 = vld [vmem:[%s263 + $0x140] sm:$0xf]
      %v368 = vld [vmem:[%s263 + $0x144] sm:$0xf]
      %v369 = vld [vmem:[%s263 + $0x148] sm:$0xf]
      %v370 = vld [vmem:[%s263 + $0x14c] sm:$0xf]
      %v371 = vld [vmem:[%s263 + $0x150] sm:$0xf]
      %v372 = vld [vmem:[%s263 + $0x154] sm:$0xf]
      %v373 = vld [vmem:[%s263 + $0x158] sm:$0xf]
      %v374 = vld [vmem:[%s263 + $0x15c] sm:$0xf]
      %v375 = vld [vmem:[%s263 + $0x160] sm:$0xf]
      %v376 = vld [vmem:[%s263 + $0x164] sm:$0xf]
      %v377 = vld [vmem:[%s263 + $0x168] sm:$0xf]
      %v378 = vld [vmem:[%s263 + $0x16c] sm:$0xf]
      %v379 = vld [vmem:[%s263 + $0x170] sm:$0xf]
      %v380 = vld [vmem:[%s263 + $0x174] sm:$0xf]
      %v381 = vld [vmem:[%s263 + $0x178] sm:$0xf]
      %v382 = vld [vmem:[%s263 + $0x17c] sm:$0xf]
      %v383 = vld [vmem:[%s263 + $0x180] sm:$0xf]
      %v384 = vld [vmem:[%s263 + $0x184] sm:$0xf]
      %v385 = vld [vmem:[%s263 + $0x188] sm:$0xf]
      %v386 = vld [vmem:[%s263 + $0x18c] sm:$0xf]
      %v387 = vld [vmem:[%s263 + $0x190] sm:$0xf]
      %v388 = vld [vmem:[%s263 + $0x194] sm:$0xf]
      %v389 = vld [vmem:[%s263 + $0x198] sm:$0xf]
      %v390 = vld [vmem:[%s263 + $0x19c] sm:$0xf]
      %v391 = vld [vmem:[%s263 + $0x1a0] sm:$0xf]
      %v392 = vld [vmem:[%s263 + $0x1a4] sm:$0xf]
      %v393 = vld [vmem:[%s263 + $0x1a8] sm:$0xf]
      %v394 = vld [vmem:[%s263 + $0x1ac] sm:$0xf]
      %v395 = vld [vmem:[%s263 + $0x1b0] sm:$0xf]
      %v396 = vld [vmem:[%s263 + $0x1b4] sm:$0xf]
      %v397 = vld [vmem:[%s263 + $0x1b8] sm:$0xf]
      %v398 = vld [vmem:[%s263 + $0x1bc] sm:$0xf]
      %v399 = vld [vmem:[%s263 + $0x1c0] sm:$0xf]
      %v400 = vld [vmem:[%s263 + $0x1c4] sm:$0xf]
      %v401 = vld [vmem:[%s263 + $0x1c8] sm:$0xf]
      %v402 = vld [vmem:[%s263 + $0x1cc] sm:$0xf]
      %v403 = vld [vmem:[%s263 + $0x1d0] sm:$0xf]
      %v404 = vld [vmem:[%s263 + $0x1d4] sm:$0xf]
      %v405 = vld [vmem:[%s263 + $0x1d8] sm:$0xf]
      %v406 = vld [vmem:[%s263 + $0x1dc] sm:$0xf]
      %v407 = vld [vmem:[%s263 + $0x1e0] sm:$0xf]
      %v408 = vld [vmem:[%s263 + $0x1e4] sm:$0xf]
      %v409 = vld [vmem:[%s263 + $0x1e8] sm:$0xf]
      %v410 = vld [vmem:[%s263 + $0x1ec] sm:$0xf]
      %v411 = vld [vmem:[%s263 + $0x1f0] sm:$0xf]
      %v412 = vld [vmem:[%s263 + $0x1f4] sm:$0xf]
      %v413 = vld [vmem:[%s263 + $0x1f8] sm:$0xf]
      %v414 = vld [vmem:[%s263 + $0x1fc] sm:$0xf]
      %v415 = vld [vmem:[%s263 + $0x200] sm:$0xf]
      %v416 = vld [vmem:[%s263 + $0x204] sm:$0xf]
      %v417 = vld [vmem:[%s263 + $0x208] sm:$0xf]
      %v418 = vld [vmem:[%s263 + $0x20c] sm:$0xf]
      %v419 = vld [vmem:[%s263 + $0x210] sm:$0xf]
      %v420 = vld [vmem:[%s263 + $0x214] sm:$0xf]
      %v421 = vld [vmem:[%s263 + $0x218] sm:$0xf]
      %v422 = vld [vmem:[%s263 + $0x21c] sm:$0xf]
      %v423 = vld [vmem:[%s263 + $0x220] sm:$0xf]
      %v424 = vld [vmem:[%s263 + $0x224] sm:$0xf]
      %v425 = vld [vmem:[%s263 + $0x228] sm:$0xf]
      %v426 = vld [vmem:[%s263 + $0x22c] sm:$0xf]
      %v427 = vld [vmem:[%s263 + $0x230] sm:$0xf]
      %v428 = vld [vmem:[%s263 + $0x234] sm:$0xf]
      %v429 = vld [vmem:[%s263 + $0x238] sm:$0xf]
      %v430 = vld [vmem:[%s263 + $0x23c] sm:$0xf]
      %v431 = vld [vmem:[%s263 + $0x240] sm:$0xf]
      %v432 = vld [vmem:[%s263 + $0x244] sm:$0xf]
      %v433 = vld [vmem:[%s263 + $0x248] sm:$0xf]
      %v434 = vld [vmem:[%s263 + $0x24c] sm:$0xf]
      %v435 = vld [vmem:[%s263 + $0x250] sm:$0xf]
      %v436 = vld [vmem:[%s263 + $0x254] sm:$0xf]
      %v437 = vld [vmem:[%s263 + $0x258] sm:$0xf]
      %v438 = vld [vmem:[%s263 + $0x25c] sm:$0xf]
      %v439 = vld [vmem:[%s263 + $0x260] sm:$0xf]
      %v440 = vld [vmem:[%s263 + $0x264] sm:$0xf]
      %v441 = vld [vmem:[%s263 + $0x268] sm:$0xf]
      %v442 = vld [vmem:[%s263 + $0x26c] sm:$0xf]
      %v443 = vld [vmem:[%s263 + $0x270] sm:$0xf]
      %v444 = vld [vmem:[%s263 + $0x274] sm:$0xf]
      %v445 = vld [vmem:[%s263 + $0x278] sm:$0xf]
      %v446 = vld [vmem:[%s263 + $0x27c] sm:$0xf]
      %v447 = vld [vmem:[%s263 + $0x280] sm:$0xf]
      %v448 = vld [vmem:[%s263 + $0x284] sm:$0xf]
      %v449 = vld [vmem:[%s263 + $0x288] sm:$0xf]
      %v450 = vld [vmem:[%s263 + $0x28c] sm:$0xf]
      %v451 = vld [vmem:[%s263 + $0x290] sm:$0xf]
      %v452 = vld [vmem:[%s263 + $0x294] sm:$0xf]
      %v453 = vld [vmem:[%s263 + $0x298] sm:$0xf]
      %v454 = vld [vmem:[%s263 + $0x29c] sm:$0xf]
      %v455 = vld [vmem:[%s263 + $0x2a0] sm:$0xf]
      %v456 = vld [vmem:[%s263 + $0x2a4] sm:$0xf]
      %v457 = vld [vmem:[%s263 + $0x2a8] sm:$0xf]
      %v458 = vld [vmem:[%s263 + $0x2ac] sm:$0xf]
      %v459 = vld [vmem:[%s263 + $0x2b0] sm:$0xf]
      %v460 = vld [vmem:[%s263 + $0x2b4] sm:$0xf]
      %v461 = vld [vmem:[%s263 + $0x2b8] sm:$0xf]
      %v462 = vld [vmem:[%s263 + $0x2bc] sm:$0xf]
      %v463 = vld [vmem:[%s263 + $0x2c0] sm:$0xf]
      %v464 = vld [vmem:[%s263 + $0x2c4] sm:$0xf]
      %v465 = vld [vmem:[%s263 + $0x2c8] sm:$0xf]
      %v466 = vld [vmem:[%s263 + $0x2cc] sm:$0xf]
      %v467 = vld [vmem:[%s263 + $0x2d0] sm:$0xf]
      %v468 = vld [vmem:[%s263 + $0x2d4] sm:$0xf]
      %v469 = vld [vmem:[%s263 + $0x2d8] sm:$0xf]
      %v470 = vld [vmem:[%s263 + $0x2dc] sm:$0xf]
      %v471 = vld [vmem:[%s263 + $0x2e0] sm:$0xf]
      %v472 = vld [vmem:[%s263 + $0x2e4] sm:$0xf]
      %v473 = vld [vmem:[%s263 + $0x2e8] sm:$0xf]
      %v474 = vld [vmem:[%s263 + $0x2ec] sm:$0xf]
      %v475 = vld [vmem:[%s263 + $0x2f0] sm:$0xf]
      %v476 = vld [vmem:[%s263 + $0x2f4] sm:$0xf]
      %v477 = vld [vmem:[%s263 + $0x2f8] sm:$0xf]
      %v478 = vld [vmem:[%s263 + $0x2fc] sm:$0xf]
      %v479 = vld [vmem:[%s263 + $0x300] sm:$0xf]
      %v480 = vld [vmem:[%s263 + $0x304] sm:$0xf]
      %v481 = vld [vmem:[%s263 + $0x308] sm:$0xf]
      %v482 = vld [vmem:[%s263 + $0x30c] sm:$0xf]
      %v483 = vld [vmem:[%s263 + $0x310] sm:$0xf]
      %v484 = vld [vmem:[%s263 + $0x314] sm:$0xf]
      %v485 = vld [vmem:[%s263 + $0x318] sm:$0xf]
      %v486 = vld [vmem:[%s263 + $0x31c] sm:$0xf]
      %v487 = vld [vmem:[%s263 + $0x320] sm:$0xf]
      %v488 = vld [vmem:[%s263 + $0x324] sm:$0xf]
      %v489 = vld [vmem:[%s263 + $0x328] sm:$0xf]
      %v490 = vld [vmem:[%s263 + $0x32c] sm:$0xf]
      %v491 = vld [vmem:[%s263 + $0x330] sm:$0xf]
      %v492 = vld [vmem:[%s263 + $0x334] sm:$0xf]
      %v493 = vld [vmem:[%s263 + $0x338] sm:$0xf]
      %v494 = vld [vmem:[%s263 + $0x33c] sm:$0xf]
      %v495 = vld [vmem:[%s263 + $0x340] sm:$0xf]
      %v496 = vld [vmem:[%s263 + $0x344] sm:$0xf]
      %v497 = vld [vmem:[%s263 + $0x348] sm:$0xf]
      %v498 = vld [vmem:[%s263 + $0x34c] sm:$0xf]
      %v499 = vld [vmem:[%s263 + $0x350] sm:$0xf]
      %v500 = vld [vmem:[%s263 + $0x354] sm:$0xf]
      %v501 = vld [vmem:[%s263 + $0x358] sm:$0xf]
      %v502 = vld [vmem:[%s263 + $0x35c] sm:$0xf]
      %v503 = vld [vmem:[%s263 + $0x360] sm:$0xf]
      %v504 = vld [vmem:[%s263 + $0x364] sm:$0xf]
      %v505 = vld [vmem:[%s263 + $0x368] sm:$0xf]
      %v506 = vld [vmem:[%s263 + $0x36c] sm:$0xf]
      %v507 = vld [vmem:[%s263 + $0x370] sm:$0xf]
      %v508 = vld [vmem:[%s263 + $0x374] sm:$0xf]
      %v509 = vld [vmem:[%s263 + $0x378] sm:$0xf]
      %v510 = vld [vmem:[%s263 + $0x37c] sm:$0xf]
      %v511 = vld [vmem:[%s263 + $0x380] sm:$0xf]
      %v512 = vld [vmem:[%s263 + $0x384] sm:$0xf]
      %v513 = vld [vmem:[%s263 + $0x388] sm:$0xf]
      %v514 = vld [vmem:[%s263 + $0x38c] sm:$0xf]
      %v515 = vld [vmem:[%s263 + $0x390] sm:$0xf]
      %v516 = vld [vmem:[%s263 + $0x394] sm:$0xf]
      %v517 = vld [vmem:[%s263 + $0x398] sm:$0xf]
      %v518 = vld [vmem:[%s263 + $0x39c] sm:$0xf]
      %v519 = vld [vmem:[%s263 + $0x3a0] sm:$0xf]
      %v520 = vld [vmem:[%s263 + $0x3a4] sm:$0xf]
      %v521 = vld [vmem:[%s263 + $0x3a8] sm:$0xf]
      %v522 = vld [vmem:[%s263 + $0x3ac] sm:$0xf]
      %v523 = vld [vmem:[%s263 + $0x3b0] sm:$0xf]
      %v524 = vld [vmem:[%s263 + $0x3b4] sm:$0xf]
      %v525 = vld [vmem:[%s263 + $0x3b8] sm:$0xf]
      %v526 = vld [vmem:[%s263 + $0x3bc] sm:$0xf]
      %v527 = vld [vmem:[%s263 + $0x3c0] sm:$0xf]
      %v528 = vld [vmem:[%s263 + $0x3c4] sm:$0xf]
      %v529 = vld [vmem:[%s263 + $0x3c8] sm:$0xf]
      %v530 = vld [vmem:[%s263 + $0x3cc] sm:$0xf]
      %v531 = vld [vmem:[%s263 + $0x3d0] sm:$0xf]
      %v532 = vld [vmem:[%s263 + $0x3d4] sm:$0xf]
      %v533 = vld [vmem:[%s263 + $0x3d8] sm:$0xf]
      %v534 = vld [vmem:[%s263 + $0x3dc] sm:$0xf]
      %v535 = vld [vmem:[%s263 + $0x3e0] sm:$0xf]
      %v536 = vld [vmem:[%s263 + $0x3e4] sm:$0xf]
      %v537 = vld [vmem:[%s263 + $0x3e8] sm:$0xf]
      %v538 = vld [vmem:[%s263 + $0x3ec] sm:$0xf]
      %v539 = vld [vmem:[%s263 + $0x3f0] sm:$0xf]
      %v540 = vld [vmem:[%s263 + $0x3f4] sm:$0xf]
      %v541 = vld [vmem:[%s263 + $0x3f8] sm:$0xf]
      %v542 = vld [vmem:[%s263 + $0x3fc] sm:$0xf]
      %v545 = vcombine.high %v285, %v285
      %v547 = vunpack.c.l.s4 1966171168
      %v548 = vunpack.c.0.s8 %v547
      %v549 = vlaneseq
      %v550 = vshrl.u32 %v549, 7
      %v551 = vsub.s32 %v548, %v550
      %v552 = vrot.slane %v285, %v551
      %v554 = vunpack.c.l.s4 1966171168
      %v555 = vunpack.c.0.s8 %v554
      %v556 = vlaneseq
      %v557 = vshrl.u32 %v556, 7
      %v558 = vsub.s32 %v555, %v557
      %v559 = vrot.slane %v545, %v558
      %v560 = vcombine.high %v552, %v552
      %v561 = vcombine.high %v559, %v559
      %v563 = vunpack.c.l.s4 1966171168
      %v564 = vunpack.c.0.s8 %v563
      %v565 = vlaneseq
      %v566 = vshrl.u32 %v565, 7
      %v567 = vsub.s32 %v564, %v566
      %v568 = vrot.slane %v552, %v567
      %v570 = vunpack.c.l.s4 1966171168
      %v571 = vunpack.c.0.s8 %v570
      %v572 = vlaneseq
      %v573 = vshrl.u32 %v572, 7
      %v574 = vsub.s32 %v571, %v573
      %v575 = vrot.slane %v559, %v574
      %v577 = vunpack.c.l.s4 1966171168
      %v578 = vunpack.c.0.s8 %v577
      %v579 = vlaneseq
      %v580 = vshrl.u32 %v579, 7
      %v581 = vsub.s32 %v578, %v580
      %v582 = vrot.slane %v560, %v581
      %v584 = vunpack.c.l.s4 1966171168
      %v585 = vunpack.c.0.s8 %v584
      %v586 = vlaneseq
      %v587 = vshrl.u32 %v586, 7
      %v588 = vsub.s32 %v585, %v587
      %v589 = vrot.slane %v561, %v588
      %v590 = vcombine.high %v568, %v568
      %v591 = vcombine.high %v575, %v575
      %v592 = vcombine.high %v582, %v582
      %v593 = vcombine.high %v589, %v589
      %v594 = vcombine.high %v286, %v286
      %v596 = vunpack.c.l.s4 1966171168
      %v597 = vunpack.c.0.s8 %v596
      %v598 = vlaneseq
      %v599 = vshrl.u32 %v598, 7
      %v600 = vsub.s32 %v597, %v599
      %v601 = vrot.slane %v286, %v600
      %v603 = vunpack.c.l.s4 1966171168
      %v604 = vunpack.c.0.s8 %v603
      %v605 = vlaneseq
      %v606 = vshrl.u32 %v605, 7
      %v607 = vsub.s32 %v604, %v606
      %v608 = vrot.slane %v594, %v607
      %v609 = vcombine.high %v601, %v601
      %v610 = vcombine.high %v608, %v608
      %v612 = vunpack.c.l.s4 1966171168
      %v613 = vunpack.c.0.s8 %v612
      %v614 = vlaneseq
      %v615 = vshrl.u32 %v614, 7
      %v616 = vsub.s32 %v613, %v615
      %v617 = vrot.slane %v601, %v616
      %v619 = vunpack.c.l.s4 1966171168
      %v620 = vunpack.c.0.s8 %v619
      %v621 = vlaneseq
      %v622 = vshrl.u32 %v621, 7
      %v623 = vsub.s32 %v620, %v622
      %v624 = vrot.slane %v608, %v623
      %v626 = vunpack.c.l.s4 1966171168
      %v627 = vunpack.c.0.s8 %v626
      %v628 = vlaneseq
      %v629 = vshrl.u32 %v628, 7
      %v630 = vsub.s32 %v627, %v629
      %v631 = vrot.slane %v609, %v630
      %v633 = vunpack.c.l.s4 1966171168
      %v634 = vunpack.c.0.s8 %v633
      %v635 = vlaneseq
      %v636 = vshrl.u32 %v635, 7
      %v637 = vsub.s32 %v634, %v636
      %v638 = vrot.slane %v610, %v637
      %v639 = vcombine.high %v617, %v617
      %v640 = vcombine.high %v624, %v624
      %v641 = vcombine.high %v631, %v631
      %v642 = vcombine.high %v638, %v638
      %v915 = vunpack.c.l.b16 %v287
      %v916 = vunpack.c.l.b16 %v288
      %v917 = vunpack.c.l.b16 %v289
      %v918 = vunpack.c.l.b16 %v290
      %v919 = vunpack.c.l.b16 %v291
      %v920 = vunpack.c.l.b16 %v292
      %v921 = vunpack.c.l.b16 %v293
      %v922 = vunpack.c.l.b16 %v294
      %v923 = vunpack.c.l.b16 %v295
      %v924 = vunpack.c.l.b16 %v296
      %v925 = vunpack.c.l.b16 %v297
      %v926 = vunpack.c.l.b16 %v298
      %v927 = vunpack.c.l.b16 %v299
      %v928 = vunpack.c.l.b16 %v300
      %v929 = vunpack.c.l.b16 %v301
      %v930 = vunpack.c.l.b16 %v302
      %v931 = vunpack.c.l.b16 %v303
      %v932 = vunpack.c.l.b16 %v304
      %v933 = vunpack.c.l.b16 %v305
      %v934 = vunpack.c.l.b16 %v306
      %v935 = vunpack.c.l.b16 %v307
      %v936 = vunpack.c.l.b16 %v308
      %v937 = vunpack.c.l.b16 %v309
      %v938 = vunpack.c.l.b16 %v310
      %v939 = vunpack.c.l.b16 %v311
      %v940 = vunpack.c.l.b16 %v312
      %v941 = vunpack.c.l.b16 %v313
      %v942 = vunpack.c.l.b16 %v314
      %v943 = vunpack.c.l.b16 %v315
      %v944 = vunpack.c.l.b16 %v316
      %v945 = vunpack.c.l.b16 %v317
      %v946 = vunpack.c.l.b16 %v318
      %v947 = vunpack.c.l.b16 %v319
      %v948 = vunpack.c.l.b16 %v320
      %v949 = vunpack.c.l.b16 %v321
      %v950 = vunpack.c.l.b16 %v322
      %v951 = vunpack.c.l.b16 %v323
      %v952 = vunpack.c.l.b16 %v324
      %v953 = vunpack.c.l.b16 %v325
      %v954 = vunpack.c.l.b16 %v326
      %v955 = vunpack.c.l.b16 %v327
      %v956 = vunpack.c.l.b16 %v328
      %v957 = vunpack.c.l.b16 %v329
      %v958 = vunpack.c.l.b16 %v330
      %v959 = vunpack.c.l.b16 %v331
      %v960 = vunpack.c.l.b16 %v332
      %v961 = vunpack.c.l.b16 %v333
      %v962 = vunpack.c.l.b16 %v334
      %v963 = vunpack.c.l.b16 %v335
      %v964 = vunpack.c.l.b16 %v336
      %v965 = vunpack.c.l.b16 %v337
      %v966 = vunpack.c.l.b16 %v338
      %v967 = vunpack.c.l.b16 %v339
      %v968 = vunpack.c.l.b16 %v340
      %v969 = vunpack.c.l.b16 %v341
      %v970 = vunpack.c.l.b16 %v342
      %v971 = vunpack.c.l.b16 %v343
      %v972 = vunpack.c.l.b16 %v344
      %v973 = vunpack.c.l.b16 %v345
      %v974 = vunpack.c.l.b16 %v346
      %v975 = vunpack.c.l.b16 %v347
      %v976 = vunpack.c.l.b16 %v348
      %v977 = vunpack.c.l.b16 %v349
      %v978 = vunpack.c.l.b16 %v350
      %v979 = vunpack.c.l.b16 %v351
      %v980 = vunpack.c.l.b16 %v352
      %v981 = vunpack.c.l.b16 %v353
      %v982 = vunpack.c.l.b16 %v354
      %v983 = vunpack.c.l.b16 %v355
      %v984 = vunpack.c.l.b16 %v356
      %v985 = vunpack.c.l.b16 %v357
      %v986 = vunpack.c.l.b16 %v358
      %v987 = vunpack.c.l.b16 %v359
      %v988 = vunpack.c.l.b16 %v360
      %v989 = vunpack.c.l.b16 %v361
      %v990 = vunpack.c.l.b16 %v362
      %v991 = vunpack.c.l.b16 %v363
      %v992 = vunpack.c.l.b16 %v364
      %v993 = vunpack.c.l.b16 %v365
      %v994 = vunpack.c.l.b16 %v366
      %v995 = vunpack.c.l.b16 %v367
      %v996 = vunpack.c.l.b16 %v368
      %v997 = vunpack.c.l.b16 %v369
      %v998 = vunpack.c.l.b16 %v370
      %v999 = vunpack.c.l.b16 %v371
      %v1000 = vunpack.c.l.b16 %v372
      %v1001 = vunpack.c.l.b16 %v373
      %v1002 = vunpack.c.l.b16 %v374
      %v1003 = vunpack.c.l.b16 %v375
      %v1004 = vunpack.c.l.b16 %v376
      %v1005 = vunpack.c.l.b16 %v377
      %v1006 = vunpack.c.l.b16 %v378
      %v1007 = vunpack.c.l.b16 %v379
      %v1008 = vunpack.c.l.b16 %v380
      %v1009 = vunpack.c.l.b16 %v381
      %v1010 = vunpack.c.l.b16 %v382
      %v1011 = vunpack.c.l.b16 %v383
      %v1012 = vunpack.c.l.b16 %v384
      %v1013 = vunpack.c.l.b16 %v385
      %v1014 = vunpack.c.l.b16 %v386
      %v1015 = vunpack.c.l.b16 %v387
      %v1016 = vunpack.c.l.b16 %v388
      %v1017 = vunpack.c.l.b16 %v389
      %v1018 = vunpack.c.l.b16 %v390
      %v1019 = vunpack.c.l.b16 %v391
      %v1020 = vunpack.c.l.b16 %v392
      %v1021 = vunpack.c.l.b16 %v393
      %v1022 = vunpack.c.l.b16 %v394
      %v1023 = vunpack.c.l.b16 %v395
      %v1024 = vunpack.c.l.b16 %v396
      %v1025 = vunpack.c.l.b16 %v397
      %v1026 = vunpack.c.l.b16 %v398
      %v1027 = vunpack.c.l.b16 %v399
      %v1028 = vunpack.c.l.b16 %v400
      %v1029 = vunpack.c.l.b16 %v401
      %v1030 = vunpack.c.l.b16 %v402
      %v1031 = vunpack.c.l.b16 %v403
      %v1032 = vunpack.c.l.b16 %v404
      %v1033 = vunpack.c.l.b16 %v405
      %v1034 = vunpack.c.l.b16 %v406
      %v1035 = vunpack.c.l.b16 %v407
      %v1036 = vunpack.c.l.b16 %v408
      %v1037 = vunpack.c.l.b16 %v409
      %v1038 = vunpack.c.l.b16 %v410
      %v1039 = vunpack.c.l.b16 %v411
      %v1040 = vunpack.c.l.b16 %v412
      %v1041 = vunpack.c.l.b16 %v413
      %v1042 = vunpack.c.l.b16 %v414
      %v1043 = vunpack.c.l.b16 %v415
      %v1044 = vunpack.c.l.b16 %v416
      %v1045 = vunpack.c.l.b16 %v417
      %v1046 = vunpack.c.l.b16 %v418
      %v1047 = vunpack.c.l.b16 %v419
      %v1048 = vunpack.c.l.b16 %v420
      %v1049 = vunpack.c.l.b16 %v421
      %v1050 = vunpack.c.l.b16 %v422
      %v1051 = vunpack.c.l.b16 %v423
      %v1052 = vunpack.c.l.b16 %v424
      %v1053 = vunpack.c.l.b16 %v425
      %v1054 = vunpack.c.l.b16 %v426
      %v1055 = vunpack.c.l.b16 %v427
      %v1056 = vunpack.c.l.b16 %v428
      %v1057 = vunpack.c.l.b16 %v429
      %v1058 = vunpack.c.l.b16 %v430
      %v1059 = vunpack.c.l.b16 %v431
      %v1060 = vunpack.c.l.b16 %v432
      %v1061 = vunpack.c.l.b16 %v433
      %v1062 = vunpack.c.l.b16 %v434
      %v1063 = vunpack.c.l.b16 %v435
      %v1064 = vunpack.c.l.b16 %v436
      %v1065 = vunpack.c.l.b16 %v437
      %v1066 = vunpack.c.l.b16 %v438
      %v1067 = vunpack.c.l.b16 %v439
      %v1068 = vunpack.c.l.b16 %v440
      %v1069 = vunpack.c.l.b16 %v441
      %v1070 = vunpack.c.l.b16 %v442
      %v1071 = vunpack.c.l.b16 %v443
      %v1072 = vunpack.c.l.b16 %v444
      %v1073 = vunpack.c.l.b16 %v445
      %v1074 = vunpack.c.l.b16 %v446
      %v1075 = vunpack.c.l.b16 %v447
      %v1076 = vunpack.c.l.b16 %v448
      %v1077 = vunpack.c.l.b16 %v449
      %v1078 = vunpack.c.l.b16 %v450
      %v1079 = vunpack.c.l.b16 %v451
      %v1080 = vunpack.c.l.b16 %v452
      %v1081 = vunpack.c.l.b16 %v453
      %v1082 = vunpack.c.l.b16 %v454
      %v1083 = vunpack.c.l.b16 %v455
      %v1084 = vunpack.c.l.b16 %v456
      %v1085 = vunpack.c.l.b16 %v457
      %v1086 = vunpack.c.l.b16 %v458
      %v1087 = vunpack.c.l.b16 %v459
      %v1088 = vunpack.c.l.b16 %v460
      %v1089 = vunpack.c.l.b16 %v461
      %v1090 = vunpack.c.l.b16 %v462
      %v1091 = vunpack.c.l.b16 %v463
      %v1092 = vunpack.c.l.b16 %v464
      %v1093 = vunpack.c.l.b16 %v465
      %v1094 = vunpack.c.l.b16 %v466
      %v1095 = vunpack.c.l.b16 %v467
      %v1096 = vunpack.c.l.b16 %v468
      %v1097 = vunpack.c.l.b16 %v469
      %v1098 = vunpack.c.l.b16 %v470
      %v1099 = vunpack.c.l.b16 %v471
      %v1100 = vunpack.c.l.b16 %v472
      %v1101 = vunpack.c.l.b16 %v473
      %v1102 = vunpack.c.l.b16 %v474
      %v1103 = vunpack.c.l.b16 %v475
      %v1104 = vunpack.c.l.b16 %v476
      %v1105 = vunpack.c.l.b16 %v477
      %v1106 = vunpack.c.l.b16 %v478
      %v1107 = vunpack.c.l.b16 %v479
      %v1108 = vunpack.c.l.b16 %v480
      %v1109 = vunpack.c.l.b16 %v481
      %v1110 = vunpack.c.l.b16 %v482
      %v1111 = vunpack.c.l.b16 %v483
      %v1112 = vunpack.c.l.b16 %v484
      %v1113 = vunpack.c.l.b16 %v485
      %v1114 = vunpack.c.l.b16 %v486
      %v1115 = vunpack.c.l.b16 %v487
      %v1116 = vunpack.c.l.b16 %v488
      %v1117 = vunpack.c.l.b16 %v489
      %v1118 = vunpack.c.l.b16 %v490
      %v1119 = vunpack.c.l.b16 %v491
      %v1120 = vunpack.c.l.b16 %v492
      %v1121 = vunpack.c.l.b16 %v493
      %v1122 = vunpack.c.l.b16 %v494
      %v1123 = vunpack.c.l.b16 %v495
      %v1124 = vunpack.c.l.b16 %v496
      %v1125 = vunpack.c.l.b16 %v497
      %v1126 = vunpack.c.l.b16 %v498
      %v1127 = vunpack.c.l.b16 %v499
      %v1128 = vunpack.c.l.b16 %v500
      %v1129 = vunpack.c.l.b16 %v501
      %v1130 = vunpack.c.l.b16 %v502
      %v1131 = vunpack.c.l.b16 %v503
      %v1132 = vunpack.c.l.b16 %v504
      %v1133 = vunpack.c.l.b16 %v505
      %v1134 = vunpack.c.l.b16 %v506
      %v1135 = vunpack.c.l.b16 %v507
      %v1136 = vunpack.c.l.b16 %v508
      %v1137 = vunpack.c.l.b16 %v509
      %v1138 = vunpack.c.l.b16 %v510
      %v1139 = vunpack.c.l.b16 %v511
      %v1140 = vunpack.c.l.b16 %v512
      %v1141 = vunpack.c.l.b16 %v513
      %v1142 = vunpack.c.l.b16 %v514
      %v1143 = vunpack.c.l.b16 %v515
      %v1144 = vunpack.c.l.b16 %v516
      %v1145 = vunpack.c.l.b16 %v517
      %v1146 = vunpack.c.l.b16 %v518
      %v1147 = vunpack.c.l.b16 %v519
      %v1148 = vunpack.c.l.b16 %v520
      %v1149 = vunpack.c.l.b16 %v521
      %v1150 = vunpack.c.l.b16 %v522
      %v1151 = vunpack.c.l.b16 %v523
      %v1152 = vunpack.c.l.b16 %v524
      %v1153 = vunpack.c.l.b16 %v525
      %v1154 = vunpack.c.l.b16 %v526
      %v1155 = vunpack.c.l.b16 %v527
      %v1156 = vunpack.c.l.b16 %v528
      %v1157 = vunpack.c.l.b16 %v529
      %v1158 = vunpack.c.l.b16 %v530
      %v1159 = vunpack.c.l.b16 %v531
      %v1160 = vunpack.c.l.b16 %v532
      %v1161 = vunpack.c.l.b16 %v533
      %v1162 = vunpack.c.l.b16 %v534
      %v1163 = vunpack.c.l.b16 %v535
      %v1164 = vunpack.c.l.b16 %v536
      %v1165 = vunpack.c.l.b16 %v537
      %v1166 = vunpack.c.l.b16 %v538
      %v1167 = vunpack.c.l.b16 %v539
      %v1168 = vunpack.c.l.b16 %v540
      %v1169 = vunpack.c.l.b16 %v541
      %v1170 = vunpack.c.l.b16 %v542
      %v1171 = vpack.c.b16 %v916, %v915
      %v1172 = vpack.c.b16 %v918, %v917
      %v1173 = vpack.c.b16 %v920, %v919
      %v1174 = vpack.c.b16 %v922, %v921
      %v1175 = vpack.c.b16 %v924, %v923
      %v1176 = vpack.c.b16 %v926, %v925
      %v1177 = vpack.c.b16 %v928, %v927
      %v1178 = vpack.c.b16 %v930, %v929
      %v1179 = vpack.c.b16 %v932, %v931
      %v1180 = vpack.c.b16 %v934, %v933
      %v1181 = vpack.c.b16 %v936, %v935
      %v1182 = vpack.c.b16 %v938, %v937
      %v1183 = vpack.c.b16 %v940, %v939
      %v1184 = vpack.c.b16 %v942, %v941
      %v1185 = vpack.c.b16 %v944, %v943
      %v1186 = vpack.c.b16 %v946, %v945
      %v1187 = vpack.c.b16 %v948, %v947
      %v1188 = vpack.c.b16 %v950, %v949
      %v1189 = vpack.c.b16 %v952, %v951
      %v1190 = vpack.c.b16 %v954, %v953
      %v1191 = vpack.c.b16 %v956, %v955
      %v1192 = vpack.c.b16 %v958, %v957
      %v1193 = vpack.c.b16 %v960, %v959
      %v1194 = vpack.c.b16 %v962, %v961
      %v1195 = vpack.c.b16 %v964, %v963
      %v1196 = vpack.c.b16 %v966, %v965
      %v1197 = vpack.c.b16 %v968, %v967
      %v1198 = vpack.c.b16 %v970, %v969
      %v1199 = vpack.c.b16 %v972, %v971
      %v1200 = vpack.c.b16 %v974, %v973
      %v1201 = vpack.c.b16 %v976, %v975
      %v1202 = vpack.c.b16 %v978, %v977
      %v1203 = vpack.c.b16 %v980, %v979
      %v1204 = vpack.c.b16 %v982, %v981
      %v1205 = vpack.c.b16 %v984, %v983
      %v1206 = vpack.c.b16 %v986, %v985
      %v1207 = vpack.c.b16 %v988, %v987
      %v1208 = vpack.c.b16 %v990, %v989
      %v1209 = vpack.c.b16 %v992, %v991
      %v1210 = vpack.c.b16 %v994, %v993
      %v1211 = vpack.c.b16 %v996, %v995
      %v1212 = vpack.c.b16 %v998, %v997
      %v1213 = vpack.c.b16 %v1000, %v999
      %v1214 = vpack.c.b16 %v1002, %v1001
      %v1215 = vpack.c.b16 %v1004, %v1003
      %v1216 = vpack.c.b16 %v1006, %v1005
      %v1217 = vpack.c.b16 %v1008, %v1007
      %v1218 = vpack.c.b16 %v1010, %v1009
      %v1219 = vpack.c.b16 %v1012, %v1011
      %v1220 = vpack.c.b16 %v1014, %v1013
      %v1221 = vpack.c.b16 %v1016, %v1015
      %v1222 = vpack.c.b16 %v1018, %v1017
      %v1223 = vpack.c.b16 %v1020, %v1019
      %v1224 = vpack.c.b16 %v1022, %v1021
      %v1225 = vpack.c.b16 %v1024, %v1023
      %v1226 = vpack.c.b16 %v1026, %v1025
      %v1227 = vpack.c.b16 %v1028, %v1027
      %v1228 = vpack.c.b16 %v1030, %v1029
      %v1229 = vpack.c.b16 %v1032, %v1031
      %v1230 = vpack.c.b16 %v1034, %v1033
      %v1231 = vpack.c.b16 %v1036, %v1035
      %v1232 = vpack.c.b16 %v1038, %v1037
      %v1233 = vpack.c.b16 %v1040, %v1039
      %v1234 = vpack.c.b16 %v1042, %v1041
      %v1235 = vpack.c.b16 %v1044, %v1043
      %v1236 = vpack.c.b16 %v1046, %v1045
      %v1237 = vpack.c.b16 %v1048, %v1047
      %v1238 = vpack.c.b16 %v1050, %v1049
      %v1239 = vpack.c.b16 %v1052, %v1051
      %v1240 = vpack.c.b16 %v1054, %v1053
      %v1241 = vpack.c.b16 %v1056, %v1055
      %v1242 = vpack.c.b16 %v1058, %v1057
      %v1243 = vpack.c.b16 %v1060, %v1059
      %v1244 = vpack.c.b16 %v1062, %v1061
      %v1245 = vpack.c.b16 %v1064, %v1063
      %v1246 = vpack.c.b16 %v1066, %v1065
      %v1247 = vpack.c.b16 %v1068, %v1067
      %v1248 = vpack.c.b16 %v1070, %v1069
      %v1249 = vpack.c.b16 %v1072, %v1071
      %v1250 = vpack.c.b16 %v1074, %v1073
      %v1251 = vpack.c.b16 %v1076, %v1075
      %v1252 = vpack.c.b16 %v1078, %v1077
      %v1253 = vpack.c.b16 %v1080, %v1079
      %v1254 = vpack.c.b16 %v1082, %v1081
      %v1255 = vpack.c.b16 %v1084, %v1083
      %v1256 = vpack.c.b16 %v1086, %v1085
      %v1257 = vpack.c.b16 %v1088, %v1087
      %v1258 = vpack.c.b16 %v1090, %v1089
      %v1259 = vpack.c.b16 %v1092, %v1091
      %v1260 = vpack.c.b16 %v1094, %v1093
      %v1261 = vpack.c.b16 %v1096, %v1095
      %v1262 = vpack.c.b16 %v1098, %v1097
      %v1263 = vpack.c.b16 %v1100, %v1099
      %v1264 = vpack.c.b16 %v1102, %v1101
      %v1265 = vpack.c.b16 %v1104, %v1103
      %v1266 = vpack.c.b16 %v1106, %v1105
      %v1267 = vpack.c.b16 %v1108, %v1107
      %v1268 = vpack.c.b16 %v1110, %v1109
      %v1269 = vpack.c.b16 %v1112, %v1111
      %v1270 = vpack.c.b16 %v1114, %v1113
      %v1271 = vpack.c.b16 %v1116, %v1115
      %v1272 = vpack.c.b16 %v1118, %v1117
      %v1273 = vpack.c.b16 %v1120, %v1119
      %v1274 = vpack.c.b16 %v1122, %v1121
      %v1275 = vpack.c.b16 %v1124, %v1123
      %v1276 = vpack.c.b16 %v1126, %v1125
      %v1277 = vpack.c.b16 %v1128, %v1127
      %v1278 = vpack.c.b16 %v1130, %v1129
      %v1279 = vpack.c.b16 %v1132, %v1131
      %v1280 = vpack.c.b16 %v1134, %v1133
      %v1281 = vpack.c.b16 %v1136, %v1135
      %v1282 = vpack.c.b16 %v1138, %v1137
      %v1283 = vpack.c.b16 %v1140, %v1139
      %v1284 = vpack.c.b16 %v1142, %v1141
      %v1285 = vpack.c.b16 %v1144, %v1143
      %v1286 = vpack.c.b16 %v1146, %v1145
      %v1287 = vpack.c.b16 %v1148, %v1147
      %v1288 = vpack.c.b16 %v1150, %v1149
      %v1289 = vpack.c.b16 %v1152, %v1151
      %v1290 = vpack.c.b16 %v1154, %v1153
      %v1291 = vpack.c.b16 %v1156, %v1155
      %v1292 = vpack.c.b16 %v1158, %v1157
      %v1293 = vpack.c.b16 %v1160, %v1159
      %v1294 = vpack.c.b16 %v1162, %v1161
      %v1295 = vpack.c.b16 %v1164, %v1163
      %v1296 = vpack.c.b16 %v1166, %v1165
      %v1297 = vpack.c.b16 %v1168, %v1167
      %v1298 = vpack.c.b16 %v1170, %v1169
      %1427 = vmatprep.subr.bf16.mxu0 0
      %1428 = vmatpush1.bf16.msra.mxu0 %v1171
      %1429 = vmatprep.subr.bf16.mxu0 0
      %1430 = vmatpush1.bf16.msra.mxu0 %v1172
      %1431 = vmatprep.subr.bf16.mxu0 0
      %1432 = vmatpush1.bf16.msra.mxu0 %v1173
      %1433 = vmatprep.subr.bf16.mxu0 0
      %1434 = vmatpush1.bf16.msra.mxu0 %v1174
      %1435 = vmatprep.subr.bf16.mxu0 0
      %1436 = vmatpush1.bf16.msra.mxu0 %v1175
      %1437 = vmatprep.subr.bf16.mxu0 0
      %1438 = vmatpush1.bf16.msra.mxu0 %v1176
      %1439 = vmatprep.subr.bf16.mxu0 0
      %1440 = vmatpush1.bf16.msra.mxu0 %v1177
      %1441 = vmatprep.subr.bf16.mxu0 0
      %1442 = vmatpush1.bf16.msra.mxu0 %v1178
      %1443 = vmatprep.subr.bf16.mxu0 0
      %1444 = vmatpush1.bf16.msra.mxu0 %v1179
      %1445 = vmatprep.subr.bf16.mxu0 0
      %1446 = vmatpush1.bf16.msra.mxu0 %v1180
      %1447 = vmatprep.subr.bf16.mxu0 0
      %1448 = vmatpush1.bf16.msra.mxu0 %v1181
      %1449 = vmatprep.subr.bf16.mxu0 0
      %1450 = vmatpush1.bf16.msra.mxu0 %v1182
      %1451 = vmatprep.subr.bf16.mxu0 0
      %1452 = vmatpush1.bf16.msra.mxu0 %v1183
      %1453 = vmatprep.subr.bf16.mxu0 0
      %1454 = vmatpush1.bf16.msra.mxu0 %v1184
      %1455 = vmatprep.subr.bf16.mxu0 0
      %1456 = vmatpush1.bf16.msra.mxu0 %v1185
      %1457 = vmatprep.subr.bf16.mxu0 0
      %1458 = vmatpush1.bf16.msra.mxu0 %v1186
      %1459 = vmatprep.mubr.bf16.mxu0 %v582
      %1460 = vmatmul.mubr.bf16.gmra.mrb[0].mxu0 %v568
      %v1461 = vpop.f32.mrb[0].mxu0
      %v1462 = vadd.f32 0.0, %v1461
      %v1463 = vpop.f32.mrb[0].mxu0
      %v1464 = vpop.f32.mrb[0].mxu0
      %v1465 = vpop.f32.mrb[0].mxu0
      %1466 = vdwg.mxu0
      %1467 = vmatprep.subr.bf16.mxu0 0
      %1468 = vmatpush1.bf16.msra.mxu0 %v1187
      %1469 = vmatprep.subr.bf16.mxu0 0
      %1470 = vmatpush1.bf16.msra.mxu0 %v1188
      %1471 = vmatprep.subr.bf16.mxu0 0
      %1472 = vmatpush1.bf16.msra.mxu0 %v1189
      %1473 = vmatprep.subr.bf16.mxu0 0
      %1474 = vmatpush1.bf16.msra.mxu0 %v1190
      %1475 = vmatprep.subr.bf16.mxu0 0
      %1476 = vmatpush1.bf16.msra.mxu0 %v1191
      %1477 = vmatprep.subr.bf16.mxu0 0
      %1478 = vmatpush1.bf16.msra.mxu0 %v1192
      %1479 = vmatprep.subr.bf16.mxu0 0
      %1480 = vmatpush1.bf16.msra.mxu0 %v1193
      %1481 = vmatprep.subr.bf16.mxu0 0
      %1482 = vmatpush1.bf16.msra.mxu0 %v1194
      %1483 = vmatprep.subr.bf16.mxu0 0
      %1484 = vmatpush1.bf16.msra.mxu0 %v1195
      %1485 = vmatprep.subr.bf16.mxu0 0
      %1486 = vmatpush1.bf16.msra.mxu0 %v1196
      %1487 = vmatprep.subr.bf16.mxu0 0
      %1488 = vmatpush1.bf16.msra.mxu0 %v1197
      %1489 = vmatprep.subr.bf16.mxu0 0
      %1490 = vmatpush1.bf16.msra.mxu0 %v1198
      %1491 = vmatprep.subr.bf16.mxu0 0
      %1492 = vmatpush1.bf16.msra.mxu0 %v1199
      %1493 = vmatprep.subr.bf16.mxu0 0
      %1494 = vmatpush1.bf16.msra.mxu0 %v1200
      %1495 = vmatprep.subr.bf16.mxu0 0
      %1496 = vmatpush1.bf16.msra.mxu0 %v1201
      %1497 = vmatprep.subr.bf16.mxu0 0
      %1498 = vmatpush1.bf16.msra.mxu0 %v1202
      %1499 = vmatprep.mubr.bf16.mxu0 %v592
      %1500 = vmatmul.mubr.bf16.gmra.mrb[0].mxu0 %v590
      %v1501 = vpop.f32.mrb[0].mxu0
      %v1502 = vadd.f32 %v1462, %v1501
      %v1503 = vpop.f32.mrb[0].mxu0
      %v1504 = vpop.f32.mrb[0].mxu0
      %v1505 = vpop.f32.mrb[0].mxu0
      %1506 = vdwg.mxu0
      %1507 = vmatprep.subr.bf16.mxu0 0
      %1508 = vmatpush1.bf16.msra.mxu0 %v1203
      %1509 = vmatprep.subr.bf16.mxu0 0
      %1510 = vmatpush1.bf16.msra.mxu0 %v1204
      %1511 = vmatprep.subr.bf16.mxu0 0
      %1512 = vmatpush1.bf16.msra.mxu0 %v1205
      %1513 = vmatprep.subr.bf16.mxu0 0
      %1514 = vmatpush1.bf16.msra.mxu0 %v1206
      %1515 = vmatprep.subr.bf16.mxu0 0
      %1516 = vmatpush1.bf16.msra.mxu0 %v1207
      %1517 = vmatprep.subr.bf16.mxu0 0
      %1518 = vmatpush1.bf16.msra.mxu0 %v1208
      %1519 = vmatprep.subr.bf16.mxu0 0
      %1520 = vmatpush1.bf16.msra.mxu0 %v1209
      %1521 = vmatprep.subr.bf16.mxu0 0
      %1522 = vmatpush1.bf16.msra.mxu0 %v1210
      %1523 = vmatprep.subr.bf16.mxu0 0
      %1524 = vmatpush1.bf16.msra.mxu0 %v1211
      %1525 = vmatprep.subr.bf16.mxu0 0
      %1526 = vmatpush1.bf16.msra.mxu0 %v1212
      %1527 = vmatprep.subr.bf16.mxu0 0
      %1528 = vmatpush1.bf16.msra.mxu0 %v1213
      %1529 = vmatprep.subr.bf16.mxu0 0
      %1530 = vmatpush1.bf16.msra.mxu0 %v1214
      %1531 = vmatprep.subr.bf16.mxu0 0
      %1532 = vmatpush1.bf16.msra.mxu0 %v1215
      %1533 = vmatprep.subr.bf16.mxu0 0
      %1534 = vmatpush1.bf16.msra.mxu0 %v1216
      %1535 = vmatprep.subr.bf16.mxu0 0
      %1536 = vmatpush1.bf16.msra.mxu0 %v1217
      %1537 = vmatprep.subr.bf16.mxu0 0
      %1538 = vmatpush1.bf16.msra.mxu0 %v1218
      %1539 = vmatprep.mubr.bf16.mxu0 %v589
      %1540 = vmatmul.mubr.bf16.gmra.mrb[0].mxu0 %v575
      %v1541 = vpop.f32.mrb[0].mxu0
      %v1542 = vadd.f32 %v1502, %v1541
      %v1543 = vpop.f32.mrb[0].mxu0
      %v1544 = vpop.f32.mrb[0].mxu0
      %v1545 = vpop.f32.mrb[0].mxu0
      %1546 = vdwg.mxu0
      %1547 = vmatprep.subr.bf16.mxu0 0
      %1548 = vmatpush1.bf16.msra.mxu0 %v1219
      %1549 = vmatprep.subr.bf16.mxu0 0
      %1550 = vmatpush1.bf16.msra.mxu0 %v1220
      %1551 = vmatprep.subr.bf16.mxu0 0
      %1552 = vmatpush1.bf16.msra.mxu0 %v1221
      %1553 = vmatprep.subr.bf16.mxu0 0
      %1554 = vmatpush1.bf16.msra.mxu0 %v1222
      %1555 = vmatprep.subr.bf16.mxu0 0
      %1556 = vmatpush1.bf16.msra.mxu0 %v1223
      %1557 = vmatprep.subr.bf16.mxu0 0
      %1558 = vmatpush1.bf16.msra.mxu0 %v1224
      %1559 = vmatprep.subr.bf16.mxu0 0
      %1560 = vmatpush1.bf16.msra.mxu0 %v1225
      %1561 = vmatprep.subr.bf16.mxu0 0
      %1562 = vmatpush1.bf16.msra.mxu0 %v1226
      %1563 = vmatprep.subr.bf16.mxu0 0
      %1564 = vmatpush1.bf16.msra.mxu0 %v1227
      %1565 = vmatprep.subr.bf16.mxu0 0
      %1566 = vmatpush1.bf16.msra.mxu0 %v1228
      %1567 = vmatprep.subr.bf16.mxu0 0
      %1568 = vmatpush1.bf16.msra.mxu0 %v1229
      %1569 = vmatprep.subr.bf16.mxu0 0
      %1570 = vmatpush1.bf16.msra.mxu0 %v1230
      %1571 = vmatprep.subr.bf16.mxu0 0
      %1572 = vmatpush1.bf16.msra.mxu0 %v1231
      %1573 = vmatprep.subr.bf16.mxu0 0
      %1574 = vmatpush1.bf16.msra.mxu0 %v1232
      %1575 = vmatprep.subr.bf16.mxu0 0
      %1576 = vmatpush1.bf16.msra.mxu0 %v1233
      %1577 = vmatprep.subr.bf16.mxu0 0
      %1578 = vmatpush1.bf16.msra.mxu0 %v1234
      %1579 = vmatprep.mubr.bf16.mxu0 %v593
      %1580 = vmatmul.mubr.bf16.gmra.mrb[0].mxu0 %v591
      %v1581 = vpop.f32.mrb[0].mxu0
      %v1582 = vadd.f32 %v1542, %v1581
      %v1583 = vpop.f32.mrb[0].mxu0
      %v1584 = vpop.f32.mrb[0].mxu0
      %v1585 = vpop.f32.mrb[0].mxu0
      %1586 = vdwg.mxu0
      %1587 = vmatprep.subr.bf16.mxu0 0
      %1588 = vmatpush1.bf16.msra.mxu0 %v1235
      %1589 = vmatprep.subr.bf16.mxu0 0
      %1590 = vmatpush1.bf16.msra.mxu0 %v1236
      %1591 = vmatprep.subr.bf16.mxu0 0
      %1592 = vmatpush1.bf16.msra.mxu0 %v1237
      %1593 = vmatprep.subr.bf16.mxu0 0
      %1594 = vmatpush1.bf16.msra.mxu0 %v1238
      %1595 = vmatprep.subr.bf16.mxu0 0
      %1596 = vmatpush1.bf16.msra.mxu0 %v1239
      %1597 = vmatprep.subr.bf16.mxu0 0
      %1598 = vmatpush1.bf16.msra.mxu0 %v1240
      %1599 = vmatprep.subr.bf16.mxu0 0
      %1600 = vmatpush1.bf16.msra.mxu0 %v1241
      %1601 = vmatprep.subr.bf16.mxu0 0
      %1602 = vmatpush1.bf16.msra.mxu0 %v1242
      %1603 = vmatprep.subr.bf16.mxu0 0
      %1604 = vmatpush1.bf16.msra.mxu0 %v1243
      %1605 = vmatprep.subr.bf16.mxu0 0
      %1606 = vmatpush1.bf16.msra.mxu0 %v1244
      %1607 = vmatprep.subr.bf16.mxu0 0
      %1608 = vmatpush1.bf16.msra.mxu0 %v1245
      %1609 = vmatprep.subr.bf16.mxu0 0
      %1610 = vmatpush1.bf16.msra.mxu0 %v1246
      %1611 = vmatprep.subr.bf16.mxu0 0
      %1612 = vmatpush1.bf16.msra.mxu0 %v1247
      %1613 = vmatprep.subr.bf16.mxu0 0
      %1614 = vmatpush1.bf16.msra.mxu0 %v1248
      %1615 = vmatprep.subr.bf16.mxu0 0
      %1616 = vmatpush1.bf16.msra.mxu0 %v1249
      %1617 = vmatprep.subr.bf16.mxu0 0
      %1618 = vmatpush1.bf16.msra.mxu0 %v1250
      %1619 = vmatprep.mubr.bf16.mxu0 %v631
      %1620 = vmatmul.mubr.bf16.gmra.mrb[0].mxu0 %v617
      %v1621 = vpop.f32.mrb[0].mxu0
      %v1622 = vadd.f32 %v1582, %v1621
      %v1623 = vpop.f32.mrb[0].mxu0
      %v1624 = vpop.f32.mrb[0].mxu0
      %v1625 = vpop.f32.mrb[0].mxu0
      %1626 = vdwg.mxu0
      %1627 = vmatprep.subr.bf16.mxu0 0
      %1628 = vmatpush1.bf16.msra.mxu0 %v1251
      %1629 = vmatprep.subr.bf16.mxu0 0
      %1630 = vmatpush1.bf16.msra.mxu0 %v1252
      %1631 = vmatprep.subr.bf16.mxu0 0
      %1632 = vmatpush1.bf16.msra.mxu0 %v1253
      %1633 = vmatprep.subr.bf16.mxu0 0
      %1634 = vmatpush1.bf16.msra.mxu0 %v1254
      %1635 = vmatprep.subr.bf16.mxu0 0
      %1636 = vmatpush1.bf16.msra.mxu0 %v1255
      %1637 = vmatprep.subr.bf16.mxu0 0
      %1638 = vmatpush1.bf16.msra.mxu0 %v1256
      %1639 = vmatprep.subr.bf16.mxu0 0
      %1640 = vmatpush1.bf16.msra.mxu0 %v1257
      %1641 = vmatprep.subr.bf16.mxu0 0
      %1642 = vmatpush1.bf16.msra.mxu0 %v1258
      %1643 = vmatprep.subr.bf16.mxu0 0
      %1644 = vmatpush1.bf16.msra.mxu0 %v1259
      %1645 = vmatprep.subr.bf16.mxu0 0
      %1646 = vmatpush1.bf16.msra.mxu0 %v1260
      %1647 = vmatprep.subr.bf16.mxu0 0
      %1648 = vmatpush1.bf16.msra.mxu0 %v1261
      %1649 = vmatprep.subr.bf16.mxu0 0
      %1650 = vmatpush1.bf16.msra.mxu0 %v1262
      %1651 = vmatprep.subr.bf16.mxu0 0
      %1652 = vmatpush1.bf16.msra.mxu0 %v1263
      %1653 = vmatprep.subr.bf16.mxu0 0
      %1654 = vmatpush1.bf16.msra.mxu0 %v1264
      %1655 = vmatprep.subr.bf16.mxu0 0
      %1656 = vmatpush1.bf16.msra.mxu0 %v1265
      %1657 = vmatprep.subr.bf16.mxu0 0
      %1658 = vmatpush1.bf16.msra.mxu0 %v1266
      %1659 = vmatprep.mubr.bf16.mxu0 %v641
      %1660 = vmatmul.mubr.bf16.gmra.mrb[0].mxu0 %v639
      %v1661 = vpop.f32.mrb[0].mxu0
      %v1662 = vadd.f32 %v1622, %v1661
      %v1663 = vpop.f32.mrb[0].mxu0
      %v1664 = vpop.f32.mrb[0].mxu0
      %v1665 = vpop.f32.mrb[0].mxu0
      %1666 = vdwg.mxu0
      %1667 = vmatprep.subr.bf16.mxu0 0
      %1668 = vmatpush1.bf16.msra.mxu0 %v1267
      %1669 = vmatprep.subr.bf16.mxu0 0
      %1670 = vmatpush1.bf16.msra.mxu0 %v1268
      %1671 = vmatprep.subr.bf16.mxu0 0
      %1672 = vmatpush1.bf16.msra.mxu0 %v1269
      %1673 = vmatprep.subr.bf16.mxu0 0
      %1674 = vmatpush1.bf16.msra.mxu0 %v1270
      %1675 = vmatprep.subr.bf16.mxu0 0
      %1676 = vmatpush1.bf16.msra.mxu0 %v1271
      %1677 = vmatprep.subr.bf16.mxu0 0
      %1678 = vmatpush1.bf16.msra.mxu0 %v1272
      %1679 = vmatprep.subr.bf16.mxu0 0
      %1680 = vmatpush1.bf16.msra.mxu0 %v1273
      %1681 = vmatprep.subr.bf16.mxu0 0
      %1682 = vmatpush1.bf16.msra.mxu0 %v1274
      %1683 = vmatprep.subr.bf16.mxu0 0
      %1684 = vmatpush1.bf16.msra.mxu0 %v1275
      %1685 = vmatprep.subr.bf16.mxu0 0
      %1686 = vmatpush1.bf16.msra.mxu0 %v1276
      %1687 = vmatprep.subr.bf16.mxu0 0
      %1688 = vmatpush1.bf16.msra.mxu0 %v1277
      %1689 = vmatprep.subr.bf16.mxu0 0
      %1690 = vmatpush1.bf16.msra.mxu0 %v1278
      %1691 = vmatprep.subr.bf16.mxu0 0
      %1692 = vmatpush1.bf16.msra.mxu0 %v1279
      %1693 = vmatprep.subr.bf16.mxu0 0
      %1694 = vmatpush1.bf16.msra.mxu0 %v1280
      %1695 = vmatprep.subr.bf16.mxu0 0
      %1696 = vmatpush1.bf16.msra.mxu0 %v1281
      %1697 = vmatprep.subr.bf16.mxu0 0
      %1698 = vmatpush1.bf16.msra.mxu0 %v1282
      %1699 = vmatprep.mubr.bf16.mxu0 %v638
      %1700 = vmatmul.mubr.bf16.gmra.mrb[0].mxu0 %v624
      %v1701 = vpop.f32.mrb[0].mxu0
      %v1702 = vadd.f32 %v1662, %v1701
      %v1703 = vpop.f32.mrb[0].mxu0
      %v1704 = vpop.f32.mrb[0].mxu0
      %v1705 = vpop.f32.mrb[0].mxu0
      %1706 = vdwg.mxu0
      %1707 = vmatprep.subr.bf16.mxu0 0
      %1708 = vmatpush1.bf16.msra.mxu0 %v1283
      %1709 = vmatprep.subr.bf16.mxu0 0
      %1710 = vmatpush1.bf16.msra.mxu0 %v1284
      %1711 = vmatprep.subr.bf16.mxu0 0
      %1712 = vmatpush1.bf16.msra.mxu0 %v1285
      %1713 = vmatprep.subr.bf16.mxu0 0
      %1714 = vmatpush1.bf16.msra.mxu0 %v1286
      %1715 = vmatprep.subr.bf16.mxu0 0
      %1716 = vmatpush1.bf16.msra.mxu0 %v1287
      %1717 = vmatprep.subr.bf16.mxu0 0
      %1718 = vmatpush1.bf16.msra.mxu0 %v1288
      %1719 = vmatprep.subr.bf16.mxu0 0
      %1720 = vmatpush1.bf16.msra.mxu0 %v1289
      %1721 = vmatprep.subr.bf16.mxu0 0
      %1722 = vmatpush1.bf16.msra.mxu0 %v1290
      %1723 = vmatprep.subr.bf16.mxu0 0
      %1724 = vmatpush1.bf16.msra.mxu0 %v1291
      %1725 = vmatprep.subr.bf16.mxu0 0
      %1726 = vmatpush1.bf16.msra.mxu0 %v1292
      %1727 = vmatprep.subr.bf16.mxu0 0
      %1728 = vmatpush1.bf16.msra.mxu0 %v1293
      %1729 = vmatprep.subr.bf16.mxu0 0
      %1730 = vmatpush1.bf16.msra.mxu0 %v1294
      %1731 = vmatprep.subr.bf16.mxu0 0
      %1732 = vmatpush1.bf16.msra.mxu0 %v1295
      %1733 = vmatprep.subr.bf16.mxu0 0
      %1734 = vmatpush1.bf16.msra.mxu0 %v1296
      %1735 = vmatprep.subr.bf16.mxu0 0
      %1736 = vmatpush1.bf16.msra.mxu0 %v1297
      %1737 = vmatprep.subr.bf16.mxu0 0
      %1738 = vmatpush1.bf16.msra.mxu0 %v1298
      %1739 = vmatprep.mubr.bf16.mxu0 %v642
      %1740 = vmatmul.mubr.bf16.gmra.mrb[0].mxu0 %v640
      %v1741 = vpop.f32.mrb[0].mxu0
      %v1742 = vadd.f32 %v1702, %v1741
      %v1743 = vpop.f32.mrb[0].mxu0
      %v1744 = vpop.f32.mrb[0].mxu0
      %v1745 = vpop.f32.mrb[0].mxu0
      %1746 = vdwg.mxu0
      %v1747 = vadd.f32 %v284, %v1742
      %vm1748 = vcmask 517120
      %1749 = vst.msk [vmem:[#allocation2] sm:$0x3] %vm1748, %v1747
      %p1750 = scmp.eq.s32.totalorder %s20, 7
      // Predicated region
      $region41: #{cnn_forward.5} parent=35 // pred_check
        %p1751 = pneg %p1750
      $region42: #{cnn_forward.5} parent=35 // pred_check_branch
        %1753 = sbr.rel (%p1751) target = $region44
      $region43: #{cnn_forward.5} parent=35 // pred_region
        %v1754 = vld [vmem:[#allocation2] sm:$0x3]
        %v1755 = vld [vmem:[%s267] sm:$0x1]
        %v1757 = vlaneseq
        %v1758 = vshrl.u32 %v1757, 7
        %v1759 = vsub.s32 0, %v1758
        %v1760 = vrot.slane %v1755, %v1759
        %v1762 = vadd.f32 %v1754, %v1760
        %v1763 = vmax.f32 %v1762, 0.0
        %v1764 = vld [vmem:[%s272] sm:$0xff]
        %v1765 = vld [vmem:[%s272 + $0x8] sm:$0xff]
        %v1766 = vld [vmem:[%s272 + $0x10] sm:$0xff]
        %v1767 = vld [vmem:[%s272 + $0x18] sm:$0xff]
        %v1768 = vld [vmem:[%s272 + $0x20] sm:$0xff]
        %v1769 = vld [vmem:[%s272 + $0x28] sm:$0xff]
        %v1770 = vld [vmem:[%s272 + $0x30] sm:$0xff]
        %v1771 = vld [vmem:[%s272 + $0x38] sm:$0xff]
        %vm1772 = vcmask 523264
        %v1774 = vsel %vm1772, %v1763, 0
        %1776 = vmatprep.subr.mxu0 0.0
        %1777 = vmatpush1.msra.mxu0 %v1764
        %1778 = vmatprep.subr.mxu0 0.0
        %1779 = vmatpush1.msra.mxu0 %v1765
        %1780 = vmatprep.subr.mxu0 0.0
        %1781 = vmatpush1.msra.mxu0 %v1766
        %1782 = vmatprep.subr.mxu0 0.0
        %1783 = vmatpush1.msra.mxu0 %v1767
        %1784 = vmatprep.subr.mxu0 0.0
        %1785 = vmatpush1.msra.mxu0 %v1768
        %1786 = vmatprep.subr.mxu0 0.0
        %1787 = vmatpush1.msra.mxu0 %v1769
        %1788 = vmatprep.subr.mxu0 0.0
        %1789 = vmatpush1.msra.mxu0 %v1770
        %1790 = vmatprep.subr.mxu0 0.0
        %1791 = vmatpush1.msra.mxu0 %v1771
        %1792 = vmatprep.subr.mxu0 0.0
        %1793 = vmatpush1.msra.mxu0 0.0
        %1794 = vmatprep.subr.mxu0 0.0
        %1795 = vmatpush1.msra.mxu0 0.0
        %1796 = vmatprep.subr.mxu0 0.0
        %1797 = vmatpush1.msra.mxu0 0.0
        %1798 = vmatprep.subr.mxu0 0.0
        %1799 = vmatpush1.msra.mxu0 0.0
        %1800 = vmatprep.subr.mxu0 0.0
        %1801 = vmatpush1.msra.mxu0 0.0
        %1802 = vmatprep.subr.mxu0 0.0
        %1803 = vmatpush1.msra.mxu0 0.0
        %1804 = vmatprep.subr.mxu0 0.0
        %1805 = vmatpush1.msra.mxu0 0.0
        %1806 = vmatprep.subr.mxu0 0.0
        %1807 = vmatpush1.msra.mxu0 0.0
        %1808 = vmatprep.subr.mxu0 0.0
        %1809 = vmatpush1.msra.mxu0 0.0
        %1810 = vmatprep.subr.mxu0 0.0
        %1811 = vmatpush1.msra.mxu0 0.0
        %1812 = vmatprep.subr.mxu0 0.0
        %1813 = vmatpush1.msra.mxu0 0.0
        %1814 = vmatprep.subr.mxu0 0.0
        %1815 = vmatpush1.msra.mxu0 0.0
        %1816 = vmatprep.subr.mxu0 0.0
        %1817 = vmatpush1.msra.mxu0 0.0
        %1818 = vmatprep.subr.mxu0 0.0
        %1819 = vmatpush1.msra.mxu0 0.0
        %1820 = vmatprep.subr.mxu0 0.0
        %1821 = vmatpush1.msra.mxu0 0.0
        %1822 = vmatprep.subr.mxu0 0.0
        %1823 = vmatpush1.msra.mxu0 0.0
        %1824 = vmatprep.subr.mxu0 0.0
        %1825 = vmatpush1.msra.mxu0 0.0
        %1826 = vmatprep.subr.mxu0 0.0
        %1827 = vmatpush1.msra.mxu0 0.0
        %1828 = vmatprep.subr.mxu0 0.0
        %1829 = vmatpush1.msra.mxu0 0.0
        %1830 = vmatprep.subr.mxu0 0.0
        %1831 = vmatpush1.msra.mxu0 0.0
        %1832 = vmatprep.subr.mxu0 0.0
        %1833 = vmatpush1.msra.mxu0 0.0
        %1834 = vmatprep.subr.mxu0 0.0
        %1835 = vmatpush1.msra.mxu0 0.0
        %1836 = vmatprep.subr.mxu0 0.0
        %1837 = vmatpush1.msra.mxu0 0.0
        %1838 = vmatprep.subr.mxu0 0.0
        %1839 = vmatpush1.msra.mxu0 0.0
        %1840 = vmatprep.mubr.f32.mxu0 0.0
        %1841 = vmatmul.mubr.f32.gmra.mrb[0].mxu0 %v1774
        %v1842 = vpop.f32.mrb[0].mxu0
        %v1843 = vadd.f32 0.0, %v1842
        %v1844 = vpop.f32.mrb[0].mxu0
        %1845 = vdwg.mxu0
        %vm1846 = vcmask 25600
        %1847 = vst.msk [vmem:[%s276] sm:$0x3] %vm1846, %v1843
      $region44: #{cnn_forward.5} parent=35 // pred_fallthru
        _
      %p1848 = scmp.lt.s32.totalorder %s19, 1
      %s1849 = scalar_select %p1848, %s19, 1
      %s1850 = smul.addr %s1849, 2
      %s1851 = scalar_lea.vmem %s4, %s1850
      // Predicated region
      $region45: #{cnn_forward.5} parent=35 // pred_check
        %p1852 = pneg %p151
      $region46: #{cnn_forward.5} parent=35 // pred_check_branch
        %1854 = sbr.rel (%p1852) target = $region48
      $region47: #{cnn_forward.5} parent=35 // pred_region
        _
      $region48: #{cnn_forward.5} parent=35 // pred_fallthru
        _
    $region36: #{cnn_forward.5} parent=5 // pred_fallthru
      _
    %p1855 = scmp.le.s32.totalorder 2, %s10
    // Predicated region
    $region49: #{cnn_forward.5} parent=5 // pred_check
      %p1856 = pneg %p1855
    $region50: #{cnn_forward.5} parent=5 // pred_check_branch
      %1858 = sbr.rel (%p1856) target = $region52
    $region51: #{cnn_forward.5} parent=5 // pred_region
      %s1859 = ssub.s32 %s10, 2
      // Predicated region
      $region53: #{cnn_forward.5} parent=51 // pred_check
        %p1860 = pneg %p157
      $region54: #{cnn_forward.5} parent=51 // pred_check_branch
        %1862 = sbr.rel (%p1860) target = $region56
      $region55: #{cnn_forward.5} parent=51 // pred_region
        %p1863 = scmp.lt.s32.totalorder %s21, 1
        %s1864 = scalar_select %p1863, %s21, 1
        %s1865 = smul.addr %s1864, 2
        %s1866 = scalar_lea.vmem %s4, %s1865
      $region56: #{cnn_forward.5} parent=51 // pred_fallthru
        _
    $region52: #{cnn_forward.5} parent=5 // pred_fallthru
      _
  $region6: #{cnn_forward.5} parent=0 // loop_footer
    %s14 = sadd.s32 1, %s10
  $region7: #{cnn_forward.5} parent=0 // loop_footer_branch
    %9 = sbr.rel target = $region3
  $region8: #{cnn_forward.5} parent=0 // loop_exit
    _

</llo_original>
